<compile_context>
chip_gen: v7x
topology: tpu7x:2x2x1
jax: 0.10.0
libtpu: 0.0.40
codegen_flags: <defaults>
</compile_context>

<pallas_src>
import numpy as np
import jax
import jax.numpy as jnp
from jax.experimental import pallas as pl
from jax.experimental.pallas import tpu as pltpu


def make_bicubic_taps(scale_factor, a=-0.75):
    """Same math as the PyTorch module's __init__: (s, 4) tap weights."""
    cubic = np.array(
        [[0.0, a, -2.0 * a, a],
         [1.0, 0.0, -(a + 3.0), a + 2.0],
         [0.0, -a, 2.0 * a + 3.0, -(a + 2.0)],
         [0.0, 0.0, a, -a]], dtype=np.float32)
    taps = []
    for d in range(scale_factor):
        t = 1.0 * d / scale_factor
        taps.append(cubic @ np.array([1.0, t, t * t, t ** 3], dtype=np.float32))
    return np.stack(taps).astype(np.float32)  # (s, 4)


def make_banded_operators(h, w, s, a=-0.75):
    """Constant banded matrices folding taps + replicate pad + phase interleave.

    out_plane = A @ x_plane @ B, shape (h*s, w*s), already interleaved.
    """
    K = make_bicubic_taps(s, a)
    A = np.zeros((h * s, h), dtype=np.float32)
    for i in range(h):
        for pi in range(s):
            for aa in range(4):
                A[i * s + pi, min(max(i + aa - 1, 0), h - 1)] += K[pi, aa]
    B = np.zeros((w, w * s), dtype=np.float32)
    for j in range(w):
        for pj in range(s):
            for bb in range(4):
                B[min(max(j + bb - 1, 0), w - 1), j * s + pj] += K[pj, bb]
    return A, B


def _choose_tiles(num_planes, h, w, s, itemsize):
    """Pick (planes per block, out-row tile, out-col tile).

    Conservative VMEM budget (~12 MiB double-buffered in+out) so it fits v7x's
    64 MiB VMEM with the default scoped limit; v5e/v6e (128 MiB) get headroom.
    Out-col tile stays a multiple of 128 (lane-dense stores) for large frames.
    """
    hs, ws = h * s, w * s
    tws = ws if ws <= 512 else 512            # full width or multiple of 128
    ths = hs if hs <= 256 else 256            # full height or multiple of 8
    budget = 12 << 20
    per_plane = 2 * itemsize * (h * w + ths * tws) + 4 * (ths * h + w * tws)
    pb = int(max(1, min(8, budget // max(per_plane, 1))))
    while num_planes % pb:                    # keep the grid exactly divisible
        pb -= 1
    return pb, ths, tws


def bicubic_upsample(x, scale_factor=4, a=-0.75):
    n, c, h, w = x.shape
    s = scale_factor
    hs, ws = h * s, w * s
    num_planes = n * c

    A_np, B_np = make_banded_operators(h, w, s, a)
    A = jnp.asarray(A_np)                                # (hs, h)
    B = jnp.asarray(B_np)                                # (w, ws)

    pb, ths, tws = _choose_tiles(num_planes, h, w, s, jnp.dtype(x.dtype).itemsize)
    grid = (num_planes // pb, pl.cdiv(hs, ths), pl.cdiv(ws, tws))

    x_flat = x.reshape(num_planes, h, w)                 # metadata-only reshape

    def kernel(a_ref, b_ref, x_ref, o_ref):
        a_mat = a_ref[...]                               # (ths, h)
        b_mat = b_ref[...]                               # (w, tws)
        for p in range(pb):                              # small, unrolled
            xp = x_ref[p].astype(jnp.float32)            # (h, w)
            t = jnp.dot(a_mat, xp,
                        precision=jax.lax.Precision.HIGHEST,
                        preferred_element_type=jnp.float32)          # (ths, w)
            o_ref[p] = jnp.dot(t, b_mat,
                               precision=jax.lax.Precision.HIGHEST,
                               preferred_element_type=jnp.float32
                               ).astype(o_ref.dtype)                 # (ths, tws)

    out_flat = pl.pallas_call(
        kernel,
        out_shape=jax.ShapeDtypeStruct((num_planes, hs, ws), x.dtype),
        grid=grid,
        in_specs=[
            # Row tile of A: changes only with the out-row grid index.
            pl.BlockSpec((ths, h), lambda p, i, j: (i, 0)),
            # Column tile of B: changes only with the out-col grid index.
            pl.BlockSpec((w, tws), lambda p, i, j: (0, j)),
            # Input planes: re-DMA'd only when the plane index changes.
            pl.BlockSpec((pb, h, w), lambda p, i, j: (p, 0, 0)),
        ],
        out_specs=pl.BlockSpec((pb, ths, tws), lambda p, i, j: (p, i, j)),
        compiler_params=pltpu.CompilerParams(
            dimension_semantics=("parallel", "parallel", "parallel")),
    )(A, B, x_flat)

    # Only a metadata-only reshape remains: (n*c, h*s, w*s) -> (n, c, h*s, w*s).
    return out_flat.reshape(n, c, hs, ws)


def reference_numpy(x, scale_factor=4, a=-0.75):
    """Pure-numpy reference reproducing the PyTorch forward semantics."""
    K = make_bicubic_taps(scale_factor, a)
    s = scale_factor
    xn = np.asarray(x, dtype=np.float32)
    n, c, h, w = xn.shape
    xp = np.pad(xn, ((0, 0), (0, 0), (1, 2), (1, 2)), mode="edge")
    out = np.zeros((n, c, h * s, w * s), dtype=np.float32)
    for pi in range(s):
        for pj in range(s):
            acc = np.zeros((n, c, h, w), dtype=np.float32)
            for aa in range(4):
                for bb in range(4):
                    acc += K[pi, aa] * K[pj, bb] * xp[:, :, aa:aa + h, bb:bb + w]
            out[:, :, pi::s, pj::s] = acc
    return out


if __name__ == "__main__":
    key = jax.random.PRNGKey(0)
    x = jax.random.normal(key, (2, 4, 16, 16), dtype=jnp.float32)

    y = jax.block_until_ready(bicubic_upsample(x, scale_factor=4))

    y_ref = reference_numpy(np.asarray(x), scale_factor=4)
    assert y.shape == (2, 4, 64, 64), y.shape
    # f32 MXU matmul; small margin left for multi-pass MXU decomposition.
    np.testing.assert_allclose(np.asarray(y), y_ref, rtol=2e-3, atol=2e-3)
    print("KERNEL_OK")
</pallas_src>

<mosaic_0001>
module attributes {stable_mosaic.version = 11 : i64} {
  func.func @kernel(%arg0: i32, %arg1: i32, %arg2: i32, %arg3: memref<64x16xf32, #tpu.memory_space<vmem>>, %arg4: memref<16x64xf32, #tpu.memory_space<vmem>>, %arg5: memref<8x16x16xf32, #tpu.memory_space<vmem>>, %arg6: memref<8x64x64xf32, #tpu.memory_space<vmem>>) attributes {dimension_semantics = [#tpu.dimension_semantics<parallel>, #tpu.dimension_semantics<parallel>, #tpu.dimension_semantics<parallel>], iteration_bounds = array<i64: 1, 1, 1>, scalar_prefetch = 0 : i64, scratch_operands = 0 : i64, tpu.core_type = #tpu.core_type<tc>, window_params = [{transform_indices = @transform_0, window_bounds = array<i64: 64, 16>}, {transform_indices = @transform_1, window_bounds = array<i64: 16, 64>}, {transform_indices = @transform_2, window_bounds = array<i64: 8, 16, 16>}, {transform_indices = @transform_3, window_bounds = array<i64: 8, 64, 64>}]} {
    %c0 = arith.constant 0 : index
    %c0_0 = arith.constant 0 : index
    %0 = vector.load %arg3[%c0, %c0_0] : memref<64x16xf32, #tpu.memory_space<vmem>>, vector<64x16xf32>
    %c0_1 = arith.constant 0 : index
    %c0_2 = arith.constant 0 : index
    %1 = vector.load %arg4[%c0_1, %c0_2] : memref<16x64xf32, #tpu.memory_space<vmem>>, vector<16x64xf32>
    %c0_3 = arith.constant 0 : index
    %c0_4 = arith.constant 0 : index
    %c0_5 = arith.constant 0 : index
    %2 = vector.load %arg5[%c0_3, %c0_4, %c0_5] : memref<8x16x16xf32, #tpu.memory_space<vmem>>, vector<1x16x16xf32>
    %3 = vector.shape_cast %2 : vector<1x16x16xf32> to vector<16x16xf32>
    %cst = arith.constant dense<0.000000e+00> : vector<64x16xf32>
    %4 = tpu.matmul %0, %3, %cst {dimension_numbers = #tpu.dot_dimension_numbers<[1], [0], [0], [1], [0, 0, 1, 1], [], []>, precision = #tpu.contract_precision<fp32>} : vector<64x16xf32>, vector<16x16xf32>, vector<64x16xf32> -> vector<64x16xf32>
    %cst_6 = arith.constant dense<0.000000e+00> : vector<64x64xf32>
    %5 = tpu.matmul %4, %1, %cst_6 {dimension_numbers = #tpu.dot_dimension_numbers<[1], [0], [0], [1], [0, 0, 1, 1], [], []>, precision = #tpu.contract_precision<fp32>} : vector<64x16xf32>, vector<16x64xf32>, vector<64x64xf32> -> vector<64x64xf32>
    %c0_7 = arith.constant 0 : index
    %c0_8 = arith.constant 0 : index
    %c0_9 = arith.constant 0 : index
    %6 = vector.load %arg6[%c0_7, %c0_8, %c0_9] : memref<8x64x64xf32, #tpu.memory_space<vmem>>, vector<1x64x64xf32>
    %7 = vector.shape_cast %6 : vector<1x64x64xf32> to vector<64x64xf32>
    %8 = vector.shape_cast %5 : vector<64x64xf32> to vector<1x64x64xf32>
    tpu.vector_store %arg6[%c0_7, %c0_8, %c0_9], %8 {strides = array<i32>} : memref<8x64x64xf32, #tpu.memory_space<vmem>>, vector<1x64x64xf32>,
    %c1 = arith.constant 1 : index
    %c0_10 = arith.constant 0 : index
    %c0_11 = arith.constant 0 : index
    %9 = vector.load %arg5[%c1, %c0_10, %c0_11] : memref<8x16x16xf32, #tpu.memory_space<vmem>>, vector<1x16x16xf32>
    %10 = vector.shape_cast %9 : vector<1x16x16xf32> to vector<16x16xf32>
    %cst_12 = arith.constant dense<0.000000e+00> : vector<64x16xf32>
    %11 = tpu.matmul %0, %10, %cst_12 {dimension_numbers = #tpu.dot_dimension_numbers<[1], [0], [0], [1], [0, 0, 1, 1], [], []>, precision = #tpu.contract_precision<fp32>} : vector<64x16xf32>, vector<16x16xf32>, vector<64x16xf32> -> vector<64x16xf32>
    %cst_13 = arith.constant dense<0.000000e+00> : vector<64x64xf32>
    %12 = tpu.matmul %11, %1, %cst_13 {dimension_numbers = #tpu.dot_dimension_numbers<[1], [0], [0], [1], [0, 0, 1, 1], [], []>, precision = #tpu.contract_precision<fp32>} : vector<64x16xf32>, vector<16x64xf32>, vector<64x64xf32> -> vector<64x64xf32>
    %c1_14 = arith.constant 1 : index
    %c0_15 = arith.constant 0 : index
    %c0_16 = arith.constant 0 : index
    %13 = vector.load %arg6[%c1_14, %c0_15, %c0_16] : memref<8x64x64xf32, #tpu.memory_space<vmem>>, vector<1x64x64xf32>
    %14 = vector.shape_cast %13 : vector<1x64x64xf32> to vector<64x64xf32>
    %15 = vector.shape_cast %12 : vector<64x64xf32> to vector<1x64x64xf32>
    tpu.vector_store %arg6[%c1_14, %c0_15, %c0_16], %15 {strides = array<i32>} : memref<8x64x64xf32, #tpu.memory_space<vmem>>, vector<1x64x64xf32>,
    %c2 = arith.constant 2 : index
    %c0_17 = arith.constant 0 : index
    %c0_18 = arith.constant 0 : index
    %16 = vector.load %arg5[%c2, %c0_17, %c0_18] : memref<8x16x16xf32, #tpu.memory_space<vmem>>, vector<1x16x16xf32>
    %17 = vector.shape_cast %16 : vector<1x16x16xf32> to vector<16x16xf32>
    %cst_19 = arith.constant dense<0.000000e+00> : vector<64x16xf32>
    %18 = tpu.matmul %0, %17, %cst_19 {dimension_numbers = #tpu.dot_dimension_numbers<[1], [0], [0], [1], [0, 0, 1, 1], [], []>, precision = #tpu.contract_precision<fp32>} : vector<64x16xf32>, vector<16x16xf32>, vector<64x16xf32> -> vector<64x16xf32>
    %cst_20 = arith.constant dense<0.000000e+00> : vector<64x64xf32>
    %19 = tpu.matmul %18, %1, %cst_20 {dimension_numbers = #tpu.dot_dimension_numbers<[1], [0], [0], [1], [0, 0, 1, 1], [], []>, precision = #tpu.contract_precision<fp32>} : vector<64x16xf32>, vector<16x64xf32>, vector<64x64xf32> -> vector<64x64xf32>
    %c2_21 = arith.constant 2 : index
    %c0_22 = arith.constant 0 : index
    %c0_23 = arith.constant 0 : index
    %20 = vector.load %arg6[%c2_21, %c0_22, %c0_23] : memref<8x64x64xf32, #tpu.memory_space<vmem>>, vector<1x64x64xf32>
    %21 = vector.shape_cast %20 : vector<1x64x64xf32> to vector<64x64xf32>
    %22 = vector.shape_cast %19 : vector<64x64xf32> to vector<1x64x64xf32>
    tpu.vector_store %arg6[%c2_21, %c0_22, %c0_23], %22 {strides = array<i32>} : memref<8x64x64xf32, #tpu.memory_space<vmem>>, vector<1x64x64xf32>,
    %c3 = arith.constant 3 : index
    %c0_24 = arith.constant 0 : index
    %c0_25 = arith.constant 0 : index
    %23 = vector.load %arg5[%c3, %c0_24, %c0_25] : memref<8x16x16xf32, #tpu.memory_space<vmem>>, vector<1x16x16xf32>
    %24 = vector.shape_cast %23 : vector<1x16x16xf32> to vector<16x16xf32>
    %cst_26 = arith.constant dense<0.000000e+00> : vector<64x16xf32>
    %25 = tpu.matmul %0, %24, %cst_26 {dimension_numbers = #tpu.dot_dimension_numbers<[1], [0], [0], [1], [0, 0, 1, 1], [], []>, precision = #tpu.contract_precision<fp32>} : vector<64x16xf32>, vector<16x16xf32>, vector<64x16xf32> -> vector<64x16xf32>
    %cst_27 = arith.constant dense<0.000000e+00> : vector<64x64xf32>
    %26 = tpu.matmul %25, %1, %cst_27 {dimension_numbers = #tpu.dot_dimension_numbers<[1], [0], [0], [1], [0, 0, 1, 1], [], []>, precision = #tpu.contract_precision<fp32>} : vector<64x16xf32>, vector<16x64xf32>, vector<64x64xf32> -> vector<64x64xf32>
    %c3_28 = arith.constant 3 : index
    %c0_29 = arith.constant 0 : index
    %c0_30 = arith.constant 0 : index
    %27 = vector.load %arg6[%c3_28, %c0_29, %c0_30] : memref<8x64x64xf32, #tpu.memory_space<vmem>>, vector<1x64x64xf32>
    %28 = vector.shape_cast %27 : vector<1x64x64xf32> to vector<64x64xf32>
    %29 = vector.shape_cast %26 : vector<64x64xf32> to vector<1x64x64xf32>
    tpu.vector_store %arg6[%c3_28, %c0_29, %c0_30], %29 {strides = array<i32>} : memref<8x64x64xf32, #tpu.memory_space<vmem>>, vector<1x64x64xf32>,
    %c4 = arith.constant 4 : index
    %c0_31 = arith.constant 0 : index
    %c0_32 = arith.constant 0 : index
    %30 = vector.load %arg5[%c4, %c0_31, %c0_32] : memref<8x16x16xf32, #tpu.memory_space<vmem>>, vector<1x16x16xf32>
    %31 = vector.shape_cast %30 : vector<1x16x16xf32> to vector<16x16xf32>
    %cst_33 = arith.constant dense<0.000000e+00> : vector<64x16xf32>
    %32 = tpu.matmul %0, %31, %cst_33 {dimension_numbers = #tpu.dot_dimension_numbers<[1], [0], [0], [1], [0, 0, 1, 1], [], []>, precision = #tpu.contract_precision<fp32>} : vector<64x16xf32>, vector<16x16xf32>, vector<64x16xf32> -> vector<64x16xf32>
    %cst_34 = arith.constant dense<0.000000e+00> : vector<64x64xf32>
    %33 = tpu.matmul %32, %1, %cst_34 {dimension_numbers = #tpu.dot_dimension_numbers<[1], [0], [0], [1], [0, 0, 1, 1], [], []>, precision = #tpu.contract_precision<fp32>} : vector<64x16xf32>, vector<16x64xf32>, vector<64x64xf32> -> vector<64x64xf32>
    %c4_35 = arith.constant 4 : index
    %c0_36 = arith.constant 0 : index
    %c0_37 = arith.constant 0 : index
    %34 = vector.load %arg6[%c4_35, %c0_36, %c0_37] : memref<8x64x64xf32, #tpu.memory_space<vmem>>, vector<1x64x64xf32>
    %35 = vector.shape_cast %34 : vector<1x64x64xf32> to vector<64x64xf32>
    %36 = vector.shape_cast %33 : vector<64x64xf32> to vector<1x64x64xf32>
    tpu.vector_store %arg6[%c4_35, %c0_36, %c0_37], %36 {strides = array<i32>} : memref<8x64x64xf32, #tpu.memory_space<vmem>>, vector<1x64x64xf32>,
    %c5 = arith.constant 5 : index
    %c0_38 = arith.constant 0 : index
    %c0_39 = arith.constant 0 : index
    %37 = vector.load %arg5[%c5, %c0_38, %c0_39] : memref<8x16x16xf32, #tpu.memory_space<vmem>>, vector<1x16x16xf32>
    %38 = vector.shape_cast %37 : vector<1x16x16xf32> to vector<16x16xf32>
    %cst_40 = arith.constant dense<0.000000e+00> : vector<64x16xf32>
    %39 = tpu.matmul %0, %38, %cst_40 {dimension_numbers = #tpu.dot_dimension_numbers<[1], [0], [0], [1], [0, 0, 1, 1], [], []>, precision = #tpu.contract_precision<fp32>} : vector<64x16xf32>, vector<16x16xf32>, vector<64x16xf32> -> vector<64x16xf32>
    %cst_41 = arith.constant dense<0.000000e+00> : vector<64x64xf32>
    %40 = tpu.matmul %39, %1, %cst_41 {dimension_numbers = #tpu.dot_dimension_numbers<[1], [0], [0], [1], [0, 0, 1, 1], [], []>, precision = #tpu.contract_precision<fp32>} : vector<64x16xf32>, vector<16x64xf32>, vector<64x64xf32> -> vector<64x64xf32>
    %c5_42 = arith.constant 5 : index
    %c0_43 = arith.constant 0 : index
    %c0_44 = arith.constant 0 : index
    %41 = vector.load %arg6[%c5_42, %c0_43, %c0_44] : memref<8x64x64xf32, #tpu.memory_space<vmem>>, vector<1x64x64xf32>
    %42 = vector.shape_cast %41 : vector<1x64x64xf32> to vector<64x64xf32>
    %43 = vector.shape_cast %40 : vector<64x64xf32> to vector<1x64x64xf32>
    tpu.vector_store %arg6[%c5_42, %c0_43, %c0_44], %43 {strides = array<i32>} : memref<8x64x64xf32, #tpu.memory_space<vmem>>, vector<1x64x64xf32>,
    %c6 = arith.constant 6 : index
    %c0_45 = arith.constant 0 : index
    %c0_46 = arith.constant 0 : index
    %44 = vector.load %arg5[%c6, %c0_45, %c0_46] : memref<8x16x16xf32, #tpu.memory_space<vmem>>, vector<1x16x16xf32>
    %45 = vector.shape_cast %44 : vector<1x16x16xf32> to vector<16x16xf32>
    %cst_47 = arith.constant dense<0.000000e+00> : vector<64x16xf32>
    %46 = tpu.matmul %0, %45, %cst_47 {dimension_numbers = #tpu.dot_dimension_numbers<[1], [0], [0], [1], [0, 0, 1, 1], [], []>, precision = #tpu.contract_precision<fp32>} : vector<64x16xf32>, vector<16x16xf32>, vector<64x16xf32> -> vector<64x16xf32>
    %cst_48 = arith.constant dense<0.000000e+00> : vector<64x64xf32>
    %47 = tpu.matmul %46, %1, %cst_48 {dimension_numbers = #tpu.dot_dimension_numbers<[1], [0], [0], [1], [0, 0, 1, 1], [], []>, precision = #tpu.contract_precision<fp32>} : vector<64x16xf32>, vector<16x64xf32>, vector<64x64xf32> -> vector<64x64xf32>
    %c6_49 = arith.constant 6 : index
    %c0_50 = arith.constant 0 : index
    %c0_51 = arith.constant 0 : index
    %48 = vector.load %arg6[%c6_49, %c0_50, %c0_51] : memref<8x64x64xf32, #tpu.memory_space<vmem>>, vector<1x64x64xf32>
    %49 = vector.shape_cast %48 : vector<1x64x64xf32> to vector<64x64xf32>
    %50 = vector.shape_cast %47 : vector<64x64xf32> to vector<1x64x64xf32>
    tpu.vector_store %arg6[%c6_49, %c0_50, %c0_51], %50 {strides = array<i32>} : memref<8x64x64xf32, #tpu.memory_space<vmem>>, vector<1x64x64xf32>,
    %c7 = arith.constant 7 : index
    %c0_52 = arith.constant 0 : index
    %c0_53 = arith.constant 0 : index
    %51 = vector.load %arg5[%c7, %c0_52, %c0_53] : memref<8x16x16xf32, #tpu.memory_space<vmem>>, vector<1x16x16xf32>
    %52 = vector.shape_cast %51 : vector<1x16x16xf32> to vector<16x16xf32>
    %cst_54 = arith.constant dense<0.000000e+00> : vector<64x16xf32>
    %53 = tpu.matmul %0, %52, %cst_54 {dimension_numbers = #tpu.dot_dimension_numbers<[1], [0], [0], [1], [0, 0, 1, 1], [], []>, precision = #tpu.contract_precision<fp32>} : vector<64x16xf32>, vector<16x16xf32>, vector<64x16xf32> -> vector<64x16xf32>
    %cst_55 = arith.constant dense<0.000000e+00> : vector<64x64xf32>
    %54 = tpu.matmul %53, %1, %cst_55 {dimension_numbers = #tpu.dot_dimension_numbers<[1], [0], [0], [1], [0, 0, 1, 1], [], []>, precision = #tpu.contract_precision<fp32>} : vector<64x16xf32>, vector<16x64xf32>, vector<64x64xf32> -> vector<64x64xf32>
    %c7_56 = arith.constant 7 : index
    %c0_57 = arith.constant 0 : index
    %c0_58 = arith.constant 0 : index
    %55 = vector.load %arg6[%c7_56, %c0_57, %c0_58] : memref<8x64x64xf32, #tpu.memory_space<vmem>>, vector<1x64x64xf32>
    %56 = vector.shape_cast %55 : vector<1x64x64xf32> to vector<64x64xf32>
    %57 = vector.shape_cast %54 : vector<64x64xf32> to vector<1x64x64xf32>
    tpu.vector_store %arg6[%c7_56, %c0_57, %c0_58], %57 {strides = array<i32>} : memref<8x64x64xf32, #tpu.memory_space<vmem>>, vector<1x64x64xf32>,
    return
  }
  func.func @transform_0(%arg0: i32, %arg1: i32, %arg2: i32) -> (i32, i32) {
    %c0_i32 = arith.constant 0 : i32
    %c0_i32_0 = arith.constant 0 : i32
    return %arg1, %c0_i32 : i32, i32
  }
  func.func @transform_1(%arg0: i32, %arg1: i32, %arg2: i32) -> (i32, i32) {
    %c0_i32 = arith.constant 0 : i32
    %c0_i32_0 = arith.constant 0 : i32
    return %c0_i32, %arg2 : i32, i32
  }
  func.func @transform_2(%arg0: i32, %arg1: i32, %arg2: i32) -> (i32, i32, i32) {
    %c0_i32 = arith.constant 0 : i32
    %c0_i32_0 = arith.constant 0 : i32
    %c0_i32_1 = arith.constant 0 : i32
    return %arg0, %c0_i32, %c0_i32_0 : i32, i32, i32
  }
  func.func @transform_3(%arg0: i32, %arg1: i32, %arg2: i32) -> (i32, i32, i32) {
    %c0_i32 = arith.constant 0 : i32
    return %arg0, %arg1, %arg2 : i32, i32, i32
  }
}

</mosaic_0001>

<llo_original>
// kernel: tpu_custom_call.1
$region0: #{tpu_custom_call.1}
  #allocation0 [shape = 'u32[]', space=smem, size = 0x4, offset = 0x4, fixed_abs, tag = 'smem constant byte address 0x4 - core index']
  #allocation1 [shape = 'u32[144,128]{1,0:T(1,128)}', space=vmem, size = 0x12000, scoped, tag = 'internal scratch']
  %s0 = inlined_call_operand.vmem [shape: f32[64,16], index: 0, kind: input, shape index: {}]
  %s1 = inlined_call_operand.vmem [shape: f32[16,64], index: 1, kind: input, shape index: {}]
  %s2 = inlined_call_operand.hbm [shape: f32[8,16,16], index: 2, kind: input, shape index: {}]
  %s3 = inlined_call_operand.hbm [shape: f32[8,64,64], index: 3, kind: output, shape index: {}]
  %s4 = sld [smem:[#allocation0]]
  $region26: #{tpu_custom_call.1} parent=0
    _
  %s6 = ssub.s32 1, %s4
  %s7 = scalar_select 0, %s6, %s4
  $region1: #{tpu_custom_call.1} parent=0
    #allocation2 [shape = 'u8[65536]{0}', space=vmem, size = 0x10000, scoped, tag = 'input window, operand 2, single buffered']
    #allocation3 [shape = 's32[1]{0}', space=sflag, size = 0x4, scoped, tag = 'scoped memory for tpu_custom_call.1']
    #allocation4 [shape = 's32[1]{0}', space=sflag, size = 0x4, scoped, tag = 'scoped memory for tpu_custom_call.1']
    #allocation5 [shape = 'u8[262144]{0}', space=vmem, size = 0x40000, scoped, tag = 'output window, operand 0, single buffered']
    %8 = vsyncpa [#allocation3], 0
    %9 = vsyncpa [#allocation4], 0
    // Predicated region
    $region2: #{tpu_custom_call.1} parent=1 // pred_check
      _
    $region3: #{tpu_custom_call.1} parent=1 // pred_check_branch
      %11 = sbr.rel (0) target = $region5
    $region4: #{tpu_custom_call.1} parent=1 // pred_region
      _
    $region5: #{tpu_custom_call.1} parent=1 // pred_fallthru
      _
    // Predicated region
    $region6: #{tpu_custom_call.1} parent=1 // pred_check
      _
    $region7: #{tpu_custom_call.1} parent=1 // pred_check_branch
      %13 = sbr.rel (0) target = $region9
    $region8: #{tpu_custom_call.1} parent=1 // pred_region
      _
    $region9: #{tpu_custom_call.1} parent=1 // pred_fallthru
      _
    // Predicated region
    $region10: #{tpu_custom_call.1} parent=1 // pred_check
      _
    $region11: #{tpu_custom_call.1} parent=1 // pred_check_branch
      %15 = sbr.rel (0) target = $region13
    $region12: #{tpu_custom_call.1} parent=1 // pred_region
      %s17 = ssub.s32 2048, 2048
      %18 = vsyncadd [#allocation3], %s17
      %s19 = sshll.u32 [#allocation2], 4
      %s20 = int_to_ptr.vmem [resolvable:$true] %s19
      %25 = dma.hbm_to_vmem [thread:$0]  %s2, 2048, %s20, [#allocation3], 128, 128, 8
    $region13: #{tpu_custom_call.1} parent=1 // pred_fallthru
      _
    // Predicated region
    $region14: #{tpu_custom_call.1} parent=1 // pred_check
      _
    $region15: #{tpu_custom_call.1} parent=1 // pred_check_branch
      %27 = sbr.rel (0) target = $region17
    $region16: #{tpu_custom_call.1} parent=1 // pred_region
      %28 = dma.done [#allocation3], 2048
    $region17: #{tpu_custom_call.1} parent=1 // pred_fallthru
      _
    %v29 = vld [vmem:[%s0] sm:$0xff]
    %v30 = vld [vmem:[%s0 + $0x8] sm:$0xff]
    %v31 = vld [vmem:[%s0 + $0x10] sm:$0xff]
    %v32 = vld [vmem:[%s0 + $0x18] sm:$0xff]
    %v33 = vld [vmem:[%s0 + $0x20] sm:$0xff]
    %v34 = vld [vmem:[%s0 + $0x28] sm:$0xff]
    %v35 = vld [vmem:[%s0 + $0x30] sm:$0xff]
    %v36 = vld [vmem:[%s0 + $0x38] sm:$0xff]
    %v37 = vld [vmem:[%s1] sm:$0xff]
    %v38 = vld [vmem:[%s1 + $0x8] sm:$0xff]
    %v39 = vld [vmem:[#allocation2] sm:$0xff]
    %v40 = vld [vmem:[#allocation2 + $0x8] sm:$0xff]
    %vm41 = vcmask 130048
    %v43 = vsel %vm41, %v29, 0
    %v46 = vsel %vm41, %v30, 0
    %v49 = vsel %vm41, %v31, 0
    %v52 = vsel %vm41, %v32, 0
    %v55 = vsel %vm41, %v33, 0
    %v58 = vsel %vm41, %v34, 0
    %v61 = vsel %vm41, %v35, 0
    %v64 = vsel %vm41, %v36, 0
    %66 = vmatprep.subr.mxu0 0.0
    %v67 = vand.u32 %v39, 4294901760
    %68 = vmatpush1.msra.mxu0 %v67
    %69 = vmatprep.subr.mxu0 0.0
    %v70 = vand.u32 %v40, 4294901760
    %71 = vmatpush1.msra.mxu0 %v70
    %72 = vmatprep.subr.mxu0 0.0
    %73 = vmatpush1.msra.mxu0 0.0
    %74 = vmatprep.subr.mxu0 0.0
    %75 = vmatpush1.msra.mxu0 0.0
    %76 = vmatprep.subr.mxu0 0.0
    %77 = vmatpush1.msra.mxu0 0.0
    %78 = vmatprep.subr.mxu0 0.0
    %79 = vmatpush1.msra.mxu0 0.0
    %80 = vmatprep.subr.mxu0 0.0
    %81 = vmatpush1.msra.mxu0 0.0
    %82 = vmatprep.subr.mxu0 0.0
    %83 = vmatpush1.msra.mxu0 0.0
    %84 = vmatprep.subr.mxu0 0.0
    %85 = vmatpush1.msra.mxu0 0.0
    %86 = vmatprep.subr.mxu0 0.0
    %87 = vmatpush1.msra.mxu0 0.0
    %88 = vmatprep.subr.mxu0 0.0
    %89 = vmatpush1.msra.mxu0 0.0
    %90 = vmatprep.subr.mxu0 0.0
    %91 = vmatpush1.msra.mxu0 0.0
    %92 = vmatprep.subr.mxu0 0.0
    %93 = vmatpush1.msra.mxu0 0.0
    %94 = vmatprep.subr.mxu0 0.0
    %95 = vmatpush1.msra.mxu0 0.0
    %96 = vmatprep.subr.mxu0 0.0
    %97 = vmatpush1.msra.mxu0 0.0
    %98 = vmatprep.subr.mxu0 0.0
    %99 = vmatpush1.msra.mxu0 0.0
    %100 = vmatprep.subr.mxu0 0.0
    %101 = vmatpush1.msra.mxu0 0.0
    %102 = vmatprep.subr.mxu0 0.0
    %103 = vmatpush1.msra.mxu0 0.0
    %104 = vmatprep.subr.mxu0 0.0
    %105 = vmatpush1.msra.mxu0 0.0
    %106 = vmatprep.subr.mxu0 0.0
    %107 = vmatpush1.msra.mxu0 0.0
    %108 = vmatprep.subr.mxu0 0.0
    %109 = vmatpush1.msra.mxu0 0.0
    %110 = vmatprep.subr.mxu0 0.0
    %111 = vmatpush1.msra.mxu0 0.0
    %112 = vmatprep.subr.mxu0 0.0
    %113 = vmatpush1.msra.mxu0 0.0
    %114 = vmatprep.subr.mxu0 0.0
    %115 = vmatpush1.msra.mxu0 0.0
    %116 = vmatprep.subr.mxu0 0.0
    %117 = vmatpush1.msra.mxu0 0.0
    %118 = vmatprep.subr.mxu0 0.0
    %119 = vmatpush1.msra.mxu0 0.0
    %120 = vmatprep.subr.mxu0 0.0
    %121 = vmatpush1.msra.mxu0 0.0
    %122 = vmatprep.subr.mxu0 0.0
    %123 = vmatpush1.msra.mxu0 0.0
    %124 = vmatprep.subr.mxu0 0.0
    %125 = vmatpush1.msra.mxu0 0.0
    %126 = vmatprep.subr.mxu0 0.0
    %127 = vmatpush1.msra.mxu0 0.0
    %128 = vmatprep.subr.mxu0 0.0
    %129 = vmatpush1.msra.mxu0 0.0
    %130 = vmatprep.subr.mxu0 0.0
    %131 = vmatpush1.msra.mxu0 0.0
    %132 = vmatprep.mubr.f32.mxu0 0.0
    %v133 = vand.u32 %v43, 4294901760
    %v134 = vsub.f32 %v43, %v133
    %v135 = vand.u32 %v134, 4294901760
    %v136 = vsub.f32 %v134, %v135
    %v137 = vand.u32 %v136, 4294901760
    %138 = vmatmul.mubr.f32.gmra.mrb[0].mxu0 %v137
    %v139 = vpop.f32.mrb[0].mxu0
    %v140 = vadd.f32 0.0, %v139
    %v141 = vpop.f32.mrb[0].mxu0
    %142 = vmatprep.mubr.f32.mxu0 0.0
    %v143 = vand.u32 %v46, 4294901760
    %v144 = vsub.f32 %v46, %v143
    %v145 = vand.u32 %v144, 4294901760
    %v146 = vsub.f32 %v144, %v145
    %v147 = vand.u32 %v146, 4294901760
    %148 = vmatmul.mubr.f32.gmra.mrb[0].mxu0 %v147
    %v149 = vpop.f32.mrb[0].mxu0
    %v150 = vadd.f32 0.0, %v149
    %v151 = vpop.f32.mrb[0].mxu0
    %152 = vmatprep.mubr.f32.mxu0 0.0
    %v153 = vand.u32 %v49, 4294901760
    %v154 = vsub.f32 %v49, %v153
    %v155 = vand.u32 %v154, 4294901760
    %v156 = vsub.f32 %v154, %v155
    %v157 = vand.u32 %v156, 4294901760
    %158 = vmatmul.mubr.f32.gmra.mrb[0].mxu0 %v157
    %v159 = vpop.f32.mrb[0].mxu0
    %v160 = vadd.f32 0.0, %v159
    %v161 = vpop.f32.mrb[0].mxu0
    %162 = vmatprep.mubr.f32.mxu0 0.0
    %v163 = vand.u32 %v52, 4294901760
    %v164 = vsub.f32 %v52, %v163
    %v165 = vand.u32 %v164, 4294901760
    %v166 = vsub.f32 %v164, %v165
    %v167 = vand.u32 %v166, 4294901760
    %168 = vmatmul.mubr.f32.gmra.mrb[0].mxu0 %v167
    %v169 = vpop.f32.mrb[0].mxu0
    %v170 = vadd.f32 0.0, %v169
    %v171 = vpop.f32.mrb[0].mxu0
    %172 = vmatprep.mubr.f32.mxu0 0.0
    %v173 = vand.u32 %v55, 4294901760
    %v174 = vsub.f32 %v55, %v173
    %v175 = vand.u32 %v174, 4294901760
    %v176 = vsub.f32 %v174, %v175
    %v177 = vand.u32 %v176, 4294901760
    %178 = vmatmul.mubr.f32.gmra.mrb[0].mxu0 %v177
    %v179 = vpop.f32.mrb[0].mxu0
    %v180 = vadd.f32 0.0, %v179
    %v181 = vpop.f32.mrb[0].mxu0
    %182 = vmatprep.mubr.f32.mxu0 0.0
    %v183 = vand.u32 %v58, 4294901760
    %v184 = vsub.f32 %v58, %v183
    %v185 = vand.u32 %v184, 4294901760
    %v186 = vsub.f32 %v184, %v185
    %v187 = vand.u32 %v186, 4294901760
    %188 = vmatmul.mubr.f32.gmra.mrb[0].mxu0 %v187
    %v189 = vpop.f32.mrb[0].mxu0
    %v190 = vadd.f32 0.0, %v189
    %v191 = vpop.f32.mrb[0].mxu0
    %192 = vmatprep.mubr.f32.mxu0 0.0
    %v193 = vand.u32 %v61, 4294901760
    %v194 = vsub.f32 %v61, %v193
    %v195 = vand.u32 %v194, 4294901760
    %v196 = vsub.f32 %v194, %v195
    %v197 = vand.u32 %v196, 4294901760
    %198 = vmatmul.mubr.f32.gmra.mrb[0].mxu0 %v197
    %v199 = vpop.f32.mrb[0].mxu0
    %v200 = vadd.f32 0.0, %v199
    %v201 = vpop.f32.mrb[0].mxu0
    %202 = vmatprep.mubr.f32.mxu0 0.0
    %v203 = vand.u32 %v64, 4294901760
    %v204 = vsub.f32 %v64, %v203
    %v205 = vand.u32 %v204, 4294901760
    %v206 = vsub.f32 %v204, %v205
    %v207 = vand.u32 %v206, 4294901760
    %208 = vmatmul.mubr.f32.gmra.mrb[0].mxu0 %v207
    %v209 = vpop.f32.mrb[0].mxu0
    %v210 = vadd.f32 0.0, %v209
    %v211 = vpop.f32.mrb[0].mxu0
    %212 = vdwg.mxu0
    %213 = vmatprep.subr.mxu0 0.0
    %v214 = vand.u32 %v39, 4294901760
    %v215 = vsub.f32 %v39, %v214
    %v216 = vand.u32 %v215, 4294901760
    %v217 = vsub.f32 %v215, %v216
    %v218 = vand.u32 %v217, 4294901760
    %219 = vmatpush1.msra.mxu0 %v218
    %220 = vmatprep.subr.mxu0 0.0
    %v221 = vand.u32 %v40, 4294901760
    %v222 = vsub.f32 %v40, %v221
    %v223 = vand.u32 %v222, 4294901760
    %v224 = vsub.f32 %v222, %v223
    %v225 = vand.u32 %v224, 4294901760
    %226 = vmatpush1.msra.mxu0 %v225
    %227 = vmatprep.subr.mxu0 0.0
    %228 = vmatpush1.msra.mxu0 0.0
    %229 = vmatprep.subr.mxu0 0.0
    %230 = vmatpush1.msra.mxu0 0.0
    %231 = vmatprep.subr.mxu0 0.0
    %232 = vmatpush1.msra.mxu0 0.0
    %233 = vmatprep.subr.mxu0 0.0
    %234 = vmatpush1.msra.mxu0 0.0
    %235 = vmatprep.subr.mxu0 0.0
    %236 = vmatpush1.msra.mxu0 0.0
    %237 = vmatprep.subr.mxu0 0.0
    %238 = vmatpush1.msra.mxu0 0.0
    %239 = vmatprep.subr.mxu0 0.0
    %240 = vmatpush1.msra.mxu0 0.0
    %241 = vmatprep.subr.mxu0 0.0
    %242 = vmatpush1.msra.mxu0 0.0
    %243 = vmatprep.subr.mxu0 0.0
    %244 = vmatpush1.msra.mxu0 0.0
    %245 = vmatprep.subr.mxu0 0.0
    %246 = vmatpush1.msra.mxu0 0.0
    %247 = vmatprep.subr.mxu0 0.0
    %248 = vmatpush1.msra.mxu0 0.0
    %249 = vmatprep.subr.mxu0 0.0
    %250 = vmatpush1.msra.mxu0 0.0
    %251 = vmatprep.subr.mxu0 0.0
    %252 = vmatpush1.msra.mxu0 0.0
    %253 = vmatprep.subr.mxu0 0.0
    %254 = vmatpush1.msra.mxu0 0.0
    %255 = vmatprep.subr.mxu0 0.0
    %256 = vmatpush1.msra.mxu0 0.0
    %257 = vmatprep.subr.mxu0 0.0
    %258 = vmatpush1.msra.mxu0 0.0
    %259 = vmatprep.subr.mxu0 0.0
    %260 = vmatpush1.msra.mxu0 0.0
    %261 = vmatprep.subr.mxu0 0.0
    %262 = vmatpush1.msra.mxu0 0.0
    %263 = vmatprep.subr.mxu0 0.0
    %264 = vmatpush1.msra.mxu0 0.0
    %265 = vmatprep.subr.mxu0 0.0
    %266 = vmatpush1.msra.mxu0 0.0
    %267 = vmatprep.subr.mxu0 0.0
    %268 = vmatpush1.msra.mxu0 0.0
    %269 = vmatprep.subr.mxu0 0.0
    %270 = vmatpush1.msra.mxu0 0.0
    %271 = vmatprep.subr.mxu0 0.0
    %272 = vmatpush1.msra.mxu0 0.0
    %273 = vmatprep.subr.mxu0 0.0
    %274 = vmatpush1.msra.mxu0 0.0
    %275 = vmatprep.subr.mxu0 0.0
    %276 = vmatpush1.msra.mxu0 0.0
    %277 = vmatprep.subr.mxu0 0.0
    %278 = vmatpush1.msra.mxu0 0.0
    %279 = vmatprep.subr.mxu0 0.0
    %280 = vmatpush1.msra.mxu0 0.0
    %281 = vmatprep.subr.mxu0 0.0
    %282 = vmatpush1.msra.mxu0 0.0
    %283 = vmatprep.subr.mxu0 0.0
    %284 = vmatpush1.msra.mxu0 0.0
    %285 = vmatprep.subr.mxu0 0.0
    %286 = vmatpush1.msra.mxu0 0.0
    %287 = vmatprep.mubr.f32.mxu0 0.0
    %v288 = vand.u32 %v43, 4294901760
    %289 = vmatmul.mubr.f32.gmra.mrb[0].mxu0 %v288
    %v290 = vpop.f32.mrb[0].mxu0
    %v291 = vadd.f32 %v140, %v290
    %v292 = vpop.f32.mrb[0].mxu0
    %293 = vmatprep.mubr.f32.mxu0 0.0
    %v294 = vand.u32 %v46, 4294901760
    %295 = vmatmul.mubr.f32.gmra.mrb[0].mxu0 %v294
    %v296 = vpop.f32.mrb[0].mxu0
    %v297 = vadd.f32 %v150, %v296
    %v298 = vpop.f32.mrb[0].mxu0
    %299 = vmatprep.mubr.f32.mxu0 0.0
    %v300 = vand.u32 %v49, 4294901760
    %301 = vmatmul.mubr.f32.gmra.mrb[0].mxu0 %v300
    %v302 = vpop.f32.mrb[0].mxu0
    %v303 = vadd.f32 %v160, %v302
    %v304 = vpop.f32.mrb[0].mxu0
    %305 = vmatprep.mubr.f32.mxu0 0.0
    %v306 = vand.u32 %v52, 4294901760
    %307 = vmatmul.mubr.f32.gmra.mrb[0].mxu0 %v306
    %v308 = vpop.f32.mrb[0].mxu0
    %v309 = vadd.f32 %v170, %v308
    %v310 = vpop.f32.mrb[0].mxu0
    %311 = vmatprep.mubr.f32.mxu0 0.0
    %v312 = vand.u32 %v55, 4294901760
    %313 = vmatmul.mubr.f32.gmra.mrb[0].mxu0 %v312
    %v314 = vpop.f32.mrb[0].mxu0
    %v315 = vadd.f32 %v180, %v314
    %v316 = vpop.f32.mrb[0].mxu0
    %317 = vmatprep.mubr.f32.mxu0 0.0
    %v318 = vand.u32 %v58, 4294901760
    %319 = vmatmul.mubr.f32.gmra.mrb[0].mxu0 %v318
    %v320 = vpop.f32.mrb[0].mxu0
    %v321 = vadd.f32 %v190, %v320
    %v322 = vpop.f32.mrb[0].mxu0
    %323 = vmatprep.mubr.f32.mxu0 0.0
    %v324 = vand.u32 %v61, 4294901760
    %325 = vmatmul.mubr.f32.gmra.mrb[0].mxu0 %v324
    %v326 = vpop.f32.mrb[0].mxu0
    %v327 = vadd.f32 %v200, %v326
    %v328 = vpop.f32.mrb[0].mxu0
    %329 = vmatprep.mubr.f32.mxu0 0.0
    %v330 = vand.u32 %v64, 4294901760
    %331 = vmatmul.mubr.f32.gmra.mrb[0].mxu0 %v330
    %v332 = vpop.f32.mrb[0].mxu0
    %v333 = vadd.f32 %v210, %v332
    %v334 = vpop.f32.mrb[0].mxu0
    %335 = vdwg.mxu0
    %336 = vmatprep.subr.mxu0 0.0
    %v337 = vand.u32 %v39, 4294901760
    %v338 = vsub.f32 %v39, %v337
    %339 = vmatpush1.msra.mxu0 %v338
    %340 = vmatprep.subr.mxu0 0.0
    %v341 = vand.u32 %v40, 4294901760
    %v342 = vsub.f32 %v40, %v341
    %343 = vmatpush1.msra.mxu0 %v342
    %344 = vmatprep.subr.mxu0 0.0
    %345 = vmatpush1.msra.mxu0 0.0
    %346 = vmatprep.subr.mxu0 0.0
    %347 = vmatpush1.msra.mxu0 0.0
    %348 = vmatprep.subr.mxu0 0.0
    %349 = vmatpush1.msra.mxu0 0.0
    %350 = vmatprep.subr.mxu0 0.0
    %351 = vmatpush1.msra.mxu0 0.0
    %352 = vmatprep.subr.mxu0 0.0
    %353 = vmatpush1.msra.mxu0 0.0
    %354 = vmatprep.subr.mxu0 0.0
    %355 = vmatpush1.msra.mxu0 0.0
    %356 = vmatprep.subr.mxu0 0.0
    %357 = vmatpush1.msra.mxu0 0.0
    %358 = vmatprep.subr.mxu0 0.0
    %359 = vmatpush1.msra.mxu0 0.0
    %360 = vmatprep.subr.mxu0 0.0
    %361 = vmatpush1.msra.mxu0 0.0
    %362 = vmatprep.subr.mxu0 0.0
    %363 = vmatpush1.msra.mxu0 0.0
    %364 = vmatprep.subr.mxu0 0.0
    %365 = vmatpush1.msra.mxu0 0.0
    %366 = vmatprep.subr.mxu0 0.0
    %367 = vmatpush1.msra.mxu0 0.0
    %368 = vmatprep.subr.mxu0 0.0
    %369 = vmatpush1.msra.mxu0 0.0
    %370 = vmatprep.subr.mxu0 0.0
    %371 = vmatpush1.msra.mxu0 0.0
    %372 = vmatprep.subr.mxu0 0.0
    %373 = vmatpush1.msra.mxu0 0.0
    %374 = vmatprep.subr.mxu0 0.0
    %375 = vmatpush1.msra.mxu0 0.0
    %376 = vmatprep.subr.mxu0 0.0
    %377 = vmatpush1.msra.mxu0 0.0
    %378 = vmatprep.subr.mxu0 0.0
    %379 = vmatpush1.msra.mxu0 0.0
    %380 = vmatprep.subr.mxu0 0.0
    %381 = vmatpush1.msra.mxu0 0.0
    %382 = vmatprep.subr.mxu0 0.0
    %383 = vmatpush1.msra.mxu0 0.0
    %384 = vmatprep.subr.mxu0 0.0
    %385 = vmatpush1.msra.mxu0 0.0
    %386 = vmatprep.subr.mxu0 0.0
    %387 = vmatpush1.msra.mxu0 0.0
    %388 = vmatprep.subr.mxu0 0.0
    %389 = vmatpush1.msra.mxu0 0.0
    %390 = vmatprep.subr.mxu0 0.0
    %391 = vmatpush1.msra.mxu0 0.0
    %392 = vmatprep.subr.mxu0 0.0
    %393 = vmatpush1.msra.mxu0 0.0
    %394 = vmatprep.subr.mxu0 0.0
    %395 = vmatpush1.msra.mxu0 0.0
    %396 = vmatprep.subr.mxu0 0.0
    %397 = vmatpush1.msra.mxu0 0.0
    %398 = vmatprep.subr.mxu0 0.0
    %399 = vmatpush1.msra.mxu0 0.0
    %400 = vmatprep.subr.mxu0 0.0
    %401 = vmatpush1.msra.mxu0 0.0
    %402 = vmatprep.subr.mxu0 0.0
    %403 = vmatpush1.msra.mxu0 0.0
    %404 = vmatprep.mubr.f32.mxu0 0.0
    %v405 = vand.u32 %v43, 4294901760
    %v406 = vsub.f32 %v43, %v405
    %407 = vmatmul.mubr.f32.gmra.mrb[0].mxu0 %v406
    %v408 = vpop.f32.mrb[0].mxu0
    %v409 = vadd.f32 %v291, %v408
    %v410 = vpop.f32.mrb[0].mxu0
    %411 = vmatprep.mubr.f32.mxu0 0.0
    %v412 = vand.u32 %v46, 4294901760
    %v413 = vsub.f32 %v46, %v412
    %414 = vmatmul.mubr.f32.gmra.mrb[0].mxu0 %v413
    %v415 = vpop.f32.mrb[0].mxu0
    %v416 = vadd.f32 %v297, %v415
    %v417 = vpop.f32.mrb[0].mxu0
    %418 = vmatprep.mubr.f32.mxu0 0.0
    %v419 = vand.u32 %v49, 4294901760
    %v420 = vsub.f32 %v49, %v419
    %421 = vmatmul.mubr.f32.gmra.mrb[0].mxu0 %v420
    %v422 = vpop.f32.mrb[0].mxu0
    %v423 = vadd.f32 %v303, %v422
    %v424 = vpop.f32.mrb[0].mxu0
    %425 = vmatprep.mubr.f32.mxu0 0.0
    %v426 = vand.u32 %v52, 4294901760
    %v427 = vsub.f32 %v52, %v426
    %428 = vmatmul.mubr.f32.gmra.mrb[0].mxu0 %v427
    %v429 = vpop.f32.mrb[0].mxu0
    %v430 = vadd.f32 %v309, %v429
    %v431 = vpop.f32.mrb[0].mxu0
    %432 = vmatprep.mubr.f32.mxu0 0.0
    %v433 = vand.u32 %v55, 4294901760
    %v434 = vsub.f32 %v55, %v433
    %435 = vmatmul.mubr.f32.gmra.mrb[0].mxu0 %v434
    %v436 = vpop.f32.mrb[0].mxu0
    %v437 = vadd.f32 %v315, %v436
    %v438 = vpop.f32.mrb[0].mxu0
    %439 = vmatprep.mubr.f32.mxu0 0.0
    %v440 = vand.u32 %v58, 4294901760
    %v441 = vsub.f32 %v58, %v440
    %442 = vmatmul.mubr.f32.gmra.mrb[0].mxu0 %v441
    %v443 = vpop.f32.mrb[0].mxu0
    %v444 = vadd.f32 %v321, %v443
    %v445 = vpop.f32.mrb[0].mxu0
    %446 = vmatprep.mubr.f32.mxu0 0.0
    %v447 = vand.u32 %v61, 4294901760
    %v448 = vsub.f32 %v61, %v447
    %449 = vmatmul.mubr.f32.gmra.mrb[0].mxu0 %v448
    %v450 = vpop.f32.mrb[0].mxu0
    %v451 = vadd.f32 %v327, %v450
    %v452 = vpop.f32.mrb[0].mxu0
    %453 = vmatprep.mubr.f32.mxu0 0.0
    %v454 = vand.u32 %v64, 4294901760
    %v455 = vsub.f32 %v64, %v454
    %456 = vmatmul.mubr.f32.gmra.mrb[0].mxu0 %v455
    %v457 = vpop.f32.mrb[0].mxu0
    %v458 = vadd.f32 %v333, %v457
    %v459 = vpop.f32.mrb[0].mxu0
    %460 = vdwg.mxu0
    %461 = vmatprep.subr.mxu0 0.0
    %v462 = vand.u32 %v39, 4294901760
    %463 = vmatpush1.msra.mxu0 %v462
    %464 = vmatprep.subr.mxu0 0.0
    %v465 = vand.u32 %v40, 4294901760
    %466 = vmatpush1.msra.mxu0 %v465
    %467 = vmatprep.subr.mxu0 0.0
    %468 = vmatpush1.msra.mxu0 0.0
    %469 = vmatprep.subr.mxu0 0.0
    %470 = vmatpush1.msra.mxu0 0.0
    %471 = vmatprep.subr.mxu0 0.0
    %472 = vmatpush1.msra.mxu0 0.0
    %473 = vmatprep.subr.mxu0 0.0
    %474 = vmatpush1.msra.mxu0 0.0
    %475 = vmatprep.subr.mxu0 0.0
    %476 = vmatpush1.msra.mxu0 0.0
    %477 = vmatprep.subr.mxu0 0.0
    %478 = vmatpush1.msra.mxu0 0.0
    %479 = vmatprep.subr.mxu0 0.0
    %480 = vmatpush1.msra.mxu0 0.0
    %481 = vmatprep.subr.mxu0 0.0
    %482 = vmatpush1.msra.mxu0 0.0
    %483 = vmatprep.subr.mxu0 0.0
    %484 = vmatpush1.msra.mxu0 0.0
    %485 = vmatprep.subr.mxu0 0.0
    %486 = vmatpush1.msra.mxu0 0.0
    %487 = vmatprep.subr.mxu0 0.0
    %488 = vmatpush1.msra.mxu0 0.0
    %489 = vmatprep.subr.mxu0 0.0
    %490 = vmatpush1.msra.mxu0 0.0
    %491 = vmatprep.subr.mxu0 0.0
    %492 = vmatpush1.msra.mxu0 0.0
    %493 = vmatprep.subr.mxu0 0.0
    %494 = vmatpush1.msra.mxu0 0.0
    %495 = vmatprep.subr.mxu0 0.0
    %496 = vmatpush1.msra.mxu0 0.0
    %497 = vmatprep.subr.mxu0 0.0
    %498 = vmatpush1.msra.mxu0 0.0
    %499 = vmatprep.subr.mxu0 0.0
    %500 = vmatpush1.msra.mxu0 0.0
    %501 = vmatprep.subr.mxu0 0.0
    %502 = vmatpush1.msra.mxu0 0.0
    %503 = vmatprep.subr.mxu0 0.0
    %504 = vmatpush1.msra.mxu0 0.0
    %505 = vmatprep.subr.mxu0 0.0
    %506 = vmatpush1.msra.mxu0 0.0
    %507 = vmatprep.subr.mxu0 0.0
    %508 = vmatpush1.msra.mxu0 0.0
    %509 = vmatprep.subr.mxu0 0.0
    %510 = vmatpush1.msra.mxu0 0.0
    %511 = vmatprep.subr.mxu0 0.0
    %512 = vmatpush1.msra.mxu0 0.0
    %513 = vmatprep.subr.mxu0 0.0
    %514 = vmatpush1.msra.mxu0 0.0
    %515 = vmatprep.subr.mxu0 0.0
    %516 = vmatpush1.msra.mxu0 0.0
    %517 = vmatprep.subr.mxu0 0.0
    %518 = vmatpush1.msra.mxu0 0.0
    %519 = vmatprep.subr.mxu0 0.0
    %520 = vmatpush1.msra.mxu0 0.0
    %521 = vmatprep.subr.mxu0 0.0
    %522 = vmatpush1.msra.mxu0 0.0
    %523 = vmatprep.subr.mxu0 0.0
    %524 = vmatpush1.msra.mxu0 0.0
    %525 = vmatprep.subr.mxu0 0.0
    %526 = vmatpush1.msra.mxu0 0.0
    %527 = vmatprep.mubr.f32.mxu0 0.0
    %v528 = vand.u32 %v43, 4294901760
    %v529 = vsub.f32 %v43, %v528
    %v530 = vand.u32 %v529, 4294901760
    %531 = vmatmul.mubr.f32.gmra.mrb[0].mxu0 %v530
    %v532 = vpop.f32.mrb[0].mxu0
    %v533 = vadd.f32 %v409, %v532
    %v534 = vpop.f32.mrb[0].mxu0
    %535 = vmatprep.mubr.f32.mxu0 0.0
    %v536 = vand.u32 %v46, 4294901760
    %v537 = vsub.f32 %v46, %v536
    %v538 = vand.u32 %v537, 4294901760
    %539 = vmatmul.mubr.f32.gmra.mrb[0].mxu0 %v538
    %v540 = vpop.f32.mrb[0].mxu0
    %v541 = vadd.f32 %v416, %v540
    %v542 = vpop.f32.mrb[0].mxu0
    %543 = vmatprep.mubr.f32.mxu0 0.0
    %v544 = vand.u32 %v49, 4294901760
    %v545 = vsub.f32 %v49, %v544
    %v546 = vand.u32 %v545, 4294901760
    %547 = vmatmul.mubr.f32.gmra.mrb[0].mxu0 %v546
    %v548 = vpop.f32.mrb[0].mxu0
    %v549 = vadd.f32 %v423, %v548
    %v550 = vpop.f32.mrb[0].mxu0
    %551 = vmatprep.mubr.f32.mxu0 0.0
    %v552 = vand.u32 %v52, 4294901760
    %v553 = vsub.f32 %v52, %v552
    %v554 = vand.u32 %v553, 4294901760
    %555 = vmatmul.mubr.f32.gmra.mrb[0].mxu0 %v554
    %v556 = vpop.f32.mrb[0].mxu0
    %v557 = vadd.f32 %v430, %v556
    %v558 = vpop.f32.mrb[0].mxu0
    %559 = vmatprep.mubr.f32.mxu0 0.0
    %v560 = vand.u32 %v55, 4294901760
    %v561 = vsub.f32 %v55, %v560
    %v562 = vand.u32 %v561, 4294901760
    %563 = vmatmul.mubr.f32.gmra.mrb[0].mxu0 %v562
    %v564 = vpop.f32.mrb[0].mxu0
    %v565 = vadd.f32 %v437, %v564
    %v566 = vpop.f32.mrb[0].mxu0
    %567 = vmatprep.mubr.f32.mxu0 0.0
    %v568 = vand.u32 %v58, 4294901760
    %v569 = vsub.f32 %v58, %v568
    %v570 = vand.u32 %v569, 4294901760
    %571 = vmatmul.mubr.f32.gmra.mrb[0].mxu0 %v570
    %v572 = vpop.f32.mrb[0].mxu0
    %v573 = vadd.f32 %v444, %v572
    %v574 = vpop.f32.mrb[0].mxu0
    %575 = vmatprep.mubr.f32.mxu0 0.0
    %v576 = vand.u32 %v61, 4294901760
    %v577 = vsub.f32 %v61, %v576
    %v578 = vand.u32 %v577, 4294901760
    %579 = vmatmul.mubr.f32.gmra.mrb[0].mxu0 %v578
    %v580 = vpop.f32.mrb[0].mxu0
    %v581 = vadd.f32 %v451, %v580
    %v582 = vpop.f32.mrb[0].mxu0
    %583 = vmatprep.mubr.f32.mxu0 0.0
    %v584 = vand.u32 %v64, 4294901760
    %v585 = vsub.f32 %v64, %v584
    %v586 = vand.u32 %v585, 4294901760
    %587 = vmatmul.mubr.f32.gmra.mrb[0].mxu0 %v586
    %v588 = vpop.f32.mrb[0].mxu0
    %v589 = vadd.f32 %v458, %v588
    %v590 = vpop.f32.mrb[0].mxu0
    %591 = vdwg.mxu0
    %592 = vmatprep.subr.mxu0 0.0
    %v593 = vand.u32 %v39, 4294901760
    %v594 = vsub.f32 %v39, %v593
    %v595 = vand.u32 %v594, 4294901760
    %596 = vmatpush1.msra.mxu0 %v595
    %597 = vmatprep.subr.mxu0 0.0
    %v598 = vand.u32 %v40, 4294901760
    %v599 = vsub.f32 %v40, %v598
    %v600 = vand.u32 %v599, 4294901760
    %601 = vmatpush1.msra.mxu0 %v600
    %602 = vmatprep.subr.mxu0 0.0
    %603 = vmatpush1.msra.mxu0 0.0
    %604 = vmatprep.subr.mxu0 0.0
    %605 = vmatpush1.msra.mxu0 0.0
    %606 = vmatprep.subr.mxu0 0.0
    %607 = vmatpush1.msra.mxu0 0.0
    %608 = vmatprep.subr.mxu0 0.0
    %609 = vmatpush1.msra.mxu0 0.0
    %610 = vmatprep.subr.mxu0 0.0
    %611 = vmatpush1.msra.mxu0 0.0
    %612 = vmatprep.subr.mxu0 0.0
    %613 = vmatpush1.msra.mxu0 0.0
    %614 = vmatprep.subr.mxu0 0.0
    %615 = vmatpush1.msra.mxu0 0.0
    %616 = vmatprep.subr.mxu0 0.0
    %617 = vmatpush1.msra.mxu0 0.0
    %618 = vmatprep.subr.mxu0 0.0
    %619 = vmatpush1.msra.mxu0 0.0
    %620 = vmatprep.subr.mxu0 0.0
    %621 = vmatpush1.msra.mxu0 0.0
    %622 = vmatprep.subr.mxu0 0.0
    %623 = vmatpush1.msra.mxu0 0.0
    %624 = vmatprep.subr.mxu0 0.0
    %625 = vmatpush1.msra.mxu0 0.0
    %626 = vmatprep.subr.mxu0 0.0
    %627 = vmatpush1.msra.mxu0 0.0
    %628 = vmatprep.subr.mxu0 0.0
    %629 = vmatpush1.msra.mxu0 0.0
    %630 = vmatprep.subr.mxu0 0.0
    %631 = vmatpush1.msra.mxu0 0.0
    %632 = vmatprep.subr.mxu0 0.0
    %633 = vmatpush1.msra.mxu0 0.0
    %634 = vmatprep.subr.mxu0 0.0
    %635 = vmatpush1.msra.mxu0 0.0
    %636 = vmatprep.subr.mxu0 0.0
    %637 = vmatpush1.msra.mxu0 0.0
    %638 = vmatprep.subr.mxu0 0.0
    %639 = vmatpush1.msra.mxu0 0.0
    %640 = vmatprep.subr.mxu0 0.0
    %641 = vmatpush1.msra.mxu0 0.0
    %642 = vmatprep.subr.mxu0 0.0
    %643 = vmatpush1.msra.mxu0 0.0
    %644 = vmatprep.subr.mxu0 0.0
    %645 = vmatpush1.msra.mxu0 0.0
    %646 = vmatprep.subr.mxu0 0.0
    %647 = vmatpush1.msra.mxu0 0.0
    %648 = vmatprep.subr.mxu0 0.0
    %649 = vmatpush1.msra.mxu0 0.0
    %650 = vmatprep.subr.mxu0 0.0
    %651 = vmatpush1.msra.mxu0 0.0
    %652 = vmatprep.subr.mxu0 0.0
    %653 = vmatpush1.msra.mxu0 0.0
    %654 = vmatprep.subr.mxu0 0.0
    %655 = vmatpush1.msra.mxu0 0.0
    %656 = vmatprep.subr.mxu0 0.0
    %657 = vmatpush1.msra.mxu0 0.0
    %658 = vmatprep.subr.mxu0 0.0
    %659 = vmatpush1.msra.mxu0 0.0
    %660 = vmatprep.subr.mxu0 0.0
    %661 = vmatpush1.msra.mxu0 0.0
    %662 = vmatprep.mubr.f32.mxu0 0.0
    %v663 = vand.u32 %v43, 4294901760
    %664 = vmatmul.mubr.f32.gmra.mrb[0].mxu0 %v663
    %v665 = vpop.f32.mrb[0].mxu0
    %v666 = vadd.f32 %v533, %v665
    %v667 = vpop.f32.mrb[0].mxu0
    %668 = vmatprep.mubr.f32.mxu0 0.0
    %v669 = vand.u32 %v46, 4294901760
    %670 = vmatmul.mubr.f32.gmra.mrb[0].mxu0 %v669
    %v671 = vpop.f32.mrb[0].mxu0
    %v672 = vadd.f32 %v541, %v671
    %v673 = vpop.f32.mrb[0].mxu0
    %674 = vmatprep.mubr.f32.mxu0 0.0
    %v675 = vand.u32 %v49, 4294901760
    %676 = vmatmul.mubr.f32.gmra.mrb[0].mxu0 %v675
    %v677 = vpop.f32.mrb[0].mxu0
    %v678 = vadd.f32 %v549, %v677
    %v679 = vpop.f32.mrb[0].mxu0
    %680 = vmatprep.mubr.f32.mxu0 0.0
    %v681 = vand.u32 %v52, 4294901760
    %682 = vmatmul.mubr.f32.gmra.mrb[0].mxu0 %v681
    %v683 = vpop.f32.mrb[0].mxu0
    %v684 = vadd.f32 %v557, %v683
    %v685 = vpop.f32.mrb[0].mxu0
    %686 = vmatprep.mubr.f32.mxu0 0.0
    %v687 = vand.u32 %v55, 4294901760
    %688 = vmatmul.mubr.f32.gmra.mrb[0].mxu0 %v687
    %v689 = vpop.f32.mrb[0].mxu0
    %v690 = vadd.f32 %v565, %v689
    %v691 = vpop.f32.mrb[0].mxu0
    %692 = vmatprep.mubr.f32.mxu0 0.0
    %v693 = vand.u32 %v58, 4294901760
    %694 = vmatmul.mubr.f32.gmra.mrb[0].mxu0 %v693
    %v695 = vpop.f32.mrb[0].mxu0
    %v696 = vadd.f32 %v573, %v695
    %v697 = vpop.f32.mrb[0].mxu0
    %698 = vmatprep.mubr.f32.mxu0 0.0
    %v699 = vand.u32 %v61, 4294901760
    %700 = vmatmul.mubr.f32.gmra.mrb[0].mxu0 %v699
    %v701 = vpop.f32.mrb[0].mxu0
    %v702 = vadd.f32 %v581, %v701
    %v703 = vpop.f32.mrb[0].mxu0
    %704 = vmatprep.mubr.f32.mxu0 0.0
    %v705 = vand.u32 %v64, 4294901760
    %706 = vmatmul.mubr.f32.gmra.mrb[0].mxu0 %v705
    %v707 = vpop.f32.mrb[0].mxu0
    %v708 = vadd.f32 %v589, %v707
    %v709 = vpop.f32.mrb[0].mxu0
    %710 = vdwg.mxu0
    %711 = vmatprep.subr.mxu0 0.0
    %v712 = vand.u32 %v39, 4294901760
    %713 = vmatpush1.msra.mxu0 %v712
    %714 = vmatprep.subr.mxu0 0.0
    %v715 = vand.u32 %v40, 4294901760
    %716 = vmatpush1.msra.mxu0 %v715
    %717 = vmatprep.subr.mxu0 0.0
    %718 = vmatpush1.msra.mxu0 0.0
    %719 = vmatprep.subr.mxu0 0.0
    %720 = vmatpush1.msra.mxu0 0.0
    %721 = vmatprep.subr.mxu0 0.0
    %722 = vmatpush1.msra.mxu0 0.0
    %723 = vmatprep.subr.mxu0 0.0
    %724 = vmatpush1.msra.mxu0 0.0
    %725 = vmatprep.subr.mxu0 0.0
    %726 = vmatpush1.msra.mxu0 0.0
    %727 = vmatprep.subr.mxu0 0.0
    %728 = vmatpush1.msra.mxu0 0.0
    %729 = vmatprep.subr.mxu0 0.0
    %730 = vmatpush1.msra.mxu0 0.0
    %731 = vmatprep.subr.mxu0 0.0
    %732 = vmatpush1.msra.mxu0 0.0
    %733 = vmatprep.subr.mxu0 0.0
    %734 = vmatpush1.msra.mxu0 0.0
    %735 = vmatprep.subr.mxu0 0.0
    %736 = vmatpush1.msra.mxu0 0.0
    %737 = vmatprep.subr.mxu0 0.0
    %738 = vmatpush1.msra.mxu0 0.0
    %739 = vmatprep.subr.mxu0 0.0
    %740 = vmatpush1.msra.mxu0 0.0
    %741 = vmatprep.subr.mxu0 0.0
    %742 = vmatpush1.msra.mxu0 0.0
    %743 = vmatprep.subr.mxu0 0.0
    %744 = vmatpush1.msra.mxu0 0.0
    %745 = vmatprep.subr.mxu0 0.0
    %746 = vmatpush1.msra.mxu0 0.0
    %747 = vmatprep.subr.mxu0 0.0
    %748 = vmatpush1.msra.mxu0 0.0
    %749 = vmatprep.subr.mxu0 0.0
    %750 = vmatpush1.msra.mxu0 0.0
    %751 = vmatprep.subr.mxu0 0.0
    %752 = vmatpush1.msra.mxu0 0.0
    %753 = vmatprep.subr.mxu0 0.0
    %754 = vmatpush1.msra.mxu0 0.0
    %755 = vmatprep.subr.mxu0 0.0
    %756 = vmatpush1.msra.mxu0 0.0
    %757 = vmatprep.subr.mxu0 0.0
    %758 = vmatpush1.msra.mxu0 0.0
    %759 = vmatprep.subr.mxu0 0.0
    %760 = vmatpush1.msra.mxu0 0.0
    %761 = vmatprep.subr.mxu0 0.0
    %762 = vmatpush1.msra.mxu0 0.0
    %763 = vmatprep.subr.mxu0 0.0
    %764 = vmatpush1.msra.mxu0 0.0
    %765 = vmatprep.subr.mxu0 0.0
    %766 = vmatpush1.msra.mxu0 0.0
    %767 = vmatprep.subr.mxu0 0.0
    %768 = vmatpush1.msra.mxu0 0.0
    %769 = vmatprep.subr.mxu0 0.0
    %770 = vmatpush1.msra.mxu0 0.0
    %771 = vmatprep.subr.mxu0 0.0
    %772 = vmatpush1.msra.mxu0 0.0
    %773 = vmatprep.subr.mxu0 0.0
    %774 = vmatpush1.msra.mxu0 0.0
    %775 = vmatprep.subr.mxu0 0.0
    %776 = vmatpush1.msra.mxu0 0.0
    %777 = vmatprep.mubr.f32.mxu0 0.0
    %v778 = vand.u32 %v43, 4294901760
    %779 = vmatmul.mubr.f32.gmra.mrb[0].mxu0 %v778
    %v780 = vpop.f32.mrb[0].mxu0
    %v781 = vadd.f32 %v666, %v780
    %v782 = vpop.f32.mrb[0].mxu0
    %783 = vmatprep.mubr.f32.mxu0 0.0
    %v784 = vand.u32 %v46, 4294901760
    %785 = vmatmul.mubr.f32.gmra.mrb[0].mxu0 %v784
    %v786 = vpop.f32.mrb[0].mxu0
    %v787 = vadd.f32 %v672, %v786
    %v788 = vpop.f32.mrb[0].mxu0
    %789 = vmatprep.mubr.f32.mxu0 0.0
    %v790 = vand.u32 %v49, 4294901760
    %791 = vmatmul.mubr.f32.gmra.mrb[0].mxu0 %v790
    %v792 = vpop.f32.mrb[0].mxu0
    %v793 = vadd.f32 %v678, %v792
    %v794 = vpop.f32.mrb[0].mxu0
    %795 = vmatprep.mubr.f32.mxu0 0.0
    %v796 = vand.u32 %v52, 4294901760
    %797 = vmatmul.mubr.f32.gmra.mrb[0].mxu0 %v796
    %v798 = vpop.f32.mrb[0].mxu0
    %v799 = vadd.f32 %v684, %v798
    %v800 = vpop.f32.mrb[0].mxu0
    %801 = vmatprep.mubr.f32.mxu0 0.0
    %v802 = vand.u32 %v55, 4294901760
    %803 = vmatmul.mubr.f32.gmra.mrb[0].mxu0 %v802
    %v804 = vpop.f32.mrb[0].mxu0
    %v805 = vadd.f32 %v690, %v804
    %v806 = vpop.f32.mrb[0].mxu0
    %807 = vmatprep.mubr.f32.mxu0 0.0
    %v808 = vand.u32 %v58, 4294901760
    %809 = vmatmul.mubr.f32.gmra.mrb[0].mxu0 %v808
    %v810 = vpop.f32.mrb[0].mxu0
    %v811 = vadd.f32 %v696, %v810
    %v812 = vpop.f32.mrb[0].mxu0
    %813 = vmatprep.mubr.f32.mxu0 0.0
    %v814 = vand.u32 %v61, 4294901760
    %815 = vmatmul.mubr.f32.gmra.mrb[0].mxu0 %v814
    %v816 = vpop.f32.mrb[0].mxu0
    %v817 = vadd.f32 %v702, %v816
    %v818 = vpop.f32.mrb[0].mxu0
    %819 = vmatprep.mubr.f32.mxu0 0.0
    %v820 = vand.u32 %v64, 4294901760
    %821 = vmatmul.mubr.f32.gmra.mrb[0].mxu0 %v820
    %v822 = vpop.f32.mrb[0].mxu0
    %v823 = vadd.f32 %v708, %v822
    %v824 = vpop.f32.mrb[0].mxu0
    %825 = vdwg.mxu0
    %v827 = vsel %vm41, %v781, 0
    %v830 = vsel %vm41, %v787, 0
    %v833 = vsel %vm41, %v793, 0
    %v836 = vsel %vm41, %v799, 0
    %v839 = vsel %vm41, %v805, 0
    %v842 = vsel %vm41, %v811, 0
    %v845 = vsel %vm41, %v817, 0
    %v848 = vsel %vm41, %v823, 0
    %850 = vmatprep.subr.mxu0 0.0
    %v851 = vand.u32 %v37, 4294901760
    %852 = vmatpush1.msra.mxu0 %v851
    %853 = vmatprep.subr.mxu0 0.0
    %v854 = vand.u32 %v38, 4294901760
    %855 = vmatpush1.msra.mxu0 %v854
    %856 = vmatprep.subr.mxu0 0.0
    %857 = vmatpush1.msra.mxu0 0.0
    %858 = vmatprep.subr.mxu0 0.0
    %859 = vmatpush1.msra.mxu0 0.0
    %860 = vmatprep.subr.mxu0 0.0
    %861 = vmatpush1.msra.mxu0 0.0
    %862 = vmatprep.subr.mxu0 0.0
    %863 = vmatpush1.msra.mxu0 0.0
    %864 = vmatprep.subr.mxu0 0.0
    %865 = vmatpush1.msra.mxu0 0.0
    %866 = vmatprep.subr.mxu0 0.0
    %867 = vmatpush1.msra.mxu0 0.0
    %868 = vmatprep.subr.mxu0 0.0
    %869 = vmatpush1.msra.mxu0 0.0
    %870 = vmatprep.subr.mxu0 0.0
    %871 = vmatpush1.msra.mxu0 0.0
    %872 = vmatprep.subr.mxu0 0.0
    %873 = vmatpush1.msra.mxu0 0.0
    %874 = vmatprep.subr.mxu0 0.0
    %875 = vmatpush1.msra.mxu0 0.0
    %876 = vmatprep.subr.mxu0 0.0
    %877 = vmatpush1.msra.mxu0 0.0
    %878 = vmatprep.subr.mxu0 0.0
    %879 = vmatpush1.msra.mxu0 0.0
    %880 = vmatprep.subr.mxu0 0.0
    %881 = vmatpush1.msra.mxu0 0.0
    %882 = vmatprep.subr.mxu0 0.0
    %883 = vmatpush1.msra.mxu0 0.0
    %884 = vmatprep.subr.mxu0 0.0
    %885 = vmatpush1.msra.mxu0 0.0
    %886 = vmatprep.subr.mxu0 0.0
    %887 = vmatpush1.msra.mxu0 0.0
    %888 = vmatprep.subr.mxu0 0.0
    %889 = vmatpush1.msra.mxu0 0.0
    %890 = vmatprep.subr.mxu0 0.0
    %891 = vmatpush1.msra.mxu0 0.0
    %892 = vmatprep.subr.mxu0 0.0
    %893 = vmatpush1.msra.mxu0 0.0
    %894 = vmatprep.subr.mxu0 0.0
    %895 = vmatpush1.msra.mxu0 0.0
    %896 = vmatprep.subr.mxu0 0.0
    %897 = vmatpush1.msra.mxu0 0.0
    %898 = vmatprep.subr.mxu0 0.0
    %899 = vmatpush1.msra.mxu0 0.0
    %900 = vmatprep.subr.mxu0 0.0
    %901 = vmatpush1.msra.mxu0 0.0
    %902 = vmatprep.subr.mxu0 0.0
    %903 = vmatpush1.msra.mxu0 0.0
    %904 = vmatprep.subr.mxu0 0.0
    %905 = vmatpush1.msra.mxu0 0.0
    %906 = vmatprep.subr.mxu0 0.0
    %907 = vmatpush1.msra.mxu0 0.0
    %908 = vmatprep.subr.mxu0 0.0
    %909 = vmatpush1.msra.mxu0 0.0
    %910 = vmatprep.subr.mxu0 0.0
    %911 = vmatpush1.msra.mxu0 0.0
    %912 = vmatprep.subr.mxu0 0.0
    %913 = vmatpush1.msra.mxu0 0.0
    %914 = vmatprep.subr.mxu0 0.0
    %915 = vmatpush1.msra.mxu0 0.0
    %916 = vmatprep.mubr.f32.mxu0 0.0
    %v917 = vand.u32 %v827, 4294901760
    %v918 = vsub.f32 %v827, %v917
    %v919 = vand.u32 %v918, 4294901760
    %v920 = vsub.f32 %v918, %v919
    %v921 = vand.u32 %v920, 4294901760
    %922 = vmatmul.mubr.f32.gmra.mrb[0].mxu0 %v921
    %v923 = vpop.f32.mrb[0].mxu0
    %v924 = vadd.f32 0.0, %v923
    %v925 = vpop.f32.mrb[0].mxu0
    %926 = vmatprep.mubr.f32.mxu0 0.0
    %v927 = vand.u32 %v830, 4294901760
    %v928 = vsub.f32 %v830, %v927
    %v929 = vand.u32 %v928, 4294901760
    %v930 = vsub.f32 %v928, %v929
    %v931 = vand.u32 %v930, 4294901760
    %932 = vmatmul.mubr.f32.gmra.mrb[0].mxu0 %v931
    %v933 = vpop.f32.mrb[0].mxu0
    %v934 = vadd.f32 0.0, %v933
    %v935 = vpop.f32.mrb[0].mxu0
    %936 = vmatprep.mubr.f32.mxu0 0.0
    %v937 = vand.u32 %v833, 4294901760
    %v938 = vsub.f32 %v833, %v937
    %v939 = vand.u32 %v938, 4294901760
    %v940 = vsub.f32 %v938, %v939
    %v941 = vand.u32 %v940, 4294901760
    %942 = vmatmul.mubr.f32.gmra.mrb[0].mxu0 %v941
    %v943 = vpop.f32.mrb[0].mxu0
    %v944 = vadd.f32 0.0, %v943
    %v945 = vpop.f32.mrb[0].mxu0
    %946 = vmatprep.mubr.f32.mxu0 0.0
    %v947 = vand.u32 %v836, 4294901760
    %v948 = vsub.f32 %v836, %v947
    %v949 = vand.u32 %v948, 4294901760
    %v950 = vsub.f32 %v948, %v949
    %v951 = vand.u32 %v950, 4294901760
    %952 = vmatmul.mubr.f32.gmra.mrb[0].mxu0 %v951
    %v953 = vpop.f32.mrb[0].mxu0
    %v954 = vadd.f32 0.0, %v953
    %v955 = vpop.f32.mrb[0].mxu0
    %956 = vmatprep.mubr.f32.mxu0 0.0
    %v957 = vand.u32 %v839, 4294901760
    %v958 = vsub.f32 %v839, %v957
    %v959 = vand.u32 %v958, 4294901760
    %v960 = vsub.f32 %v958, %v959
    %v961 = vand.u32 %v960, 4294901760
    %962 = vmatmul.mubr.f32.gmra.mrb[0].mxu0 %v961
    %v963 = vpop.f32.mrb[0].mxu0
    %v964 = vadd.f32 0.0, %v963
    %v965 = vpop.f32.mrb[0].mxu0
    %966 = vmatprep.mubr.f32.mxu0 0.0
    %v967 = vand.u32 %v842, 4294901760
    %v968 = vsub.f32 %v842, %v967
    %v969 = vand.u32 %v968, 4294901760
    %v970 = vsub.f32 %v968, %v969
    %v971 = vand.u32 %v970, 4294901760
    %972 = vmatmul.mubr.f32.gmra.mrb[0].mxu0 %v971
    %v973 = vpop.f32.mrb[0].mxu0
    %v974 = vadd.f32 0.0, %v973
    %v975 = vpop.f32.mrb[0].mxu0
    %976 = vmatprep.mubr.f32.mxu0 0.0
    %v977 = vand.u32 %v845, 4294901760
    %v978 = vsub.f32 %v845, %v977
    %v979 = vand.u32 %v978, 4294901760
    %v980 = vsub.f32 %v978, %v979
    %v981 = vand.u32 %v980, 4294901760
    %982 = vmatmul.mubr.f32.gmra.mrb[0].mxu0 %v981
    %v983 = vpop.f32.mrb[0].mxu0
    %v984 = vadd.f32 0.0, %v983
    %v985 = vpop.f32.mrb[0].mxu0
    %986 = vmatprep.mubr.f32.mxu0 0.0
    %v987 = vand.u32 %v848, 4294901760
    %v988 = vsub.f32 %v848, %v987
    %v989 = vand.u32 %v988, 4294901760
    %v990 = vsub.f32 %v988, %v989
    %v991 = vand.u32 %v990, 4294901760
    %992 = vmatmul.mubr.f32.gmra.mrb[0].mxu0 %v991
    %v993 = vpop.f32.mrb[0].mxu0
    %v994 = vadd.f32 0.0, %v993
    %v995 = vpop.f32.mrb[0].mxu0
    %996 = vdwg.mxu0
    %997 = vmatprep.subr.mxu0 0.0
    %v998 = vand.u32 %v37, 4294901760
    %v999 = vsub.f32 %v37, %v998
    %v1000 = vand.u32 %v999, 4294901760
    %v1001 = vsub.f32 %v999, %v1000
    %v1002 = vand.u32 %v1001, 4294901760
    %1003 = vmatpush1.msra.mxu0 %v1002
    %1004 = vmatprep.subr.mxu0 0.0
    %v1005 = vand.u32 %v38, 4294901760
    %v1006 = vsub.f32 %v38, %v1005
    %v1007 = vand.u32 %v1006, 4294901760
    %v1008 = vsub.f32 %v1006, %v1007
    %v1009 = vand.u32 %v1008, 4294901760
    %1010 = vmatpush1.msra.mxu0 %v1009
    %1011 = vmatprep.subr.mxu0 0.0
    %1012 = vmatpush1.msra.mxu0 0.0
    %1013 = vmatprep.subr.mxu0 0.0
    %1014 = vmatpush1.msra.mxu0 0.0
    %1015 = vmatprep.subr.mxu0 0.0
    %1016 = vmatpush1.msra.mxu0 0.0
    %1017 = vmatprep.subr.mxu0 0.0
    %1018 = vmatpush1.msra.mxu0 0.0
    %1019 = vmatprep.subr.mxu0 0.0
    %1020 = vmatpush1.msra.mxu0 0.0
    %1021 = vmatprep.subr.mxu0 0.0
    %1022 = vmatpush1.msra.mxu0 0.0
    %1023 = vmatprep.subr.mxu0 0.0
    %1024 = vmatpush1.msra.mxu0 0.0
    %1025 = vmatprep.subr.mxu0 0.0
    %1026 = vmatpush1.msra.mxu0 0.0
    %1027 = vmatprep.subr.mxu0 0.0
    %1028 = vmatpush1.msra.mxu0 0.0
    %1029 = vmatprep.subr.mxu0 0.0
    %1030 = vmatpush1.msra.mxu0 0.0
    %1031 = vmatprep.subr.mxu0 0.0
    %1032 = vmatpush1.msra.mxu0 0.0
    %1033 = vmatprep.subr.mxu0 0.0
    %1034 = vmatpush1.msra.mxu0 0.0
    %1035 = vmatprep.subr.mxu0 0.0
    %1036 = vmatpush1.msra.mxu0 0.0
    %1037 = vmatprep.subr.mxu0 0.0
    %1038 = vmatpush1.msra.mxu0 0.0
    %1039 = vmatprep.subr.mxu0 0.0
    %1040 = vmatpush1.msra.mxu0 0.0
    %1041 = vmatprep.subr.mxu0 0.0
    %1042 = vmatpush1.msra.mxu0 0.0
    %1043 = vmatprep.subr.mxu0 0.0
    %1044 = vmatpush1.msra.mxu0 0.0
    %1045 = vmatprep.subr.mxu0 0.0
    %1046 = vmatpush1.msra.mxu0 0.0
    %1047 = vmatprep.subr.mxu0 0.0
    %1048 = vmatpush1.msra.mxu0 0.0
    %1049 = vmatprep.subr.mxu0 0.0
    %1050 = vmatpush1.msra.mxu0 0.0
    %1051 = vmatprep.subr.mxu0 0.0
    %1052 = vmatpush1.msra.mxu0 0.0
    %1053 = vmatprep.subr.mxu0 0.0
    %1054 = vmatpush1.msra.mxu0 0.0
    %1055 = vmatprep.subr.mxu0 0.0
    %1056 = vmatpush1.msra.mxu0 0.0
    %1057 = vmatprep.subr.mxu0 0.0
    %1058 = vmatpush1.msra.mxu0 0.0
    %1059 = vmatprep.subr.mxu0 0.0
    %1060 = vmatpush1.msra.mxu0 0.0
    %1061 = vmatprep.subr.mxu0 0.0
    %1062 = vmatpush1.msra.mxu0 0.0
    %1063 = vmatprep.subr.mxu0 0.0
    %1064 = vmatpush1.msra.mxu0 0.0
    %1065 = vmatprep.subr.mxu0 0.0
    %1066 = vmatpush1.msra.mxu0 0.0
    %1067 = vmatprep.subr.mxu0 0.0
    %1068 = vmatpush1.msra.mxu0 0.0
    %1069 = vmatprep.subr.mxu0 0.0
    %1070 = vmatpush1.msra.mxu0 0.0
    %1071 = vmatprep.mubr.f32.mxu0 0.0
    %v1072 = vand.u32 %v827, 4294901760
    %1073 = vmatmul.mubr.f32.gmra.mrb[0].mxu0 %v1072
    %v1074 = vpop.f32.mrb[0].mxu0
    %v1075 = vadd.f32 %v924, %v1074
    %v1076 = vpop.f32.mrb[0].mxu0
    %1077 = vmatprep.mubr.f32.mxu0 0.0
    %v1078 = vand.u32 %v830, 4294901760
    %1079 = vmatmul.mubr.f32.gmra.mrb[0].mxu0 %v1078
    %v1080 = vpop.f32.mrb[0].mxu0
    %v1081 = vadd.f32 %v934, %v1080
    %v1082 = vpop.f32.mrb[0].mxu0
    %1083 = vmatprep.mubr.f32.mxu0 0.0
    %v1084 = vand.u32 %v833, 4294901760
    %1085 = vmatmul.mubr.f32.gmra.mrb[0].mxu0 %v1084
    %v1086 = vpop.f32.mrb[0].mxu0
    %v1087 = vadd.f32 %v944, %v1086
    %v1088 = vpop.f32.mrb[0].mxu0
    %1089 = vmatprep.mubr.f32.mxu0 0.0
    %v1090 = vand.u32 %v836, 4294901760
    %1091 = vmatmul.mubr.f32.gmra.mrb[0].mxu0 %v1090
    %v1092 = vpop.f32.mrb[0].mxu0
    %v1093 = vadd.f32 %v954, %v1092
    %v1094 = vpop.f32.mrb[0].mxu0
    %1095 = vmatprep.mubr.f32.mxu0 0.0
    %v1096 = vand.u32 %v839, 4294901760
    %1097 = vmatmul.mubr.f32.gmra.mrb[0].mxu0 %v1096
    %v1098 = vpop.f32.mrb[0].mxu0
    %v1099 = vadd.f32 %v964, %v1098
    %v1100 = vpop.f32.mrb[0].mxu0
    %1101 = vmatprep.mubr.f32.mxu0 0.0
    %v1102 = vand.u32 %v842, 4294901760
    %1103 = vmatmul.mubr.f32.gmra.mrb[0].mxu0 %v1102
    %v1104 = vpop.f32.mrb[0].mxu0
    %v1105 = vadd.f32 %v974, %v1104
    %v1106 = vpop.f32.mrb[0].mxu0
    %1107 = vmatprep.mubr.f32.mxu0 0.0
    %v1108 = vand.u32 %v845, 4294901760
    %1109 = vmatmul.mubr.f32.gmra.mrb[0].mxu0 %v1108
    %v1110 = vpop.f32.mrb[0].mxu0
    %v1111 = vadd.f32 %v984, %v1110
    %v1112 = vpop.f32.mrb[0].mxu0
    %1113 = vmatprep.mubr.f32.mxu0 0.0
    %v1114 = vand.u32 %v848, 4294901760
    %1115 = vmatmul.mubr.f32.gmra.mrb[0].mxu0 %v1114
    %v1116 = vpop.f32.mrb[0].mxu0
    %v1117 = vadd.f32 %v994, %v1116
    %v1118 = vpop.f32.mrb[0].mxu0
    %1119 = vdwg.mxu0
    %1120 = vmatprep.subr.mxu0 0.0
    %v1121 = vand.u32 %v37, 4294901760
    %v1122 = vsub.f32 %v37, %v1121
    %1123 = vmatpush1.msra.mxu0 %v1122
    %1124 = vmatprep.subr.mxu0 0.0
    %v1125 = vand.u32 %v38, 4294901760
    %v1126 = vsub.f32 %v38, %v1125
    %1127 = vmatpush1.msra.mxu0 %v1126
    %1128 = vmatprep.subr.mxu0 0.0
    %1129 = vmatpush1.msra.mxu0 0.0
    %1130 = vmatprep.subr.mxu0 0.0
    %1131 = vmatpush1.msra.mxu0 0.0
    %1132 = vmatprep.subr.mxu0 0.0
    %1133 = vmatpush1.msra.mxu0 0.0
    %1134 = vmatprep.subr.mxu0 0.0
    %1135 = vmatpush1.msra.mxu0 0.0
    %1136 = vmatprep.subr.mxu0 0.0
    %1137 = vmatpush1.msra.mxu0 0.0
    %1138 = vmatprep.subr.mxu0 0.0
    %1139 = vmatpush1.msra.mxu0 0.0
    %1140 = vmatprep.subr.mxu0 0.0
    %1141 = vmatpush1.msra.mxu0 0.0
    %1142 = vmatprep.subr.mxu0 0.0
    %1143 = vmatpush1.msra.mxu0 0.0
    %1144 = vmatprep.subr.mxu0 0.0
    %1145 = vmatpush1.msra.mxu0 0.0
    %1146 = vmatprep.subr.mxu0 0.0
    %1147 = vmatpush1.msra.mxu0 0.0
    %1148 = vmatprep.subr.mxu0 0.0
    %1149 = vmatpush1.msra.mxu0 0.0
    %1150 = vmatprep.subr.mxu0 0.0
    %1151 = vmatpush1.msra.mxu0 0.0
    %1152 = vmatprep.subr.mxu0 0.0
    %1153 = vmatpush1.msra.mxu0 0.0
    %1154 = vmatprep.subr.mxu0 0.0
    %1155 = vmatpush1.msra.mxu0 0.0
    %1156 = vmatprep.subr.mxu0 0.0
    %1157 = vmatpush1.msra.mxu0 0.0
    %1158 = vmatprep.subr.mxu0 0.0
    %1159 = vmatpush1.msra.mxu0 0.0
    %1160 = vmatprep.subr.mxu0 0.0
    %1161 = vmatpush1.msra.mxu0 0.0
    %1162 = vmatprep.subr.mxu0 0.0
    %1163 = vmatpush1.msra.mxu0 0.0
    %1164 = vmatprep.subr.mxu0 0.0
    %1165 = vmatpush1.msra.mxu0 0.0
    %1166 = vmatprep.subr.mxu0 0.0
    %1167 = vmatpush1.msra.mxu0 0.0
    %1168 = vmatprep.subr.mxu0 0.0
    %1169 = vmatpush1.msra.mxu0 0.0
    %1170 = vmatprep.subr.mxu0 0.0
    %1171 = vmatpush1.msra.mxu0 0.0
    %1172 = vmatprep.subr.mxu0 0.0
    %1173 = vmatpush1.msra.mxu0 0.0
    %1174 = vmatprep.subr.mxu0 0.0
    %1175 = vmatpush1.msra.mxu0 0.0
    %1176 = vmatprep.subr.mxu0 0.0
    %1177 = vmatpush1.msra.mxu0 0.0
    %1178 = vmatprep.subr.mxu0 0.0
    %1179 = vmatpush1.msra.mxu0 0.0
    %1180 = vmatprep.subr.mxu0 0.0
    %1181 = vmatpush1.msra.mxu0 0.0
    %1182 = vmatprep.subr.mxu0 0.0
    %1183 = vmatpush1.msra.mxu0 0.0
    %1184 = vmatprep.subr.mxu0 0.0
    %1185 = vmatpush1.msra.mxu0 0.0
    %1186 = vmatprep.subr.mxu0 0.0
    %1187 = vmatpush1.msra.mxu0 0.0
    %1188 = vmatprep.mubr.f32.mxu0 0.0
    %v1189 = vand.u32 %v827, 4294901760
    %v1190 = vsub.f32 %v827, %v1189
    %1191 = vmatmul.mubr.f32.gmra.mrb[0].mxu0 %v1190
    %v1192 = vpop.f32.mrb[0].mxu0
    %v1193 = vadd.f32 %v1075, %v1192
    %v1194 = vpop.f32.mrb[0].mxu0
    %1195 = vmatprep.mubr.f32.mxu0 0.0
    %v1196 = vand.u32 %v830, 4294901760
    %v1197 = vsub.f32 %v830, %v1196
    %1198 = vmatmul.mubr.f32.gmra.mrb[0].mxu0 %v1197
    %v1199 = vpop.f32.mrb[0].mxu0
    %v1200 = vadd.f32 %v1081, %v1199
    %v1201 = vpop.f32.mrb[0].mxu0
    %1202 = vmatprep.mubr.f32.mxu0 0.0
    %v1203 = vand.u32 %v833, 4294901760
    %v1204 = vsub.f32 %v833, %v1203
    %1205 = vmatmul.mubr.f32.gmra.mrb[0].mxu0 %v1204
    %v1206 = vpop.f32.mrb[0].mxu0
    %v1207 = vadd.f32 %v1087, %v1206
    %v1208 = vpop.f32.mrb[0].mxu0
    %1209 = vmatprep.mubr.f32.mxu0 0.0
    %v1210 = vand.u32 %v836, 4294901760
    %v1211 = vsub.f32 %v836, %v1210
    %1212 = vmatmul.mubr.f32.gmra.mrb[0].mxu0 %v1211
    %v1213 = vpop.f32.mrb[0].mxu0
    %v1214 = vadd.f32 %v1093, %v1213
    %v1215 = vpop.f32.mrb[0].mxu0
    %1216 = vmatprep.mubr.f32.mxu0 0.0
    %v1217 = vand.u32 %v839, 4294901760
    %v1218 = vsub.f32 %v839, %v1217
    %1219 = vmatmul.mubr.f32.gmra.mrb[0].mxu0 %v1218
    %v1220 = vpop.f32.mrb[0].mxu0
    %v1221 = vadd.f32 %v1099, %v1220
    %v1222 = vpop.f32.mrb[0].mxu0
    %1223 = vmatprep.mubr.f32.mxu0 0.0
    %v1224 = vand.u32 %v842, 4294901760
    %v1225 = vsub.f32 %v842, %v1224
    %1226 = vmatmul.mubr.f32.gmra.mrb[0].mxu0 %v1225
    %v1227 = vpop.f32.mrb[0].mxu0
    %v1228 = vadd.f32 %v1105, %v1227
    %v1229 = vpop.f32.mrb[0].mxu0
    %1230 = vmatprep.mubr.f32.mxu0 0.0
    %v1231 = vand.u32 %v845, 4294901760
    %v1232 = vsub.f32 %v845, %v1231
    %1233 = vmatmul.mubr.f32.gmra.mrb[0].mxu0 %v1232
    %v1234 = vpop.f32.mrb[0].mxu0
    %v1235 = vadd.f32 %v1111, %v1234
    %v1236 = vpop.f32.mrb[0].mxu0
    %1237 = vmatprep.mubr.f32.mxu0 0.0
    %v1238 = vand.u32 %v848, 4294901760
    %v1239 = vsub.f32 %v848, %v1238
    %1240 = vmatmul.mubr.f32.gmra.mrb[0].mxu0 %v1239
    %v1241 = vpop.f32.mrb[0].mxu0
    %v1242 = vadd.f32 %v1117, %v1241
    %v1243 = vpop.f32.mrb[0].mxu0
    %1244 = vdwg.mxu0
    %1245 = vmatprep.subr.mxu0 0.0
    %v1246 = vand.u32 %v37, 4294901760
    %1247 = vmatpush1.msra.mxu0 %v1246
    %1248 = vmatprep.subr.mxu0 0.0
    %v1249 = vand.u32 %v38, 4294901760
    %1250 = vmatpush1.msra.mxu0 %v1249
    %1251 = vmatprep.subr.mxu0 0.0
    %1252 = vmatpush1.msra.mxu0 0.0
    %1253 = vmatprep.subr.mxu0 0.0
    %1254 = vmatpush1.msra.mxu0 0.0
    %1255 = vmatprep.subr.mxu0 0.0
    %1256 = vmatpush1.msra.mxu0 0.0
    %1257 = vmatprep.subr.mxu0 0.0
    %1258 = vmatpush1.msra.mxu0 0.0
    %1259 = vmatprep.subr.mxu0 0.0
    %1260 = vmatpush1.msra.mxu0 0.0
    %1261 = vmatprep.subr.mxu0 0.0
    %1262 = vmatpush1.msra.mxu0 0.0
    %1263 = vmatprep.subr.mxu0 0.0
    %1264 = vmatpush1.msra.mxu0 0.0
    %1265 = vmatprep.subr.mxu0 0.0
    %1266 = vmatpush1.msra.mxu0 0.0
    %1267 = vmatprep.subr.mxu0 0.0
    %1268 = vmatpush1.msra.mxu0 0.0
    %1269 = vmatprep.subr.mxu0 0.0
    %1270 = vmatpush1.msra.mxu0 0.0
    %1271 = vmatprep.subr.mxu0 0.0
    %1272 = vmatpush1.msra.mxu0 0.0
    %1273 = vmatprep.subr.mxu0 0.0
    %1274 = vmatpush1.msra.mxu0 0.0
    %1275 = vmatprep.subr.mxu0 0.0
    %1276 = vmatpush1.msra.mxu0 0.0
    %1277 = vmatprep.subr.mxu0 0.0
    %1278 = vmatpush1.msra.mxu0 0.0
    %1279 = vmatprep.subr.mxu0 0.0
    %1280 = vmatpush1.msra.mxu0 0.0
    %1281 = vmatprep.subr.mxu0 0.0
    %1282 = vmatpush1.msra.mxu0 0.0
    %1283 = vmatprep.subr.mxu0 0.0
    %1284 = vmatpush1.msra.mxu0 0.0
    %1285 = vmatprep.subr.mxu0 0.0
    %1286 = vmatpush1.msra.mxu0 0.0
    %1287 = vmatprep.subr.mxu0 0.0
    %1288 = vmatpush1.msra.mxu0 0.0
    %1289 = vmatprep.subr.mxu0 0.0
    %1290 = vmatpush1.msra.mxu0 0.0
    %1291 = vmatprep.subr.mxu0 0.0
    %1292 = vmatpush1.msra.mxu0 0.0
    %1293 = vmatprep.subr.mxu0 0.0
    %1294 = vmatpush1.msra.mxu0 0.0
    %1295 = vmatprep.subr.mxu0 0.0
    %1296 = vmatpush1.msra.mxu0 0.0
    %1297 = vmatprep.subr.mxu0 0.0
    %1298 = vmatpush1.msra.mxu0 0.0
    %1299 = vmatprep.subr.mxu0 0.0
    %1300 = vmatpush1.msra.mxu0 0.0
    %1301 = vmatprep.subr.mxu0 0.0
    %1302 = vmatpush1.msra.mxu0 0.0
    %1303 = vmatprep.subr.mxu0 0.0
    %1304 = vmatpush1.msra.mxu0 0.0
    %1305 = vmatprep.subr.mxu0 0.0
    %1306 = vmatpush1.msra.mxu0 0.0
    %1307 = vmatprep.subr.mxu0 0.0
    %1308 = vmatpush1.msra.mxu0 0.0
    %1309 = vmatprep.subr.mxu0 0.0
    %1310 = vmatpush1.msra.mxu0 0.0
    %1311 = vmatprep.mubr.f32.mxu0 0.0
    %v1312 = vand.u32 %v827, 4294901760
    %v1313 = vsub.f32 %v827, %v1312
    %v1314 = vand.u32 %v1313, 4294901760
    %1315 = vmatmul.mubr.f32.gmra.mrb[0].mxu0 %v1314
    %v1316 = vpop.f32.mrb[0].mxu0
    %v1317 = vadd.f32 %v1193, %v1316
    %v1318 = vpop.f32.mrb[0].mxu0
    %1319 = vmatprep.mubr.f32.mxu0 0.0
    %v1320 = vand.u32 %v830, 4294901760
    %v1321 = vsub.f32 %v830, %v1320
    %v1322 = vand.u32 %v1321, 4294901760
    %1323 = vmatmul.mubr.f32.gmra.mrb[0].mxu0 %v1322
    %v1324 = vpop.f32.mrb[0].mxu0
    %v1325 = vadd.f32 %v1200, %v1324
    %v1326 = vpop.f32.mrb[0].mxu0
    %1327 = vmatprep.mubr.f32.mxu0 0.0
    %v1328 = vand.u32 %v833, 4294901760
    %v1329 = vsub.f32 %v833, %v1328
    %v1330 = vand.u32 %v1329, 4294901760
    %1331 = vmatmul.mubr.f32.gmra.mrb[0].mxu0 %v1330
    %v1332 = vpop.f32.mrb[0].mxu0
    %v1333 = vadd.f32 %v1207, %v1332
    %v1334 = vpop.f32.mrb[0].mxu0
    %1335 = vmatprep.mubr.f32.mxu0 0.0
    %v1336 = vand.u32 %v836, 4294901760
    %v1337 = vsub.f32 %v836, %v1336
    %v1338 = vand.u32 %v1337, 4294901760
    %1339 = vmatmul.mubr.f32.gmra.mrb[0].mxu0 %v1338
    %v1340 = vpop.f32.mrb[0].mxu0
    %v1341 = vadd.f32 %v1214, %v1340
    %v1342 = vpop.f32.mrb[0].mxu0
    %1343 = vmatprep.mubr.f32.mxu0 0.0
    %v1344 = vand.u32 %v839, 4294901760
    %v1345 = vsub.f32 %v839, %v1344
    %v1346 = vand.u32 %v1345, 4294901760
    %1347 = vmatmul.mubr.f32.gmra.mrb[0].mxu0 %v1346
    %v1348 = vpop.f32.mrb[0].mxu0
    %v1349 = vadd.f32 %v1221, %v1348
    %v1350 = vpop.f32.mrb[0].mxu0
    %1351 = vmatprep.mubr.f32.mxu0 0.0
    %v1352 = vand.u32 %v842, 4294901760
    %v1353 = vsub.f32 %v842, %v1352
    %v1354 = vand.u32 %v1353, 4294901760
    %1355 = vmatmul.mubr.f32.gmra.mrb[0].mxu0 %v1354
    %v1356 = vpop.f32.mrb[0].mxu0
    %v1357 = vadd.f32 %v1228, %v1356
    %v1358 = vpop.f32.mrb[0].mxu0
    %1359 = vmatprep.mubr.f32.mxu0 0.0
    %v1360 = vand.u32 %v845, 4294901760
    %v1361 = vsub.f32 %v845, %v1360
    %v1362 = vand.u32 %v1361, 4294901760
    %1363 = vmatmul.mubr.f32.gmra.mrb[0].mxu0 %v1362
    %v1364 = vpop.f32.mrb[0].mxu0
    %v1365 = vadd.f32 %v1235, %v1364
    %v1366 = vpop.f32.mrb[0].mxu0
    %1367 = vmatprep.mubr.f32.mxu0 0.0
    %v1368 = vand.u32 %v848, 4294901760
    %v1369 = vsub.f32 %v848, %v1368
    %v1370 = vand.u32 %v1369, 4294901760
    %1371 = vmatmul.mubr.f32.gmra.mrb[0].mxu0 %v1370
    %v1372 = vpop.f32.mrb[0].mxu0
    %v1373 = vadd.f32 %v1242, %v1372
    %v1374 = vpop.f32.mrb[0].mxu0
    %1375 = vdwg.mxu0
    %1376 = vmatprep.subr.mxu0 0.0
    %v1377 = vand.u32 %v37, 4294901760
    %v1378 = vsub.f32 %v37, %v1377
    %v1379 = vand.u32 %v1378, 4294901760
    %1380 = vmatpush1.msra.mxu0 %v1379
    %1381 = vmatprep.subr.mxu0 0.0
    %v1382 = vand.u32 %v38, 4294901760
    %v1383 = vsub.f32 %v38, %v1382
    %v1384 = vand.u32 %v1383, 4294901760
    %1385 = vmatpush1.msra.mxu0 %v1384
    %1386 = vmatprep.subr.mxu0 0.0
    %1387 = vmatpush1.msra.mxu0 0.0
    %1388 = vmatprep.subr.mxu0 0.0
    %1389 = vmatpush1.msra.mxu0 0.0
    %1390 = vmatprep.subr.mxu0 0.0
    %1391 = vmatpush1.msra.mxu0 0.0
    %1392 = vmatprep.subr.mxu0 0.0
    %1393 = vmatpush1.msra.mxu0 0.0
    %1394 = vmatprep.subr.mxu0 0.0
    %1395 = vmatpush1.msra.mxu0 0.0
    %1396 = vmatprep.subr.mxu0 0.0
    %1397 = vmatpush1.msra.mxu0 0.0
    %1398 = vmatprep.subr.mxu0 0.0
    %1399 = vmatpush1.msra.mxu0 0.0
    %1400 = vmatprep.subr.mxu0 0.0
    %1401 = vmatpush1.msra.mxu0 0.0
    %1402 = vmatprep.subr.mxu0 0.0
    %1403 = vmatpush1.msra.mxu0 0.0
    %1404 = vmatprep.subr.mxu0 0.0
    %1405 = vmatpush1.msra.mxu0 0.0
    %1406 = vmatprep.subr.mxu0 0.0
    %1407 = vmatpush1.msra.mxu0 0.0
    %1408 = vmatprep.subr.mxu0 0.0
    %1409 = vmatpush1.msra.mxu0 0.0
    %1410 = vmatprep.subr.mxu0 0.0
    %1411 = vmatpush1.msra.mxu0 0.0
    %1412 = vmatprep.subr.mxu0 0.0
    %1413 = vmatpush1.msra.mxu0 0.0
    %1414 = vmatprep.subr.mxu0 0.0
    %1415 = vmatpush1.msra.mxu0 0.0
    %1416 = vmatprep.subr.mxu0 0.0
    %1417 = vmatpush1.msra.mxu0 0.0
    %1418 = vmatprep.subr.mxu0 0.0
    %1419 = vmatpush1.msra.mxu0 0.0
    %1420 = vmatprep.subr.mxu0 0.0
    %1421 = vmatpush1.msra.mxu0 0.0
    %1422 = vmatprep.subr.mxu0 0.0
    %1423 = vmatpush1.msra.mxu0 0.0
    %1424 = vmatprep.subr.mxu0 0.0
    %1425 = vmatpush1.msra.mxu0 0.0
    %1426 = vmatprep.subr.mxu0 0.0
    %1427 = vmatpush1.msra.mxu0 0.0
    %1428 = vmatprep.subr.mxu0 0.0
    %1429 = vmatpush1.msra.mxu0 0.0
    %1430 = vmatprep.subr.mxu0 0.0
    %1431 = vmatpush1.msra.mxu0 0.0
    %1432 = vmatprep.subr.mxu0 0.0
    %1433 = vmatpush1.msra.mxu0 0.0
    %1434 = vmatprep.subr.mxu0 0.0
    %1435 = vmatpush1.msra.mxu0 0.0
    %1436 = vmatprep.subr.mxu0 0.0
    %1437 = vmatpush1.msra.mxu0 0.0
    %1438 = vmatprep.subr.mxu0 0.0
    %1439 = vmatpush1.msra.mxu0 0.0
    %1440 = vmatprep.subr.mxu0 0.0
    %1441 = vmatpush1.msra.mxu0 0.0
    %1442 = vmatprep.subr.mxu0 0.0
    %1443 = vmatpush1.msra.mxu0 0.0
    %1444 = vmatprep.subr.mxu0 0.0
    %1445 = vmatpush1.msra.mxu0 0.0
    %1446 = vmatprep.mubr.f32.mxu0 0.0
    %v1447 = vand.u32 %v827, 4294901760
    %1448 = vmatmul.mubr.f32.gmra.mrb[0].mxu0 %v1447
    %v1449 = vpop.f32.mrb[0].mxu0
    %v1450 = vadd.f32 %v1317, %v1449
    %v1451 = vpop.f32.mrb[0].mxu0
    %1452 = vmatprep.mubr.f32.mxu0 0.0
    %v1453 = vand.u32 %v830, 4294901760
    %1454 = vmatmul.mubr.f32.gmra.mrb[0].mxu0 %v1453
    %v1455 = vpop.f32.mrb[0].mxu0
    %v1456 = vadd.f32 %v1325, %v1455
    %v1457 = vpop.f32.mrb[0].mxu0
    %1458 = vmatprep.mubr.f32.mxu0 0.0
    %v1459 = vand.u32 %v833, 4294901760
    %1460 = vmatmul.mubr.f32.gmra.mrb[0].mxu0 %v1459
    %v1461 = vpop.f32.mrb[0].mxu0
    %v1462 = vadd.f32 %v1333, %v1461
    %v1463 = vpop.f32.mrb[0].mxu0
    %1464 = vmatprep.mubr.f32.mxu0 0.0
    %v1465 = vand.u32 %v836, 4294901760
    %1466 = vmatmul.mubr.f32.gmra.mrb[0].mxu0 %v1465
    %v1467 = vpop.f32.mrb[0].mxu0
    %v1468 = vadd.f32 %v1341, %v1467
    %v1469 = vpop.f32.mrb[0].mxu0
    %1470 = vmatprep.mubr.f32.mxu0 0.0
    %v1471 = vand.u32 %v839, 4294901760
    %1472 = vmatmul.mubr.f32.gmra.mrb[0].mxu0 %v1471
    %v1473 = vpop.f32.mrb[0].mxu0
    %v1474 = vadd.f32 %v1349, %v1473
    %v1475 = vpop.f32.mrb[0].mxu0
    %1476 = vmatprep.mubr.f32.mxu0 0.0
    %v1477 = vand.u32 %v842, 4294901760
    %1478 = vmatmul.mubr.f32.gmra.mrb[0].mxu0 %v1477
    %v1479 = vpop.f32.mrb[0].mxu0
    %v1480 = vadd.f32 %v1357, %v1479
    %v1481 = vpop.f32.mrb[0].mxu0
    %1482 = vmatprep.mubr.f32.mxu0 0.0
    %v1483 = vand.u32 %v845, 4294901760
    %1484 = vmatmul.mubr.f32.gmra.mrb[0].mxu0 %v1483
    %v1485 = vpop.f32.mrb[0].mxu0
    %v1486 = vadd.f32 %v1365, %v1485
    %v1487 = vpop.f32.mrb[0].mxu0
    %1488 = vmatprep.mubr.f32.mxu0 0.0
    %v1489 = vand.u32 %v848, 4294901760
    %1490 = vmatmul.mubr.f32.gmra.mrb[0].mxu0 %v1489
    %v1491 = vpop.f32.mrb[0].mxu0
    %v1492 = vadd.f32 %v1373, %v1491
    %v1493 = vpop.f32.mrb[0].mxu0
    %1494 = vdwg.mxu0
    %1495 = vmatprep.subr.mxu0 0.0
    %v1496 = vand.u32 %v37, 4294901760
    %1497 = vmatpush1.msra.mxu0 %v1496
    %1498 = vmatprep.subr.mxu0 0.0
    %v1499 = vand.u32 %v38, 4294901760
    %1500 = vmatpush1.msra.mxu0 %v1499
    %1501 = vmatprep.subr.mxu0 0.0
    %1502 = vmatpush1.msra.mxu0 0.0
    %1503 = vmatprep.subr.mxu0 0.0
    %1504 = vmatpush1.msra.mxu0 0.0
    %1505 = vmatprep.subr.mxu0 0.0
    %1506 = vmatpush1.msra.mxu0 0.0
    %1507 = vmatprep.subr.mxu0 0.0
    %1508 = vmatpush1.msra.mxu0 0.0
    %1509 = vmatprep.subr.mxu0 0.0
    %1510 = vmatpush1.msra.mxu0 0.0
    %1511 = vmatprep.subr.mxu0 0.0
    %1512 = vmatpush1.msra.mxu0 0.0
    %1513 = vmatprep.subr.mxu0 0.0
    %1514 = vmatpush1.msra.mxu0 0.0
    %1515 = vmatprep.subr.mxu0 0.0
    %1516 = vmatpush1.msra.mxu0 0.0
    %1517 = vmatprep.subr.mxu0 0.0
    %1518 = vmatpush1.msra.mxu0 0.0
    %1519 = vmatprep.subr.mxu0 0.0
    %1520 = vmatpush1.msra.mxu0 0.0
    %1521 = vmatprep.subr.mxu0 0.0
    %1522 = vmatpush1.msra.mxu0 0.0
    %1523 = vmatprep.subr.mxu0 0.0
    %1524 = vmatpush1.msra.mxu0 0.0
    %1525 = vmatprep.subr.mxu0 0.0
    %1526 = vmatpush1.msra.mxu0 0.0
    %1527 = vmatprep.subr.mxu0 0.0
    %1528 = vmatpush1.msra.mxu0 0.0
    %1529 = vmatprep.subr.mxu0 0.0
    %1530 = vmatpush1.msra.mxu0 0.0
    %1531 = vmatprep.subr.mxu0 0.0
    %1532 = vmatpush1.msra.mxu0 0.0
    %1533 = vmatprep.subr.mxu0 0.0
    %1534 = vmatpush1.msra.mxu0 0.0
    %1535 = vmatprep.subr.mxu0 0.0
    %1536 = vmatpush1.msra.mxu0 0.0
    %1537 = vmatprep.subr.mxu0 0.0
    %1538 = vmatpush1.msra.mxu0 0.0
    %1539 = vmatprep.subr.mxu0 0.0
    %1540 = vmatpush1.msra.mxu0 0.0
    %1541 = vmatprep.subr.mxu0 0.0
    %1542 = vmatpush1.msra.mxu0 0.0
    %1543 = vmatprep.subr.mxu0 0.0
    %1544 = vmatpush1.msra.mxu0 0.0
    %1545 = vmatprep.subr.mxu0 0.0
    %1546 = vmatpush1.msra.mxu0 0.0
    %1547 = vmatprep.subr.mxu0 0.0
    %1548 = vmatpush1.msra.mxu0 0.0
    %1549 = vmatprep.subr.mxu0 0.0
    %1550 = vmatpush1.msra.mxu0 0.0
    %1551 = vmatprep.subr.mxu0 0.0
    %1552 = vmatpush1.msra.mxu0 0.0
    %1553 = vmatprep.subr.mxu0 0.0
    %1554 = vmatpush1.msra.mxu0 0.0
    %1555 = vmatprep.subr.mxu0 0.0
    %1556 = vmatpush1.msra.mxu0 0.0
    %1557 = vmatprep.subr.mxu0 0.0
    %1558 = vmatpush1.msra.mxu0 0.0
    %1559 = vmatprep.subr.mxu0 0.0
    %1560 = vmatpush1.msra.mxu0 0.0
    %1561 = vmatprep.mubr.f32.mxu0 0.0
    %v1562 = vand.u32 %v827, 4294901760
    %1563 = vmatmul.mubr.f32.gmra.mrb[0].mxu0 %v1562
    %v1564 = vpop.f32.mrb[0].mxu0
    %v1565 = vadd.f32 %v1450, %v1564
    %v1566 = vpop.f32.mrb[0].mxu0
    %1567 = vmatprep.mubr.f32.mxu0 0.0
    %v1568 = vand.u32 %v830, 4294901760
    %1569 = vmatmul.mubr.f32.gmra.mrb[0].mxu0 %v1568
    %v1570 = vpop.f32.mrb[0].mxu0
    %v1571 = vadd.f32 %v1456, %v1570
    %v1572 = vpop.f32.mrb[0].mxu0
    %1573 = vmatprep.mubr.f32.mxu0 0.0
    %v1574 = vand.u32 %v833, 4294901760
    %1575 = vmatmul.mubr.f32.gmra.mrb[0].mxu0 %v1574
    %v1576 = vpop.f32.mrb[0].mxu0
    %v1577 = vadd.f32 %v1462, %v1576
    %v1578 = vpop.f32.mrb[0].mxu0
    %1579 = vmatprep.mubr.f32.mxu0 0.0
    %v1580 = vand.u32 %v836, 4294901760
    %1581 = vmatmul.mubr.f32.gmra.mrb[0].mxu0 %v1580
    %v1582 = vpop.f32.mrb[0].mxu0
    %v1583 = vadd.f32 %v1468, %v1582
    %v1584 = vpop.f32.mrb[0].mxu0
    %1585 = vmatprep.mubr.f32.mxu0 0.0
    %v1586 = vand.u32 %v839, 4294901760
    %1587 = vmatmul.mubr.f32.gmra.mrb[0].mxu0 %v1586
    %v1588 = vpop.f32.mrb[0].mxu0
    %v1589 = vadd.f32 %v1474, %v1588
    %v1590 = vpop.f32.mrb[0].mxu0
    %1591 = vmatprep.mubr.f32.mxu0 0.0
    %v1592 = vand.u32 %v842, 4294901760
    %1593 = vmatmul.mubr.f32.gmra.mrb[0].mxu0 %v1592
    %v1594 = vpop.f32.mrb[0].mxu0
    %v1595 = vadd.f32 %v1480, %v1594
    %v1596 = vpop.f32.mrb[0].mxu0
    %1597 = vmatprep.mubr.f32.mxu0 0.0
    %v1598 = vand.u32 %v845, 4294901760
    %1599 = vmatmul.mubr.f32.gmra.mrb[0].mxu0 %v1598
    %v1600 = vpop.f32.mrb[0].mxu0
    %v1601 = vadd.f32 %v1486, %v1600
    %v1602 = vpop.f32.mrb[0].mxu0
    %1603 = vmatprep.mubr.f32.mxu0 0.0
    %v1604 = vand.u32 %v848, 4294901760
    %1605 = vmatmul.mubr.f32.gmra.mrb[0].mxu0 %v1604
    %v1606 = vpop.f32.mrb[0].mxu0
    %v1607 = vadd.f32 %v1492, %v1606
    %v1608 = vpop.f32.mrb[0].mxu0
    %1609 = vdwg.mxu0
    %vm1610 = vcmask 523264
    %1611 = vst.msk [vmem:[#allocation5] sm:$0xff] %vm1610, %v1565
    %1612 = vst.msk [vmem:[#allocation5 + $0x8] sm:$0xff] %vm1610, %v1571
    %1613 = vst.msk [vmem:[#allocation5 + $0x10] sm:$0xff] %vm1610, %v1577
    %1614 = vst.msk [vmem:[#allocation5 + $0x18] sm:$0xff] %vm1610, %v1583
    %1615 = vst.msk [vmem:[#allocation5 + $0x20] sm:$0xff] %vm1610, %v1589
    %1616 = vst.msk [vmem:[#allocation5 + $0x28] sm:$0xff] %vm1610, %v1595
    %1617 = vst.msk [vmem:[#allocation5 + $0x30] sm:$0xff] %vm1610, %v1601
    %1618 = vst.msk [vmem:[#allocation5 + $0x38] sm:$0xff] %vm1610, %v1607
    %s1619 = scalar_lea.vmem [#allocation2], 16
    %v1620 = vld [vmem:[%s1619] sm:$0xff]
    %v1621 = vld [vmem:[%s1619 + $0x8] sm:$0xff]
    %1622 = vmatprep.subr.mxu0 0.0
    %v1623 = vand.u32 %v1620, 4294901760
    %1624 = vmatpush1.msra.mxu0 %v1623
    %1625 = vmatprep.subr.mxu0 0.0
    %v1626 = vand.u32 %v1621, 4294901760
    %1627 = vmatpush1.msra.mxu0 %v1626
    %1628 = vmatprep.subr.mxu0 0.0
    %1629 = vmatpush1.msra.mxu0 0.0
    %1630 = vmatprep.subr.mxu0 0.0
    %1631 = vmatpush1.msra.mxu0 0.0
    %1632 = vmatprep.subr.mxu0 0.0
    %1633 = vmatpush1.msra.mxu0 0.0
    %1634 = vmatprep.subr.mxu0 0.0
    %1635 = vmatpush1.msra.mxu0 0.0
    %1636 = vmatprep.subr.mxu0 0.0
    %1637 = vmatpush1.msra.mxu0 0.0
    %1638 = vmatprep.subr.mxu0 0.0
    %1639 = vmatpush1.msra.mxu0 0.0
    %1640 = vmatprep.subr.mxu0 0.0
    %1641 = vmatpush1.msra.mxu0 0.0
    %1642 = vmatprep.subr.mxu0 0.0
    %1643 = vmatpush1.msra.mxu0 0.0
    %1644 = vmatprep.subr.mxu0 0.0
    %1645 = vmatpush1.msra.mxu0 0.0
    %1646 = vmatprep.subr.mxu0 0.0
    %1647 = vmatpush1.msra.mxu0 0.0
    %1648 = vmatprep.subr.mxu0 0.0
    %1649 = vmatpush1.msra.mxu0 0.0
    %1650 = vmatprep.subr.mxu0 0.0
    %1651 = vmatpush1.msra.mxu0 0.0
    %1652 = vmatprep.subr.mxu0 0.0
    %1653 = vmatpush1.msra.mxu0 0.0
    %1654 = vmatprep.subr.mxu0 0.0
    %1655 = vmatpush1.msra.mxu0 0.0
    %1656 = vmatprep.subr.mxu0 0.0
    %1657 = vmatpush1.msra.mxu0 0.0
    %1658 = vmatprep.subr.mxu0 0.0
    %1659 = vmatpush1.msra.mxu0 0.0
    %1660 = vmatprep.subr.mxu0 0.0
    %1661 = vmatpush1.msra.mxu0 0.0
    %1662 = vmatprep.subr.mxu0 0.0
    %1663 = vmatpush1.msra.mxu0 0.0
    %1664 = vmatprep.subr.mxu0 0.0
    %1665 = vmatpush1.msra.mxu0 0.0
    %1666 = vmatprep.subr.mxu0 0.0
    %1667 = vmatpush1.msra.mxu0 0.0
    %1668 = vmatprep.subr.mxu0 0.0
    %1669 = vmatpush1.msra.mxu0 0.0
    %1670 = vmatprep.subr.mxu0 0.0
    %1671 = vmatpush1.msra.mxu0 0.0
    %1672 = vmatprep.subr.mxu0 0.0
    %1673 = vmatpush1.msra.mxu0 0.0
    %1674 = vmatprep.subr.mxu0 0.0
    %1675 = vmatpush1.msra.mxu0 0.0
    %1676 = vmatprep.subr.mxu0 0.0
    %1677 = vmatpush1.msra.mxu0 0.0
    %1678 = vmatprep.subr.mxu0 0.0
    %1679 = vmatpush1.msra.mxu0 0.0
    %1680 = vmatprep.subr.mxu0 0.0
    %1681 = vmatpush1.msra.mxu0 0.0
    %1682 = vmatprep.subr.mxu0 0.0
    %1683 = vmatpush1.msra.mxu0 0.0
    %1684 = vmatprep.subr.mxu0 0.0
    %1685 = vmatpush1.msra.mxu0 0.0
    %1686 = vmatprep.subr.mxu0 0.0
    %1687 = vmatpush1.msra.mxu0 0.0
    %1688 = vmatprep.mubr.f32.mxu0 0.0
    %v1689 = vand.u32 %v43, 4294901760
    %v1690 = vsub.f32 %v43, %v1689
    %v1691 = vand.u32 %v1690, 4294901760
    %v1692 = vsub.f32 %v1690, %v1691
    %v1693 = vand.u32 %v1692, 4294901760
    %1694 = vmatmul.mubr.f32.gmra.mrb[0].mxu0 %v1693
    %v1695 = vpop.f32.mrb[0].mxu0
    %v1696 = vadd.f32 0.0, %v1695
    %v1697 = vpop.f32.mrb[0].mxu0
    %1698 = vmatprep.mubr.f32.mxu0 0.0
    %v1699 = vand.u32 %v46, 4294901760
    %v1700 = vsub.f32 %v46, %v1699
    %v1701 = vand.u32 %v1700, 4294901760
    %v1702 = vsub.f32 %v1700, %v1701
    %v1703 = vand.u32 %v1702, 4294901760
    %1704 = vmatmul.mubr.f32.gmra.mrb[0].mxu0 %v1703
    %v1705 = vpop.f32.mrb[0].mxu0
    %v1706 = vadd.f32 0.0, %v1705
    %v1707 = vpop.f32.mrb[0].mxu0
    %1708 = vmatprep.mubr.f32.mxu0 0.0
    %v1709 = vand.u32 %v49, 4294901760
    %v1710 = vsub.f32 %v49, %v1709
    %v1711 = vand.u32 %v1710, 4294901760
    %v1712 = vsub.f32 %v1710, %v1711
    %v1713 = vand.u32 %v1712, 4294901760
    %1714 = vmatmul.mubr.f32.gmra.mrb[0].mxu0 %v1713
    %v1715 = vpop.f32.mrb[0].mxu0
    %v1716 = vadd.f32 0.0, %v1715
    %v1717 = vpop.f32.mrb[0].mxu0
    %1718 = vmatprep.mubr.f32.mxu0 0.0
    %v1719 = vand.u32 %v52, 4294901760
    %v1720 = vsub.f32 %v52, %v1719
    %v1721 = vand.u32 %v1720, 4294901760
    %v1722 = vsub.f32 %v1720, %v1721
    %v1723 = vand.u32 %v1722, 4294901760
    %1724 = vmatmul.mubr.f32.gmra.mrb[0].mxu0 %v1723
    %v1725 = vpop.f32.mrb[0].mxu0
    %v1726 = vadd.f32 0.0, %v1725
    %v1727 = vpop.f32.mrb[0].mxu0
    %1728 = vmatprep.mubr.f32.mxu0 0.0
    %v1729 = vand.u32 %v55, 4294901760
    %v1730 = vsub.f32 %v55, %v1729
    %v1731 = vand.u32 %v1730, 4294901760
    %v1732 = vsub.f32 %v1730, %v1731
    %v1733 = vand.u32 %v1732, 4294901760
    %1734 = vmatmul.mubr.f32.gmra.mrb[0].mxu0 %v1733
    %v1735 = vpop.f32.mrb[0].mxu0
    %v1736 = vadd.f32 0.0, %v1735
    %v1737 = vpop.f32.mrb[0].mxu0
    %1738 = vmatprep.mubr.f32.mxu0 0.0
    %v1739 = vand.u32 %v58, 4294901760
    %v1740 = vsub.f32 %v58, %v1739
    %v1741 = vand.u32 %v1740, 4294901760
    %v1742 = vsub.f32 %v1740, %v1741
    %v1743 = vand.u32 %v1742, 4294901760
    %1744 = vmatmul.mubr.f32.gmra.mrb[0].mxu0 %v1743
    %v1745 = vpop.f32.mrb[0].mxu0
    %v1746 = vadd.f32 0.0, %v1745
    %v1747 = vpop.f32.mrb[0].mxu0
    %1748 = vmatprep.mubr.f32.mxu0 0.0
    %v1749 = vand.u32 %v61, 4294901760
    %v1750 = vsub.f32 %v61, %v1749
    %v1751 = vand.u32 %v1750, 4294901760
    %v1752 = vsub.f32 %v1750, %v1751
    %v1753 = vand.u32 %v1752, 4294901760
    %1754 = vmatmul.mubr.f32.gmra.mrb[0].mxu0 %v1753
    %v1755 = vpop.f32.mrb[0].mxu0
    %v1756 = vadd.f32 0.0, %v1755
    %v1757 = vpop.f32.mrb[0].mxu0
    %1758 = vmatprep.mubr.f32.mxu0 0.0
    %v1759 = vand.u32 %v64, 4294901760
    %v1760 = vsub.f32 %v64, %v1759
    %v1761 = vand.u32 %v1760, 4294901760
    %v1762 = vsub.f32 %v1760, %v1761
    %v1763 = vand.u32 %v1762, 4294901760
    %1764 = vmatmul.mubr.f32.gmra.mrb[0].mxu0 %v1763
    %v1765 = vpop.f32.mrb[0].mxu0
    %v1766 = vadd.f32 0.0, %v1765
    %v1767 = vpop.f32.mrb[0].mxu0
    %1768 = vdwg.mxu0
    %1769 = vmatprep.subr.mxu0 0.0
    %v1770 = vand.u32 %v1620, 4294901760
    %v1771 = vsub.f32 %v1620, %v1770
    %v1772 = vand.u32 %v1771, 4294901760
    %v1773 = vsub.f32 %v1771, %v1772
    %v1774 = vand.u32 %v1773, 4294901760
    %1775 = vmatpush1.msra.mxu0 %v1774
    %1776 = vmatprep.subr.mxu0 0.0
    %v1777 = vand.u32 %v1621, 4294901760
    %v1778 = vsub.f32 %v1621, %v1777
    %v1779 = vand.u32 %v1778, 4294901760
    %v1780 = vsub.f32 %v1778, %v1779
    %v1781 = vand.u32 %v1780, 4294901760
    %1782 = vmatpush1.msra.mxu0 %v1781
    %1783 = vmatprep.subr.mxu0 0.0
    %1784 = vmatpush1.msra.mxu0 0.0
    %1785 = vmatprep.subr.mxu0 0.0
    %1786 = vmatpush1.msra.mxu0 0.0
    %1787 = vmatprep.subr.mxu0 0.0
    %1788 = vmatpush1.msra.mxu0 0.0
    %1789 = vmatprep.subr.mxu0 0.0
    %1790 = vmatpush1.msra.mxu0 0.0
    %1791 = vmatprep.subr.mxu0 0.0
    %1792 = vmatpush1.msra.mxu0 0.0
    %1793 = vmatprep.subr.mxu0 0.0
    %1794 = vmatpush1.msra.mxu0 0.0
    %1795 = vmatprep.subr.mxu0 0.0
    %1796 = vmatpush1.msra.mxu0 0.0
    %1797 = vmatprep.subr.mxu0 0.0
    %1798 = vmatpush1.msra.mxu0 0.0
    %1799 = vmatprep.subr.mxu0 0.0
    %1800 = vmatpush1.msra.mxu0 0.0
    %1801 = vmatprep.subr.mxu0 0.0
    %1802 = vmatpush1.msra.mxu0 0.0
    %1803 = vmatprep.subr.mxu0 0.0
    %1804 = vmatpush1.msra.mxu0 0.0
    %1805 = vmatprep.subr.mxu0 0.0
    %1806 = vmatpush1.msra.mxu0 0.0
    %1807 = vmatprep.subr.mxu0 0.0
    %1808 = vmatpush1.msra.mxu0 0.0
    %1809 = vmatprep.subr.mxu0 0.0
    %1810 = vmatpush1.msra.mxu0 0.0
    %1811 = vmatprep.subr.mxu0 0.0
    %1812 = vmatpush1.msra.mxu0 0.0
    %1813 = vmatprep.subr.mxu0 0.0
    %1814 = vmatpush1.msra.mxu0 0.0
    %1815 = vmatprep.subr.mxu0 0.0
    %1816 = vmatpush1.msra.mxu0 0.0
    %1817 = vmatprep.subr.mxu0 0.0
    %1818 = vmatpush1.msra.mxu0 0.0
    %1819 = vmatprep.subr.mxu0 0.0
    %1820 = vmatpush1.msra.mxu0 0.0
    %1821 = vmatprep.subr.mxu0 0.0
    %1822 = vmatpush1.msra.mxu0 0.0
    %1823 = vmatprep.subr.mxu0 0.0
    %1824 = vmatpush1.msra.mxu0 0.0
    %1825 = vmatprep.subr.mxu0 0.0
    %1826 = vmatpush1.msra.mxu0 0.0
    %1827 = vmatprep.subr.mxu0 0.0
    %1828 = vmatpush1.msra.mxu0 0.0
    %1829 = vmatprep.subr.mxu0 0.0
    %1830 = vmatpush1.msra.mxu0 0.0
    %1831 = vmatprep.subr.mxu0 0.0
    %1832 = vmatpush1.msra.mxu0 0.0
    %1833 = vmatprep.subr.mxu0 0.0
    %1834 = vmatpush1.msra.mxu0 0.0
    %1835 = vmatprep.subr.mxu0 0.0
    %1836 = vmatpush1.msra.mxu0 0.0
    %1837 = vmatprep.subr.mxu0 0.0
    %1838 = vmatpush1.msra.mxu0 0.0
    %1839 = vmatprep.subr.mxu0 0.0
    %1840 = vmatpush1.msra.mxu0 0.0
    %1841 = vmatprep.subr.mxu0 0.0
    %1842 = vmatpush1.msra.mxu0 0.0
    %1843 = vmatprep.mubr.f32.mxu0 0.0
    %v1844 = vand.u32 %v43, 4294901760
    %1845 = vmatmul.mubr.f32.gmra.mrb[0].mxu0 %v1844
    %v1846 = vpop.f32.mrb[0].mxu0
    %v1847 = vadd.f32 %v1696, %v1846
    %v1848 = vpop.f32.mrb[0].mxu0
    %1849 = vmatprep.mubr.f32.mxu0 0.0
    %v1850 = vand.u32 %v46, 4294901760
    %1851 = vmatmul.mubr.f32.gmra.mrb[0].mxu0 %v1850
    %v1852 = vpop.f32.mrb[0].mxu0
    %v1853 = vadd.f32 %v1706, %v1852
    %v1854 = vpop.f32.mrb[0].mxu0
    %1855 = vmatprep.mubr.f32.mxu0 0.0
    %v1856 = vand.u32 %v49, 4294901760
    %1857 = vmatmul.mubr.f32.gmra.mrb[0].mxu0 %v1856
    %v1858 = vpop.f32.mrb[0].mxu0
    %v1859 = vadd.f32 %v1716, %v1858
    %v1860 = vpop.f32.mrb[0].mxu0
    %1861 = vmatprep.mubr.f32.mxu0 0.0
    %v1862 = vand.u32 %v52, 4294901760
    %1863 = vmatmul.mubr.f32.gmra.mrb[0].mxu0 %v1862
    %v1864 = vpop.f32.mrb[0].mxu0
    %v1865 = vadd.f32 %v1726, %v1864
    %v1866 = vpop.f32.mrb[0].mxu0
    %1867 = vmatprep.mubr.f32.mxu0 0.0
    %v1868 = vand.u32 %v55, 4294901760
    %1869 = vmatmul.mubr.f32.gmra.mrb[0].mxu0 %v1868
    %v1870 = vpop.f32.mrb[0].mxu0
    %v1871 = vadd.f32 %v1736, %v1870
    %v1872 = vpop.f32.mrb[0].mxu0
    %1873 = vmatprep.mubr.f32.mxu0 0.0
    %v1874 = vand.u32 %v58, 4294901760
    %1875 = vmatmul.mubr.f32.gmra.mrb[0].mxu0 %v1874
    %v1876 = vpop.f32.mrb[0].mxu0
    %v1877 = vadd.f32 %v1746, %v1876
    %v1878 = vpop.f32.mrb[0].mxu0
    %1879 = vmatprep.mubr.f32.mxu0 0.0
    %v1880 = vand.u32 %v61, 4294901760
    %1881 = vmatmul.mubr.f32.gmra.mrb[0].mxu0 %v1880
    %v1882 = vpop.f32.mrb[0].mxu0
    %v1883 = vadd.f32 %v1756, %v1882
    %v1884 = vpop.f32.mrb[0].mxu0
    %1885 = vmatprep.mubr.f32.mxu0 0.0
    %v1886 = vand.u32 %v64, 4294901760
    %1887 = vmatmul.mubr.f32.gmra.mrb[0].mxu0 %v1886
    %v1888 = vpop.f32.mrb[0].mxu0
    %v1889 = vadd.f32 %v1766, %v1888
    %v1890 = vpop.f32.mrb[0].mxu0
    %1891 = vdwg.mxu0
    %1892 = vmatprep.subr.mxu0 0.0
    %v1893 = vand.u32 %v1620, 4294901760
    %v1894 = vsub.f32 %v1620, %v1893
    %1895 = vmatpush1.msra.mxu0 %v1894
    %1896 = vmatprep.subr.mxu0 0.0
    %v1897 = vand.u32 %v1621, 4294901760
    %v1898 = vsub.f32 %v1621, %v1897
    %1899 = vmatpush1.msra.mxu0 %v1898
    %1900 = vmatprep.subr.mxu0 0.0
    %1901 = vmatpush1.msra.mxu0 0.0
    %1902 = vmatprep.subr.mxu0 0.0
    %1903 = vmatpush1.msra.mxu0 0.0
    %1904 = vmatprep.subr.mxu0 0.0
    %1905 = vmatpush1.msra.mxu0 0.0
    %1906 = vmatprep.subr.mxu0 0.0
    %1907 = vmatpush1.msra.mxu0 0.0
    %1908 = vmatprep.subr.mxu0 0.0
    %1909 = vmatpush1.msra.mxu0 0.0
    %1910 = vmatprep.subr.mxu0 0.0
    %1911 = vmatpush1.msra.mxu0 0.0
    %1912 = vmatprep.subr.mxu0 0.0
    %1913 = vmatpush1.msra.mxu0 0.0
    %1914 = vmatprep.subr.mxu0 0.0
    %1915 = vmatpush1.msra.mxu0 0.0
    %1916 = vmatprep.subr.mxu0 0.0
    %1917 = vmatpush1.msra.mxu0 0.0
    %1918 = vmatprep.subr.mxu0 0.0
    %1919 = vmatpush1.msra.mxu0 0.0
    %1920 = vmatprep.subr.mxu0 0.0
    %1921 = vmatpush1.msra.mxu0 0.0
    %1922 = vmatprep.subr.mxu0 0.0
    %1923 = vmatpush1.msra.mxu0 0.0
    %1924 = vmatprep.subr.mxu0 0.0
    %1925 = vmatpush1.msra.mxu0 0.0
    %1926 = vmatprep.subr.mxu0 0.0
    %1927 = vmatpush1.msra.mxu0 0.0
    %1928 = vmatprep.subr.mxu0 0.0
    %1929 = vmatpush1.msra.mxu0 0.0
    %1930 = vmatprep.subr.mxu0 0.0
    %1931 = vmatpush1.msra.mxu0 0.0
    %1932 = vmatprep.subr.mxu0 0.0
    %1933 = vmatpush1.msra.mxu0 0.0
    %1934 = vmatprep.subr.mxu0 0.0
    %1935 = vmatpush1.msra.mxu0 0.0
    %1936 = vmatprep.subr.mxu0 0.0
    %1937 = vmatpush1.msra.mxu0 0.0
    %1938 = vmatprep.subr.mxu0 0.0
    %1939 = vmatpush1.msra.mxu0 0.0
    %1940 = vmatprep.subr.mxu0 0.0
    %1941 = vmatpush1.msra.mxu0 0.0
    %1942 = vmatprep.subr.mxu0 0.0
    %1943 = vmatpush1.msra.mxu0 0.0
    %1944 = vmatprep.subr.mxu0 0.0
    %1945 = vmatpush1.msra.mxu0 0.0
    %1946 = vmatprep.subr.mxu0 0.0
    %1947 = vmatpush1.msra.mxu0 0.0
    %1948 = vmatprep.subr.mxu0 0.0
    %1949 = vmatpush1.msra.mxu0 0.0
    %1950 = vmatprep.subr.mxu0 0.0
    %1951 = vmatpush1.msra.mxu0 0.0
    %1952 = vmatprep.subr.mxu0 0.0
    %1953 = vmatpush1.msra.mxu0 0.0
    %1954 = vmatprep.subr.mxu0 0.0
    %1955 = vmatpush1.msra.mxu0 0.0
    %1956 = vmatprep.subr.mxu0 0.0
    %1957 = vmatpush1.msra.mxu0 0.0
    %1958 = vmatprep.subr.mxu0 0.0
    %1959 = vmatpush1.msra.mxu0 0.0
    %1960 = vmatprep.mubr.f32.mxu0 0.0
    %v1961 = vand.u32 %v43, 4294901760
    %v1962 = vsub.f32 %v43, %v1961
    %1963 = vmatmul.mubr.f32.gmra.mrb[0].mxu0 %v1962
    %v1964 = vpop.f32.mrb[0].mxu0
    %v1965 = vadd.f32 %v1847, %v1964
    %v1966 = vpop.f32.mrb[0].mxu0
    %1967 = vmatprep.mubr.f32.mxu0 0.0
    %v1968 = vand.u32 %v46, 4294901760
    %v1969 = vsub.f32 %v46, %v1968
    %1970 = vmatmul.mubr.f32.gmra.mrb[0].mxu0 %v1969
    %v1971 = vpop.f32.mrb[0].mxu0
    %v1972 = vadd.f32 %v1853, %v1971
    %v1973 = vpop.f32.mrb[0].mxu0
    %1974 = vmatprep.mubr.f32.mxu0 0.0
    %v1975 = vand.u32 %v49, 4294901760
    %v1976 = vsub.f32 %v49, %v1975
    %1977 = vmatmul.mubr.f32.gmra.mrb[0].mxu0 %v1976
    %v1978 = vpop.f32.mrb[0].mxu0
    %v1979 = vadd.f32 %v1859, %v1978
    %v1980 = vpop.f32.mrb[0].mxu0
    %1981 = vmatprep.mubr.f32.mxu0 0.0
    %v1982 = vand.u32 %v52, 4294901760
    %v1983 = vsub.f32 %v52, %v1982
    %1984 = vmatmul.mubr.f32.gmra.mrb[0].mxu0 %v1983
    %v1985 = vpop.f32.mrb[0].mxu0
    %v1986 = vadd.f32 %v1865, %v1985
    %v1987 = vpop.f32.mrb[0].mxu0
    %1988 = vmatprep.mubr.f32.mxu0 0.0
    %v1989 = vand.u32 %v55, 4294901760
    %v1990 = vsub.f32 %v55, %v1989
    %1991 = vmatmul.mubr.f32.gmra.mrb[0].mxu0 %v1990
    %v1992 = vpop.f32.mrb[0].mxu0
    %v1993 = vadd.f32 %v1871, %v1992
    %v1994 = vpop.f32.mrb[0].mxu0
    %1995 = vmatprep.mubr.f32.mxu0 0.0
    %v1996 = vand.u32 %v58, 4294901760
    %v1997 = vsub.f32 %v58, %v1996
    %1998 = vmatmul.mubr.f32.gmra.mrb[0].mxu0 %v1997
    %v1999 = vpop.f32.mrb[0].mxu0
    %v2000 = vadd.f32 %v1877, %v1999
    %v2001 = vpop.f32.mrb[0].mxu0
    %2002 = vmatprep.mubr.f32.mxu0 0.0
    %v2003 = vand.u32 %v61, 4294901760
    %v2004 = vsub.f32 %v61, %v2003
    %2005 = vmatmul.mubr.f32.gmra.mrb[0].mxu0 %v2004
    %v2006 = vpop.f32.mrb[0].mxu0
    %v2007 = vadd.f32 %v1883, %v2006
    %v2008 = vpop.f32.mrb[0].mxu0
    %2009 = vmatprep.mubr.f32.mxu0 0.0
    %v2010 = vand.u32 %v64, 4294901760
    %v2011 = vsub.f32 %v64, %v2010
    %2012 = vmatmul.mubr.f32.gmra.mrb[0].mxu0 %v2011
    %v2013 = vpop.f32.mrb[0].mxu0
    %v2014 = vadd.f32 %v1889, %v2013
    %v2015 = vpop.f32.mrb[0].mxu0
    %2016 = vdwg.mxu0
    %2017 = vmatprep.subr.mxu0 0.0
    %v2018 = vand.u32 %v1620, 4294901760
    %2019 = vmatpush1.msra.mxu0 %v2018
    %2020 = vmatprep.subr.mxu0 0.0
    %v2021 = vand.u32 %v1621, 4294901760
    %2022 = vmatpush1.msra.mxu0 %v2021
    %2023 = vmatprep.subr.mxu0 0.0
    %2024 = vmatpush1.msra.mxu0 0.0
    %2025 = vmatprep.subr.mxu0 0.0
    %2026 = vmatpush1.msra.mxu0 0.0
    %2027 = vmatprep.subr.mxu0 0.0
    %2028 = vmatpush1.msra.mxu0 0.0
    %2029 = vmatprep.subr.mxu0 0.0
    %2030 = vmatpush1.msra.mxu0 0.0
    %2031 = vmatprep.subr.mxu0 0.0
    %2032 = vmatpush1.msra.mxu0 0.0
    %2033 = vmatprep.subr.mxu0 0.0
    %2034 = vmatpush1.msra.mxu0 0.0
    %2035 = vmatprep.subr.mxu0 0.0
    %2036 = vmatpush1.msra.mxu0 0.0
    %2037 = vmatprep.subr.mxu0 0.0
    %2038 = vmatpush1.msra.mxu0 0.0
    %2039 = vmatprep.subr.mxu0 0.0
    %2040 = vmatpush1.msra.mxu0 0.0
    %2041 = vmatprep.subr.mxu0 0.0
    %2042 = vmatpush1.msra.mxu0 0.0
    %2043 = vmatprep.subr.mxu0 0.0
    %2044 = vmatpush1.msra.mxu0 0.0
    %2045 = vmatprep.subr.mxu0 0.0
    %2046 = vmatpush1.msra.mxu0 0.0
    %2047 = vmatprep.subr.mxu0 0.0
    %2048 = vmatpush1.msra.mxu0 0.0
    %2049 = vmatprep.subr.mxu0 0.0
    %2050 = vmatpush1.msra.mxu0 0.0
    %2051 = vmatprep.subr.mxu0 0.0
    %2052 = vmatpush1.msra.mxu0 0.0
    %2053 = vmatprep.subr.mxu0 0.0
    %2054 = vmatpush1.msra.mxu0 0.0
    %2055 = vmatprep.subr.mxu0 0.0
    %2056 = vmatpush1.msra.mxu0 0.0
    %2057 = vmatprep.subr.mxu0 0.0
    %2058 = vmatpush1.msra.mxu0 0.0
    %2059 = vmatprep.subr.mxu0 0.0
    %2060 = vmatpush1.msra.mxu0 0.0
    %2061 = vmatprep.subr.mxu0 0.0
    %2062 = vmatpush1.msra.mxu0 0.0
    %2063 = vmatprep.subr.mxu0 0.0
    %2064 = vmatpush1.msra.mxu0 0.0
    %2065 = vmatprep.subr.mxu0 0.0
    %2066 = vmatpush1.msra.mxu0 0.0
    %2067 = vmatprep.subr.mxu0 0.0
    %2068 = vmatpush1.msra.mxu0 0.0
    %2069 = vmatprep.subr.mxu0 0.0
    %2070 = vmatpush1.msra.mxu0 0.0
    %2071 = vmatprep.subr.mxu0 0.0
    %2072 = vmatpush1.msra.mxu0 0.0
    %2073 = vmatprep.subr.mxu0 0.0
    %2074 = vmatpush1.msra.mxu0 0.0
    %2075 = vmatprep.subr.mxu0 0.0
    %2076 = vmatpush1.msra.mxu0 0.0
    %2077 = vmatprep.subr.mxu0 0.0
    %2078 = vmatpush1.msra.mxu0 0.0
    %2079 = vmatprep.subr.mxu0 0.0
    %2080 = vmatpush1.msra.mxu0 0.0
    %2081 = vmatprep.subr.mxu0 0.0
    %2082 = vmatpush1.msra.mxu0 0.0
    %2083 = vmatprep.mubr.f32.mxu0 0.0
    %v2084 = vand.u32 %v43, 4294901760
    %v2085 = vsub.f32 %v43, %v2084
    %v2086 = vand.u32 %v2085, 4294901760
    %2087 = vmatmul.mubr.f32.gmra.mrb[0].mxu0 %v2086
    %v2088 = vpop.f32.mrb[0].mxu0
    %v2089 = vadd.f32 %v1965, %v2088
    %v2090 = vpop.f32.mrb[0].mxu0
    %2091 = vmatprep.mubr.f32.mxu0 0.0
    %v2092 = vand.u32 %v46, 4294901760
    %v2093 = vsub.f32 %v46, %v2092
    %v2094 = vand.u32 %v2093, 4294901760
    %2095 = vmatmul.mubr.f32.gmra.mrb[0].mxu0 %v2094
    %v2096 = vpop.f32.mrb[0].mxu0
    %v2097 = vadd.f32 %v1972, %v2096
    %v2098 = vpop.f32.mrb[0].mxu0
    %2099 = vmatprep.mubr.f32.mxu0 0.0
    %v2100 = vand.u32 %v49, 4294901760
    %v2101 = vsub.f32 %v49, %v2100
    %v2102 = vand.u32 %v2101, 4294901760
    %2103 = vmatmul.mubr.f32.gmra.mrb[0].mxu0 %v2102
    %v2104 = vpop.f32.mrb[0].mxu0
    %v2105 = vadd.f32 %v1979, %v2104
    %v2106 = vpop.f32.mrb[0].mxu0
    %2107 = vmatprep.mubr.f32.mxu0 0.0
    %v2108 = vand.u32 %v52, 4294901760
    %v2109 = vsub.f32 %v52, %v2108
    %v2110 = vand.u32 %v2109, 4294901760
    %2111 = vmatmul.mubr.f32.gmra.mrb[0].mxu0 %v2110
    %v2112 = vpop.f32.mrb[0].mxu0
    %v2113 = vadd.f32 %v1986, %v2112
    %v2114 = vpop.f32.mrb[0].mxu0
    %2115 = vmatprep.mubr.f32.mxu0 0.0
    %v2116 = vand.u32 %v55, 4294901760
    %v2117 = vsub.f32 %v55, %v2116
    %v2118 = vand.u32 %v2117, 4294901760
    %2119 = vmatmul.mubr.f32.gmra.mrb[0].mxu0 %v2118
    %v2120 = vpop.f32.mrb[0].mxu0
    %v2121 = vadd.f32 %v1993, %v2120
    %v2122 = vpop.f32.mrb[0].mxu0
    %2123 = vmatprep.mubr.f32.mxu0 0.0
    %v2124 = vand.u32 %v58, 4294901760
    %v2125 = vsub.f32 %v58, %v2124
    %v2126 = vand.u32 %v2125, 4294901760
    %2127 = vmatmul.mubr.f32.gmra.mrb[0].mxu0 %v2126
    %v2128 = vpop.f32.mrb[0].mxu0
    %v2129 = vadd.f32 %v2000, %v2128
    %v2130 = vpop.f32.mrb[0].mxu0
    %2131 = vmatprep.mubr.f32.mxu0 0.0
    %v2132 = vand.u32 %v61, 4294901760
    %v2133 = vsub.f32 %v61, %v2132
    %v2134 = vand.u32 %v2133, 4294901760
    %2135 = vmatmul.mubr.f32.gmra.mrb[0].mxu0 %v2134
    %v2136 = vpop.f32.mrb[0].mxu0
    %v2137 = vadd.f32 %v2007, %v2136
    %v2138 = vpop.f32.mrb[0].mxu0
    %2139 = vmatprep.mubr.f32.mxu0 0.0
    %v2140 = vand.u32 %v64, 4294901760
    %v2141 = vsub.f32 %v64, %v2140
    %v2142 = vand.u32 %v2141, 4294901760
    %2143 = vmatmul.mubr.f32.gmra.mrb[0].mxu0 %v2142
    %v2144 = vpop.f32.mrb[0].mxu0
    %v2145 = vadd.f32 %v2014, %v2144
    %v2146 = vpop.f32.mrb[0].mxu0
    %2147 = vdwg.mxu0
    %2148 = vmatprep.subr.mxu0 0.0
    %v2149 = vand.u32 %v1620, 4294901760
    %v2150 = vsub.f32 %v1620, %v2149
    %v2151 = vand.u32 %v2150, 4294901760
    %2152 = vmatpush1.msra.mxu0 %v2151
    %2153 = vmatprep.subr.mxu0 0.0
    %v2154 = vand.u32 %v1621, 4294901760
    %v2155 = vsub.f32 %v1621, %v2154
    %v2156 = vand.u32 %v2155, 4294901760
    %2157 = vmatpush1.msra.mxu0 %v2156
    %2158 = vmatprep.subr.mxu0 0.0
    %2159 = vmatpush1.msra.mxu0 0.0
    %2160 = vmatprep.subr.mxu0 0.0
    %2161 = vmatpush1.msra.mxu0 0.0
    %2162 = vmatprep.subr.mxu0 0.0
    %2163 = vmatpush1.msra.mxu0 0.0
    %2164 = vmatprep.subr.mxu0 0.0
    %2165 = vmatpush1.msra.mxu0 0.0
    %2166 = vmatprep.subr.mxu0 0.0
    %2167 = vmatpush1.msra.mxu0 0.0
    %2168 = vmatprep.subr.mxu0 0.0
    %2169 = vmatpush1.msra.mxu0 0.0
    %2170 = vmatprep.subr.mxu0 0.0
    %2171 = vmatpush1.msra.mxu0 0.0
    %2172 = vmatprep.subr.mxu0 0.0
    %2173 = vmatpush1.msra.mxu0 0.0
    %2174 = vmatprep.subr.mxu0 0.0
    %2175 = vmatpush1.msra.mxu0 0.0
    %2176 = vmatprep.subr.mxu0 0.0
    %2177 = vmatpush1.msra.mxu0 0.0
    %2178 = vmatprep.subr.mxu0 0.0
    %2179 = vmatpush1.msra.mxu0 0.0
    %2180 = vmatprep.subr.mxu0 0.0
    %2181 = vmatpush1.msra.mxu0 0.0
    %2182 = vmatprep.subr.mxu0 0.0
    %2183 = vmatpush1.msra.mxu0 0.0
    %2184 = vmatprep.subr.mxu0 0.0
    %2185 = vmatpush1.msra.mxu0 0.0
    %2186 = vmatprep.subr.mxu0 0.0
    %2187 = vmatpush1.msra.mxu0 0.0
    %2188 = vmatprep.subr.mxu0 0.0
    %2189 = vmatpush1.msra.mxu0 0.0
    %2190 = vmatprep.subr.mxu0 0.0
    %2191 = vmatpush1.msra.mxu0 0.0
    %2192 = vmatprep.subr.mxu0 0.0
    %2193 = vmatpush1.msra.mxu0 0.0
    %2194 = vmatprep.subr.mxu0 0.0
    %2195 = vmatpush1.msra.mxu0 0.0
    %2196 = vmatprep.subr.mxu0 0.0
    %2197 = vmatpush1.msra.mxu0 0.0
    %2198 = vmatprep.subr.mxu0 0.0
    %2199 = vmatpush1.msra.mxu0 0.0
    %2200 = vmatprep.subr.mxu0 0.0
    %2201 = vmatpush1.msra.mxu0 0.0
    %2202 = vmatprep.subr.mxu0 0.0
    %2203 = vmatpush1.msra.mxu0 0.0
    %2204 = vmatprep.subr.mxu0 0.0
    %2205 = vmatpush1.msra.mxu0 0.0
    %2206 = vmatprep.subr.mxu0 0.0
    %2207 = vmatpush1.msra.mxu0 0.0
    %2208 = vmatprep.subr.mxu0 0.0
    %2209 = vmatpush1.msra.mxu0 0.0
    %2210 = vmatprep.subr.mxu0 0.0
    %2211 = vmatpush1.msra.mxu0 0.0
    %2212 = vmatprep.subr.mxu0 0.0
    %2213 = vmatpush1.msra.mxu0 0.0
    %2214 = vmatprep.subr.mxu0 0.0
    %2215 = vmatpush1.msra.mxu0 0.0
    %2216 = vmatprep.subr.mxu0 0.0
    %2217 = vmatpush1.msra.mxu0 0.0
    %2218 = vmatprep.mubr.f32.mxu0 0.0
    %v2219 = vand.u32 %v43, 4294901760
    %2220 = vmatmul.mubr.f32.gmra.mrb[0].mxu0 %v2219
    %v2221 = vpop.f32.mrb[0].mxu0
    %v2222 = vadd.f32 %v2089, %v2221
    %v2223 = vpop.f32.mrb[0].mxu0
    %2224 = vmatprep.mubr.f32.mxu0 0.0
    %v2225 = vand.u32 %v46, 4294901760
    %2226 = vmatmul.mubr.f32.gmra.mrb[0].mxu0 %v2225
    %v2227 = vpop.f32.mrb[0].mxu0
    %v2228 = vadd.f32 %v2097, %v2227
    %v2229 = vpop.f32.mrb[0].mxu0
    %2230 = vmatprep.mubr.f32.mxu0 0.0
    %v2231 = vand.u32 %v49, 4294901760
    %2232 = vmatmul.mubr.f32.gmra.mrb[0].mxu0 %v2231
    %v2233 = vpop.f32.mrb[0].mxu0
    %v2234 = vadd.f32 %v2105, %v2233
    %v2235 = vpop.f32.mrb[0].mxu0
    %2236 = vmatprep.mubr.f32.mxu0 0.0
    %v2237 = vand.u32 %v52, 4294901760
    %2238 = vmatmul.mubr.f32.gmra.mrb[0].mxu0 %v2237
    %v2239 = vpop.f32.mrb[0].mxu0
    %v2240 = vadd.f32 %v2113, %v2239
    %v2241 = vpop.f32.mrb[0].mxu0
    %2242 = vmatprep.mubr.f32.mxu0 0.0
    %v2243 = vand.u32 %v55, 4294901760
    %2244 = vmatmul.mubr.f32.gmra.mrb[0].mxu0 %v2243
    %v2245 = vpop.f32.mrb[0].mxu0
    %v2246 = vadd.f32 %v2121, %v2245
    %v2247 = vpop.f32.mrb[0].mxu0
    %2248 = vmatprep.mubr.f32.mxu0 0.0
    %v2249 = vand.u32 %v58, 4294901760
    %2250 = vmatmul.mubr.f32.gmra.mrb[0].mxu0 %v2249
    %v2251 = vpop.f32.mrb[0].mxu0
    %v2252 = vadd.f32 %v2129, %v2251
    %v2253 = vpop.f32.mrb[0].mxu0
    %2254 = vmatprep.mubr.f32.mxu0 0.0
    %v2255 = vand.u32 %v61, 4294901760
    %2256 = vmatmul.mubr.f32.gmra.mrb[0].mxu0 %v2255
    %v2257 = vpop.f32.mrb[0].mxu0
    %v2258 = vadd.f32 %v2137, %v2257
    %v2259 = vpop.f32.mrb[0].mxu0
    %2260 = vmatprep.mubr.f32.mxu0 0.0
    %v2261 = vand.u32 %v64, 4294901760
    %2262 = vmatmul.mubr.f32.gmra.mrb[0].mxu0 %v2261
    %v2263 = vpop.f32.mrb[0].mxu0
    %v2264 = vadd.f32 %v2145, %v2263
    %v2265 = vpop.f32.mrb[0].mxu0
    %2266 = vdwg.mxu0
    %2267 = vmatprep.subr.mxu0 0.0
    %v2268 = vand.u32 %v1620, 4294901760
    %2269 = vmatpush1.msra.mxu0 %v2268
    %2270 = vmatprep.subr.mxu0 0.0
    %v2271 = vand.u32 %v1621, 4294901760
    %2272 = vmatpush1.msra.mxu0 %v2271
    %2273 = vmatprep.subr.mxu0 0.0
    %2274 = vmatpush1.msra.mxu0 0.0
    %2275 = vmatprep.subr.mxu0 0.0
    %2276 = vmatpush1.msra.mxu0 0.0
    %2277 = vmatprep.subr.mxu0 0.0
    %2278 = vmatpush1.msra.mxu0 0.0
    %2279 = vmatprep.subr.mxu0 0.0
    %2280 = vmatpush1.msra.mxu0 0.0
    %2281 = vmatprep.subr.mxu0 0.0
    %2282 = vmatpush1.msra.mxu0 0.0
    %2283 = vmatprep.subr.mxu0 0.0
    %2284 = vmatpush1.msra.mxu0 0.0
    %2285 = vmatprep.subr.mxu0 0.0
    %2286 = vmatpush1.msra.mxu0 0.0
    %2287 = vmatprep.subr.mxu0 0.0
    %2288 = vmatpush1.msra.mxu0 0.0
    %2289 = vmatprep.subr.mxu0 0.0
    %2290 = vmatpush1.msra.mxu0 0.0
    %2291 = vmatprep.subr.mxu0 0.0
    %2292 = vmatpush1.msra.mxu0 0.0
    %2293 = vmatprep.subr.mxu0 0.0
    %2294 = vmatpush1.msra.mxu0 0.0
    %2295 = vmatprep.subr.mxu0 0.0
    %2296 = vmatpush1.msra.mxu0 0.0
    %2297 = vmatprep.subr.mxu0 0.0
    %2298 = vmatpush1.msra.mxu0 0.0
    %2299 = vmatprep.subr.mxu0 0.0
    %2300 = vmatpush1.msra.mxu0 0.0
    %2301 = vmatprep.subr.mxu0 0.0
    %2302 = vmatpush1.msra.mxu0 0.0
    %2303 = vmatprep.subr.mxu0 0.0
    %2304 = vmatpush1.msra.mxu0 0.0
    %2305 = vmatprep.subr.mxu0 0.0
    %2306 = vmatpush1.msra.mxu0 0.0
    %2307 = vmatprep.subr.mxu0 0.0
    %2308 = vmatpush1.msra.mxu0 0.0
    %2309 = vmatprep.subr.mxu0 0.0
    %2310 = vmatpush1.msra.mxu0 0.0
    %2311 = vmatprep.subr.mxu0 0.0
    %2312 = vmatpush1.msra.mxu0 0.0
    %2313 = vmatprep.subr.mxu0 0.0
    %2314 = vmatpush1.msra.mxu0 0.0
    %2315 = vmatprep.subr.mxu0 0.0
    %2316 = vmatpush1.msra.mxu0 0.0
    %2317 = vmatprep.subr.mxu0 0.0
    %2318 = vmatpush1.msra.mxu0 0.0
    %2319 = vmatprep.subr.mxu0 0.0
    %2320 = vmatpush1.msra.mxu0 0.0
    %2321 = vmatprep.subr.mxu0 0.0
    %2322 = vmatpush1.msra.mxu0 0.0
    %2323 = vmatprep.subr.mxu0 0.0
    %2324 = vmatpush1.msra.mxu0 0.0
    %2325 = vmatprep.subr.mxu0 0.0
    %2326 = vmatpush1.msra.mxu0 0.0
    %2327 = vmatprep.subr.mxu0 0.0
    %2328 = vmatpush1.msra.mxu0 0.0
    %2329 = vmatprep.subr.mxu0 0.0
    %2330 = vmatpush1.msra.mxu0 0.0
    %2331 = vmatprep.subr.mxu0 0.0
    %2332 = vmatpush1.msra.mxu0 0.0
    %2333 = vmatprep.mubr.f32.mxu0 0.0
    %v2334 = vand.u32 %v43, 4294901760
    %2335 = vmatmul.mubr.f32.gmra.mrb[0].mxu0 %v2334
    %v2336 = vpop.f32.mrb[0].mxu0
    %v2337 = vadd.f32 %v2222, %v2336
    %v2338 = vpop.f32.mrb[0].mxu0
    %2339 = vmatprep.mubr.f32.mxu0 0.0
    %v2340 = vand.u32 %v46, 4294901760
    %2341 = vmatmul.mubr.f32.gmra.mrb[0].mxu0 %v2340
    %v2342 = vpop.f32.mrb[0].mxu0
    %v2343 = vadd.f32 %v2228, %v2342
    %v2344 = vpop.f32.mrb[0].mxu0
    %2345 = vmatprep.mubr.f32.mxu0 0.0
    %v2346 = vand.u32 %v49, 4294901760
    %2347 = vmatmul.mubr.f32.gmra.mrb[0].mxu0 %v2346
    %v2348 = vpop.f32.mrb[0].mxu0
    %v2349 = vadd.f32 %v2234, %v2348
    %v2350 = vpop.f32.mrb[0].mxu0
    %2351 = vmatprep.mubr.f32.mxu0 0.0
    %v2352 = vand.u32 %v52, 4294901760
    %2353 = vmatmul.mubr.f32.gmra.mrb[0].mxu0 %v2352
    %v2354 = vpop.f32.mrb[0].mxu0
    %v2355 = vadd.f32 %v2240, %v2354
    %v2356 = vpop.f32.mrb[0].mxu0
    %2357 = vmatprep.mubr.f32.mxu0 0.0
    %v2358 = vand.u32 %v55, 4294901760
    %2359 = vmatmul.mubr.f32.gmra.mrb[0].mxu0 %v2358
    %v2360 = vpop.f32.mrb[0].mxu0
    %v2361 = vadd.f32 %v2246, %v2360
    %v2362 = vpop.f32.mrb[0].mxu0
    %2363 = vmatprep.mubr.f32.mxu0 0.0
    %v2364 = vand.u32 %v58, 4294901760
    %2365 = vmatmul.mubr.f32.gmra.mrb[0].mxu0 %v2364
    %v2366 = vpop.f32.mrb[0].mxu0
    %v2367 = vadd.f32 %v2252, %v2366
    %v2368 = vpop.f32.mrb[0].mxu0
    %2369 = vmatprep.mubr.f32.mxu0 0.0
    %v2370 = vand.u32 %v61, 4294901760
    %2371 = vmatmul.mubr.f32.gmra.mrb[0].mxu0 %v2370
    %v2372 = vpop.f32.mrb[0].mxu0
    %v2373 = vadd.f32 %v2258, %v2372
    %v2374 = vpop.f32.mrb[0].mxu0
    %2375 = vmatprep.mubr.f32.mxu0 0.0
    %v2376 = vand.u32 %v64, 4294901760
    %2377 = vmatmul.mubr.f32.gmra.mrb[0].mxu0 %v2376
    %v2378 = vpop.f32.mrb[0].mxu0
    %v2379 = vadd.f32 %v2264, %v2378
    %v2380 = vpop.f32.mrb[0].mxu0
    %2381 = vdwg.mxu0
    %v2383 = vsel %vm41, %v2337, 0
    %v2386 = vsel %vm41, %v2343, 0
    %v2389 = vsel %vm41, %v2349, 0
    %v2392 = vsel %vm41, %v2355, 0
    %v2395 = vsel %vm41, %v2361, 0
    %v2398 = vsel %vm41, %v2367, 0
    %v2401 = vsel %vm41, %v2373, 0
    %v2404 = vsel %vm41, %v2379, 0
    %2406 = vmatprep.subr.mxu0 0.0
    %v2407 = vand.u32 %v37, 4294901760
    %2408 = vmatpush1.msra.mxu0 %v2407
    %2409 = vmatprep.subr.mxu0 0.0
    %v2410 = vand.u32 %v38, 4294901760
    %2411 = vmatpush1.msra.mxu0 %v2410
    %2412 = vmatprep.subr.mxu0 0.0
    %2413 = vmatpush1.msra.mxu0 0.0
    %2414 = vmatprep.subr.mxu0 0.0
    %2415 = vmatpush1.msra.mxu0 0.0
    %2416 = vmatprep.subr.mxu0 0.0
    %2417 = vmatpush1.msra.mxu0 0.0
    %2418 = vmatprep.subr.mxu0 0.0
    %2419 = vmatpush1.msra.mxu0 0.0
    %2420 = vmatprep.subr.mxu0 0.0
    %2421 = vmatpush1.msra.mxu0 0.0
    %2422 = vmatprep.subr.mxu0 0.0
    %2423 = vmatpush1.msra.mxu0 0.0
    %2424 = vmatprep.subr.mxu0 0.0
    %2425 = vmatpush1.msra.mxu0 0.0
    %2426 = vmatprep.subr.mxu0 0.0
    %2427 = vmatpush1.msra.mxu0 0.0
    %2428 = vmatprep.subr.mxu0 0.0
    %2429 = vmatpush1.msra.mxu0 0.0
    %2430 = vmatprep.subr.mxu0 0.0
    %2431 = vmatpush1.msra.mxu0 0.0
    %2432 = vmatprep.subr.mxu0 0.0
    %2433 = vmatpush1.msra.mxu0 0.0
    %2434 = vmatprep.subr.mxu0 0.0
    %2435 = vmatpush1.msra.mxu0 0.0
    %2436 = vmatprep.subr.mxu0 0.0
    %2437 = vmatpush1.msra.mxu0 0.0
    %2438 = vmatprep.subr.mxu0 0.0
    %2439 = vmatpush1.msra.mxu0 0.0
    %2440 = vmatprep.subr.mxu0 0.0
    %2441 = vmatpush1.msra.mxu0 0.0
    %2442 = vmatprep.subr.mxu0 0.0
    %2443 = vmatpush1.msra.mxu0 0.0
    %2444 = vmatprep.subr.mxu0 0.0
    %2445 = vmatpush1.msra.mxu0 0.0
    %2446 = vmatprep.subr.mxu0 0.0
    %2447 = vmatpush1.msra.mxu0 0.0
    %2448 = vmatprep.subr.mxu0 0.0
    %2449 = vmatpush1.msra.mxu0 0.0
    %2450 = vmatprep.subr.mxu0 0.0
    %2451 = vmatpush1.msra.mxu0 0.0
    %2452 = vmatprep.subr.mxu0 0.0
    %2453 = vmatpush1.msra.mxu0 0.0
    %2454 = vmatprep.subr.mxu0 0.0
    %2455 = vmatpush1.msra.mxu0 0.0
    %2456 = vmatprep.subr.mxu0 0.0
    %2457 = vmatpush1.msra.mxu0 0.0
    %2458 = vmatprep.subr.mxu0 0.0
    %2459 = vmatpush1.msra.mxu0 0.0
    %2460 = vmatprep.subr.mxu0 0.0
    %2461 = vmatpush1.msra.mxu0 0.0
    %2462 = vmatprep.subr.mxu0 0.0
    %2463 = vmatpush1.msra.mxu0 0.0
    %2464 = vmatprep.subr.mxu0 0.0
    %2465 = vmatpush1.msra.mxu0 0.0
    %2466 = vmatprep.subr.mxu0 0.0
    %2467 = vmatpush1.msra.mxu0 0.0
    %2468 = vmatprep.subr.mxu0 0.0
    %2469 = vmatpush1.msra.mxu0 0.0
    %2470 = vmatprep.subr.mxu0 0.0
    %2471 = vmatpush1.msra.mxu0 0.0
    %2472 = vmatprep.mubr.f32.mxu0 0.0
    %v2473 = vand.u32 %v2383, 4294901760
    %v2474 = vsub.f32 %v2383, %v2473
    %v2475 = vand.u32 %v2474, 4294901760
    %v2476 = vsub.f32 %v2474, %v2475
    %v2477 = vand.u32 %v2476, 4294901760
    %2478 = vmatmul.mubr.f32.gmra.mrb[0].mxu0 %v2477
    %v2479 = vpop.f32.mrb[0].mxu0
    %v2480 = vadd.f32 0.0, %v2479
    %v2481 = vpop.f32.mrb[0].mxu0
    %2482 = vmatprep.mubr.f32.mxu0 0.0
    %v2483 = vand.u32 %v2386, 4294901760
    %v2484 = vsub.f32 %v2386, %v2483
    %v2485 = vand.u32 %v2484, 4294901760
    %v2486 = vsub.f32 %v2484, %v2485
    %v2487 = vand.u32 %v2486, 4294901760
    %2488 = vmatmul.mubr.f32.gmra.mrb[0].mxu0 %v2487
    %v2489 = vpop.f32.mrb[0].mxu0
    %v2490 = vadd.f32 0.0, %v2489
    %v2491 = vpop.f32.mrb[0].mxu0
    %2492 = vmatprep.mubr.f32.mxu0 0.0
    %v2493 = vand.u32 %v2389, 4294901760
    %v2494 = vsub.f32 %v2389, %v2493
    %v2495 = vand.u32 %v2494, 4294901760
    %v2496 = vsub.f32 %v2494, %v2495
    %v2497 = vand.u32 %v2496, 4294901760
    %2498 = vmatmul.mubr.f32.gmra.mrb[0].mxu0 %v2497
    %v2499 = vpop.f32.mrb[0].mxu0
    %v2500 = vadd.f32 0.0, %v2499
    %v2501 = vpop.f32.mrb[0].mxu0
    %2502 = vmatprep.mubr.f32.mxu0 0.0
    %v2503 = vand.u32 %v2392, 4294901760
    %v2504 = vsub.f32 %v2392, %v2503
    %v2505 = vand.u32 %v2504, 4294901760
    %v2506 = vsub.f32 %v2504, %v2505
    %v2507 = vand.u32 %v2506, 4294901760
    %2508 = vmatmul.mubr.f32.gmra.mrb[0].mxu0 %v2507
    %v2509 = vpop.f32.mrb[0].mxu0
    %v2510 = vadd.f32 0.0, %v2509
    %v2511 = vpop.f32.mrb[0].mxu0
    %2512 = vmatprep.mubr.f32.mxu0 0.0
    %v2513 = vand.u32 %v2395, 4294901760
    %v2514 = vsub.f32 %v2395, %v2513
    %v2515 = vand.u32 %v2514, 4294901760
    %v2516 = vsub.f32 %v2514, %v2515
    %v2517 = vand.u32 %v2516, 4294901760
    %2518 = vmatmul.mubr.f32.gmra.mrb[0].mxu0 %v2517
    %v2519 = vpop.f32.mrb[0].mxu0
    %v2520 = vadd.f32 0.0, %v2519
    %v2521 = vpop.f32.mrb[0].mxu0
    %2522 = vmatprep.mubr.f32.mxu0 0.0
    %v2523 = vand.u32 %v2398, 4294901760
    %v2524 = vsub.f32 %v2398, %v2523
    %v2525 = vand.u32 %v2524, 4294901760
    %v2526 = vsub.f32 %v2524, %v2525
    %v2527 = vand.u32 %v2526, 4294901760
    %2528 = vmatmul.mubr.f32.gmra.mrb[0].mxu0 %v2527
    %v2529 = vpop.f32.mrb[0].mxu0
    %v2530 = vadd.f32 0.0, %v2529
    %v2531 = vpop.f32.mrb[0].mxu0
    %2532 = vmatprep.mubr.f32.mxu0 0.0
    %v2533 = vand.u32 %v2401, 4294901760
    %v2534 = vsub.f32 %v2401, %v2533
    %v2535 = vand.u32 %v2534, 4294901760
    %v2536 = vsub.f32 %v2534, %v2535
    %v2537 = vand.u32 %v2536, 4294901760
    %2538 = vmatmul.mubr.f32.gmra.mrb[0].mxu0 %v2537
    %v2539 = vpop.f32.mrb[0].mxu0
    %v2540 = vadd.f32 0.0, %v2539
    %v2541 = vpop.f32.mrb[0].mxu0
    %2542 = vmatprep.mubr.f32.mxu0 0.0
    %v2543 = vand.u32 %v2404, 4294901760
    %v2544 = vsub.f32 %v2404, %v2543
    %v2545 = vand.u32 %v2544, 4294901760
    %v2546 = vsub.f32 %v2544, %v2545
    %v2547 = vand.u32 %v2546, 4294901760
    %2548 = vmatmul.mubr.f32.gmra.mrb[0].mxu0 %v2547
    %v2549 = vpop.f32.mrb[0].mxu0
    %v2550 = vadd.f32 0.0, %v2549
    %v2551 = vpop.f32.mrb[0].mxu0
    %2552 = vdwg.mxu0
    %2553 = vmatprep.subr.mxu0 0.0
    %v2554 = vand.u32 %v37, 4294901760
    %v2555 = vsub.f32 %v37, %v2554
    %v2556 = vand.u32 %v2555, 4294901760
    %v2557 = vsub.f32 %v2555, %v2556
    %v2558 = vand.u32 %v2557, 4294901760
    %2559 = vmatpush1.msra.mxu0 %v2558
    %2560 = vmatprep.subr.mxu0 0.0
    %v2561 = vand.u32 %v38, 4294901760
    %v2562 = vsub.f32 %v38, %v2561
    %v2563 = vand.u32 %v2562, 4294901760
    %v2564 = vsub.f32 %v2562, %v2563
    %v2565 = vand.u32 %v2564, 4294901760
    %2566 = vmatpush1.msra.mxu0 %v2565
    %2567 = vmatprep.subr.mxu0 0.0
    %2568 = vmatpush1.msra.mxu0 0.0
    %2569 = vmatprep.subr.mxu0 0.0
    %2570 = vmatpush1.msra.mxu0 0.0
    %2571 = vmatprep.subr.mxu0 0.0
    %2572 = vmatpush1.msra.mxu0 0.0
    %2573 = vmatprep.subr.mxu0 0.0
    %2574 = vmatpush1.msra.mxu0 0.0
    %2575 = vmatprep.subr.mxu0 0.0
    %2576 = vmatpush1.msra.mxu0 0.0
    %2577 = vmatprep.subr.mxu0 0.0
    %2578 = vmatpush1.msra.mxu0 0.0
    %2579 = vmatprep.subr.mxu0 0.0
    %2580 = vmatpush1.msra.mxu0 0.0
    %2581 = vmatprep.subr.mxu0 0.0
    %2582 = vmatpush1.msra.mxu0 0.0
    %2583 = vmatprep.subr.mxu0 0.0
    %2584 = vmatpush1.msra.mxu0 0.0
    %2585 = vmatprep.subr.mxu0 0.0
    %2586 = vmatpush1.msra.mxu0 0.0
    %2587 = vmatprep.subr.mxu0 0.0
    %2588 = vmatpush1.msra.mxu0 0.0
    %2589 = vmatprep.subr.mxu0 0.0
    %2590 = vmatpush1.msra.mxu0 0.0
    %2591 = vmatprep.subr.mxu0 0.0
    %2592 = vmatpush1.msra.mxu0 0.0
    %2593 = vmatprep.subr.mxu0 0.0
    %2594 = vmatpush1.msra.mxu0 0.0
    %2595 = vmatprep.subr.mxu0 0.0
    %2596 = vmatpush1.msra.mxu0 0.0
    %2597 = vmatprep.subr.mxu0 0.0
    %2598 = vmatpush1.msra.mxu0 0.0
    %2599 = vmatprep.subr.mxu0 0.0
    %2600 = vmatpush1.msra.mxu0 0.0
    %2601 = vmatprep.subr.mxu0 0.0
    %2602 = vmatpush1.msra.mxu0 0.0
    %2603 = vmatprep.subr.mxu0 0.0
    %2604 = vmatpush1.msra.mxu0 0.0
    %2605 = vmatprep.subr.mxu0 0.0
    %2606 = vmatpush1.msra.mxu0 0.0
    %2607 = vmatprep.subr.mxu0 0.0
    %2608 = vmatpush1.msra.mxu0 0.0
    %2609 = vmatprep.subr.mxu0 0.0
    %2610 = vmatpush1.msra.mxu0 0.0
    %2611 = vmatprep.subr.mxu0 0.0
    %2612 = vmatpush1.msra.mxu0 0.0
    %2613 = vmatprep.subr.mxu0 0.0
    %2614 = vmatpush1.msra.mxu0 0.0
    %2615 = vmatprep.subr.mxu0 0.0
    %2616 = vmatpush1.msra.mxu0 0.0
    %2617 = vmatprep.subr.mxu0 0.0
    %2618 = vmatpush1.msra.mxu0 0.0
    %2619 = vmatprep.subr.mxu0 0.0
    %2620 = vmatpush1.msra.mxu0 0.0
    %2621 = vmatprep.subr.mxu0 0.0
    %2622 = vmatpush1.msra.mxu0 0.0
    %2623 = vmatprep.subr.mxu0 0.0
    %2624 = vmatpush1.msra.mxu0 0.0
    %2625 = vmatprep.subr.mxu0 0.0
    %2626 = vmatpush1.msra.mxu0 0.0
    %2627 = vmatprep.mubr.f32.mxu0 0.0
    %v2628 = vand.u32 %v2383, 4294901760
    %2629 = vmatmul.mubr.f32.gmra.mrb[0].mxu0 %v2628
    %v2630 = vpop.f32.mrb[0].mxu0
    %v2631 = vadd.f32 %v2480, %v2630
    %v2632 = vpop.f32.mrb[0].mxu0
    %2633 = vmatprep.mubr.f32.mxu0 0.0
    %v2634 = vand.u32 %v2386, 4294901760
    %2635 = vmatmul.mubr.f32.gmra.mrb[0].mxu0 %v2634
    %v2636 = vpop.f32.mrb[0].mxu0
    %v2637 = vadd.f32 %v2490, %v2636
    %v2638 = vpop.f32.mrb[0].mxu0
    %2639 = vmatprep.mubr.f32.mxu0 0.0
    %v2640 = vand.u32 %v2389, 4294901760
    %2641 = vmatmul.mubr.f32.gmra.mrb[0].mxu0 %v2640
    %v2642 = vpop.f32.mrb[0].mxu0
    %v2643 = vadd.f32 %v2500, %v2642
    %v2644 = vpop.f32.mrb[0].mxu0
    %2645 = vmatprep.mubr.f32.mxu0 0.0
    %v2646 = vand.u32 %v2392, 4294901760
    %2647 = vmatmul.mubr.f32.gmra.mrb[0].mxu0 %v2646
    %v2648 = vpop.f32.mrb[0].mxu0
    %v2649 = vadd.f32 %v2510, %v2648
    %v2650 = vpop.f32.mrb[0].mxu0
    %2651 = vmatprep.mubr.f32.mxu0 0.0
    %v2652 = vand.u32 %v2395, 4294901760
    %2653 = vmatmul.mubr.f32.gmra.mrb[0].mxu0 %v2652
    %v2654 = vpop.f32.mrb[0].mxu0
    %v2655 = vadd.f32 %v2520, %v2654
    %v2656 = vpop.f32.mrb[0].mxu0
    %2657 = vmatprep.mubr.f32.mxu0 0.0
    %v2658 = vand.u32 %v2398, 4294901760
    %2659 = vmatmul.mubr.f32.gmra.mrb[0].mxu0 %v2658
    %v2660 = vpop.f32.mrb[0].mxu0
    %v2661 = vadd.f32 %v2530, %v2660
    %v2662 = vpop.f32.mrb[0].mxu0
    %2663 = vmatprep.mubr.f32.mxu0 0.0
    %v2664 = vand.u32 %v2401, 4294901760
    %2665 = vmatmul.mubr.f32.gmra.mrb[0].mxu0 %v2664
    %v2666 = vpop.f32.mrb[0].mxu0
    %v2667 = vadd.f32 %v2540, %v2666
    %v2668 = vpop.f32.mrb[0].mxu0
    %2669 = vmatprep.mubr.f32.mxu0 0.0
    %v2670 = vand.u32 %v2404, 4294901760
    %2671 = vmatmul.mubr.f32.gmra.mrb[0].mxu0 %v2670
    %v2672 = vpop.f32.mrb[0].mxu0
    %v2673 = vadd.f32 %v2550, %v2672
    %v2674 = vpop.f32.mrb[0].mxu0
    %2675 = vdwg.mxu0
    %2676 = vmatprep.subr.mxu0 0.0
    %v2677 = vand.u32 %v37, 4294901760
    %v2678 = vsub.f32 %v37, %v2677
    %2679 = vmatpush1.msra.mxu0 %v2678
    %2680 = vmatprep.subr.mxu0 0.0
    %v2681 = vand.u32 %v38, 4294901760
    %v2682 = vsub.f32 %v38, %v2681
    %2683 = vmatpush1.msra.mxu0 %v2682
    %2684 = vmatprep.subr.mxu0 0.0
    %2685 = vmatpush1.msra.mxu0 0.0
    %2686 = vmatprep.subr.mxu0 0.0
    %2687 = vmatpush1.msra.mxu0 0.0
    %2688 = vmatprep.subr.mxu0 0.0
    %2689 = vmatpush1.msra.mxu0 0.0
    %2690 = vmatprep.subr.mxu0 0.0
    %2691 = vmatpush1.msra.mxu0 0.0
    %2692 = vmatprep.subr.mxu0 0.0
    %2693 = vmatpush1.msra.mxu0 0.0
    %2694 = vmatprep.subr.mxu0 0.0
    %2695 = vmatpush1.msra.mxu0 0.0
    %2696 = vmatprep.subr.mxu0 0.0
    %2697 = vmatpush1.msra.mxu0 0.0
    %2698 = vmatprep.subr.mxu0 0.0
    %2699 = vmatpush1.msra.mxu0 0.0
    %2700 = vmatprep.subr.mxu0 0.0
    %2701 = vmatpush1.msra.mxu0 0.0
    %2702 = vmatprep.subr.mxu0 0.0
    %2703 = vmatpush1.msra.mxu0 0.0
    %2704 = vmatprep.subr.mxu0 0.0
    %2705 = vmatpush1.msra.mxu0 0.0
    %2706 = vmatprep.subr.mxu0 0.0
    %2707 = vmatpush1.msra.mxu0 0.0
    %2708 = vmatprep.subr.mxu0 0.0
    %2709 = vmatpush1.msra.mxu0 0.0
    %2710 = vmatprep.subr.mxu0 0.0
    %2711 = vmatpush1.msra.mxu0 0.0
    %2712 = vmatprep.subr.mxu0 0.0
    %2713 = vmatpush1.msra.mxu0 0.0
    %2714 = vmatprep.subr.mxu0 0.0
    %2715 = vmatpush1.msra.mxu0 0.0
    %2716 = vmatprep.subr.mxu0 0.0
    %2717 = vmatpush1.msra.mxu0 0.0
    %2718 = vmatprep.subr.mxu0 0.0
    %2719 = vmatpush1.msra.mxu0 0.0
    %2720 = vmatprep.subr.mxu0 0.0
    %2721 = vmatpush1.msra.mxu0 0.0
    %2722 = vmatprep.subr.mxu0 0.0
    %2723 = vmatpush1.msra.mxu0 0.0
    %2724 = vmatprep.subr.mxu0 0.0
    %2725 = vmatpush1.msra.mxu0 0.0
    %2726 = vmatprep.subr.mxu0 0.0
    %2727 = vmatpush1.msra.mxu0 0.0
    %2728 = vmatprep.subr.mxu0 0.0
    %2729 = vmatpush1.msra.mxu0 0.0
    %2730 = vmatprep.subr.mxu0 0.0
    %2731 = vmatpush1.msra.mxu0 0.0
    %2732 = vmatprep.subr.mxu0 0.0
    %2733 = vmatpush1.msra.mxu0 0.0
    %2734 = vmatprep.subr.mxu0 0.0
    %2735 = vmatpush1.msra.mxu0 0.0
    %2736 = vmatprep.subr.mxu0 0.0
    %2737 = vmatpush1.msra.mxu0 0.0
    %2738 = vmatprep.subr.mxu0 0.0
    %2739 = vmatpush1.msra.mxu0 0.0
    %2740 = vmatprep.subr.mxu0 0.0
    %2741 = vmatpush1.msra.mxu0 0.0
    %2742 = vmatprep.subr.mxu0 0.0
    %2743 = vmatpush1.msra.mxu0 0.0
    %2744 = vmatprep.mubr.f32.mxu0 0.0
    %v2745 = vand.u32 %v2383, 4294901760
    %v2746 = vsub.f32 %v2383, %v2745
    %2747 = vmatmul.mubr.f32.gmra.mrb[0].mxu0 %v2746
    %v2748 = vpop.f32.mrb[0].mxu0
    %v2749 = vadd.f32 %v2631, %v2748
    %v2750 = vpop.f32.mrb[0].mxu0
    %2751 = vmatprep.mubr.f32.mxu0 0.0
    %v2752 = vand.u32 %v2386, 4294901760
    %v2753 = vsub.f32 %v2386, %v2752
    %2754 = vmatmul.mubr.f32.gmra.mrb[0].mxu0 %v2753
    %v2755 = vpop.f32.mrb[0].mxu0
    %v2756 = vadd.f32 %v2637, %v2755
    %v2757 = vpop.f32.mrb[0].mxu0
    %2758 = vmatprep.mubr.f32.mxu0 0.0
    %v2759 = vand.u32 %v2389, 4294901760
    %v2760 = vsub.f32 %v2389, %v2759
    %2761 = vmatmul.mubr.f32.gmra.mrb[0].mxu0 %v2760
    %v2762 = vpop.f32.mrb[0].mxu0
    %v2763 = vadd.f32 %v2643, %v2762
    %v2764 = vpop.f32.mrb[0].mxu0
    %2765 = vmatprep.mubr.f32.mxu0 0.0
    %v2766 = vand.u32 %v2392, 4294901760
    %v2767 = vsub.f32 %v2392, %v2766
    %2768 = vmatmul.mubr.f32.gmra.mrb[0].mxu0 %v2767
    %v2769 = vpop.f32.mrb[0].mxu0
    %v2770 = vadd.f32 %v2649, %v2769
    %v2771 = vpop.f32.mrb[0].mxu0
    %2772 = vmatprep.mubr.f32.mxu0 0.0
    %v2773 = vand.u32 %v2395, 4294901760
    %v2774 = vsub.f32 %v2395, %v2773
    %2775 = vmatmul.mubr.f32.gmra.mrb[0].mxu0 %v2774
    %v2776 = vpop.f32.mrb[0].mxu0
    %v2777 = vadd.f32 %v2655, %v2776
    %v2778 = vpop.f32.mrb[0].mxu0
    %2779 = vmatprep.mubr.f32.mxu0 0.0
    %v2780 = vand.u32 %v2398, 4294901760
    %v2781 = vsub.f32 %v2398, %v2780
    %2782 = vmatmul.mubr.f32.gmra.mrb[0].mxu0 %v2781
    %v2783 = vpop.f32.mrb[0].mxu0
    %v2784 = vadd.f32 %v2661, %v2783
    %v2785 = vpop.f32.mrb[0].mxu0
    %2786 = vmatprep.mubr.f32.mxu0 0.0
    %v2787 = vand.u32 %v2401, 4294901760
    %v2788 = vsub.f32 %v2401, %v2787
    %2789 = vmatmul.mubr.f32.gmra.mrb[0].mxu0 %v2788
    %v2790 = vpop.f32.mrb[0].mxu0
    %v2791 = vadd.f32 %v2667, %v2790
    %v2792 = vpop.f32.mrb[0].mxu0
    %2793 = vmatprep.mubr.f32.mxu0 0.0
    %v2794 = vand.u32 %v2404, 4294901760
    %v2795 = vsub.f32 %v2404, %v2794
    %2796 = vmatmul.mubr.f32.gmra.mrb[0].mxu0 %v2795
    %v2797 = vpop.f32.mrb[0].mxu0
    %v2798 = vadd.f32 %v2673, %v2797
    %v2799 = vpop.f32.mrb[0].mxu0
    %2800 = vdwg.mxu0
    %2801 = vmatprep.subr.mxu0 0.0
    %v2802 = vand.u32 %v37, 4294901760
    %2803 = vmatpush1.msra.mxu0 %v2802
    %2804 = vmatprep.subr.mxu0 0.0
    %v2805 = vand.u32 %v38, 4294901760
    %2806 = vmatpush1.msra.mxu0 %v2805
    %2807 = vmatprep.subr.mxu0 0.0
    %2808 = vmatpush1.msra.mxu0 0.0
    %2809 = vmatprep.subr.mxu0 0.0
    %2810 = vmatpush1.msra.mxu0 0.0
    %2811 = vmatprep.subr.mxu0 0.0
    %2812 = vmatpush1.msra.mxu0 0.0
    %2813 = vmatprep.subr.mxu0 0.0
    %2814 = vmatpush1.msra.mxu0 0.0
    %2815 = vmatprep.subr.mxu0 0.0
    %2816 = vmatpush1.msra.mxu0 0.0
    %2817 = vmatprep.subr.mxu0 0.0
    %2818 = vmatpush1.msra.mxu0 0.0
    %2819 = vmatprep.subr.mxu0 0.0
    %2820 = vmatpush1.msra.mxu0 0.0
    %2821 = vmatprep.subr.mxu0 0.0
    %2822 = vmatpush1.msra.mxu0 0.0
    %2823 = vmatprep.subr.mxu0 0.0
    %2824 = vmatpush1.msra.mxu0 0.0
    %2825 = vmatprep.subr.mxu0 0.0
    %2826 = vmatpush1.msra.mxu0 0.0
    %2827 = vmatprep.subr.mxu0 0.0
    %2828 = vmatpush1.msra.mxu0 0.0
    %2829 = vmatprep.subr.mxu0 0.0
    %2830 = vmatpush1.msra.mxu0 0.0
    %2831 = vmatprep.subr.mxu0 0.0
    %2832 = vmatpush1.msra.mxu0 0.0
    %2833 = vmatprep.subr.mxu0 0.0
    %2834 = vmatpush1.msra.mxu0 0.0
    %2835 = vmatprep.subr.mxu0 0.0
    %2836 = vmatpush1.msra.mxu0 0.0
    %2837 = vmatprep.subr.mxu0 0.0
    %2838 = vmatpush1.msra.mxu0 0.0
    %2839 = vmatprep.subr.mxu0 0.0
    %2840 = vmatpush1.msra.mxu0 0.0
    %2841 = vmatprep.subr.mxu0 0.0
    %2842 = vmatpush1.msra.mxu0 0.0
    %2843 = vmatprep.subr.mxu0 0.0
    %2844 = vmatpush1.msra.mxu0 0.0
    %2845 = vmatprep.subr.mxu0 0.0
    %2846 = vmatpush1.msra.mxu0 0.0
    %2847 = vmatprep.subr.mxu0 0.0
    %2848 = vmatpush1.msra.mxu0 0.0
    %2849 = vmatprep.subr.mxu0 0.0
    %2850 = vmatpush1.msra.mxu0 0.0
    %2851 = vmatprep.subr.mxu0 0.0
    %2852 = vmatpush1.msra.mxu0 0.0
    %2853 = vmatprep.subr.mxu0 0.0
    %2854 = vmatpush1.msra.mxu0 0.0
    %2855 = vmatprep.subr.mxu0 0.0
    %2856 = vmatpush1.msra.mxu0 0.0
    %2857 = vmatprep.subr.mxu0 0.0
    %2858 = vmatpush1.msra.mxu0 0.0
    %2859 = vmatprep.subr.mxu0 0.0
    %2860 = vmatpush1.msra.mxu0 0.0
    %2861 = vmatprep.subr.mxu0 0.0
    %2862 = vmatpush1.msra.mxu0 0.0
    %2863 = vmatprep.subr.mxu0 0.0
    %2864 = vmatpush1.msra.mxu0 0.0
    %2865 = vmatprep.subr.mxu0 0.0
    %2866 = vmatpush1.msra.mxu0 0.0
    %2867 = vmatprep.mubr.f32.mxu0 0.0
    %v2868 = vand.u32 %v2383, 4294901760
    %v2869 = vsub.f32 %v2383, %v2868
    %v2870 = vand.u32 %v2869, 4294901760
    %2871 = vmatmul.mubr.f32.gmra.mrb[0].mxu0 %v2870
    %v2872 = vpop.f32.mrb[0].mxu0
    %v2873 = vadd.f32 %v2749, %v2872
    %v2874 = vpop.f32.mrb[0].mxu0
    %2875 = vmatprep.mubr.f32.mxu0 0.0
    %v2876 = vand.u32 %v2386, 4294901760
    %v2877 = vsub.f32 %v2386, %v2876
    %v2878 = vand.u32 %v2877, 4294901760
    %2879 = vmatmul.mubr.f32.gmra.mrb[0].mxu0 %v2878
    %v2880 = vpop.f32.mrb[0].mxu0
    %v2881 = vadd.f32 %v2756, %v2880
    %v2882 = vpop.f32.mrb[0].mxu0
    %2883 = vmatprep.mubr.f32.mxu0 0.0
    %v2884 = vand.u32 %v2389, 4294901760
    %v2885 = vsub.f32 %v2389, %v2884
    %v2886 = vand.u32 %v2885, 4294901760
    %2887 = vmatmul.mubr.f32.gmra.mrb[0].mxu0 %v2886
    %v2888 = vpop.f32.mrb[0].mxu0
    %v2889 = vadd.f32 %v2763, %v2888
    %v2890 = vpop.f32.mrb[0].mxu0
    %2891 = vmatprep.mubr.f32.mxu0 0.0
    %v2892 = vand.u32 %v2392, 4294901760
    %v2893 = vsub.f32 %v2392, %v2892
    %v2894 = vand.u32 %v2893, 4294901760
    %2895 = vmatmul.mubr.f32.gmra.mrb[0].mxu0 %v2894
    %v2896 = vpop.f32.mrb[0].mxu0
    %v2897 = vadd.f32 %v2770, %v2896
    %v2898 = vpop.f32.mrb[0].mxu0
    %2899 = vmatprep.mubr.f32.mxu0 0.0
    %v2900 = vand.u32 %v2395, 4294901760
    %v2901 = vsub.f32 %v2395, %v2900
    %v2902 = vand.u32 %v2901, 4294901760
    %2903 = vmatmul.mubr.f32.gmra.mrb[0].mxu0 %v2902
    %v2904 = vpop.f32.mrb[0].mxu0
    %v2905 = vadd.f32 %v2777, %v2904
    %v2906 = vpop.f32.mrb[0].mxu0
    %2907 = vmatprep.mubr.f32.mxu0 0.0
    %v2908 = vand.u32 %v2398, 4294901760
    %v2909 = vsub.f32 %v2398, %v2908
    %v2910 = vand.u32 %v2909, 4294901760
    %2911 = vmatmul.mubr.f32.gmra.mrb[0].mxu0 %v2910
    %v2912 = vpop.f32.mrb[0].mxu0
    %v2913 = vadd.f32 %v2784, %v2912
    %v2914 = vpop.f32.mrb[0].mxu0
    %2915 = vmatprep.mubr.f32.mxu0 0.0
    %v2916 = vand.u32 %v2401, 4294901760
    %v2917 = vsub.f32 %v2401, %v2916
    %v2918 = vand.u32 %v2917, 4294901760
    %2919 = vmatmul.mubr.f32.gmra.mrb[0].mxu0 %v2918
    %v2920 = vpop.f32.mrb[0].mxu0
    %v2921 = vadd.f32 %v2791, %v2920
    %v2922 = vpop.f32.mrb[0].mxu0
    %2923 = vmatprep.mubr.f32.mxu0 0.0
    %v2924 = vand.u32 %v2404, 4294901760
    %v2925 = vsub.f32 %v2404, %v2924
    %v2926 = vand.u32 %v2925, 4294901760
    %2927 = vmatmul.mubr.f32.gmra.mrb[0].mxu0 %v2926
    %v2928 = vpop.f32.mrb[0].mxu0
    %v2929 = vadd.f32 %v2798, %v2928
    %v2930 = vpop.f32.mrb[0].mxu0
    %2931 = vdwg.mxu0
    %2932 = vmatprep.subr.mxu0 0.0
    %v2933 = vand.u32 %v37, 4294901760
    %v2934 = vsub.f32 %v37, %v2933
    %v2935 = vand.u32 %v2934, 4294901760
    %2936 = vmatpush1.msra.mxu0 %v2935
    %2937 = vmatprep.subr.mxu0 0.0
    %v2938 = vand.u32 %v38, 4294901760
    %v2939 = vsub.f32 %v38, %v2938
    %v2940 = vand.u32 %v2939, 4294901760
    %2941 = vmatpush1.msra.mxu0 %v2940
    %2942 = vmatprep.subr.mxu0 0.0
    %2943 = vmatpush1.msra.mxu0 0.0
    %2944 = vmatprep.subr.mxu0 0.0
    %2945 = vmatpush1.msra.mxu0 0.0
    %2946 = vmatprep.subr.mxu0 0.0
    %2947 = vmatpush1.msra.mxu0 0.0
    %2948 = vmatprep.subr.mxu0 0.0
    %2949 = vmatpush1.msra.mxu0 0.0
    %2950 = vmatprep.subr.mxu0 0.0
    %2951 = vmatpush1.msra.mxu0 0.0
    %2952 = vmatprep.subr.mxu0 0.0
    %2953 = vmatpush1.msra.mxu0 0.0
    %2954 = vmatprep.subr.mxu0 0.0
    %2955 = vmatpush1.msra.mxu0 0.0
    %2956 = vmatprep.subr.mxu0 0.0
    %2957 = vmatpush1.msra.mxu0 0.0
    %2958 = vmatprep.subr.mxu0 0.0
    %2959 = vmatpush1.msra.mxu0 0.0
    %2960 = vmatprep.subr.mxu0 0.0
    %2961 = vmatpush1.msra.mxu0 0.0
    %2962 = vmatprep.subr.mxu0 0.0
    %2963 = vmatpush1.msra.mxu0 0.0
    %2964 = vmatprep.subr.mxu0 0.0
    %2965 = vmatpush1.msra.mxu0 0.0
    %2966 = vmatprep.subr.mxu0 0.0
    %2967 = vmatpush1.msra.mxu0 0.0
    %2968 = vmatprep.subr.mxu0 0.0
    %2969 = vmatpush1.msra.mxu0 0.0
    %2970 = vmatprep.subr.mxu0 0.0
    %2971 = vmatpush1.msra.mxu0 0.0
    %2972 = vmatprep.subr.mxu0 0.0
    %2973 = vmatpush1.msra.mxu0 0.0
    %2974 = vmatprep.subr.mxu0 0.0
    %2975 = vmatpush1.msra.mxu0 0.0
    %2976 = vmatprep.subr.mxu0 0.0
    %2977 = vmatpush1.msra.mxu0 0.0
    %2978 = vmatprep.subr.mxu0 0.0
    %2979 = vmatpush1.msra.mxu0 0.0
    %2980 = vmatprep.subr.mxu0 0.0
    %2981 = vmatpush1.msra.mxu0 0.0
    %2982 = vmatprep.subr.mxu0 0.0
    %2983 = vmatpush1.msra.mxu0 0.0
    %2984 = vmatprep.subr.mxu0 0.0
    %2985 = vmatpush1.msra.mxu0 0.0
    %2986 = vmatprep.subr.mxu0 0.0
    %2987 = vmatpush1.msra.mxu0 0.0
    %2988 = vmatprep.subr.mxu0 0.0
    %2989 = vmatpush1.msra.mxu0 0.0
    %2990 = vmatprep.subr.mxu0 0.0
    %2991 = vmatpush1.msra.mxu0 0.0
    %2992 = vmatprep.subr.mxu0 0.0
    %2993 = vmatpush1.msra.mxu0 0.0
    %2994 = vmatprep.subr.mxu0 0.0
    %2995 = vmatpush1.msra.mxu0 0.0
    %2996 = vmatprep.subr.mxu0 0.0
    %2997 = vmatpush1.msra.mxu0 0.0
    %2998 = vmatprep.subr.mxu0 0.0
    %2999 = vmatpush1.msra.mxu0 0.0
    %3000 = vmatprep.subr.mxu0 0.0
    %3001 = vmatpush1.msra.mxu0 0.0
    %3002 = vmatprep.mubr.f32.mxu0 0.0
    %v3003 = vand.u32 %v2383, 4294901760
    %3004 = vmatmul.mubr.f32.gmra.mrb[0].mxu0 %v3003
    %v3005 = vpop.f32.mrb[0].mxu0
    %v3006 = vadd.f32 %v2873, %v3005
    %v3007 = vpop.f32.mrb[0].mxu0
    %3008 = vmatprep.mubr.f32.mxu0 0.0
    %v3009 = vand.u32 %v2386, 4294901760
    %3010 = vmatmul.mubr.f32.gmra.mrb[0].mxu0 %v3009
    %v3011 = vpop.f32.mrb[0].mxu0
    %v3012 = vadd.f32 %v2881, %v3011
    %v3013 = vpop.f32.mrb[0].mxu0
    %3014 = vmatprep.mubr.f32.mxu0 0.0
    %v3015 = vand.u32 %v2389, 4294901760
    %3016 = vmatmul.mubr.f32.gmra.mrb[0].mxu0 %v3015
    %v3017 = vpop.f32.mrb[0].mxu0
    %v3018 = vadd.f32 %v2889, %v3017
    %v3019 = vpop.f32.mrb[0].mxu0
    %3020 = vmatprep.mubr.f32.mxu0 0.0
    %v3021 = vand.u32 %v2392, 4294901760
    %3022 = vmatmul.mubr.f32.gmra.mrb[0].mxu0 %v3021
    %v3023 = vpop.f32.mrb[0].mxu0
    %v3024 = vadd.f32 %v2897, %v3023
    %v3025 = vpop.f32.mrb[0].mxu0
    %3026 = vmatprep.mubr.f32.mxu0 0.0
    %v3027 = vand.u32 %v2395, 4294901760
    %3028 = vmatmul.mubr.f32.gmra.mrb[0].mxu0 %v3027
    %v3029 = vpop.f32.mrb[0].mxu0
    %v3030 = vadd.f32 %v2905, %v3029
    %v3031 = vpop.f32.mrb[0].mxu0
    %3032 = vmatprep.mubr.f32.mxu0 0.0
    %v3033 = vand.u32 %v2398, 4294901760
    %3034 = vmatmul.mubr.f32.gmra.mrb[0].mxu0 %v3033
    %v3035 = vpop.f32.mrb[0].mxu0
    %v3036 = vadd.f32 %v2913, %v3035
    %v3037 = vpop.f32.mrb[0].mxu0
    %3038 = vmatprep.mubr.f32.mxu0 0.0
    %v3039 = vand.u32 %v2401, 4294901760
    %3040 = vmatmul.mubr.f32.gmra.mrb[0].mxu0 %v3039
    %v3041 = vpop.f32.mrb[0].mxu0
    %v3042 = vadd.f32 %v2921, %v3041
    %v3043 = vpop.f32.mrb[0].mxu0
    %3044 = vmatprep.mubr.f32.mxu0 0.0
    %v3045 = vand.u32 %v2404, 4294901760
    %3046 = vmatmul.mubr.f32.gmra.mrb[0].mxu0 %v3045
    %v3047 = vpop.f32.mrb[0].mxu0
    %v3048 = vadd.f32 %v2929, %v3047
    %v3049 = vpop.f32.mrb[0].mxu0
    %3050 = vdwg.mxu0
    %3051 = vmatprep.subr.mxu0 0.0
    %v3052 = vand.u32 %v37, 4294901760
    %3053 = vmatpush1.msra.mxu0 %v3052
    %3054 = vmatprep.subr.mxu0 0.0
    %v3055 = vand.u32 %v38, 4294901760
    %3056 = vmatpush1.msra.mxu0 %v3055
    %3057 = vmatprep.subr.mxu0 0.0
    %3058 = vmatpush1.msra.mxu0 0.0
    %3059 = vmatprep.subr.mxu0 0.0
    %3060 = vmatpush1.msra.mxu0 0.0
    %3061 = vmatprep.subr.mxu0 0.0
    %3062 = vmatpush1.msra.mxu0 0.0
    %3063 = vmatprep.subr.mxu0 0.0
    %3064 = vmatpush1.msra.mxu0 0.0
    %3065 = vmatprep.subr.mxu0 0.0
    %3066 = vmatpush1.msra.mxu0 0.0
    %3067 = vmatprep.subr.mxu0 0.0
    %3068 = vmatpush1.msra.mxu0 0.0
    %3069 = vmatprep.subr.mxu0 0.0
    %3070 = vmatpush1.msra.mxu0 0.0
    %3071 = vmatprep.subr.mxu0 0.0
    %3072 = vmatpush1.msra.mxu0 0.0
    %3073 = vmatprep.subr.mxu0 0.0
    %3074 = vmatpush1.msra.mxu0 0.0
    %3075 = vmatprep.subr.mxu0 0.0
    %3076 = vmatpush1.msra.mxu0 0.0
    %3077 = vmatprep.subr.mxu0 0.0
    %3078 = vmatpush1.msra.mxu0 0.0
    %3079 = vmatprep.subr.mxu0 0.0
    %3080 = vmatpush1.msra.mxu0 0.0
    %3081 = vmatprep.subr.mxu0 0.0
    %3082 = vmatpush1.msra.mxu0 0.0
    %3083 = vmatprep.subr.mxu0 0.0
    %3084 = vmatpush1.msra.mxu0 0.0
    %3085 = vmatprep.subr.mxu0 0.0
    %3086 = vmatpush1.msra.mxu0 0.0
    %3087 = vmatprep.subr.mxu0 0.0
    %3088 = vmatpush1.msra.mxu0 0.0
    %3089 = vmatprep.subr.mxu0 0.0
    %3090 = vmatpush1.msra.mxu0 0.0
    %3091 = vmatprep.subr.mxu0 0.0
    %3092 = vmatpush1.msra.mxu0 0.0
    %3093 = vmatprep.subr.mxu0 0.0
    %3094 = vmatpush1.msra.mxu0 0.0
    %3095 = vmatprep.subr.mxu0 0.0
    %3096 = vmatpush1.msra.mxu0 0.0
    %3097 = vmatprep.subr.mxu0 0.0
    %3098 = vmatpush1.msra.mxu0 0.0
    %3099 = vmatprep.subr.mxu0 0.0
    %3100 = vmatpush1.msra.mxu0 0.0
    %3101 = vmatprep.subr.mxu0 0.0
    %3102 = vmatpush1.msra.mxu0 0.0
    %3103 = vmatprep.subr.mxu0 0.0
    %3104 = vmatpush1.msra.mxu0 0.0
    %3105 = vmatprep.subr.mxu0 0.0
    %3106 = vmatpush1.msra.mxu0 0.0
    %3107 = vmatprep.subr.mxu0 0.0
    %3108 = vmatpush1.msra.mxu0 0.0
    %3109 = vmatprep.subr.mxu0 0.0
    %3110 = vmatpush1.msra.mxu0 0.0
    %3111 = vmatprep.subr.mxu0 0.0
    %3112 = vmatpush1.msra.mxu0 0.0
    %3113 = vmatprep.subr.mxu0 0.0
    %3114 = vmatpush1.msra.mxu0 0.0
    %3115 = vmatprep.subr.mxu0 0.0
    %3116 = vmatpush1.msra.mxu0 0.0
    %3117 = vmatprep.mubr.f32.mxu0 0.0
    %v3118 = vand.u32 %v2383, 4294901760
    %3119 = vmatmul.mubr.f32.gmra.mrb[0].mxu0 %v3118
    %v3120 = vpop.f32.mrb[0].mxu0
    %v3121 = vadd.f32 %v3006, %v3120
    %v3122 = vpop.f32.mrb[0].mxu0
    %3123 = vmatprep.mubr.f32.mxu0 0.0
    %v3124 = vand.u32 %v2386, 4294901760
    %3125 = vmatmul.mubr.f32.gmra.mrb[0].mxu0 %v3124
    %v3126 = vpop.f32.mrb[0].mxu0
    %v3127 = vadd.f32 %v3012, %v3126
    %v3128 = vpop.f32.mrb[0].mxu0
    %3129 = vmatprep.mubr.f32.mxu0 0.0
    %v3130 = vand.u32 %v2389, 4294901760
    %3131 = vmatmul.mubr.f32.gmra.mrb[0].mxu0 %v3130
    %v3132 = vpop.f32.mrb[0].mxu0
    %v3133 = vadd.f32 %v3018, %v3132
    %v3134 = vpop.f32.mrb[0].mxu0
    %3135 = vmatprep.mubr.f32.mxu0 0.0
    %v3136 = vand.u32 %v2392, 4294901760
    %3137 = vmatmul.mubr.f32.gmra.mrb[0].mxu0 %v3136
    %v3138 = vpop.f32.mrb[0].mxu0
    %v3139 = vadd.f32 %v3024, %v3138
    %v3140 = vpop.f32.mrb[0].mxu0
    %3141 = vmatprep.mubr.f32.mxu0 0.0
    %v3142 = vand.u32 %v2395, 4294901760
    %3143 = vmatmul.mubr.f32.gmra.mrb[0].mxu0 %v3142
    %v3144 = vpop.f32.mrb[0].mxu0
    %v3145 = vadd.f32 %v3030, %v3144
    %v3146 = vpop.f32.mrb[0].mxu0
    %3147 = vmatprep.mubr.f32.mxu0 0.0
    %v3148 = vand.u32 %v2398, 4294901760
    %3149 = vmatmul.mubr.f32.gmra.mrb[0].mxu0 %v3148
    %v3150 = vpop.f32.mrb[0].mxu0
    %v3151 = vadd.f32 %v3036, %v3150
    %v3152 = vpop.f32.mrb[0].mxu0
    %3153 = vmatprep.mubr.f32.mxu0 0.0
    %v3154 = vand.u32 %v2401, 4294901760
    %3155 = vmatmul.mubr.f32.gmra.mrb[0].mxu0 %v3154
    %v3156 = vpop.f32.mrb[0].mxu0
    %v3157 = vadd.f32 %v3042, %v3156
    %v3158 = vpop.f32.mrb[0].mxu0
    %3159 = vmatprep.mubr.f32.mxu0 0.0
    %v3160 = vand.u32 %v2404, 4294901760
    %3161 = vmatmul.mubr.f32.gmra.mrb[0].mxu0 %v3160
    %v3162 = vpop.f32.mrb[0].mxu0
    %v3163 = vadd.f32 %v3048, %v3162
    %v3164 = vpop.f32.mrb[0].mxu0
    %3165 = vdwg.mxu0
    %s3166 = scalar_lea.vmem [#allocation5], 64
    %3167 = vst.msk [vmem:[%s3166] sm:$0xff] %vm1610, %v3121
    %3168 = vst.msk [vmem:[%s3166 + $0x8] sm:$0xff] %vm1610, %v3127
    %3169 = vst.msk [vmem:[%s3166 + $0x10] sm:$0xff] %vm1610, %v3133
    %3170 = vst.msk [vmem:[%s3166 + $0x18] sm:$0xff] %vm1610, %v3139
    %3171 = vst.msk [vmem:[%s3166 + $0x20] sm:$0xff] %vm1610, %v3145
    %3172 = vst.msk [vmem:[%s3166 + $0x28] sm:$0xff] %vm1610, %v3151
    %3173 = vst.msk [vmem:[%s3166 + $0x30] sm:$0xff] %vm1610, %v3157
    %3174 = vst.msk [vmem:[%s3166 + $0x38] sm:$0xff] %vm1610, %v3163
    %s3175 = scalar_lea.vmem [#allocation2], 32
    %v3176 = vld [vmem:[%s3175] sm:$0xff]
    %v3177 = vld [vmem:[%s3175 + $0x8] sm:$0xff]
    %3178 = vmatprep.subr.mxu0 0.0
    %v3179 = vand.u32 %v3176, 4294901760
    %3180 = vmatpush1.msra.mxu0 %v3179
    %3181 = vmatprep.subr.mxu0 0.0
    %v3182 = vand.u32 %v3177, 4294901760
    %3183 = vmatpush1.msra.mxu0 %v3182
    %3184 = vmatprep.subr.mxu0 0.0
    %3185 = vmatpush1.msra.mxu0 0.0
    %3186 = vmatprep.subr.mxu0 0.0
    %3187 = vmatpush1.msra.mxu0 0.0
    %3188 = vmatprep.subr.mxu0 0.0
    %3189 = vmatpush1.msra.mxu0 0.0
    %3190 = vmatprep.subr.mxu0 0.0
    %3191 = vmatpush1.msra.mxu0 0.0
    %3192 = vmatprep.subr.mxu0 0.0
    %3193 = vmatpush1.msra.mxu0 0.0
    %3194 = vmatprep.subr.mxu0 0.0
    %3195 = vmatpush1.msra.mxu0 0.0
    %3196 = vmatprep.subr.mxu0 0.0
    %3197 = vmatpush1.msra.mxu0 0.0
    %3198 = vmatprep.subr.mxu0 0.0
    %3199 = vmatpush1.msra.mxu0 0.0
    %3200 = vmatprep.subr.mxu0 0.0
    %3201 = vmatpush1.msra.mxu0 0.0
    %3202 = vmatprep.subr.mxu0 0.0
    %3203 = vmatpush1.msra.mxu0 0.0
    %3204 = vmatprep.subr.mxu0 0.0
    %3205 = vmatpush1.msra.mxu0 0.0
    %3206 = vmatprep.subr.mxu0 0.0
    %3207 = vmatpush1.msra.mxu0 0.0
    %3208 = vmatprep.subr.mxu0 0.0
    %3209 = vmatpush1.msra.mxu0 0.0
    %3210 = vmatprep.subr.mxu0 0.0
    %3211 = vmatpush1.msra.mxu0 0.0
    %3212 = vmatprep.subr.mxu0 0.0
    %3213 = vmatpush1.msra.mxu0 0.0
    %3214 = vmatprep.subr.mxu0 0.0
    %3215 = vmatpush1.msra.mxu0 0.0
    %3216 = vmatprep.subr.mxu0 0.0
    %3217 = vmatpush1.msra.mxu0 0.0
    %3218 = vmatprep.subr.mxu0 0.0
    %3219 = vmatpush1.msra.mxu0 0.0
    %3220 = vmatprep.subr.mxu0 0.0
    %3221 = vmatpush1.msra.mxu0 0.0
    %3222 = vmatprep.subr.mxu0 0.0
    %3223 = vmatpush1.msra.mxu0 0.0
    %3224 = vmatprep.subr.mxu0 0.0
    %3225 = vmatpush1.msra.mxu0 0.0
    %3226 = vmatprep.subr.mxu0 0.0
    %3227 = vmatpush1.msra.mxu0 0.0
    %3228 = vmatprep.subr.mxu0 0.0
    %3229 = vmatpush1.msra.mxu0 0.0
    %3230 = vmatprep.subr.mxu0 0.0
    %3231 = vmatpush1.msra.mxu0 0.0
    %3232 = vmatprep.subr.mxu0 0.0
    %3233 = vmatpush1.msra.mxu0 0.0
    %3234 = vmatprep.subr.mxu0 0.0
    %3235 = vmatpush1.msra.mxu0 0.0
    %3236 = vmatprep.subr.mxu0 0.0
    %3237 = vmatpush1.msra.mxu0 0.0
    %3238 = vmatprep.subr.mxu0 0.0
    %3239 = vmatpush1.msra.mxu0 0.0
    %3240 = vmatprep.subr.mxu0 0.0
    %3241 = vmatpush1.msra.mxu0 0.0
    %3242 = vmatprep.subr.mxu0 0.0
    %3243 = vmatpush1.msra.mxu0 0.0
    %3244 = vmatprep.mubr.f32.mxu0 0.0
    %v3245 = vand.u32 %v43, 4294901760
    %v3246 = vsub.f32 %v43, %v3245
    %v3247 = vand.u32 %v3246, 4294901760
    %v3248 = vsub.f32 %v3246, %v3247
    %v3249 = vand.u32 %v3248, 4294901760
    %3250 = vmatmul.mubr.f32.gmra.mrb[0].mxu0 %v3249
    %v3251 = vpop.f32.mrb[0].mxu0
    %v3252 = vadd.f32 0.0, %v3251
    %v3253 = vpop.f32.mrb[0].mxu0
    %3254 = vmatprep.mubr.f32.mxu0 0.0
    %v3255 = vand.u32 %v46, 4294901760
    %v3256 = vsub.f32 %v46, %v3255
    %v3257 = vand.u32 %v3256, 4294901760
    %v3258 = vsub.f32 %v3256, %v3257
    %v3259 = vand.u32 %v3258, 4294901760
    %3260 = vmatmul.mubr.f32.gmra.mrb[0].mxu0 %v3259
    %v3261 = vpop.f32.mrb[0].mxu0
    %v3262 = vadd.f32 0.0, %v3261
    %v3263 = vpop.f32.mrb[0].mxu0
    %3264 = vmatprep.mubr.f32.mxu0 0.0
    %v3265 = vand.u32 %v49, 4294901760
    %v3266 = vsub.f32 %v49, %v3265
    %v3267 = vand.u32 %v3266, 4294901760
    %v3268 = vsub.f32 %v3266, %v3267
    %v3269 = vand.u32 %v3268, 4294901760
    %3270 = vmatmul.mubr.f32.gmra.mrb[0].mxu0 %v3269
    %v3271 = vpop.f32.mrb[0].mxu0
    %v3272 = vadd.f32 0.0, %v3271
    %v3273 = vpop.f32.mrb[0].mxu0
    %3274 = vmatprep.mubr.f32.mxu0 0.0
    %v3275 = vand.u32 %v52, 4294901760
    %v3276 = vsub.f32 %v52, %v3275
    %v3277 = vand.u32 %v3276, 4294901760
    %v3278 = vsub.f32 %v3276, %v3277
    %v3279 = vand.u32 %v3278, 4294901760
    %3280 = vmatmul.mubr.f32.gmra.mrb[0].mxu0 %v3279
    %v3281 = vpop.f32.mrb[0].mxu0
    %v3282 = vadd.f32 0.0, %v3281
    %v3283 = vpop.f32.mrb[0].mxu0
    %3284 = vmatprep.mubr.f32.mxu0 0.0
    %v3285 = vand.u32 %v55, 4294901760
    %v3286 = vsub.f32 %v55, %v3285
    %v3287 = vand.u32 %v3286, 4294901760
    %v3288 = vsub.f32 %v3286, %v3287
    %v3289 = vand.u32 %v3288, 4294901760
    %3290 = vmatmul.mubr.f32.gmra.mrb[0].mxu0 %v3289
    %v3291 = vpop.f32.mrb[0].mxu0
    %v3292 = vadd.f32 0.0, %v3291
    %v3293 = vpop.f32.mrb[0].mxu0
    %3294 = vmatprep.mubr.f32.mxu0 0.0
    %v3295 = vand.u32 %v58, 4294901760
    %v3296 = vsub.f32 %v58, %v3295
    %v3297 = vand.u32 %v3296, 4294901760
    %v3298 = vsub.f32 %v3296, %v3297
    %v3299 = vand.u32 %v3298, 4294901760
    %3300 = vmatmul.mubr.f32.gmra.mrb[0].mxu0 %v3299
    %v3301 = vpop.f32.mrb[0].mxu0
    %v3302 = vadd.f32 0.0, %v3301
    %v3303 = vpop.f32.mrb[0].mxu0
    %3304 = vmatprep.mubr.f32.mxu0 0.0
    %v3305 = vand.u32 %v61, 4294901760
    %v3306 = vsub.f32 %v61, %v3305
    %v3307 = vand.u32 %v3306, 4294901760
    %v3308 = vsub.f32 %v3306, %v3307
    %v3309 = vand.u32 %v3308, 4294901760
    %3310 = vmatmul.mubr.f32.gmra.mrb[0].mxu0 %v3309
    %v3311 = vpop.f32.mrb[0].mxu0
    %v3312 = vadd.f32 0.0, %v3311
    %v3313 = vpop.f32.mrb[0].mxu0
    %3314 = vmatprep.mubr.f32.mxu0 0.0
    %v3315 = vand.u32 %v64, 4294901760
    %v3316 = vsub.f32 %v64, %v3315
    %v3317 = vand.u32 %v3316, 4294901760
    %v3318 = vsub.f32 %v3316, %v3317
    %v3319 = vand.u32 %v3318, 4294901760
    %3320 = vmatmul.mubr.f32.gmra.mrb[0].mxu0 %v3319
    %v3321 = vpop.f32.mrb[0].mxu0
    %v3322 = vadd.f32 0.0, %v3321
    %v3323 = vpop.f32.mrb[0].mxu0
    %3324 = vdwg.mxu0
    %3325 = vmatprep.subr.mxu0 0.0
    %v3326 = vand.u32 %v3176, 4294901760
    %v3327 = vsub.f32 %v3176, %v3326
    %v3328 = vand.u32 %v3327, 4294901760
    %v3329 = vsub.f32 %v3327, %v3328
    %v3330 = vand.u32 %v3329, 4294901760
    %3331 = vmatpush1.msra.mxu0 %v3330
    %3332 = vmatprep.subr.mxu0 0.0
    %v3333 = vand.u32 %v3177, 4294901760
    %v3334 = vsub.f32 %v3177, %v3333
    %v3335 = vand.u32 %v3334, 4294901760
    %v3336 = vsub.f32 %v3334, %v3335
    %v3337 = vand.u32 %v3336, 4294901760
    %3338 = vmatpush1.msra.mxu0 %v3337
    %3339 = vmatprep.subr.mxu0 0.0
    %3340 = vmatpush1.msra.mxu0 0.0
    %3341 = vmatprep.subr.mxu0 0.0
    %3342 = vmatpush1.msra.mxu0 0.0
    %3343 = vmatprep.subr.mxu0 0.0
    %3344 = vmatpush1.msra.mxu0 0.0
    %3345 = vmatprep.subr.mxu0 0.0
    %3346 = vmatpush1.msra.mxu0 0.0
    %3347 = vmatprep.subr.mxu0 0.0
    %3348 = vmatpush1.msra.mxu0 0.0
    %3349 = vmatprep.subr.mxu0 0.0
    %3350 = vmatpush1.msra.mxu0 0.0
    %3351 = vmatprep.subr.mxu0 0.0
    %3352 = vmatpush1.msra.mxu0 0.0
    %3353 = vmatprep.subr.mxu0 0.0
    %3354 = vmatpush1.msra.mxu0 0.0
    %3355 = vmatprep.subr.mxu0 0.0
    %3356 = vmatpush1.msra.mxu0 0.0
    %3357 = vmatprep.subr.mxu0 0.0
    %3358 = vmatpush1.msra.mxu0 0.0
    %3359 = vmatprep.subr.mxu0 0.0
    %3360 = vmatpush1.msra.mxu0 0.0
    %3361 = vmatprep.subr.mxu0 0.0
    %3362 = vmatpush1.msra.mxu0 0.0
    %3363 = vmatprep.subr.mxu0 0.0
    %3364 = vmatpush1.msra.mxu0 0.0
    %3365 = vmatprep.subr.mxu0 0.0
    %3366 = vmatpush1.msra.mxu0 0.0
    %3367 = vmatprep.subr.mxu0 0.0
    %3368 = vmatpush1.msra.mxu0 0.0
    %3369 = vmatprep.subr.mxu0 0.0
    %3370 = vmatpush1.msra.mxu0 0.0
    %3371 = vmatprep.subr.mxu0 0.0
    %3372 = vmatpush1.msra.mxu0 0.0
    %3373 = vmatprep.subr.mxu0 0.0
    %3374 = vmatpush1.msra.mxu0 0.0
    %3375 = vmatprep.subr.mxu0 0.0
    %3376 = vmatpush1.msra.mxu0 0.0
    %3377 = vmatprep.subr.mxu0 0.0
    %3378 = vmatpush1.msra.mxu0 0.0
    %3379 = vmatprep.subr.mxu0 0.0
    %3380 = vmatpush1.msra.mxu0 0.0
    %3381 = vmatprep.subr.mxu0 0.0
    %3382 = vmatpush1.msra.mxu0 0.0
    %3383 = vmatprep.subr.mxu0 0.0
    %3384 = vmatpush1.msra.mxu0 0.0
    %3385 = vmatprep.subr.mxu0 0.0
    %3386 = vmatpush1.msra.mxu0 0.0
    %3387 = vmatprep.subr.mxu0 0.0
    %3388 = vmatpush1.msra.mxu0 0.0
    %3389 = vmatprep.subr.mxu0 0.0
    %3390 = vmatpush1.msra.mxu0 0.0
    %3391 = vmatprep.subr.mxu0 0.0
    %3392 = vmatpush1.msra.mxu0 0.0
    %3393 = vmatprep.subr.mxu0 0.0
    %3394 = vmatpush1.msra.mxu0 0.0
    %3395 = vmatprep.subr.mxu0 0.0
    %3396 = vmatpush1.msra.mxu0 0.0
    %3397 = vmatprep.subr.mxu0 0.0
    %3398 = vmatpush1.msra.mxu0 0.0
    %3399 = vmatprep.mubr.f32.mxu0 0.0
    %v3400 = vand.u32 %v43, 4294901760
    %3401 = vmatmul.mubr.f32.gmra.mrb[0].mxu0 %v3400
    %v3402 = vpop.f32.mrb[0].mxu0
    %v3403 = vadd.f32 %v3252, %v3402
    %v3404 = vpop.f32.mrb[0].mxu0
    %3405 = vmatprep.mubr.f32.mxu0 0.0
    %v3406 = vand.u32 %v46, 4294901760
    %3407 = vmatmul.mubr.f32.gmra.mrb[0].mxu0 %v3406
    %v3408 = vpop.f32.mrb[0].mxu0
    %v3409 = vadd.f32 %v3262, %v3408
    %v3410 = vpop.f32.mrb[0].mxu0
    %3411 = vmatprep.mubr.f32.mxu0 0.0
    %v3412 = vand.u32 %v49, 4294901760
    %3413 = vmatmul.mubr.f32.gmra.mrb[0].mxu0 %v3412
    %v3414 = vpop.f32.mrb[0].mxu0
    %v3415 = vadd.f32 %v3272, %v3414
    %v3416 = vpop.f32.mrb[0].mxu0
    %3417 = vmatprep.mubr.f32.mxu0 0.0
    %v3418 = vand.u32 %v52, 4294901760
    %3419 = vmatmul.mubr.f32.gmra.mrb[0].mxu0 %v3418
    %v3420 = vpop.f32.mrb[0].mxu0
    %v3421 = vadd.f32 %v3282, %v3420
    %v3422 = vpop.f32.mrb[0].mxu0
    %3423 = vmatprep.mubr.f32.mxu0 0.0
    %v3424 = vand.u32 %v55, 4294901760
    %3425 = vmatmul.mubr.f32.gmra.mrb[0].mxu0 %v3424
    %v3426 = vpop.f32.mrb[0].mxu0
    %v3427 = vadd.f32 %v3292, %v3426
    %v3428 = vpop.f32.mrb[0].mxu0
    %3429 = vmatprep.mubr.f32.mxu0 0.0
    %v3430 = vand.u32 %v58, 4294901760
    %3431 = vmatmul.mubr.f32.gmra.mrb[0].mxu0 %v3430
    %v3432 = vpop.f32.mrb[0].mxu0
    %v3433 = vadd.f32 %v3302, %v3432
    %v3434 = vpop.f32.mrb[0].mxu0
    %3435 = vmatprep.mubr.f32.mxu0 0.0
    %v3436 = vand.u32 %v61, 4294901760
    %3437 = vmatmul.mubr.f32.gmra.mrb[0].mxu0 %v3436
    %v3438 = vpop.f32.mrb[0].mxu0
    %v3439 = vadd.f32 %v3312, %v3438
    %v3440 = vpop.f32.mrb[0].mxu0
    %3441 = vmatprep.mubr.f32.mxu0 0.0
    %v3442 = vand.u32 %v64, 4294901760
    %3443 = vmatmul.mubr.f32.gmra.mrb[0].mxu0 %v3442
    %v3444 = vpop.f32.mrb[0].mxu0
    %v3445 = vadd.f32 %v3322, %v3444
    %v3446 = vpop.f32.mrb[0].mxu0
    %3447 = vdwg.mxu0
    %3448 = vmatprep.subr.mxu0 0.0
    %v3449 = vand.u32 %v3176, 4294901760
    %v3450 = vsub.f32 %v3176, %v3449
    %3451 = vmatpush1.msra.mxu0 %v3450
    %3452 = vmatprep.subr.mxu0 0.0
    %v3453 = vand.u32 %v3177, 4294901760
    %v3454 = vsub.f32 %v3177, %v3453
    %3455 = vmatpush1.msra.mxu0 %v3454
    %3456 = vmatprep.subr.mxu0 0.0
    %3457 = vmatpush1.msra.mxu0 0.0
    %3458 = vmatprep.subr.mxu0 0.0
    %3459 = vmatpush1.msra.mxu0 0.0
    %3460 = vmatprep.subr.mxu0 0.0
    %3461 = vmatpush1.msra.mxu0 0.0
    %3462 = vmatprep.subr.mxu0 0.0
    %3463 = vmatpush1.msra.mxu0 0.0
    %3464 = vmatprep.subr.mxu0 0.0
    %3465 = vmatpush1.msra.mxu0 0.0
    %3466 = vmatprep.subr.mxu0 0.0
    %3467 = vmatpush1.msra.mxu0 0.0
    %3468 = vmatprep.subr.mxu0 0.0
    %3469 = vmatpush1.msra.mxu0 0.0
    %3470 = vmatprep.subr.mxu0 0.0
    %3471 = vmatpush1.msra.mxu0 0.0
    %3472 = vmatprep.subr.mxu0 0.0
    %3473 = vmatpush1.msra.mxu0 0.0
    %3474 = vmatprep.subr.mxu0 0.0
    %3475 = vmatpush1.msra.mxu0 0.0
    %3476 = vmatprep.subr.mxu0 0.0
    %3477 = vmatpush1.msra.mxu0 0.0
    %3478 = vmatprep.subr.mxu0 0.0
    %3479 = vmatpush1.msra.mxu0 0.0
    %3480 = vmatprep.subr.mxu0 0.0
    %3481 = vmatpush1.msra.mxu0 0.0
    %3482 = vmatprep.subr.mxu0 0.0
    %3483 = vmatpush1.msra.mxu0 0.0
    %3484 = vmatprep.subr.mxu0 0.0
    %3485 = vmatpush1.msra.mxu0 0.0
    %3486 = vmatprep.subr.mxu0 0.0
    %3487 = vmatpush1.msra.mxu0 0.0
    %3488 = vmatprep.subr.mxu0 0.0
    %3489 = vmatpush1.msra.mxu0 0.0
    %3490 = vmatprep.subr.mxu0 0.0
    %3491 = vmatpush1.msra.mxu0 0.0
    %3492 = vmatprep.subr.mxu0 0.0
    %3493 = vmatpush1.msra.mxu0 0.0
    %3494 = vmatprep.subr.mxu0 0.0
    %3495 = vmatpush1.msra.mxu0 0.0
    %3496 = vmatprep.subr.mxu0 0.0
    %3497 = vmatpush1.msra.mxu0 0.0
    %3498 = vmatprep.subr.mxu0 0.0
    %3499 = vmatpush1.msra.mxu0 0.0
    %3500 = vmatprep.subr.mxu0 0.0
    %3501 = vmatpush1.msra.mxu0 0.0
    %3502 = vmatprep.subr.mxu0 0.0
    %3503 = vmatpush1.msra.mxu0 0.0
    %3504 = vmatprep.subr.mxu0 0.0
    %3505 = vmatpush1.msra.mxu0 0.0
    %3506 = vmatprep.subr.mxu0 0.0
    %3507 = vmatpush1.msra.mxu0 0.0
    %3508 = vmatprep.subr.mxu0 0.0
    %3509 = vmatpush1.msra.mxu0 0.0
    %3510 = vmatprep.subr.mxu0 0.0
    %3511 = vmatpush1.msra.mxu0 0.0
    %3512 = vmatprep.subr.mxu0 0.0
    %3513 = vmatpush1.msra.mxu0 0.0
    %3514 = vmatprep.subr.mxu0 0.0
    %3515 = vmatpush1.msra.mxu0 0.0
    %3516 = vmatprep.mubr.f32.mxu0 0.0
    %v3517 = vand.u32 %v43, 4294901760
    %v3518 = vsub.f32 %v43, %v3517
    %3519 = vmatmul.mubr.f32.gmra.mrb[0].mxu0 %v3518
    %v3520 = vpop.f32.mrb[0].mxu0
    %v3521 = vadd.f32 %v3403, %v3520
    %v3522 = vpop.f32.mrb[0].mxu0
    %3523 = vmatprep.mubr.f32.mxu0 0.0
    %v3524 = vand.u32 %v46, 4294901760
    %v3525 = vsub.f32 %v46, %v3524
    %3526 = vmatmul.mubr.f32.gmra.mrb[0].mxu0 %v3525
    %v3527 = vpop.f32.mrb[0].mxu0
    %v3528 = vadd.f32 %v3409, %v3527
    %v3529 = vpop.f32.mrb[0].mxu0
    %3530 = vmatprep.mubr.f32.mxu0 0.0
    %v3531 = vand.u32 %v49, 4294901760
    %v3532 = vsub.f32 %v49, %v3531
    %3533 = vmatmul.mubr.f32.gmra.mrb[0].mxu0 %v3532
    %v3534 = vpop.f32.mrb[0].mxu0
    %v3535 = vadd.f32 %v3415, %v3534
    %v3536 = vpop.f32.mrb[0].mxu0
    %3537 = vmatprep.mubr.f32.mxu0 0.0
    %v3538 = vand.u32 %v52, 4294901760
    %v3539 = vsub.f32 %v52, %v3538
    %3540 = vmatmul.mubr.f32.gmra.mrb[0].mxu0 %v3539
    %v3541 = vpop.f32.mrb[0].mxu0
    %v3542 = vadd.f32 %v3421, %v3541
    %v3543 = vpop.f32.mrb[0].mxu0
    %3544 = vmatprep.mubr.f32.mxu0 0.0
    %v3545 = vand.u32 %v55, 4294901760
    %v3546 = vsub.f32 %v55, %v3545
    %3547 = vmatmul.mubr.f32.gmra.mrb[0].mxu0 %v3546
    %v3548 = vpop.f32.mrb[0].mxu0
    %v3549 = vadd.f32 %v3427, %v3548
    %v3550 = vpop.f32.mrb[0].mxu0
    %3551 = vmatprep.mubr.f32.mxu0 0.0
    %v3552 = vand.u32 %v58, 4294901760
    %v3553 = vsub.f32 %v58, %v3552
    %3554 = vmatmul.mubr.f32.gmra.mrb[0].mxu0 %v3553
    %v3555 = vpop.f32.mrb[0].mxu0
    %v3556 = vadd.f32 %v3433, %v3555
    %v3557 = vpop.f32.mrb[0].mxu0
    %3558 = vmatprep.mubr.f32.mxu0 0.0
    %v3559 = vand.u32 %v61, 4294901760
    %v3560 = vsub.f32 %v61, %v3559
    %3561 = vmatmul.mubr.f32.gmra.mrb[0].mxu0 %v3560
    %v3562 = vpop.f32.mrb[0].mxu0
    %v3563 = vadd.f32 %v3439, %v3562
    %v3564 = vpop.f32.mrb[0].mxu0
    %3565 = vmatprep.mubr.f32.mxu0 0.0
    %v3566 = vand.u32 %v64, 4294901760
    %v3567 = vsub.f32 %v64, %v3566
    %3568 = vmatmul.mubr.f32.gmra.mrb[0].mxu0 %v3567
    %v3569 = vpop.f32.mrb[0].mxu0
    %v3570 = vadd.f32 %v3445, %v3569
    %v3571 = vpop.f32.mrb[0].mxu0
    %3572 = vdwg.mxu0
    %3573 = vmatprep.subr.mxu0 0.0
    %v3574 = vand.u32 %v3176, 4294901760
    %3575 = vmatpush1.msra.mxu0 %v3574
    %3576 = vmatprep.subr.mxu0 0.0
    %v3577 = vand.u32 %v3177, 4294901760
    %3578 = vmatpush1.msra.mxu0 %v3577
    %3579 = vmatprep.subr.mxu0 0.0
    %3580 = vmatpush1.msra.mxu0 0.0
    %3581 = vmatprep.subr.mxu0 0.0
    %3582 = vmatpush1.msra.mxu0 0.0
    %3583 = vmatprep.subr.mxu0 0.0
    %3584 = vmatpush1.msra.mxu0 0.0
    %3585 = vmatprep.subr.mxu0 0.0
    %3586 = vmatpush1.msra.mxu0 0.0
    %3587 = vmatprep.subr.mxu0 0.0
    %3588 = vmatpush1.msra.mxu0 0.0
    %3589 = vmatprep.subr.mxu0 0.0
    %3590 = vmatpush1.msra.mxu0 0.0
    %3591 = vmatprep.subr.mxu0 0.0
    %3592 = vmatpush1.msra.mxu0 0.0
    %3593 = vmatprep.subr.mxu0 0.0
    %3594 = vmatpush1.msra.mxu0 0.0
    %3595 = vmatprep.subr.mxu0 0.0
    %3596 = vmatpush1.msra.mxu0 0.0
    %3597 = vmatprep.subr.mxu0 0.0
    %3598 = vmatpush1.msra.mxu0 0.0
    %3599 = vmatprep.subr.mxu0 0.0
    %3600 = vmatpush1.msra.mxu0 0.0
    %3601 = vmatprep.subr.mxu0 0.0
    %3602 = vmatpush1.msra.mxu0 0.0
    %3603 = vmatprep.subr.mxu0 0.0
    %3604 = vmatpush1.msra.mxu0 0.0
    %3605 = vmatprep.subr.mxu0 0.0
    %3606 = vmatpush1.msra.mxu0 0.0
    %3607 = vmatprep.subr.mxu0 0.0
    %3608 = vmatpush1.msra.mxu0 0.0
    %3609 = vmatprep.subr.mxu0 0.0
    %3610 = vmatpush1.msra.mxu0 0.0
    %3611 = vmatprep.subr.mxu0 0.0
    %3612 = vmatpush1.msra.mxu0 0.0
    %3613 = vmatprep.subr.mxu0 0.0
    %3614 = vmatpush1.msra.mxu0 0.0
    %3615 = vmatprep.subr.mxu0 0.0
    %3616 = vmatpush1.msra.mxu0 0.0
    %3617 = vmatprep.subr.mxu0 0.0
    %3618 = vmatpush1.msra.mxu0 0.0
    %3619 = vmatprep.subr.mxu0 0.0
    %3620 = vmatpush1.msra.mxu0 0.0
    %3621 = vmatprep.subr.mxu0 0.0
    %3622 = vmatpush1.msra.mxu0 0.0
    %3623 = vmatprep.subr.mxu0 0.0
    %3624 = vmatpush1.msra.mxu0 0.0
    %3625 = vmatprep.subr.mxu0 0.0
    %3626 = vmatpush1.msra.mxu0 0.0
    %3627 = vmatprep.subr.mxu0 0.0
    %3628 = vmatpush1.msra.mxu0 0.0
    %3629 = vmatprep.subr.mxu0 0.0
    %3630 = vmatpush1.msra.mxu0 0.0
    %3631 = vmatprep.subr.mxu0 0.0
    %3632 = vmatpush1.msra.mxu0 0.0
    %3633 = vmatprep.subr.mxu0 0.0
    %3634 = vmatpush1.msra.mxu0 0.0
    %3635 = vmatprep.subr.mxu0 0.0
    %3636 = vmatpush1.msra.mxu0 0.0
    %3637 = vmatprep.subr.mxu0 0.0
    %3638 = vmatpush1.msra.mxu0 0.0
    %3639 = vmatprep.mubr.f32.mxu0 0.0
    %v3640 = vand.u32 %v43, 4294901760
    %v3641 = vsub.f32 %v43, %v3640
    %v3642 = vand.u32 %v3641, 4294901760
    %3643 = vmatmul.mubr.f32.gmra.mrb[0].mxu0 %v3642
    %v3644 = vpop.f32.mrb[0].mxu0
    %v3645 = vadd.f32 %v3521, %v3644
    %v3646 = vpop.f32.mrb[0].mxu0
    %3647 = vmatprep.mubr.f32.mxu0 0.0
    %v3648 = vand.u32 %v46, 4294901760
    %v3649 = vsub.f32 %v46, %v3648
    %v3650 = vand.u32 %v3649, 4294901760
    %3651 = vmatmul.mubr.f32.gmra.mrb[0].mxu0 %v3650
    %v3652 = vpop.f32.mrb[0].mxu0
    %v3653 = vadd.f32 %v3528, %v3652
    %v3654 = vpop.f32.mrb[0].mxu0
    %3655 = vmatprep.mubr.f32.mxu0 0.0
    %v3656 = vand.u32 %v49, 4294901760
    %v3657 = vsub.f32 %v49, %v3656
    %v3658 = vand.u32 %v3657, 4294901760
    %3659 = vmatmul.mubr.f32.gmra.mrb[0].mxu0 %v3658
    %v3660 = vpop.f32.mrb[0].mxu0
    %v3661 = vadd.f32 %v3535, %v3660
    %v3662 = vpop.f32.mrb[0].mxu0
    %3663 = vmatprep.mubr.f32.mxu0 0.0
    %v3664 = vand.u32 %v52, 4294901760
    %v3665 = vsub.f32 %v52, %v3664
    %v3666 = vand.u32 %v3665, 4294901760
    %3667 = vmatmul.mubr.f32.gmra.mrb[0].mxu0 %v3666
    %v3668 = vpop.f32.mrb[0].mxu0
    %v3669 = vadd.f32 %v3542, %v3668
    %v3670 = vpop.f32.mrb[0].mxu0
    %3671 = vmatprep.mubr.f32.mxu0 0.0
    %v3672 = vand.u32 %v55, 4294901760
    %v3673 = vsub.f32 %v55, %v3672
    %v3674 = vand.u32 %v3673, 4294901760
    %3675 = vmatmul.mubr.f32.gmra.mrb[0].mxu0 %v3674
    %v3676 = vpop.f32.mrb[0].mxu0
    %v3677 = vadd.f32 %v3549, %v3676
    %v3678 = vpop.f32.mrb[0].mxu0
    %3679 = vmatprep.mubr.f32.mxu0 0.0
    %v3680 = vand.u32 %v58, 4294901760
    %v3681 = vsub.f32 %v58, %v3680
    %v3682 = vand.u32 %v3681, 4294901760
    %3683 = vmatmul.mubr.f32.gmra.mrb[0].mxu0 %v3682
    %v3684 = vpop.f32.mrb[0].mxu0
    %v3685 = vadd.f32 %v3556, %v3684
    %v3686 = vpop.f32.mrb[0].mxu0
    %3687 = vmatprep.mubr.f32.mxu0 0.0
    %v3688 = vand.u32 %v61, 4294901760
    %v3689 = vsub.f32 %v61, %v3688
    %v3690 = vand.u32 %v3689, 4294901760
    %3691 = vmatmul.mubr.f32.gmra.mrb[0].mxu0 %v3690
    %v3692 = vpop.f32.mrb[0].mxu0
    %v3693 = vadd.f32 %v3563, %v3692
    %v3694 = vpop.f32.mrb[0].mxu0
    %3695 = vmatprep.mubr.f32.mxu0 0.0
    %v3696 = vand.u32 %v64, 4294901760
    %v3697 = vsub.f32 %v64, %v3696
    %v3698 = vand.u32 %v3697, 4294901760
    %3699 = vmatmul.mubr.f32.gmra.mrb[0].mxu0 %v3698
    %v3700 = vpop.f32.mrb[0].mxu0
    %v3701 = vadd.f32 %v3570, %v3700
    %v3702 = vpop.f32.mrb[0].mxu0
    %3703 = vdwg.mxu0
    %3704 = vmatprep.subr.mxu0 0.0
    %v3705 = vand.u32 %v3176, 4294901760
    %v3706 = vsub.f32 %v3176, %v3705
    %v3707 = vand.u32 %v3706, 4294901760
    %3708 = vmatpush1.msra.mxu0 %v3707
    %3709 = vmatprep.subr.mxu0 0.0
    %v3710 = vand.u32 %v3177, 4294901760
    %v3711 = vsub.f32 %v3177, %v3710
    %v3712 = vand.u32 %v3711, 4294901760
    %3713 = vmatpush1.msra.mxu0 %v3712
    %3714 = vmatprep.subr.mxu0 0.0
    %3715 = vmatpush1.msra.mxu0 0.0
    %3716 = vmatprep.subr.mxu0 0.0
    %3717 = vmatpush1.msra.mxu0 0.0
    %3718 = vmatprep.subr.mxu0 0.0
    %3719 = vmatpush1.msra.mxu0 0.0
    %3720 = vmatprep.subr.mxu0 0.0
    %3721 = vmatpush1.msra.mxu0 0.0
    %3722 = vmatprep.subr.mxu0 0.0
    %3723 = vmatpush1.msra.mxu0 0.0
    %3724 = vmatprep.subr.mxu0 0.0
    %3725 = vmatpush1.msra.mxu0 0.0
    %3726 = vmatprep.subr.mxu0 0.0
    %3727 = vmatpush1.msra.mxu0 0.0
    %3728 = vmatprep.subr.mxu0 0.0
    %3729 = vmatpush1.msra.mxu0 0.0
    %3730 = vmatprep.subr.mxu0 0.0
    %3731 = vmatpush1.msra.mxu0 0.0
    %3732 = vmatprep.subr.mxu0 0.0
    %3733 = vmatpush1.msra.mxu0 0.0
    %3734 = vmatprep.subr.mxu0 0.0
    %3735 = vmatpush1.msra.mxu0 0.0
    %3736 = vmatprep.subr.mxu0 0.0
    %3737 = vmatpush1.msra.mxu0 0.0
    %3738 = vmatprep.subr.mxu0 0.0
    %3739 = vmatpush1.msra.mxu0 0.0
    %3740 = vmatprep.subr.mxu0 0.0
    %3741 = vmatpush1.msra.mxu0 0.0
    %3742 = vmatprep.subr.mxu0 0.0
    %3743 = vmatpush1.msra.mxu0 0.0
    %3744 = vmatprep.subr.mxu0 0.0
    %3745 = vmatpush1.msra.mxu0 0.0
    %3746 = vmatprep.subr.mxu0 0.0
    %3747 = vmatpush1.msra.mxu0 0.0
    %3748 = vmatprep.subr.mxu0 0.0
    %3749 = vmatpush1.msra.mxu0 0.0
    %3750 = vmatprep.subr.mxu0 0.0
    %3751 = vmatpush1.msra.mxu0 0.0
    %3752 = vmatprep.subr.mxu0 0.0
    %3753 = vmatpush1.msra.mxu0 0.0
    %3754 = vmatprep.subr.mxu0 0.0
    %3755 = vmatpush1.msra.mxu0 0.0
    %3756 = vmatprep.subr.mxu0 0.0
    %3757 = vmatpush1.msra.mxu0 0.0
    %3758 = vmatprep.subr.mxu0 0.0
    %3759 = vmatpush1.msra.mxu0 0.0
    %3760 = vmatprep.subr.mxu0 0.0
    %3761 = vmatpush1.msra.mxu0 0.0
    %3762 = vmatprep.subr.mxu0 0.0
    %3763 = vmatpush1.msra.mxu0 0.0
    %3764 = vmatprep.subr.mxu0 0.0
    %3765 = vmatpush1.msra.mxu0 0.0
    %3766 = vmatprep.subr.mxu0 0.0
    %3767 = vmatpush1.msra.mxu0 0.0
    %3768 = vmatprep.subr.mxu0 0.0
    %3769 = vmatpush1.msra.mxu0 0.0
    %3770 = vmatprep.subr.mxu0 0.0
    %3771 = vmatpush1.msra.mxu0 0.0
    %3772 = vmatprep.subr.mxu0 0.0
    %3773 = vmatpush1.msra.mxu0 0.0
    %3774 = vmatprep.mubr.f32.mxu0 0.0
    %v3775 = vand.u32 %v43, 4294901760
    %3776 = vmatmul.mubr.f32.gmra.mrb[0].mxu0 %v3775
    %v3777 = vpop.f32.mrb[0].mxu0
    %v3778 = vadd.f32 %v3645, %v3777
    %v3779 = vpop.f32.mrb[0].mxu0
    %3780 = vmatprep.mubr.f32.mxu0 0.0
    %v3781 = vand.u32 %v46, 4294901760
    %3782 = vmatmul.mubr.f32.gmra.mrb[0].mxu0 %v3781
    %v3783 = vpop.f32.mrb[0].mxu0
    %v3784 = vadd.f32 %v3653, %v3783
    %v3785 = vpop.f32.mrb[0].mxu0
    %3786 = vmatprep.mubr.f32.mxu0 0.0
    %v3787 = vand.u32 %v49, 4294901760
    %3788 = vmatmul.mubr.f32.gmra.mrb[0].mxu0 %v3787
    %v3789 = vpop.f32.mrb[0].mxu0
    %v3790 = vadd.f32 %v3661, %v3789
    %v3791 = vpop.f32.mrb[0].mxu0
    %3792 = vmatprep.mubr.f32.mxu0 0.0
    %v3793 = vand.u32 %v52, 4294901760
    %3794 = vmatmul.mubr.f32.gmra.mrb[0].mxu0 %v3793
    %v3795 = vpop.f32.mrb[0].mxu0
    %v3796 = vadd.f32 %v3669, %v3795
    %v3797 = vpop.f32.mrb[0].mxu0
    %3798 = vmatprep.mubr.f32.mxu0 0.0
    %v3799 = vand.u32 %v55, 4294901760
    %3800 = vmatmul.mubr.f32.gmra.mrb[0].mxu0 %v3799
    %v3801 = vpop.f32.mrb[0].mxu0
    %v3802 = vadd.f32 %v3677, %v3801
    %v3803 = vpop.f32.mrb[0].mxu0
    %3804 = vmatprep.mubr.f32.mxu0 0.0
    %v3805 = vand.u32 %v58, 4294901760
    %3806 = vmatmul.mubr.f32.gmra.mrb[0].mxu0 %v3805
    %v3807 = vpop.f32.mrb[0].mxu0
    %v3808 = vadd.f32 %v3685, %v3807
    %v3809 = vpop.f32.mrb[0].mxu0
    %3810 = vmatprep.mubr.f32.mxu0 0.0
    %v3811 = vand.u32 %v61, 4294901760
    %3812 = vmatmul.mubr.f32.gmra.mrb[0].mxu0 %v3811
    %v3813 = vpop.f32.mrb[0].mxu0
    %v3814 = vadd.f32 %v3693, %v3813
    %v3815 = vpop.f32.mrb[0].mxu0
    %3816 = vmatprep.mubr.f32.mxu0 0.0
    %v3817 = vand.u32 %v64, 4294901760
    %3818 = vmatmul.mubr.f32.gmra.mrb[0].mxu0 %v3817
    %v3819 = vpop.f32.mrb[0].mxu0
    %v3820 = vadd.f32 %v3701, %v3819
    %v3821 = vpop.f32.mrb[0].mxu0
    %3822 = vdwg.mxu0
    %3823 = vmatprep.subr.mxu0 0.0
    %v3824 = vand.u32 %v3176, 4294901760
    %3825 = vmatpush1.msra.mxu0 %v3824
    %3826 = vmatprep.subr.mxu0 0.0
    %v3827 = vand.u32 %v3177, 4294901760
    %3828 = vmatpush1.msra.mxu0 %v3827
    %3829 = vmatprep.subr.mxu0 0.0
    %3830 = vmatpush1.msra.mxu0 0.0
    %3831 = vmatprep.subr.mxu0 0.0
    %3832 = vmatpush1.msra.mxu0 0.0
    %3833 = vmatprep.subr.mxu0 0.0
    %3834 = vmatpush1.msra.mxu0 0.0
    %3835 = vmatprep.subr.mxu0 0.0
    %3836 = vmatpush1.msra.mxu0 0.0
    %3837 = vmatprep.subr.mxu0 0.0
    %3838 = vmatpush1.msra.mxu0 0.0
    %3839 = vmatprep.subr.mxu0 0.0
    %3840 = vmatpush1.msra.mxu0 0.0
    %3841 = vmatprep.subr.mxu0 0.0
    %3842 = vmatpush1.msra.mxu0 0.0
    %3843 = vmatprep.subr.mxu0 0.0
    %3844 = vmatpush1.msra.mxu0 0.0
    %3845 = vmatprep.subr.mxu0 0.0
    %3846 = vmatpush1.msra.mxu0 0.0
    %3847 = vmatprep.subr.mxu0 0.0
    %3848 = vmatpush1.msra.mxu0 0.0
    %3849 = vmatprep.subr.mxu0 0.0
    %3850 = vmatpush1.msra.mxu0 0.0
    %3851 = vmatprep.subr.mxu0 0.0
    %3852 = vmatpush1.msra.mxu0 0.0
    %3853 = vmatprep.subr.mxu0 0.0
    %3854 = vmatpush1.msra.mxu0 0.0
    %3855 = vmatprep.subr.mxu0 0.0
    %3856 = vmatpush1.msra.mxu0 0.0
    %3857 = vmatprep.subr.mxu0 0.0
    %3858 = vmatpush1.msra.mxu0 0.0
    %3859 = vmatprep.subr.mxu0 0.0
    %3860 = vmatpush1.msra.mxu0 0.0
    %3861 = vmatprep.subr.mxu0 0.0
    %3862 = vmatpush1.msra.mxu0 0.0
    %3863 = vmatprep.subr.mxu0 0.0
    %3864 = vmatpush1.msra.mxu0 0.0
    %3865 = vmatprep.subr.mxu0 0.0
    %3866 = vmatpush1.msra.mxu0 0.0
    %3867 = vmatprep.subr.mxu0 0.0
    %3868 = vmatpush1.msra.mxu0 0.0
    %3869 = vmatprep.subr.mxu0 0.0
    %3870 = vmatpush1.msra.mxu0 0.0
    %3871 = vmatprep.subr.mxu0 0.0
    %3872 = vmatpush1.msra.mxu0 0.0
    %3873 = vmatprep.subr.mxu0 0.0
    %3874 = vmatpush1.msra.mxu0 0.0
    %3875 = vmatprep.subr.mxu0 0.0
    %3876 = vmatpush1.msra.mxu0 0.0
    %3877 = vmatprep.subr.mxu0 0.0
    %3878 = vmatpush1.msra.mxu0 0.0
    %3879 = vmatprep.subr.mxu0 0.0
    %3880 = vmatpush1.msra.mxu0 0.0
    %3881 = vmatprep.subr.mxu0 0.0
    %3882 = vmatpush1.msra.mxu0 0.0
    %3883 = vmatprep.subr.mxu0 0.0
    %3884 = vmatpush1.msra.mxu0 0.0
    %3885 = vmatprep.subr.mxu0 0.0
    %3886 = vmatpush1.msra.mxu0 0.0
    %3887 = vmatprep.subr.mxu0 0.0
    %3888 = vmatpush1.msra.mxu0 0.0
    %3889 = vmatprep.mubr.f32.mxu0 0.0
    %v3890 = vand.u32 %v43, 4294901760
    %3891 = vmatmul.mubr.f32.gmra.mrb[0].mxu0 %v3890
    %v3892 = vpop.f32.mrb[0].mxu0
    %v3893 = vadd.f32 %v3778, %v3892
    %v3894 = vpop.f32.mrb[0].mxu0
    %3895 = vmatprep.mubr.f32.mxu0 0.0
    %v3896 = vand.u32 %v46, 4294901760
    %3897 = vmatmul.mubr.f32.gmra.mrb[0].mxu0 %v3896
    %v3898 = vpop.f32.mrb[0].mxu0
    %v3899 = vadd.f32 %v3784, %v3898
    %v3900 = vpop.f32.mrb[0].mxu0
    %3901 = vmatprep.mubr.f32.mxu0 0.0
    %v3902 = vand.u32 %v49, 4294901760
    %3903 = vmatmul.mubr.f32.gmra.mrb[0].mxu0 %v3902
    %v3904 = vpop.f32.mrb[0].mxu0
    %v3905 = vadd.f32 %v3790, %v3904
    %v3906 = vpop.f32.mrb[0].mxu0
    %3907 = vmatprep.mubr.f32.mxu0 0.0
    %v3908 = vand.u32 %v52, 4294901760
    %3909 = vmatmul.mubr.f32.gmra.mrb[0].mxu0 %v3908
    %v3910 = vpop.f32.mrb[0].mxu0
    %v3911 = vadd.f32 %v3796, %v3910
    %v3912 = vpop.f32.mrb[0].mxu0
    %3913 = vmatprep.mubr.f32.mxu0 0.0
    %v3914 = vand.u32 %v55, 4294901760
    %3915 = vmatmul.mubr.f32.gmra.mrb[0].mxu0 %v3914
    %v3916 = vpop.f32.mrb[0].mxu0
    %v3917 = vadd.f32 %v3802, %v3916
    %v3918 = vpop.f32.mrb[0].mxu0
    %3919 = vmatprep.mubr.f32.mxu0 0.0
    %v3920 = vand.u32 %v58, 4294901760
    %3921 = vmatmul.mubr.f32.gmra.mrb[0].mxu0 %v3920
    %v3922 = vpop.f32.mrb[0].mxu0
    %v3923 = vadd.f32 %v3808, %v3922
    %v3924 = vpop.f32.mrb[0].mxu0
    %3925 = vmatprep.mubr.f32.mxu0 0.0
    %v3926 = vand.u32 %v61, 4294901760
    %3927 = vmatmul.mubr.f32.gmra.mrb[0].mxu0 %v3926
    %v3928 = vpop.f32.mrb[0].mxu0
    %v3929 = vadd.f32 %v3814, %v3928
    %v3930 = vpop.f32.mrb[0].mxu0
    %3931 = vmatprep.mubr.f32.mxu0 0.0
    %v3932 = vand.u32 %v64, 4294901760
    %3933 = vmatmul.mubr.f32.gmra.mrb[0].mxu0 %v3932
    %v3934 = vpop.f32.mrb[0].mxu0
    %v3935 = vadd.f32 %v3820, %v3934
    %v3936 = vpop.f32.mrb[0].mxu0
    %3937 = vdwg.mxu0
    %v3939 = vsel %vm41, %v3893, 0
    %v3942 = vsel %vm41, %v3899, 0
    %v3945 = vsel %vm41, %v3905, 0
    %v3948 = vsel %vm41, %v3911, 0
    %v3951 = vsel %vm41, %v3917, 0
    %v3954 = vsel %vm41, %v3923, 0
    %v3957 = vsel %vm41, %v3929, 0
    %v3960 = vsel %vm41, %v3935, 0
    %3962 = vmatprep.subr.mxu0 0.0
    %v3963 = vand.u32 %v37, 4294901760
    %3964 = vmatpush1.msra.mxu0 %v3963
    %3965 = vmatprep.subr.mxu0 0.0
    %v3966 = vand.u32 %v38, 4294901760
    %3967 = vmatpush1.msra.mxu0 %v3966
    %3968 = vmatprep.subr.mxu0 0.0
    %3969 = vmatpush1.msra.mxu0 0.0
    %3970 = vmatprep.subr.mxu0 0.0
    %3971 = vmatpush1.msra.mxu0 0.0
    %3972 = vmatprep.subr.mxu0 0.0
    %3973 = vmatpush1.msra.mxu0 0.0
    %3974 = vmatprep.subr.mxu0 0.0
    %3975 = vmatpush1.msra.mxu0 0.0
    %3976 = vmatprep.subr.mxu0 0.0
    %3977 = vmatpush1.msra.mxu0 0.0
    %3978 = vmatprep.subr.mxu0 0.0
    %3979 = vmatpush1.msra.mxu0 0.0
    %3980 = vmatprep.subr.mxu0 0.0
    %3981 = vmatpush1.msra.mxu0 0.0
    %3982 = vmatprep.subr.mxu0 0.0
    %3983 = vmatpush1.msra.mxu0 0.0
    %3984 = vmatprep.subr.mxu0 0.0
    %3985 = vmatpush1.msra.mxu0 0.0
    %3986 = vmatprep.subr.mxu0 0.0
    %3987 = vmatpush1.msra.mxu0 0.0
    %3988 = vmatprep.subr.mxu0 0.0
    %3989 = vmatpush1.msra.mxu0 0.0
    %3990 = vmatprep.subr.mxu0 0.0
    %3991 = vmatpush1.msra.mxu0 0.0
    %3992 = vmatprep.subr.mxu0 0.0
    %3993 = vmatpush1.msra.mxu0 0.0
    %3994 = vmatprep.subr.mxu0 0.0
    %3995 = vmatpush1.msra.mxu0 0.0
    %3996 = vmatprep.subr.mxu0 0.0
    %3997 = vmatpush1.msra.mxu0 0.0
    %3998 = vmatprep.subr.mxu0 0.0
    %3999 = vmatpush1.msra.mxu0 0.0
    %4000 = vmatprep.subr.mxu0 0.0
    %4001 = vmatpush1.msra.mxu0 0.0
    %4002 = vmatprep.subr.mxu0 0.0
    %4003 = vmatpush1.msra.mxu0 0.0
    %4004 = vmatprep.subr.mxu0 0.0
    %4005 = vmatpush1.msra.mxu0 0.0
    %4006 = vmatprep.subr.mxu0 0.0
    %4007 = vmatpush1.msra.mxu0 0.0
    %4008 = vmatprep.subr.mxu0 0.0
    %4009 = vmatpush1.msra.mxu0 0.0
    %4010 = vmatprep.subr.mxu0 0.0
    %4011 = vmatpush1.msra.mxu0 0.0
    %4012 = vmatprep.subr.mxu0 0.0
    %4013 = vmatpush1.msra.mxu0 0.0
    %4014 = vmatprep.subr.mxu0 0.0
    %4015 = vmatpush1.msra.mxu0 0.0
    %4016 = vmatprep.subr.mxu0 0.0
    %4017 = vmatpush1.msra.mxu0 0.0
    %4018 = vmatprep.subr.mxu0 0.0
    %4019 = vmatpush1.msra.mxu0 0.0
    %4020 = vmatprep.subr.mxu0 0.0
    %4021 = vmatpush1.msra.mxu0 0.0
    %4022 = vmatprep.subr.mxu0 0.0
    %4023 = vmatpush1.msra.mxu0 0.0
    %4024 = vmatprep.subr.mxu0 0.0
    %4025 = vmatpush1.msra.mxu0 0.0
    %4026 = vmatprep.subr.mxu0 0.0
    %4027 = vmatpush1.msra.mxu0 0.0
    %4028 = vmatprep.mubr.f32.mxu0 0.0
    %v4029 = vand.u32 %v3939, 4294901760
    %v4030 = vsub.f32 %v3939, %v4029
    %v4031 = vand.u32 %v4030, 4294901760
    %v4032 = vsub.f32 %v4030, %v4031
    %v4033 = vand.u32 %v4032, 4294901760
    %4034 = vmatmul.mubr.f32.gmra.mrb[0].mxu0 %v4033
    %v4035 = vpop.f32.mrb[0].mxu0
    %v4036 = vadd.f32 0.0, %v4035
    %v4037 = vpop.f32.mrb[0].mxu0
    %4038 = vmatprep.mubr.f32.mxu0 0.0
    %v4039 = vand.u32 %v3942, 4294901760
    %v4040 = vsub.f32 %v3942, %v4039
    %v4041 = vand.u32 %v4040, 4294901760
    %v4042 = vsub.f32 %v4040, %v4041
    %v4043 = vand.u32 %v4042, 4294901760
    %4044 = vmatmul.mubr.f32.gmra.mrb[0].mxu0 %v4043
    %v4045 = vpop.f32.mrb[0].mxu0
    %v4046 = vadd.f32 0.0, %v4045
    %v4047 = vpop.f32.mrb[0].mxu0
    %4048 = vmatprep.mubr.f32.mxu0 0.0
    %v4049 = vand.u32 %v3945, 4294901760
    %v4050 = vsub.f32 %v3945, %v4049
    %v4051 = vand.u32 %v4050, 4294901760
    %v4052 = vsub.f32 %v4050, %v4051
    %v4053 = vand.u32 %v4052, 4294901760
    %4054 = vmatmul.mubr.f32.gmra.mrb[0].mxu0 %v4053
    %v4055 = vpop.f32.mrb[0].mxu0
    %v4056 = vadd.f32 0.0, %v4055
    %v4057 = vpop.f32.mrb[0].mxu0
    %4058 = vmatprep.mubr.f32.mxu0 0.0
    %v4059 = vand.u32 %v3948, 4294901760
    %v4060 = vsub.f32 %v3948, %v4059
    %v4061 = vand.u32 %v4060, 4294901760
    %v4062 = vsub.f32 %v4060, %v4061
    %v4063 = vand.u32 %v4062, 4294901760
    %4064 = vmatmul.mubr.f32.gmra.mrb[0].mxu0 %v4063
    %v4065 = vpop.f32.mrb[0].mxu0
    %v4066 = vadd.f32 0.0, %v4065
    %v4067 = vpop.f32.mrb[0].mxu0
    %4068 = vmatprep.mubr.f32.mxu0 0.0
    %v4069 = vand.u32 %v3951, 4294901760
    %v4070 = vsub.f32 %v3951, %v4069
    %v4071 = vand.u32 %v4070, 4294901760
    %v4072 = vsub.f32 %v4070, %v4071
    %v4073 = vand.u32 %v4072, 4294901760
    %4074 = vmatmul.mubr.f32.gmra.mrb[0].mxu0 %v4073
    %v4075 = vpop.f32.mrb[0].mxu0
    %v4076 = vadd.f32 0.0, %v4075
    %v4077 = vpop.f32.mrb[0].mxu0
    %4078 = vmatprep.mubr.f32.mxu0 0.0
    %v4079 = vand.u32 %v3954, 4294901760
    %v4080 = vsub.f32 %v3954, %v4079
    %v4081 = vand.u32 %v4080, 4294901760
    %v4082 = vsub.f32 %v4080, %v4081
    %v4083 = vand.u32 %v4082, 4294901760
    %4084 = vmatmul.mubr.f32.gmra.mrb[0].mxu0 %v4083
    %v4085 = vpop.f32.mrb[0].mxu0
    %v4086 = vadd.f32 0.0, %v4085
    %v4087 = vpop.f32.mrb[0].mxu0
    %4088 = vmatprep.mubr.f32.mxu0 0.0
    %v4089 = vand.u32 %v3957, 4294901760
    %v4090 = vsub.f32 %v3957, %v4089
    %v4091 = vand.u32 %v4090, 4294901760
    %v4092 = vsub.f32 %v4090, %v4091
    %v4093 = vand.u32 %v4092, 4294901760
    %4094 = vmatmul.mubr.f32.gmra.mrb[0].mxu0 %v4093
    %v4095 = vpop.f32.mrb[0].mxu0
    %v4096 = vadd.f32 0.0, %v4095
    %v4097 = vpop.f32.mrb[0].mxu0
    %4098 = vmatprep.mubr.f32.mxu0 0.0
    %v4099 = vand.u32 %v3960, 4294901760
    %v4100 = vsub.f32 %v3960, %v4099
    %v4101 = vand.u32 %v4100, 4294901760
    %v4102 = vsub.f32 %v4100, %v4101
    %v4103 = vand.u32 %v4102, 4294901760
    %4104 = vmatmul.mubr.f32.gmra.mrb[0].mxu0 %v4103
    %v4105 = vpop.f32.mrb[0].mxu0
    %v4106 = vadd.f32 0.0, %v4105
    %v4107 = vpop.f32.mrb[0].mxu0
    %4108 = vdwg.mxu0
    %4109 = vmatprep.subr.mxu0 0.0
    %v4110 = vand.u32 %v37, 4294901760
    %v4111 = vsub.f32 %v37, %v4110
    %v4112 = vand.u32 %v4111, 4294901760
    %v4113 = vsub.f32 %v4111, %v4112
    %v4114 = vand.u32 %v4113, 4294901760
    %4115 = vmatpush1.msra.mxu0 %v4114
    %4116 = vmatprep.subr.mxu0 0.0
    %v4117 = vand.u32 %v38, 4294901760
    %v4118 = vsub.f32 %v38, %v4117
    %v4119 = vand.u32 %v4118, 4294901760
    %v4120 = vsub.f32 %v4118, %v4119
    %v4121 = vand.u32 %v4120, 4294901760
    %4122 = vmatpush1.msra.mxu0 %v4121
    %4123 = vmatprep.subr.mxu0 0.0
    %4124 = vmatpush1.msra.mxu0 0.0
    %4125 = vmatprep.subr.mxu0 0.0
    %4126 = vmatpush1.msra.mxu0 0.0
    %4127 = vmatprep.subr.mxu0 0.0
    %4128 = vmatpush1.msra.mxu0 0.0
    %4129 = vmatprep.subr.mxu0 0.0
    %4130 = vmatpush1.msra.mxu0 0.0
    %4131 = vmatprep.subr.mxu0 0.0
    %4132 = vmatpush1.msra.mxu0 0.0
    %4133 = vmatprep.subr.mxu0 0.0
    %4134 = vmatpush1.msra.mxu0 0.0
    %4135 = vmatprep.subr.mxu0 0.0
    %4136 = vmatpush1.msra.mxu0 0.0
    %4137 = vmatprep.subr.mxu0 0.0
    %4138 = vmatpush1.msra.mxu0 0.0
    %4139 = vmatprep.subr.mxu0 0.0
    %4140 = vmatpush1.msra.mxu0 0.0
    %4141 = vmatprep.subr.mxu0 0.0
    %4142 = vmatpush1.msra.mxu0 0.0
    %4143 = vmatprep.subr.mxu0 0.0
    %4144 = vmatpush1.msra.mxu0 0.0
    %4145 = vmatprep.subr.mxu0 0.0
    %4146 = vmatpush1.msra.mxu0 0.0
    %4147 = vmatprep.subr.mxu0 0.0
    %4148 = vmatpush1.msra.mxu0 0.0
    %4149 = vmatprep.subr.mxu0 0.0
    %4150 = vmatpush1.msra.mxu0 0.0
    %4151 = vmatprep.subr.mxu0 0.0
    %4152 = vmatpush1.msra.mxu0 0.0
    %4153 = vmatprep.subr.mxu0 0.0
    %4154 = vmatpush1.msra.mxu0 0.0
    %4155 = vmatprep.subr.mxu0 0.0
    %4156 = vmatpush1.msra.mxu0 0.0
    %4157 = vmatprep.subr.mxu0 0.0
    %4158 = vmatpush1.msra.mxu0 0.0
    %4159 = vmatprep.subr.mxu0 0.0
    %4160 = vmatpush1.msra.mxu0 0.0
    %4161 = vmatprep.subr.mxu0 0.0
    %4162 = vmatpush1.msra.mxu0 0.0
    %4163 = vmatprep.subr.mxu0 0.0
    %4164 = vmatpush1.msra.mxu0 0.0
    %4165 = vmatprep.subr.mxu0 0.0
    %4166 = vmatpush1.msra.mxu0 0.0
    %4167 = vmatprep.subr.mxu0 0.0
    %4168 = vmatpush1.msra.mxu0 0.0
    %4169 = vmatprep.subr.mxu0 0.0
    %4170 = vmatpush1.msra.mxu0 0.0
    %4171 = vmatprep.subr.mxu0 0.0
    %4172 = vmatpush1.msra.mxu0 0.0
    %4173 = vmatprep.subr.mxu0 0.0
    %4174 = vmatpush1.msra.mxu0 0.0
    %4175 = vmatprep.subr.mxu0 0.0
    %4176 = vmatpush1.msra.mxu0 0.0
    %4177 = vmatprep.subr.mxu0 0.0
    %4178 = vmatpush1.msra.mxu0 0.0
    %4179 = vmatprep.subr.mxu0 0.0
    %4180 = vmatpush1.msra.mxu0 0.0
    %4181 = vmatprep.subr.mxu0 0.0
    %4182 = vmatpush1.msra.mxu0 0.0
    %4183 = vmatprep.mubr.f32.mxu0 0.0
    %v4184 = vand.u32 %v3939, 4294901760
    %4185 = vmatmul.mubr.f32.gmra.mrb[0].mxu0 %v4184
    %v4186 = vpop.f32.mrb[0].mxu0
    %v4187 = vadd.f32 %v4036, %v4186
    %v4188 = vpop.f32.mrb[0].mxu0
    %4189 = vmatprep.mubr.f32.mxu0 0.0
    %v4190 = vand.u32 %v3942, 4294901760
    %4191 = vmatmul.mubr.f32.gmra.mrb[0].mxu0 %v4190
    %v4192 = vpop.f32.mrb[0].mxu0
    %v4193 = vadd.f32 %v4046, %v4192
    %v4194 = vpop.f32.mrb[0].mxu0
    %4195 = vmatprep.mubr.f32.mxu0 0.0
    %v4196 = vand.u32 %v3945, 4294901760
    %4197 = vmatmul.mubr.f32.gmra.mrb[0].mxu0 %v4196
    %v4198 = vpop.f32.mrb[0].mxu0
    %v4199 = vadd.f32 %v4056, %v4198
    %v4200 = vpop.f32.mrb[0].mxu0
    %4201 = vmatprep.mubr.f32.mxu0 0.0
    %v4202 = vand.u32 %v3948, 4294901760
    %4203 = vmatmul.mubr.f32.gmra.mrb[0].mxu0 %v4202
    %v4204 = vpop.f32.mrb[0].mxu0
    %v4205 = vadd.f32 %v4066, %v4204
    %v4206 = vpop.f32.mrb[0].mxu0
    %4207 = vmatprep.mubr.f32.mxu0 0.0
    %v4208 = vand.u32 %v3951, 4294901760
    %4209 = vmatmul.mubr.f32.gmra.mrb[0].mxu0 %v4208
    %v4210 = vpop.f32.mrb[0].mxu0
    %v4211 = vadd.f32 %v4076, %v4210
    %v4212 = vpop.f32.mrb[0].mxu0
    %4213 = vmatprep.mubr.f32.mxu0 0.0
    %v4214 = vand.u32 %v3954, 4294901760
    %4215 = vmatmul.mubr.f32.gmra.mrb[0].mxu0 %v4214
    %v4216 = vpop.f32.mrb[0].mxu0
    %v4217 = vadd.f32 %v4086, %v4216
    %v4218 = vpop.f32.mrb[0].mxu0
    %4219 = vmatprep.mubr.f32.mxu0 0.0
    %v4220 = vand.u32 %v3957, 4294901760
    %4221 = vmatmul.mubr.f32.gmra.mrb[0].mxu0 %v4220
    %v4222 = vpop.f32.mrb[0].mxu0
    %v4223 = vadd.f32 %v4096, %v4222
    %v4224 = vpop.f32.mrb[0].mxu0
    %4225 = vmatprep.mubr.f32.mxu0 0.0
    %v4226 = vand.u32 %v3960, 4294901760
    %4227 = vmatmul.mubr.f32.gmra.mrb[0].mxu0 %v4226
    %v4228 = vpop.f32.mrb[0].mxu0
    %v4229 = vadd.f32 %v4106, %v4228
    %v4230 = vpop.f32.mrb[0].mxu0
    %4231 = vdwg.mxu0
    %4232 = vmatprep.subr.mxu0 0.0
    %v4233 = vand.u32 %v37, 4294901760
    %v4234 = vsub.f32 %v37, %v4233
    %4235 = vmatpush1.msra.mxu0 %v4234
    %4236 = vmatprep.subr.mxu0 0.0
    %v4237 = vand.u32 %v38, 4294901760
    %v4238 = vsub.f32 %v38, %v4237
    %4239 = vmatpush1.msra.mxu0 %v4238
    %4240 = vmatprep.subr.mxu0 0.0
    %4241 = vmatpush1.msra.mxu0 0.0
    %4242 = vmatprep.subr.mxu0 0.0
    %4243 = vmatpush1.msra.mxu0 0.0
    %4244 = vmatprep.subr.mxu0 0.0
    %4245 = vmatpush1.msra.mxu0 0.0
    %4246 = vmatprep.subr.mxu0 0.0
    %4247 = vmatpush1.msra.mxu0 0.0
    %4248 = vmatprep.subr.mxu0 0.0
    %4249 = vmatpush1.msra.mxu0 0.0
    %4250 = vmatprep.subr.mxu0 0.0
    %4251 = vmatpush1.msra.mxu0 0.0
    %4252 = vmatprep.subr.mxu0 0.0
    %4253 = vmatpush1.msra.mxu0 0.0
    %4254 = vmatprep.subr.mxu0 0.0
    %4255 = vmatpush1.msra.mxu0 0.0
    %4256 = vmatprep.subr.mxu0 0.0
    %4257 = vmatpush1.msra.mxu0 0.0
    %4258 = vmatprep.subr.mxu0 0.0
    %4259 = vmatpush1.msra.mxu0 0.0
    %4260 = vmatprep.subr.mxu0 0.0
    %4261 = vmatpush1.msra.mxu0 0.0
    %4262 = vmatprep.subr.mxu0 0.0
    %4263 = vmatpush1.msra.mxu0 0.0
    %4264 = vmatprep.subr.mxu0 0.0
    %4265 = vmatpush1.msra.mxu0 0.0
    %4266 = vmatprep.subr.mxu0 0.0
    %4267 = vmatpush1.msra.mxu0 0.0
    %4268 = vmatprep.subr.mxu0 0.0
    %4269 = vmatpush1.msra.mxu0 0.0
    %4270 = vmatprep.subr.mxu0 0.0
    %4271 = vmatpush1.msra.mxu0 0.0
    %4272 = vmatprep.subr.mxu0 0.0
    %4273 = vmatpush1.msra.mxu0 0.0
    %4274 = vmatprep.subr.mxu0 0.0
    %4275 = vmatpush1.msra.mxu0 0.0
    %4276 = vmatprep.subr.mxu0 0.0
    %4277 = vmatpush1.msra.mxu0 0.0
    %4278 = vmatprep.subr.mxu0 0.0
    %4279 = vmatpush1.msra.mxu0 0.0
    %4280 = vmatprep.subr.mxu0 0.0
    %4281 = vmatpush1.msra.mxu0 0.0
    %4282 = vmatprep.subr.mxu0 0.0
    %4283 = vmatpush1.msra.mxu0 0.0
    %4284 = vmatprep.subr.mxu0 0.0
    %4285 = vmatpush1.msra.mxu0 0.0
    %4286 = vmatprep.subr.mxu0 0.0
    %4287 = vmatpush1.msra.mxu0 0.0
    %4288 = vmatprep.subr.mxu0 0.0
    %4289 = vmatpush1.msra.mxu0 0.0
    %4290 = vmatprep.subr.mxu0 0.0
    %4291 = vmatpush1.msra.mxu0 0.0
    %4292 = vmatprep.subr.mxu0 0.0
    %4293 = vmatpush1.msra.mxu0 0.0
    %4294 = vmatprep.subr.mxu0 0.0
    %4295 = vmatpush1.msra.mxu0 0.0
    %4296 = vmatprep.subr.mxu0 0.0
    %4297 = vmatpush1.msra.mxu0 0.0
    %4298 = vmatprep.subr.mxu0 0.0
    %4299 = vmatpush1.msra.mxu0 0.0
    %4300 = vmatprep.mubr.f32.mxu0 0.0
    %v4301 = vand.u32 %v3939, 4294901760
    %v4302 = vsub.f32 %v3939, %v4301
    %4303 = vmatmul.mubr.f32.gmra.mrb[0].mxu0 %v4302
    %v4304 = vpop.f32.mrb[0].mxu0
    %v4305 = vadd.f32 %v4187, %v4304
    %v4306 = vpop.f32.mrb[0].mxu0
    %4307 = vmatprep.mubr.f32.mxu0 0.0
    %v4308 = vand.u32 %v3942, 4294901760
    %v4309 = vsub.f32 %v3942, %v4308
    %4310 = vmatmul.mubr.f32.gmra.mrb[0].mxu0 %v4309
    %v4311 = vpop.f32.mrb[0].mxu0
    %v4312 = vadd.f32 %v4193, %v4311
    %v4313 = vpop.f32.mrb[0].mxu0
    %4314 = vmatprep.mubr.f32.mxu0 0.0
    %v4315 = vand.u32 %v3945, 4294901760
    %v4316 = vsub.f32 %v3945, %v4315
    %4317 = vmatmul.mubr.f32.gmra.mrb[0].mxu0 %v4316
    %v4318 = vpop.f32.mrb[0].mxu0
    %v4319 = vadd.f32 %v4199, %v4318
    %v4320 = vpop.f32.mrb[0].mxu0
    %4321 = vmatprep.mubr.f32.mxu0 0.0
    %v4322 = vand.u32 %v3948, 4294901760
    %v4323 = vsub.f32 %v3948, %v4322
    %4324 = vmatmul.mubr.f32.gmra.mrb[0].mxu0 %v4323
    %v4325 = vpop.f32.mrb[0].mxu0
    %v4326 = vadd.f32 %v4205, %v4325
    %v4327 = vpop.f32.mrb[0].mxu0
    %4328 = vmatprep.mubr.f32.mxu0 0.0
    %v4329 = vand.u32 %v3951, 4294901760
    %v4330 = vsub.f32 %v3951, %v4329
    %4331 = vmatmul.mubr.f32.gmra.mrb[0].mxu0 %v4330
    %v4332 = vpop.f32.mrb[0].mxu0
    %v4333 = vadd.f32 %v4211, %v4332
    %v4334 = vpop.f32.mrb[0].mxu0
    %4335 = vmatprep.mubr.f32.mxu0 0.0
    %v4336 = vand.u32 %v3954, 4294901760
    %v4337 = vsub.f32 %v3954, %v4336
    %4338 = vmatmul.mubr.f32.gmra.mrb[0].mxu0 %v4337
    %v4339 = vpop.f32.mrb[0].mxu0
    %v4340 = vadd.f32 %v4217, %v4339
    %v4341 = vpop.f32.mrb[0].mxu0
    %4342 = vmatprep.mubr.f32.mxu0 0.0
    %v4343 = vand.u32 %v3957, 4294901760
    %v4344 = vsub.f32 %v3957, %v4343
    %4345 = vmatmul.mubr.f32.gmra.mrb[0].mxu0 %v4344
    %v4346 = vpop.f32.mrb[0].mxu0
    %v4347 = vadd.f32 %v4223, %v4346
    %v4348 = vpop.f32.mrb[0].mxu0
    %4349 = vmatprep.mubr.f32.mxu0 0.0
    %v4350 = vand.u32 %v3960, 4294901760
    %v4351 = vsub.f32 %v3960, %v4350
    %4352 = vmatmul.mubr.f32.gmra.mrb[0].mxu0 %v4351
    %v4353 = vpop.f32.mrb[0].mxu0
    %v4354 = vadd.f32 %v4229, %v4353
    %v4355 = vpop.f32.mrb[0].mxu0
    %4356 = vdwg.mxu0
    %4357 = vmatprep.subr.mxu0 0.0
    %v4358 = vand.u32 %v37, 4294901760
    %4359 = vmatpush1.msra.mxu0 %v4358
    %4360 = vmatprep.subr.mxu0 0.0
    %v4361 = vand.u32 %v38, 4294901760
    %4362 = vmatpush1.msra.mxu0 %v4361
    %4363 = vmatprep.subr.mxu0 0.0
    %4364 = vmatpush1.msra.mxu0 0.0
    %4365 = vmatprep.subr.mxu0 0.0
    %4366 = vmatpush1.msra.mxu0 0.0
    %4367 = vmatprep.subr.mxu0 0.0
    %4368 = vmatpush1.msra.mxu0 0.0
    %4369 = vmatprep.subr.mxu0 0.0
    %4370 = vmatpush1.msra.mxu0 0.0
    %4371 = vmatprep.subr.mxu0 0.0
    %4372 = vmatpush1.msra.mxu0 0.0
    %4373 = vmatprep.subr.mxu0 0.0
    %4374 = vmatpush1.msra.mxu0 0.0
    %4375 = vmatprep.subr.mxu0 0.0
    %4376 = vmatpush1.msra.mxu0 0.0
    %4377 = vmatprep.subr.mxu0 0.0
    %4378 = vmatpush1.msra.mxu0 0.0
    %4379 = vmatprep.subr.mxu0 0.0
    %4380 = vmatpush1.msra.mxu0 0.0
    %4381 = vmatprep.subr.mxu0 0.0
    %4382 = vmatpush1.msra.mxu0 0.0
    %4383 = vmatprep.subr.mxu0 0.0
    %4384 = vmatpush1.msra.mxu0 0.0
    %4385 = vmatprep.subr.mxu0 0.0
    %4386 = vmatpush1.msra.mxu0 0.0
    %4387 = vmatprep.subr.mxu0 0.0
    %4388 = vmatpush1.msra.mxu0 0.0
    %4389 = vmatprep.subr.mxu0 0.0
    %4390 = vmatpush1.msra.mxu0 0.0
    %4391 = vmatprep.subr.mxu0 0.0
    %4392 = vmatpush1.msra.mxu0 0.0
    %4393 = vmatprep.subr.mxu0 0.0
    %4394 = vmatpush1.msra.mxu0 0.0
    %4395 = vmatprep.subr.mxu0 0.0
    %4396 = vmatpush1.msra.mxu0 0.0
    %4397 = vmatprep.subr.mxu0 0.0
    %4398 = vmatpush1.msra.mxu0 0.0
    %4399 = vmatprep.subr.mxu0 0.0
    %4400 = vmatpush1.msra.mxu0 0.0
    %4401 = vmatprep.subr.mxu0 0.0
    %4402 = vmatpush1.msra.mxu0 0.0
    %4403 = vmatprep.subr.mxu0 0.0
    %4404 = vmatpush1.msra.mxu0 0.0
    %4405 = vmatprep.subr.mxu0 0.0
    %4406 = vmatpush1.msra.mxu0 0.0
    %4407 = vmatprep.subr.mxu0 0.0
    %4408 = vmatpush1.msra.mxu0 0.0
    %4409 = vmatprep.subr.mxu0 0.0
    %4410 = vmatpush1.msra.mxu0 0.0
    %4411 = vmatprep.subr.mxu0 0.0
    %4412 = vmatpush1.msra.mxu0 0.0
    %4413 = vmatprep.subr.mxu0 0.0
    %4414 = vmatpush1.msra.mxu0 0.0
    %4415 = vmatprep.subr.mxu0 0.0
    %4416 = vmatpush1.msra.mxu0 0.0
    %4417 = vmatprep.subr.mxu0 0.0
    %4418 = vmatpush1.msra.mxu0 0.0
    %4419 = vmatprep.subr.mxu0 0.0
    %4420 = vmatpush1.msra.mxu0 0.0
    %4421 = vmatprep.subr.mxu0 0.0
    %4422 = vmatpush1.msra.mxu0 0.0
    %4423 = vmatprep.mubr.f32.mxu0 0.0
    %v4424 = vand.u32 %v3939, 4294901760
    %v4425 = vsub.f32 %v3939, %v4424
    %v4426 = vand.u32 %v4425, 4294901760
    %4427 = vmatmul.mubr.f32.gmra.mrb[0].mxu0 %v4426
    %v4428 = vpop.f32.mrb[0].mxu0
    %v4429 = vadd.f32 %v4305, %v4428
    %v4430 = vpop.f32.mrb[0].mxu0
    %4431 = vmatprep.mubr.f32.mxu0 0.0
    %v4432 = vand.u32 %v3942, 4294901760
    %v4433 = vsub.f32 %v3942, %v4432
    %v4434 = vand.u32 %v4433, 4294901760
    %4435 = vmatmul.mubr.f32.gmra.mrb[0].mxu0 %v4434
    %v4436 = vpop.f32.mrb[0].mxu0
    %v4437 = vadd.f32 %v4312, %v4436
    %v4438 = vpop.f32.mrb[0].mxu0
    %4439 = vmatprep.mubr.f32.mxu0 0.0
    %v4440 = vand.u32 %v3945, 4294901760
    %v4441 = vsub.f32 %v3945, %v4440
    %v4442 = vand.u32 %v4441, 4294901760
    %4443 = vmatmul.mubr.f32.gmra.mrb[0].mxu0 %v4442
    %v4444 = vpop.f32.mrb[0].mxu0
    %v4445 = vadd.f32 %v4319, %v4444
    %v4446 = vpop.f32.mrb[0].mxu0
    %4447 = vmatprep.mubr.f32.mxu0 0.0
    %v4448 = vand.u32 %v3948, 4294901760
    %v4449 = vsub.f32 %v3948, %v4448
    %v4450 = vand.u32 %v4449, 4294901760
    %4451 = vmatmul.mubr.f32.gmra.mrb[0].mxu0 %v4450
    %v4452 = vpop.f32.mrb[0].mxu0
    %v4453 = vadd.f32 %v4326, %v4452
    %v4454 = vpop.f32.mrb[0].mxu0
    %4455 = vmatprep.mubr.f32.mxu0 0.0
    %v4456 = vand.u32 %v3951, 4294901760
    %v4457 = vsub.f32 %v3951, %v4456
    %v4458 = vand.u32 %v4457, 4294901760
    %4459 = vmatmul.mubr.f32.gmra.mrb[0].mxu0 %v4458
    %v4460 = vpop.f32.mrb[0].mxu0
    %v4461 = vadd.f32 %v4333, %v4460
    %v4462 = vpop.f32.mrb[0].mxu0
    %4463 = vmatprep.mubr.f32.mxu0 0.0
    %v4464 = vand.u32 %v3954, 4294901760
    %v4465 = vsub.f32 %v3954, %v4464
    %v4466 = vand.u32 %v4465, 4294901760
    %4467 = vmatmul.mubr.f32.gmra.mrb[0].mxu0 %v4466
    %v4468 = vpop.f32.mrb[0].mxu0
    %v4469 = vadd.f32 %v4340, %v4468
    %v4470 = vpop.f32.mrb[0].mxu0
    %4471 = vmatprep.mubr.f32.mxu0 0.0
    %v4472 = vand.u32 %v3957, 4294901760
    %v4473 = vsub.f32 %v3957, %v4472
    %v4474 = vand.u32 %v4473, 4294901760
    %4475 = vmatmul.mubr.f32.gmra.mrb[0].mxu0 %v4474
    %v4476 = vpop.f32.mrb[0].mxu0
    %v4477 = vadd.f32 %v4347, %v4476
    %v4478 = vpop.f32.mrb[0].mxu0
    %4479 = vmatprep.mubr.f32.mxu0 0.0
    %v4480 = vand.u32 %v3960, 4294901760
    %v4481 = vsub.f32 %v3960, %v4480
    %v4482 = vand.u32 %v4481, 4294901760
    %4483 = vmatmul.mubr.f32.gmra.mrb[0].mxu0 %v4482
    %v4484 = vpop.f32.mrb[0].mxu0
    %v4485 = vadd.f32 %v4354, %v4484
    %v4486 = vpop.f32.mrb[0].mxu0
    %4487 = vdwg.mxu0
    %4488 = vmatprep.subr.mxu0 0.0
    %v4489 = vand.u32 %v37, 4294901760
    %v4490 = vsub.f32 %v37, %v4489
    %v4491 = vand.u32 %v4490, 4294901760
    %4492 = vmatpush1.msra.mxu0 %v4491
    %4493 = vmatprep.subr.mxu0 0.0
    %v4494 = vand.u32 %v38, 4294901760
    %v4495 = vsub.f32 %v38, %v4494
    %v4496 = vand.u32 %v4495, 4294901760
    %4497 = vmatpush1.msra.mxu0 %v4496
    %4498 = vmatprep.subr.mxu0 0.0
    %4499 = vmatpush1.msra.mxu0 0.0
    %4500 = vmatprep.subr.mxu0 0.0
    %4501 = vmatpush1.msra.mxu0 0.0
    %4502 = vmatprep.subr.mxu0 0.0
    %4503 = vmatpush1.msra.mxu0 0.0
    %4504 = vmatprep.subr.mxu0 0.0
    %4505 = vmatpush1.msra.mxu0 0.0
    %4506 = vmatprep.subr.mxu0 0.0
    %4507 = vmatpush1.msra.mxu0 0.0
    %4508 = vmatprep.subr.mxu0 0.0
    %4509 = vmatpush1.msra.mxu0 0.0
    %4510 = vmatprep.subr.mxu0 0.0
    %4511 = vmatpush1.msra.mxu0 0.0
    %4512 = vmatprep.subr.mxu0 0.0
    %4513 = vmatpush1.msra.mxu0 0.0
    %4514 = vmatprep.subr.mxu0 0.0
    %4515 = vmatpush1.msra.mxu0 0.0
    %4516 = vmatprep.subr.mxu0 0.0
    %4517 = vmatpush1.msra.mxu0 0.0
    %4518 = vmatprep.subr.mxu0 0.0
    %4519 = vmatpush1.msra.mxu0 0.0
    %4520 = vmatprep.subr.mxu0 0.0
    %4521 = vmatpush1.msra.mxu0 0.0
    %4522 = vmatprep.subr.mxu0 0.0
    %4523 = vmatpush1.msra.mxu0 0.0
    %4524 = vmatprep.subr.mxu0 0.0
    %4525 = vmatpush1.msra.mxu0 0.0
    %4526 = vmatprep.subr.mxu0 0.0
    %4527 = vmatpush1.msra.mxu0 0.0
    %4528 = vmatprep.subr.mxu0 0.0
    %4529 = vmatpush1.msra.mxu0 0.0
    %4530 = vmatprep.subr.mxu0 0.0
    %4531 = vmatpush1.msra.mxu0 0.0
    %4532 = vmatprep.subr.mxu0 0.0
    %4533 = vmatpush1.msra.mxu0 0.0
    %4534 = vmatprep.subr.mxu0 0.0
    %4535 = vmatpush1.msra.mxu0 0.0
    %4536 = vmatprep.subr.mxu0 0.0
    %4537 = vmatpush1.msra.mxu0 0.0
    %4538 = vmatprep.subr.mxu0 0.0
    %4539 = vmatpush1.msra.mxu0 0.0
    %4540 = vmatprep.subr.mxu0 0.0
    %4541 = vmatpush1.msra.mxu0 0.0
    %4542 = vmatprep.subr.mxu0 0.0
    %4543 = vmatpush1.msra.mxu0 0.0
    %4544 = vmatprep.subr.mxu0 0.0
    %4545 = vmatpush1.msra.mxu0 0.0
    %4546 = vmatprep.subr.mxu0 0.0
    %4547 = vmatpush1.msra.mxu0 0.0
    %4548 = vmatprep.subr.mxu0 0.0
    %4549 = vmatpush1.msra.mxu0 0.0
    %4550 = vmatprep.subr.mxu0 0.0
    %4551 = vmatpush1.msra.mxu0 0.0
    %4552 = vmatprep.subr.mxu0 0.0
    %4553 = vmatpush1.msra.mxu0 0.0
    %4554 = vmatprep.subr.mxu0 0.0
    %4555 = vmatpush1.msra.mxu0 0.0
    %4556 = vmatprep.subr.mxu0 0.0
    %4557 = vmatpush1.msra.mxu0 0.0
    %4558 = vmatprep.mubr.f32.mxu0 0.0
    %v4559 = vand.u32 %v3939, 4294901760
    %4560 = vmatmul.mubr.f32.gmra.mrb[0].mxu0 %v4559
    %v4561 = vpop.f32.mrb[0].mxu0
    %v4562 = vadd.f32 %v4429, %v4561
    %v4563 = vpop.f32.mrb[0].mxu0
    %4564 = vmatprep.mubr.f32.mxu0 0.0
    %v4565 = vand.u32 %v3942, 4294901760
    %4566 = vmatmul.mubr.f32.gmra.mrb[0].mxu0 %v4565
    %v4567 = vpop.f32.mrb[0].mxu0
    %v4568 = vadd.f32 %v4437, %v4567
    %v4569 = vpop.f32.mrb[0].mxu0
    %4570 = vmatprep.mubr.f32.mxu0 0.0
    %v4571 = vand.u32 %v3945, 4294901760
    %4572 = vmatmul.mubr.f32.gmra.mrb[0].mxu0 %v4571
    %v4573 = vpop.f32.mrb[0].mxu0
    %v4574 = vadd.f32 %v4445, %v4573
    %v4575 = vpop.f32.mrb[0].mxu0
    %4576 = vmatprep.mubr.f32.mxu0 0.0
    %v4577 = vand.u32 %v3948, 4294901760
    %4578 = vmatmul.mubr.f32.gmra.mrb[0].mxu0 %v4577
    %v4579 = vpop.f32.mrb[0].mxu0
    %v4580 = vadd.f32 %v4453, %v4579
    %v4581 = vpop.f32.mrb[0].mxu0
    %4582 = vmatprep.mubr.f32.mxu0 0.0
    %v4583 = vand.u32 %v3951, 4294901760
    %4584 = vmatmul.mubr.f32.gmra.mrb[0].mxu0 %v4583
    %v4585 = vpop.f32.mrb[0].mxu0
    %v4586 = vadd.f32 %v4461, %v4585
    %v4587 = vpop.f32.mrb[0].mxu0
    %4588 = vmatprep.mubr.f32.mxu0 0.0
    %v4589 = vand.u32 %v3954, 4294901760
    %4590 = vmatmul.mubr.f32.gmra.mrb[0].mxu0 %v4589
    %v4591 = vpop.f32.mrb[0].mxu0
    %v4592 = vadd.f32 %v4469, %v4591
    %v4593 = vpop.f32.mrb[0].mxu0
    %4594 = vmatprep.mubr.f32.mxu0 0.0
    %v4595 = vand.u32 %v3957, 4294901760
    %4596 = vmatmul.mubr.f32.gmra.mrb[0].mxu0 %v4595
    %v4597 = vpop.f32.mrb[0].mxu0
    %v4598 = vadd.f32 %v4477, %v4597
    %v4599 = vpop.f32.mrb[0].mxu0
    %4600 = vmatprep.mubr.f32.mxu0 0.0
    %v4601 = vand.u32 %v3960, 4294901760
    %4602 = vmatmul.mubr.f32.gmra.mrb[0].mxu0 %v4601
    %v4603 = vpop.f32.mrb[0].mxu0
    %v4604 = vadd.f32 %v4485, %v4603
    %v4605 = vpop.f32.mrb[0].mxu0
    %4606 = vdwg.mxu0
    %4607 = vmatprep.subr.mxu0 0.0
    %v4608 = vand.u32 %v37, 4294901760
    %4609 = vmatpush1.msra.mxu0 %v4608
    %4610 = vmatprep.subr.mxu0 0.0
    %v4611 = vand.u32 %v38, 4294901760
    %4612 = vmatpush1.msra.mxu0 %v4611
    %4613 = vmatprep.subr.mxu0 0.0
    %4614 = vmatpush1.msra.mxu0 0.0
    %4615 = vmatprep.subr.mxu0 0.0
    %4616 = vmatpush1.msra.mxu0 0.0
    %4617 = vmatprep.subr.mxu0 0.0
    %4618 = vmatpush1.msra.mxu0 0.0
    %4619 = vmatprep.subr.mxu0 0.0
    %4620 = vmatpush1.msra.mxu0 0.0
    %4621 = vmatprep.subr.mxu0 0.0
    %4622 = vmatpush1.msra.mxu0 0.0
    %4623 = vmatprep.subr.mxu0 0.0
    %4624 = vmatpush1.msra.mxu0 0.0
    %4625 = vmatprep.subr.mxu0 0.0
    %4626 = vmatpush1.msra.mxu0 0.0
    %4627 = vmatprep.subr.mxu0 0.0
    %4628 = vmatpush1.msra.mxu0 0.0
    %4629 = vmatprep.subr.mxu0 0.0
    %4630 = vmatpush1.msra.mxu0 0.0
    %4631 = vmatprep.subr.mxu0 0.0
    %4632 = vmatpush1.msra.mxu0 0.0
    %4633 = vmatprep.subr.mxu0 0.0
    %4634 = vmatpush1.msra.mxu0 0.0
    %4635 = vmatprep.subr.mxu0 0.0
    %4636 = vmatpush1.msra.mxu0 0.0
    %4637 = vmatprep.subr.mxu0 0.0
    %4638 = vmatpush1.msra.mxu0 0.0
    %4639 = vmatprep.subr.mxu0 0.0
    %4640 = vmatpush1.msra.mxu0 0.0
    %4641 = vmatprep.subr.mxu0 0.0
    %4642 = vmatpush1.msra.mxu0 0.0
    %4643 = vmatprep.subr.mxu0 0.0
    %4644 = vmatpush1.msra.mxu0 0.0
    %4645 = vmatprep.subr.mxu0 0.0
    %4646 = vmatpush1.msra.mxu0 0.0
    %4647 = vmatprep.subr.mxu0 0.0
    %4648 = vmatpush1.msra.mxu0 0.0
    %4649 = vmatprep.subr.mxu0 0.0
    %4650 = vmatpush1.msra.mxu0 0.0
    %4651 = vmatprep.subr.mxu0 0.0
    %4652 = vmatpush1.msra.mxu0 0.0
    %4653 = vmatprep.subr.mxu0 0.0
    %4654 = vmatpush1.msra.mxu0 0.0
    %4655 = vmatprep.subr.mxu0 0.0
    %4656 = vmatpush1.msra.mxu0 0.0
    %4657 = vmatprep.subr.mxu0 0.0
    %4658 = vmatpush1.msra.mxu0 0.0
    %4659 = vmatprep.subr.mxu0 0.0
    %4660 = vmatpush1.msra.mxu0 0.0
    %4661 = vmatprep.subr.mxu0 0.0
    %4662 = vmatpush1.msra.mxu0 0.0
    %4663 = vmatprep.subr.mxu0 0.0
    %4664 = vmatpush1.msra.mxu0 0.0
    %4665 = vmatprep.subr.mxu0 0.0
    %4666 = vmatpush1.msra.mxu0 0.0
    %4667 = vmatprep.subr.mxu0 0.0
    %4668 = vmatpush1.msra.mxu0 0.0
    %4669 = vmatprep.subr.mxu0 0.0
    %4670 = vmatpush1.msra.mxu0 0.0
    %4671 = vmatprep.subr.mxu0 0.0
    %4672 = vmatpush1.msra.mxu0 0.0
    %4673 = vmatprep.mubr.f32.mxu0 0.0
    %v4674 = vand.u32 %v3939, 4294901760
    %4675 = vmatmul.mubr.f32.gmra.mrb[0].mxu0 %v4674
    %v4676 = vpop.f32.mrb[0].mxu0
    %v4677 = vadd.f32 %v4562, %v4676
    %v4678 = vpop.f32.mrb[0].mxu0
    %4679 = vmatprep.mubr.f32.mxu0 0.0
    %v4680 = vand.u32 %v3942, 4294901760
    %4681 = vmatmul.mubr.f32.gmra.mrb[0].mxu0 %v4680
    %v4682 = vpop.f32.mrb[0].mxu0
    %v4683 = vadd.f32 %v4568, %v4682
    %v4684 = vpop.f32.mrb[0].mxu0
    %4685 = vmatprep.mubr.f32.mxu0 0.0
    %v4686 = vand.u32 %v3945, 4294901760
    %4687 = vmatmul.mubr.f32.gmra.mrb[0].mxu0 %v4686
    %v4688 = vpop.f32.mrb[0].mxu0
    %v4689 = vadd.f32 %v4574, %v4688
    %v4690 = vpop.f32.mrb[0].mxu0
    %4691 = vmatprep.mubr.f32.mxu0 0.0
    %v4692 = vand.u32 %v3948, 4294901760
    %4693 = vmatmul.mubr.f32.gmra.mrb[0].mxu0 %v4692
    %v4694 = vpop.f32.mrb[0].mxu0
    %v4695 = vadd.f32 %v4580, %v4694
    %v4696 = vpop.f32.mrb[0].mxu0
    %4697 = vmatprep.mubr.f32.mxu0 0.0
    %v4698 = vand.u32 %v3951, 4294901760
    %4699 = vmatmul.mubr.f32.gmra.mrb[0].mxu0 %v4698
    %v4700 = vpop.f32.mrb[0].mxu0
    %v4701 = vadd.f32 %v4586, %v4700
    %v4702 = vpop.f32.mrb[0].mxu0
    %4703 = vmatprep.mubr.f32.mxu0 0.0
    %v4704 = vand.u32 %v3954, 4294901760
    %4705 = vmatmul.mubr.f32.gmra.mrb[0].mxu0 %v4704
    %v4706 = vpop.f32.mrb[0].mxu0
    %v4707 = vadd.f32 %v4592, %v4706
    %v4708 = vpop.f32.mrb[0].mxu0
    %4709 = vmatprep.mubr.f32.mxu0 0.0
    %v4710 = vand.u32 %v3957, 4294901760
    %4711 = vmatmul.mubr.f32.gmra.mrb[0].mxu0 %v4710
    %v4712 = vpop.f32.mrb[0].mxu0
    %v4713 = vadd.f32 %v4598, %v4712
    %v4714 = vpop.f32.mrb[0].mxu0
    %4715 = vmatprep.mubr.f32.mxu0 0.0
    %v4716 = vand.u32 %v3960, 4294901760
    %4717 = vmatmul.mubr.f32.gmra.mrb[0].mxu0 %v4716
    %v4718 = vpop.f32.mrb[0].mxu0
    %v4719 = vadd.f32 %v4604, %v4718
    %v4720 = vpop.f32.mrb[0].mxu0
    %4721 = vdwg.mxu0
    %s4722 = scalar_lea.vmem [#allocation5], 128
    %4723 = vst.msk [vmem:[%s4722] sm:$0xff] %vm1610, %v4677
    %4724 = vst.msk [vmem:[%s4722 + $0x8] sm:$0xff] %vm1610, %v4683
    %4725 = vst.msk [vmem:[%s4722 + $0x10] sm:$0xff] %vm1610, %v4689
    %4726 = vst.msk [vmem:[%s4722 + $0x18] sm:$0xff] %vm1610, %v4695
    %4727 = vst.msk [vmem:[%s4722 + $0x20] sm:$0xff] %vm1610, %v4701
    %4728 = vst.msk [vmem:[%s4722 + $0x28] sm:$0xff] %vm1610, %v4707
    %4729 = vst.msk [vmem:[%s4722 + $0x30] sm:$0xff] %vm1610, %v4713
    %4730 = vst.msk [vmem:[%s4722 + $0x38] sm:$0xff] %vm1610, %v4719
    %s4731 = scalar_lea.vmem [#allocation2], 48
    %v4732 = vld [vmem:[%s4731] sm:$0xff]
    %v4733 = vld [vmem:[%s4731 + $0x8] sm:$0xff]
    %4734 = vmatprep.subr.mxu0 0.0
    %v4735 = vand.u32 %v4732, 4294901760
    %4736 = vmatpush1.msra.mxu0 %v4735
    %4737 = vmatprep.subr.mxu0 0.0
    %v4738 = vand.u32 %v4733, 4294901760
    %4739 = vmatpush1.msra.mxu0 %v4738
    %4740 = vmatprep.subr.mxu0 0.0
    %4741 = vmatpush1.msra.mxu0 0.0
    %4742 = vmatprep.subr.mxu0 0.0
    %4743 = vmatpush1.msra.mxu0 0.0
    %4744 = vmatprep.subr.mxu0 0.0
    %4745 = vmatpush1.msra.mxu0 0.0
    %4746 = vmatprep.subr.mxu0 0.0
    %4747 = vmatpush1.msra.mxu0 0.0
    %4748 = vmatprep.subr.mxu0 0.0
    %4749 = vmatpush1.msra.mxu0 0.0
    %4750 = vmatprep.subr.mxu0 0.0
    %4751 = vmatpush1.msra.mxu0 0.0
    %4752 = vmatprep.subr.mxu0 0.0
    %4753 = vmatpush1.msra.mxu0 0.0
    %4754 = vmatprep.subr.mxu0 0.0
    %4755 = vmatpush1.msra.mxu0 0.0
    %4756 = vmatprep.subr.mxu0 0.0
    %4757 = vmatpush1.msra.mxu0 0.0
    %4758 = vmatprep.subr.mxu0 0.0
    %4759 = vmatpush1.msra.mxu0 0.0
    %4760 = vmatprep.subr.mxu0 0.0
    %4761 = vmatpush1.msra.mxu0 0.0
    %4762 = vmatprep.subr.mxu0 0.0
    %4763 = vmatpush1.msra.mxu0 0.0
    %4764 = vmatprep.subr.mxu0 0.0
    %4765 = vmatpush1.msra.mxu0 0.0
    %4766 = vmatprep.subr.mxu0 0.0
    %4767 = vmatpush1.msra.mxu0 0.0
    %4768 = vmatprep.subr.mxu0 0.0
    %4769 = vmatpush1.msra.mxu0 0.0
    %4770 = vmatprep.subr.mxu0 0.0
    %4771 = vmatpush1.msra.mxu0 0.0
    %4772 = vmatprep.subr.mxu0 0.0
    %4773 = vmatpush1.msra.mxu0 0.0
    %4774 = vmatprep.subr.mxu0 0.0
    %4775 = vmatpush1.msra.mxu0 0.0
    %4776 = vmatprep.subr.mxu0 0.0
    %4777 = vmatpush1.msra.mxu0 0.0
    %4778 = vmatprep.subr.mxu0 0.0
    %4779 = vmatpush1.msra.mxu0 0.0
    %4780 = vmatprep.subr.mxu0 0.0
    %4781 = vmatpush1.msra.mxu0 0.0
    %4782 = vmatprep.subr.mxu0 0.0
    %4783 = vmatpush1.msra.mxu0 0.0
    %4784 = vmatprep.subr.mxu0 0.0
    %4785 = vmatpush1.msra.mxu0 0.0
    %4786 = vmatprep.subr.mxu0 0.0
    %4787 = vmatpush1.msra.mxu0 0.0
    %4788 = vmatprep.subr.mxu0 0.0
    %4789 = vmatpush1.msra.mxu0 0.0
    %4790 = vmatprep.subr.mxu0 0.0
    %4791 = vmatpush1.msra.mxu0 0.0
    %4792 = vmatprep.subr.mxu0 0.0
    %4793 = vmatpush1.msra.mxu0 0.0
    %4794 = vmatprep.subr.mxu0 0.0
    %4795 = vmatpush1.msra.mxu0 0.0
    %4796 = vmatprep.subr.mxu0 0.0
    %4797 = vmatpush1.msra.mxu0 0.0
    %4798 = vmatprep.subr.mxu0 0.0
    %4799 = vmatpush1.msra.mxu0 0.0
    %4800 = vmatprep.mubr.f32.mxu0 0.0
    %v4801 = vand.u32 %v43, 4294901760
    %v4802 = vsub.f32 %v43, %v4801
    %v4803 = vand.u32 %v4802, 4294901760
    %v4804 = vsub.f32 %v4802, %v4803
    %v4805 = vand.u32 %v4804, 4294901760
    %4806 = vmatmul.mubr.f32.gmra.mrb[0].mxu0 %v4805
    %v4807 = vpop.f32.mrb[0].mxu0
    %v4808 = vadd.f32 0.0, %v4807
    %v4809 = vpop.f32.mrb[0].mxu0
    %4810 = vmatprep.mubr.f32.mxu0 0.0
    %v4811 = vand.u32 %v46, 4294901760
    %v4812 = vsub.f32 %v46, %v4811
    %v4813 = vand.u32 %v4812, 4294901760
    %v4814 = vsub.f32 %v4812, %v4813
    %v4815 = vand.u32 %v4814, 4294901760
    %4816 = vmatmul.mubr.f32.gmra.mrb[0].mxu0 %v4815
    %v4817 = vpop.f32.mrb[0].mxu0
    %v4818 = vadd.f32 0.0, %v4817
    %v4819 = vpop.f32.mrb[0].mxu0
    %4820 = vmatprep.mubr.f32.mxu0 0.0
    %v4821 = vand.u32 %v49, 4294901760
    %v4822 = vsub.f32 %v49, %v4821
    %v4823 = vand.u32 %v4822, 4294901760
    %v4824 = vsub.f32 %v4822, %v4823
    %v4825 = vand.u32 %v4824, 4294901760
    %4826 = vmatmul.mubr.f32.gmra.mrb[0].mxu0 %v4825
    %v4827 = vpop.f32.mrb[0].mxu0
    %v4828 = vadd.f32 0.0, %v4827
    %v4829 = vpop.f32.mrb[0].mxu0
    %4830 = vmatprep.mubr.f32.mxu0 0.0
    %v4831 = vand.u32 %v52, 4294901760
    %v4832 = vsub.f32 %v52, %v4831
    %v4833 = vand.u32 %v4832, 4294901760
    %v4834 = vsub.f32 %v4832, %v4833
    %v4835 = vand.u32 %v4834, 4294901760
    %4836 = vmatmul.mubr.f32.gmra.mrb[0].mxu0 %v4835
    %v4837 = vpop.f32.mrb[0].mxu0
    %v4838 = vadd.f32 0.0, %v4837
    %v4839 = vpop.f32.mrb[0].mxu0
    %4840 = vmatprep.mubr.f32.mxu0 0.0
    %v4841 = vand.u32 %v55, 4294901760
    %v4842 = vsub.f32 %v55, %v4841
    %v4843 = vand.u32 %v4842, 4294901760
    %v4844 = vsub.f32 %v4842, %v4843
    %v4845 = vand.u32 %v4844, 4294901760
    %4846 = vmatmul.mubr.f32.gmra.mrb[0].mxu0 %v4845
    %v4847 = vpop.f32.mrb[0].mxu0
    %v4848 = vadd.f32 0.0, %v4847
    %v4849 = vpop.f32.mrb[0].mxu0
    %4850 = vmatprep.mubr.f32.mxu0 0.0
    %v4851 = vand.u32 %v58, 4294901760
    %v4852 = vsub.f32 %v58, %v4851
    %v4853 = vand.u32 %v4852, 4294901760
    %v4854 = vsub.f32 %v4852, %v4853
    %v4855 = vand.u32 %v4854, 4294901760
    %4856 = vmatmul.mubr.f32.gmra.mrb[0].mxu0 %v4855
    %v4857 = vpop.f32.mrb[0].mxu0
    %v4858 = vadd.f32 0.0, %v4857
    %v4859 = vpop.f32.mrb[0].mxu0
    %4860 = vmatprep.mubr.f32.mxu0 0.0
    %v4861 = vand.u32 %v61, 4294901760
    %v4862 = vsub.f32 %v61, %v4861
    %v4863 = vand.u32 %v4862, 4294901760
    %v4864 = vsub.f32 %v4862, %v4863
    %v4865 = vand.u32 %v4864, 4294901760
    %4866 = vmatmul.mubr.f32.gmra.mrb[0].mxu0 %v4865
    %v4867 = vpop.f32.mrb[0].mxu0
    %v4868 = vadd.f32 0.0, %v4867
    %v4869 = vpop.f32.mrb[0].mxu0
    %4870 = vmatprep.mubr.f32.mxu0 0.0
    %v4871 = vand.u32 %v64, 4294901760
    %v4872 = vsub.f32 %v64, %v4871
    %v4873 = vand.u32 %v4872, 4294901760
    %v4874 = vsub.f32 %v4872, %v4873
    %v4875 = vand.u32 %v4874, 4294901760
    %4876 = vmatmul.mubr.f32.gmra.mrb[0].mxu0 %v4875
    %v4877 = vpop.f32.mrb[0].mxu0
    %v4878 = vadd.f32 0.0, %v4877
    %v4879 = vpop.f32.mrb[0].mxu0
    %4880 = vdwg.mxu0
    %4881 = vmatprep.subr.mxu0 0.0
    %v4882 = vand.u32 %v4732, 4294901760
    %v4883 = vsub.f32 %v4732, %v4882
    %v4884 = vand.u32 %v4883, 4294901760
    %v4885 = vsub.f32 %v4883, %v4884
    %v4886 = vand.u32 %v4885, 4294901760
    %4887 = vmatpush1.msra.mxu0 %v4886
    %4888 = vmatprep.subr.mxu0 0.0
    %v4889 = vand.u32 %v4733, 4294901760
    %v4890 = vsub.f32 %v4733, %v4889
    %v4891 = vand.u32 %v4890, 4294901760
    %v4892 = vsub.f32 %v4890, %v4891
    %v4893 = vand.u32 %v4892, 4294901760
    %4894 = vmatpush1.msra.mxu0 %v4893
    %4895 = vmatprep.subr.mxu0 0.0
    %4896 = vmatpush1.msra.mxu0 0.0
    %4897 = vmatprep.subr.mxu0 0.0
    %4898 = vmatpush1.msra.mxu0 0.0
    %4899 = vmatprep.subr.mxu0 0.0
    %4900 = vmatpush1.msra.mxu0 0.0
    %4901 = vmatprep.subr.mxu0 0.0
    %4902 = vmatpush1.msra.mxu0 0.0
    %4903 = vmatprep.subr.mxu0 0.0
    %4904 = vmatpush1.msra.mxu0 0.0
    %4905 = vmatprep.subr.mxu0 0.0
    %4906 = vmatpush1.msra.mxu0 0.0
    %4907 = vmatprep.subr.mxu0 0.0
    %4908 = vmatpush1.msra.mxu0 0.0
    %4909 = vmatprep.subr.mxu0 0.0
    %4910 = vmatpush1.msra.mxu0 0.0
    %4911 = vmatprep.subr.mxu0 0.0
    %4912 = vmatpush1.msra.mxu0 0.0
    %4913 = vmatprep.subr.mxu0 0.0
    %4914 = vmatpush1.msra.mxu0 0.0
    %4915 = vmatprep.subr.mxu0 0.0
    %4916 = vmatpush1.msra.mxu0 0.0
    %4917 = vmatprep.subr.mxu0 0.0
    %4918 = vmatpush1.msra.mxu0 0.0
    %4919 = vmatprep.subr.mxu0 0.0
    %4920 = vmatpush1.msra.mxu0 0.0
    %4921 = vmatprep.subr.mxu0 0.0
    %4922 = vmatpush1.msra.mxu0 0.0
    %4923 = vmatprep.subr.mxu0 0.0
    %4924 = vmatpush1.msra.mxu0 0.0
    %4925 = vmatprep.subr.mxu0 0.0
    %4926 = vmatpush1.msra.mxu0 0.0
    %4927 = vmatprep.subr.mxu0 0.0
    %4928 = vmatpush1.msra.mxu0 0.0
    %4929 = vmatprep.subr.mxu0 0.0
    %4930 = vmatpush1.msra.mxu0 0.0
    %4931 = vmatprep.subr.mxu0 0.0
    %4932 = vmatpush1.msra.mxu0 0.0
    %4933 = vmatprep.subr.mxu0 0.0
    %4934 = vmatpush1.msra.mxu0 0.0
    %4935 = vmatprep.subr.mxu0 0.0
    %4936 = vmatpush1.msra.mxu0 0.0
    %4937 = vmatprep.subr.mxu0 0.0
    %4938 = vmatpush1.msra.mxu0 0.0
    %4939 = vmatprep.subr.mxu0 0.0
    %4940 = vmatpush1.msra.mxu0 0.0
    %4941 = vmatprep.subr.mxu0 0.0
    %4942 = vmatpush1.msra.mxu0 0.0
    %4943 = vmatprep.subr.mxu0 0.0
    %4944 = vmatpush1.msra.mxu0 0.0
    %4945 = vmatprep.subr.mxu0 0.0
    %4946 = vmatpush1.msra.mxu0 0.0
    %4947 = vmatprep.subr.mxu0 0.0
    %4948 = vmatpush1.msra.mxu0 0.0
    %4949 = vmatprep.subr.mxu0 0.0
    %4950 = vmatpush1.msra.mxu0 0.0
    %4951 = vmatprep.subr.mxu0 0.0
    %4952 = vmatpush1.msra.mxu0 0.0
    %4953 = vmatprep.subr.mxu0 0.0
    %4954 = vmatpush1.msra.mxu0 0.0
    %4955 = vmatprep.mubr.f32.mxu0 0.0
    %v4956 = vand.u32 %v43, 4294901760
    %4957 = vmatmul.mubr.f32.gmra.mrb[0].mxu0 %v4956
    %v4958 = vpop.f32.mrb[0].mxu0
    %v4959 = vadd.f32 %v4808, %v4958
    %v4960 = vpop.f32.mrb[0].mxu0
    %4961 = vmatprep.mubr.f32.mxu0 0.0
    %v4962 = vand.u32 %v46, 4294901760
    %4963 = vmatmul.mubr.f32.gmra.mrb[0].mxu0 %v4962
    %v4964 = vpop.f32.mrb[0].mxu0
    %v4965 = vadd.f32 %v4818, %v4964
    %v4966 = vpop.f32.mrb[0].mxu0
    %4967 = vmatprep.mubr.f32.mxu0 0.0
    %v4968 = vand.u32 %v49, 4294901760
    %4969 = vmatmul.mubr.f32.gmra.mrb[0].mxu0 %v4968
    %v4970 = vpop.f32.mrb[0].mxu0
    %v4971 = vadd.f32 %v4828, %v4970
    %v4972 = vpop.f32.mrb[0].mxu0
    %4973 = vmatprep.mubr.f32.mxu0 0.0
    %v4974 = vand.u32 %v52, 4294901760
    %4975 = vmatmul.mubr.f32.gmra.mrb[0].mxu0 %v4974
    %v4976 = vpop.f32.mrb[0].mxu0
    %v4977 = vadd.f32 %v4838, %v4976
    %v4978 = vpop.f32.mrb[0].mxu0
    %4979 = vmatprep.mubr.f32.mxu0 0.0
    %v4980 = vand.u32 %v55, 4294901760
    %4981 = vmatmul.mubr.f32.gmra.mrb[0].mxu0 %v4980
    %v4982 = vpop.f32.mrb[0].mxu0
    %v4983 = vadd.f32 %v4848, %v4982
    %v4984 = vpop.f32.mrb[0].mxu0
    %4985 = vmatprep.mubr.f32.mxu0 0.0
    %v4986 = vand.u32 %v58, 4294901760
    %4987 = vmatmul.mubr.f32.gmra.mrb[0].mxu0 %v4986
    %v4988 = vpop.f32.mrb[0].mxu0
    %v4989 = vadd.f32 %v4858, %v4988
    %v4990 = vpop.f32.mrb[0].mxu0
    %4991 = vmatprep.mubr.f32.mxu0 0.0
    %v4992 = vand.u32 %v61, 4294901760
    %4993 = vmatmul.mubr.f32.gmra.mrb[0].mxu0 %v4992
    %v4994 = vpop.f32.mrb[0].mxu0
    %v4995 = vadd.f32 %v4868, %v4994
    %v4996 = vpop.f32.mrb[0].mxu0
    %4997 = vmatprep.mubr.f32.mxu0 0.0
    %v4998 = vand.u32 %v64, 4294901760
    %4999 = vmatmul.mubr.f32.gmra.mrb[0].mxu0 %v4998
    %v5000 = vpop.f32.mrb[0].mxu0
    %v5001 = vadd.f32 %v4878, %v5000
    %v5002 = vpop.f32.mrb[0].mxu0
    %5003 = vdwg.mxu0
    %5004 = vmatprep.subr.mxu0 0.0
    %v5005 = vand.u32 %v4732, 4294901760
    %v5006 = vsub.f32 %v4732, %v5005
    %5007 = vmatpush1.msra.mxu0 %v5006
    %5008 = vmatprep.subr.mxu0 0.0
    %v5009 = vand.u32 %v4733, 4294901760
    %v5010 = vsub.f32 %v4733, %v5009
    %5011 = vmatpush1.msra.mxu0 %v5010
    %5012 = vmatprep.subr.mxu0 0.0
    %5013 = vmatpush1.msra.mxu0 0.0
    %5014 = vmatprep.subr.mxu0 0.0
    %5015 = vmatpush1.msra.mxu0 0.0
    %5016 = vmatprep.subr.mxu0 0.0
    %5017 = vmatpush1.msra.mxu0 0.0
    %5018 = vmatprep.subr.mxu0 0.0
    %5019 = vmatpush1.msra.mxu0 0.0
    %5020 = vmatprep.subr.mxu0 0.0
    %5021 = vmatpush1.msra.mxu0 0.0
    %5022 = vmatprep.subr.mxu0 0.0
    %5023 = vmatpush1.msra.mxu0 0.0
    %5024 = vmatprep.subr.mxu0 0.0
    %5025 = vmatpush1.msra.mxu0 0.0
    %5026 = vmatprep.subr.mxu0 0.0
    %5027 = vmatpush1.msra.mxu0 0.0
    %5028 = vmatprep.subr.mxu0 0.0
    %5029 = vmatpush1.msra.mxu0 0.0
    %5030 = vmatprep.subr.mxu0 0.0
    %5031 = vmatpush1.msra.mxu0 0.0
    %5032 = vmatprep.subr.mxu0 0.0
    %5033 = vmatpush1.msra.mxu0 0.0
    %5034 = vmatprep.subr.mxu0 0.0
    %5035 = vmatpush1.msra.mxu0 0.0
    %5036 = vmatprep.subr.mxu0 0.0
    %5037 = vmatpush1.msra.mxu0 0.0
    %5038 = vmatprep.subr.mxu0 0.0
    %5039 = vmatpush1.msra.mxu0 0.0
    %5040 = vmatprep.subr.mxu0 0.0
    %5041 = vmatpush1.msra.mxu0 0.0
    %5042 = vmatprep.subr.mxu0 0.0
    %5043 = vmatpush1.msra.mxu0 0.0
    %5044 = vmatprep.subr.mxu0 0.0
    %5045 = vmatpush1.msra.mxu0 0.0
    %5046 = vmatprep.subr.mxu0 0.0
    %5047 = vmatpush1.msra.mxu0 0.0
    %5048 = vmatprep.subr.mxu0 0.0
    %5049 = vmatpush1.msra.mxu0 0.0
    %5050 = vmatprep.subr.mxu0 0.0
    %5051 = vmatpush1.msra.mxu0 0.0
    %5052 = vmatprep.subr.mxu0 0.0
    %5053 = vmatpush1.msra.mxu0 0.0
    %5054 = vmatprep.subr.mxu0 0.0
    %5055 = vmatpush1.msra.mxu0 0.0
    %5056 = vmatprep.subr.mxu0 0.0
    %5057 = vmatpush1.msra.mxu0 0.0
    %5058 = vmatprep.subr.mxu0 0.0
    %5059 = vmatpush1.msra.mxu0 0.0
    %5060 = vmatprep.subr.mxu0 0.0
    %5061 = vmatpush1.msra.mxu0 0.0
    %5062 = vmatprep.subr.mxu0 0.0
    %5063 = vmatpush1.msra.mxu0 0.0
    %5064 = vmatprep.subr.mxu0 0.0
    %5065 = vmatpush1.msra.mxu0 0.0
    %5066 = vmatprep.subr.mxu0 0.0
    %5067 = vmatpush1.msra.mxu0 0.0
    %5068 = vmatprep.subr.mxu0 0.0
    %5069 = vmatpush1.msra.mxu0 0.0
    %5070 = vmatprep.subr.mxu0 0.0
    %5071 = vmatpush1.msra.mxu0 0.0
    %5072 = vmatprep.mubr.f32.mxu0 0.0
    %v5073 = vand.u32 %v43, 4294901760
    %v5074 = vsub.f32 %v43, %v5073
    %5075 = vmatmul.mubr.f32.gmra.mrb[0].mxu0 %v5074
    %v5076 = vpop.f32.mrb[0].mxu0
    %v5077 = vadd.f32 %v4959, %v5076
    %v5078 = vpop.f32.mrb[0].mxu0
    %5079 = vmatprep.mubr.f32.mxu0 0.0
    %v5080 = vand.u32 %v46, 4294901760
    %v5081 = vsub.f32 %v46, %v5080
    %5082 = vmatmul.mubr.f32.gmra.mrb[0].mxu0 %v5081
    %v5083 = vpop.f32.mrb[0].mxu0
    %v5084 = vadd.f32 %v4965, %v5083
    %v5085 = vpop.f32.mrb[0].mxu0
    %5086 = vmatprep.mubr.f32.mxu0 0.0
    %v5087 = vand.u32 %v49, 4294901760
    %v5088 = vsub.f32 %v49, %v5087
    %5089 = vmatmul.mubr.f32.gmra.mrb[0].mxu0 %v5088
    %v5090 = vpop.f32.mrb[0].mxu0
    %v5091 = vadd.f32 %v4971, %v5090
    %v5092 = vpop.f32.mrb[0].mxu0
    %5093 = vmatprep.mubr.f32.mxu0 0.0
    %v5094 = vand.u32 %v52, 4294901760
    %v5095 = vsub.f32 %v52, %v5094
    %5096 = vmatmul.mubr.f32.gmra.mrb[0].mxu0 %v5095
    %v5097 = vpop.f32.mrb[0].mxu0
    %v5098 = vadd.f32 %v4977, %v5097
    %v5099 = vpop.f32.mrb[0].mxu0
    %5100 = vmatprep.mubr.f32.mxu0 0.0
    %v5101 = vand.u32 %v55, 4294901760
    %v5102 = vsub.f32 %v55, %v5101
    %5103 = vmatmul.mubr.f32.gmra.mrb[0].mxu0 %v5102
    %v5104 = vpop.f32.mrb[0].mxu0
    %v5105 = vadd.f32 %v4983, %v5104
    %v5106 = vpop.f32.mrb[0].mxu0
    %5107 = vmatprep.mubr.f32.mxu0 0.0
    %v5108 = vand.u32 %v58, 4294901760
    %v5109 = vsub.f32 %v58, %v5108
    %5110 = vmatmul.mubr.f32.gmra.mrb[0].mxu0 %v5109
    %v5111 = vpop.f32.mrb[0].mxu0
    %v5112 = vadd.f32 %v4989, %v5111
    %v5113 = vpop.f32.mrb[0].mxu0
    %5114 = vmatprep.mubr.f32.mxu0 0.0
    %v5115 = vand.u32 %v61, 4294901760
    %v5116 = vsub.f32 %v61, %v5115
    %5117 = vmatmul.mubr.f32.gmra.mrb[0].mxu0 %v5116
    %v5118 = vpop.f32.mrb[0].mxu0
    %v5119 = vadd.f32 %v4995, %v5118
    %v5120 = vpop.f32.mrb[0].mxu0
    %5121 = vmatprep.mubr.f32.mxu0 0.0
    %v5122 = vand.u32 %v64, 4294901760
    %v5123 = vsub.f32 %v64, %v5122
    %5124 = vmatmul.mubr.f32.gmra.mrb[0].mxu0 %v5123
    %v5125 = vpop.f32.mrb[0].mxu0
    %v5126 = vadd.f32 %v5001, %v5125
    %v5127 = vpop.f32.mrb[0].mxu0
    %5128 = vdwg.mxu0
    %5129 = vmatprep.subr.mxu0 0.0
    %v5130 = vand.u32 %v4732, 4294901760
    %5131 = vmatpush1.msra.mxu0 %v5130
    %5132 = vmatprep.subr.mxu0 0.0
    %v5133 = vand.u32 %v4733, 4294901760
    %5134 = vmatpush1.msra.mxu0 %v5133
    %5135 = vmatprep.subr.mxu0 0.0
    %5136 = vmatpush1.msra.mxu0 0.0
    %5137 = vmatprep.subr.mxu0 0.0
    %5138 = vmatpush1.msra.mxu0 0.0
    %5139 = vmatprep.subr.mxu0 0.0
    %5140 = vmatpush1.msra.mxu0 0.0
    %5141 = vmatprep.subr.mxu0 0.0
    %5142 = vmatpush1.msra.mxu0 0.0
    %5143 = vmatprep.subr.mxu0 0.0
    %5144 = vmatpush1.msra.mxu0 0.0
    %5145 = vmatprep.subr.mxu0 0.0
    %5146 = vmatpush1.msra.mxu0 0.0
    %5147 = vmatprep.subr.mxu0 0.0
    %5148 = vmatpush1.msra.mxu0 0.0
    %5149 = vmatprep.subr.mxu0 0.0
    %5150 = vmatpush1.msra.mxu0 0.0
    %5151 = vmatprep.subr.mxu0 0.0
    %5152 = vmatpush1.msra.mxu0 0.0
    %5153 = vmatprep.subr.mxu0 0.0
    %5154 = vmatpush1.msra.mxu0 0.0
    %5155 = vmatprep.subr.mxu0 0.0
    %5156 = vmatpush1.msra.mxu0 0.0
    %5157 = vmatprep.subr.mxu0 0.0
    %5158 = vmatpush1.msra.mxu0 0.0
    %5159 = vmatprep.subr.mxu0 0.0
    %5160 = vmatpush1.msra.mxu0 0.0
    %5161 = vmatprep.subr.mxu0 0.0
    %5162 = vmatpush1.msra.mxu0 0.0
    %5163 = vmatprep.subr.mxu0 0.0
    %5164 = vmatpush1.msra.mxu0 0.0
    %5165 = vmatprep.subr.mxu0 0.0
    %5166 = vmatpush1.msra.mxu0 0.0
    %5167 = vmatprep.subr.mxu0 0.0
    %5168 = vmatpush1.msra.mxu0 0.0
    %5169 = vmatprep.subr.mxu0 0.0
    %5170 = vmatpush1.msra.mxu0 0.0
    %5171 = vmatprep.subr.mxu0 0.0
    %5172 = vmatpush1.msra.mxu0 0.0
    %5173 = vmatprep.subr.mxu0 0.0
    %5174 = vmatpush1.msra.mxu0 0.0
    %5175 = vmatprep.subr.mxu0 0.0
    %5176 = vmatpush1.msra.mxu0 0.0
    %5177 = vmatprep.subr.mxu0 0.0
    %5178 = vmatpush1.msra.mxu0 0.0
    %5179 = vmatprep.subr.mxu0 0.0
    %5180 = vmatpush1.msra.mxu0 0.0
    %5181 = vmatprep.subr.mxu0 0.0
    %5182 = vmatpush1.msra.mxu0 0.0
    %5183 = vmatprep.subr.mxu0 0.0
    %5184 = vmatpush1.msra.mxu0 0.0
    %5185 = vmatprep.subr.mxu0 0.0
    %5186 = vmatpush1.msra.mxu0 0.0
    %5187 = vmatprep.subr.mxu0 0.0
    %5188 = vmatpush1.msra.mxu0 0.0
    %5189 = vmatprep.subr.mxu0 0.0
    %5190 = vmatpush1.msra.mxu0 0.0
    %5191 = vmatprep.subr.mxu0 0.0
    %5192 = vmatpush1.msra.mxu0 0.0
    %5193 = vmatprep.subr.mxu0 0.0
    %5194 = vmatpush1.msra.mxu0 0.0
    %5195 = vmatprep.mubr.f32.mxu0 0.0
    %v5196 = vand.u32 %v43, 4294901760
    %v5197 = vsub.f32 %v43, %v5196
    %v5198 = vand.u32 %v5197, 4294901760
    %5199 = vmatmul.mubr.f32.gmra.mrb[0].mxu0 %v5198
    %v5200 = vpop.f32.mrb[0].mxu0
    %v5201 = vadd.f32 %v5077, %v5200
    %v5202 = vpop.f32.mrb[0].mxu0
    %5203 = vmatprep.mubr.f32.mxu0 0.0
    %v5204 = vand.u32 %v46, 4294901760
    %v5205 = vsub.f32 %v46, %v5204
    %v5206 = vand.u32 %v5205, 4294901760
    %5207 = vmatmul.mubr.f32.gmra.mrb[0].mxu0 %v5206
    %v5208 = vpop.f32.mrb[0].mxu0
    %v5209 = vadd.f32 %v5084, %v5208
    %v5210 = vpop.f32.mrb[0].mxu0
    %5211 = vmatprep.mubr.f32.mxu0 0.0
    %v5212 = vand.u32 %v49, 4294901760
    %v5213 = vsub.f32 %v49, %v5212
    %v5214 = vand.u32 %v5213, 4294901760
    %5215 = vmatmul.mubr.f32.gmra.mrb[0].mxu0 %v5214
    %v5216 = vpop.f32.mrb[0].mxu0
    %v5217 = vadd.f32 %v5091, %v5216
    %v5218 = vpop.f32.mrb[0].mxu0
    %5219 = vmatprep.mubr.f32.mxu0 0.0
    %v5220 = vand.u32 %v52, 4294901760
    %v5221 = vsub.f32 %v52, %v5220
    %v5222 = vand.u32 %v5221, 4294901760
    %5223 = vmatmul.mubr.f32.gmra.mrb[0].mxu0 %v5222
    %v5224 = vpop.f32.mrb[0].mxu0
    %v5225 = vadd.f32 %v5098, %v5224
    %v5226 = vpop.f32.mrb[0].mxu0
    %5227 = vmatprep.mubr.f32.mxu0 0.0
    %v5228 = vand.u32 %v55, 4294901760
    %v5229 = vsub.f32 %v55, %v5228
    %v5230 = vand.u32 %v5229, 4294901760
    %5231 = vmatmul.mubr.f32.gmra.mrb[0].mxu0 %v5230
    %v5232 = vpop.f32.mrb[0].mxu0
    %v5233 = vadd.f32 %v5105, %v5232
    %v5234 = vpop.f32.mrb[0].mxu0
    %5235 = vmatprep.mubr.f32.mxu0 0.0
    %v5236 = vand.u32 %v58, 4294901760
    %v5237 = vsub.f32 %v58, %v5236
    %v5238 = vand.u32 %v5237, 4294901760
    %5239 = vmatmul.mubr.f32.gmra.mrb[0].mxu0 %v5238
    %v5240 = vpop.f32.mrb[0].mxu0
    %v5241 = vadd.f32 %v5112, %v5240
    %v5242 = vpop.f32.mrb[0].mxu0
    %5243 = vmatprep.mubr.f32.mxu0 0.0
    %v5244 = vand.u32 %v61, 4294901760
    %v5245 = vsub.f32 %v61, %v5244
    %v5246 = vand.u32 %v5245, 4294901760
    %5247 = vmatmul.mubr.f32.gmra.mrb[0].mxu0 %v5246
    %v5248 = vpop.f32.mrb[0].mxu0
    %v5249 = vadd.f32 %v5119, %v5248
    %v5250 = vpop.f32.mrb[0].mxu0
    %5251 = vmatprep.mubr.f32.mxu0 0.0
    %v5252 = vand.u32 %v64, 4294901760
    %v5253 = vsub.f32 %v64, %v5252
    %v5254 = vand.u32 %v5253, 4294901760
    %5255 = vmatmul.mubr.f32.gmra.mrb[0].mxu0 %v5254
    %v5256 = vpop.f32.mrb[0].mxu0
    %v5257 = vadd.f32 %v5126, %v5256
    %v5258 = vpop.f32.mrb[0].mxu0
    %5259 = vdwg.mxu0
    %5260 = vmatprep.subr.mxu0 0.0
    %v5261 = vand.u32 %v4732, 4294901760
    %v5262 = vsub.f32 %v4732, %v5261
    %v5263 = vand.u32 %v5262, 4294901760
    %5264 = vmatpush1.msra.mxu0 %v5263
    %5265 = vmatprep.subr.mxu0 0.0
    %v5266 = vand.u32 %v4733, 4294901760
    %v5267 = vsub.f32 %v4733, %v5266
    %v5268 = vand.u32 %v5267, 4294901760
    %5269 = vmatpush1.msra.mxu0 %v5268
    %5270 = vmatprep.subr.mxu0 0.0
    %5271 = vmatpush1.msra.mxu0 0.0
    %5272 = vmatprep.subr.mxu0 0.0
    %5273 = vmatpush1.msra.mxu0 0.0
    %5274 = vmatprep.subr.mxu0 0.0
    %5275 = vmatpush1.msra.mxu0 0.0
    %5276 = vmatprep.subr.mxu0 0.0
    %5277 = vmatpush1.msra.mxu0 0.0
    %5278 = vmatprep.subr.mxu0 0.0
    %5279 = vmatpush1.msra.mxu0 0.0
    %5280 = vmatprep.subr.mxu0 0.0
    %5281 = vmatpush1.msra.mxu0 0.0
    %5282 = vmatprep.subr.mxu0 0.0
    %5283 = vmatpush1.msra.mxu0 0.0
    %5284 = vmatprep.subr.mxu0 0.0
    %5285 = vmatpush1.msra.mxu0 0.0
    %5286 = vmatprep.subr.mxu0 0.0
    %5287 = vmatpush1.msra.mxu0 0.0
    %5288 = vmatprep.subr.mxu0 0.0
    %5289 = vmatpush1.msra.mxu0 0.0
    %5290 = vmatprep.subr.mxu0 0.0
    %5291 = vmatpush1.msra.mxu0 0.0
    %5292 = vmatprep.subr.mxu0 0.0
    %5293 = vmatpush1.msra.mxu0 0.0
    %5294 = vmatprep.subr.mxu0 0.0
    %5295 = vmatpush1.msra.mxu0 0.0
    %5296 = vmatprep.subr.mxu0 0.0
    %5297 = vmatpush1.msra.mxu0 0.0
    %5298 = vmatprep.subr.mxu0 0.0
    %5299 = vmatpush1.msra.mxu0 0.0
    %5300 = vmatprep.subr.mxu0 0.0
    %5301 = vmatpush1.msra.mxu0 0.0
    %5302 = vmatprep.subr.mxu0 0.0
    %5303 = vmatpush1.msra.mxu0 0.0
    %5304 = vmatprep.subr.mxu0 0.0
    %5305 = vmatpush1.msra.mxu0 0.0
    %5306 = vmatprep.subr.mxu0 0.0
    %5307 = vmatpush1.msra.mxu0 0.0
    %5308 = vmatprep.subr.mxu0 0.0
    %5309 = vmatpush1.msra.mxu0 0.0
    %5310 = vmatprep.subr.mxu0 0.0
    %5311 = vmatpush1.msra.mxu0 0.0
    %5312 = vmatprep.subr.mxu0 0.0
    %5313 = vmatpush1.msra.mxu0 0.0
    %5314 = vmatprep.subr.mxu0 0.0
    %5315 = vmatpush1.msra.mxu0 0.0
    %5316 = vmatprep.subr.mxu0 0.0
    %5317 = vmatpush1.msra.mxu0 0.0
    %5318 = vmatprep.subr.mxu0 0.0
    %5319 = vmatpush1.msra.mxu0 0.0
    %5320 = vmatprep.subr.mxu0 0.0
    %5321 = vmatpush1.msra.mxu0 0.0
    %5322 = vmatprep.subr.mxu0 0.0
    %5323 = vmatpush1.msra.mxu0 0.0
    %5324 = vmatprep.subr.mxu0 0.0
    %5325 = vmatpush1.msra.mxu0 0.0
    %5326 = vmatprep.subr.mxu0 0.0
    %5327 = vmatpush1.msra.mxu0 0.0
    %5328 = vmatprep.subr.mxu0 0.0
    %5329 = vmatpush1.msra.mxu0 0.0
    %5330 = vmatprep.mubr.f32.mxu0 0.0
    %v5331 = vand.u32 %v43, 4294901760
    %5332 = vmatmul.mubr.f32.gmra.mrb[0].mxu0 %v5331
    %v5333 = vpop.f32.mrb[0].mxu0
    %v5334 = vadd.f32 %v5201, %v5333
    %v5335 = vpop.f32.mrb[0].mxu0
    %5336 = vmatprep.mubr.f32.mxu0 0.0
    %v5337 = vand.u32 %v46, 4294901760
    %5338 = vmatmul.mubr.f32.gmra.mrb[0].mxu0 %v5337
    %v5339 = vpop.f32.mrb[0].mxu0
    %v5340 = vadd.f32 %v5209, %v5339
    %v5341 = vpop.f32.mrb[0].mxu0
    %5342 = vmatprep.mubr.f32.mxu0 0.0
    %v5343 = vand.u32 %v49, 4294901760
    %5344 = vmatmul.mubr.f32.gmra.mrb[0].mxu0 %v5343
    %v5345 = vpop.f32.mrb[0].mxu0
    %v5346 = vadd.f32 %v5217, %v5345
    %v5347 = vpop.f32.mrb[0].mxu0
    %5348 = vmatprep.mubr.f32.mxu0 0.0
    %v5349 = vand.u32 %v52, 4294901760
    %5350 = vmatmul.mubr.f32.gmra.mrb[0].mxu0 %v5349
    %v5351 = vpop.f32.mrb[0].mxu0
    %v5352 = vadd.f32 %v5225, %v5351
    %v5353 = vpop.f32.mrb[0].mxu0
    %5354 = vmatprep.mubr.f32.mxu0 0.0
    %v5355 = vand.u32 %v55, 4294901760
    %5356 = vmatmul.mubr.f32.gmra.mrb[0].mxu0 %v5355
    %v5357 = vpop.f32.mrb[0].mxu0
    %v5358 = vadd.f32 %v5233, %v5357
    %v5359 = vpop.f32.mrb[0].mxu0
    %5360 = vmatprep.mubr.f32.mxu0 0.0
    %v5361 = vand.u32 %v58, 4294901760
    %5362 = vmatmul.mubr.f32.gmra.mrb[0].mxu0 %v5361
    %v5363 = vpop.f32.mrb[0].mxu0
    %v5364 = vadd.f32 %v5241, %v5363
    %v5365 = vpop.f32.mrb[0].mxu0
    %5366 = vmatprep.mubr.f32.mxu0 0.0
    %v5367 = vand.u32 %v61, 4294901760
    %5368 = vmatmul.mubr.f32.gmra.mrb[0].mxu0 %v5367
    %v5369 = vpop.f32.mrb[0].mxu0
    %v5370 = vadd.f32 %v5249, %v5369
    %v5371 = vpop.f32.mrb[0].mxu0
    %5372 = vmatprep.mubr.f32.mxu0 0.0
    %v5373 = vand.u32 %v64, 4294901760
    %5374 = vmatmul.mubr.f32.gmra.mrb[0].mxu0 %v5373
    %v5375 = vpop.f32.mrb[0].mxu0
    %v5376 = vadd.f32 %v5257, %v5375
    %v5377 = vpop.f32.mrb[0].mxu0
    %5378 = vdwg.mxu0
    %5379 = vmatprep.subr.mxu0 0.0
    %v5380 = vand.u32 %v4732, 4294901760
    %5381 = vmatpush1.msra.mxu0 %v5380
    %5382 = vmatprep.subr.mxu0 0.0
    %v5383 = vand.u32 %v4733, 4294901760
    %5384 = vmatpush1.msra.mxu0 %v5383
    %5385 = vmatprep.subr.mxu0 0.0
    %5386 = vmatpush1.msra.mxu0 0.0
    %5387 = vmatprep.subr.mxu0 0.0
    %5388 = vmatpush1.msra.mxu0 0.0
    %5389 = vmatprep.subr.mxu0 0.0
    %5390 = vmatpush1.msra.mxu0 0.0
    %5391 = vmatprep.subr.mxu0 0.0
    %5392 = vmatpush1.msra.mxu0 0.0
    %5393 = vmatprep.subr.mxu0 0.0
    %5394 = vmatpush1.msra.mxu0 0.0
    %5395 = vmatprep.subr.mxu0 0.0
    %5396 = vmatpush1.msra.mxu0 0.0
    %5397 = vmatprep.subr.mxu0 0.0
    %5398 = vmatpush1.msra.mxu0 0.0
    %5399 = vmatprep.subr.mxu0 0.0
    %5400 = vmatpush1.msra.mxu0 0.0
    %5401 = vmatprep.subr.mxu0 0.0
    %5402 = vmatpush1.msra.mxu0 0.0
    %5403 = vmatprep.subr.mxu0 0.0
    %5404 = vmatpush1.msra.mxu0 0.0
    %5405 = vmatprep.subr.mxu0 0.0
    %5406 = vmatpush1.msra.mxu0 0.0
    %5407 = vmatprep.subr.mxu0 0.0
    %5408 = vmatpush1.msra.mxu0 0.0
    %5409 = vmatprep.subr.mxu0 0.0
    %5410 = vmatpush1.msra.mxu0 0.0
    %5411 = vmatprep.subr.mxu0 0.0
    %5412 = vmatpush1.msra.mxu0 0.0
    %5413 = vmatprep.subr.mxu0 0.0
    %5414 = vmatpush1.msra.mxu0 0.0
    %5415 = vmatprep.subr.mxu0 0.0
    %5416 = vmatpush1.msra.mxu0 0.0
    %5417 = vmatprep.subr.mxu0 0.0
    %5418 = vmatpush1.msra.mxu0 0.0
    %5419 = vmatprep.subr.mxu0 0.0
    %5420 = vmatpush1.msra.mxu0 0.0
    %5421 = vmatprep.subr.mxu0 0.0
    %5422 = vmatpush1.msra.mxu0 0.0
    %5423 = vmatprep.subr.mxu0 0.0
    %5424 = vmatpush1.msra.mxu0 0.0
    %5425 = vmatprep.subr.mxu0 0.0
    %5426 = vmatpush1.msra.mxu0 0.0
    %5427 = vmatprep.subr.mxu0 0.0
    %5428 = vmatpush1.msra.mxu0 0.0
    %5429 = vmatprep.subr.mxu0 0.0
    %5430 = vmatpush1.msra.mxu0 0.0
    %5431 = vmatprep.subr.mxu0 0.0
    %5432 = vmatpush1.msra.mxu0 0.0
    %5433 = vmatprep.subr.mxu0 0.0
    %5434 = vmatpush1.msra.mxu0 0.0
    %5435 = vmatprep.subr.mxu0 0.0
    %5436 = vmatpush1.msra.mxu0 0.0
    %5437 = vmatprep.subr.mxu0 0.0
    %5438 = vmatpush1.msra.mxu0 0.0
    %5439 = vmatprep.subr.mxu0 0.0
    %5440 = vmatpush1.msra.mxu0 0.0
    %5441 = vmatprep.subr.mxu0 0.0
    %5442 = vmatpush1.msra.mxu0 0.0
    %5443 = vmatprep.subr.mxu0 0.0
    %5444 = vmatpush1.msra.mxu0 0.0
    %5445 = vmatprep.mubr.f32.mxu0 0.0
    %v5446 = vand.u32 %v43, 4294901760
    %5447 = vmatmul.mubr.f32.gmra.mrb[0].mxu0 %v5446
    %v5448 = vpop.f32.mrb[0].mxu0
    %v5449 = vadd.f32 %v5334, %v5448
    %v5450 = vpop.f32.mrb[0].mxu0
    %5451 = vmatprep.mubr.f32.mxu0 0.0
    %v5452 = vand.u32 %v46, 4294901760
    %5453 = vmatmul.mubr.f32.gmra.mrb[0].mxu0 %v5452
    %v5454 = vpop.f32.mrb[0].mxu0
    %v5455 = vadd.f32 %v5340, %v5454
    %v5456 = vpop.f32.mrb[0].mxu0
    %5457 = vmatprep.mubr.f32.mxu0 0.0
    %v5458 = vand.u32 %v49, 4294901760
    %5459 = vmatmul.mubr.f32.gmra.mrb[0].mxu0 %v5458
    %v5460 = vpop.f32.mrb[0].mxu0
    %v5461 = vadd.f32 %v5346, %v5460
    %v5462 = vpop.f32.mrb[0].mxu0
    %5463 = vmatprep.mubr.f32.mxu0 0.0
    %v5464 = vand.u32 %v52, 4294901760
    %5465 = vmatmul.mubr.f32.gmra.mrb[0].mxu0 %v5464
    %v5466 = vpop.f32.mrb[0].mxu0
    %v5467 = vadd.f32 %v5352, %v5466
    %v5468 = vpop.f32.mrb[0].mxu0
    %5469 = vmatprep.mubr.f32.mxu0 0.0
    %v5470 = vand.u32 %v55, 4294901760
    %5471 = vmatmul.mubr.f32.gmra.mrb[0].mxu0 %v5470
    %v5472 = vpop.f32.mrb[0].mxu0
    %v5473 = vadd.f32 %v5358, %v5472
    %v5474 = vpop.f32.mrb[0].mxu0
    %5475 = vmatprep.mubr.f32.mxu0 0.0
    %v5476 = vand.u32 %v58, 4294901760
    %5477 = vmatmul.mubr.f32.gmra.mrb[0].mxu0 %v5476
    %v5478 = vpop.f32.mrb[0].mxu0
    %v5479 = vadd.f32 %v5364, %v5478
    %v5480 = vpop.f32.mrb[0].mxu0
    %5481 = vmatprep.mubr.f32.mxu0 0.0
    %v5482 = vand.u32 %v61, 4294901760
    %5483 = vmatmul.mubr.f32.gmra.mrb[0].mxu0 %v5482
    %v5484 = vpop.f32.mrb[0].mxu0
    %v5485 = vadd.f32 %v5370, %v5484
    %v5486 = vpop.f32.mrb[0].mxu0
    %5487 = vmatprep.mubr.f32.mxu0 0.0
    %v5488 = vand.u32 %v64, 4294901760
    %5489 = vmatmul.mubr.f32.gmra.mrb[0].mxu0 %v5488
    %v5490 = vpop.f32.mrb[0].mxu0
    %v5491 = vadd.f32 %v5376, %v5490
    %v5492 = vpop.f32.mrb[0].mxu0
    %5493 = vdwg.mxu0
    %v5495 = vsel %vm41, %v5449, 0
    %v5498 = vsel %vm41, %v5455, 0
    %v5501 = vsel %vm41, %v5461, 0
    %v5504 = vsel %vm41, %v5467, 0
    %v5507 = vsel %vm41, %v5473, 0
    %v5510 = vsel %vm41, %v5479, 0
    %v5513 = vsel %vm41, %v5485, 0
    %v5516 = vsel %vm41, %v5491, 0
    %5518 = vmatprep.subr.mxu0 0.0
    %v5519 = vand.u32 %v37, 4294901760
    %5520 = vmatpush1.msra.mxu0 %v5519
    %5521 = vmatprep.subr.mxu0 0.0
    %v5522 = vand.u32 %v38, 4294901760
    %5523 = vmatpush1.msra.mxu0 %v5522
    %5524 = vmatprep.subr.mxu0 0.0
    %5525 = vmatpush1.msra.mxu0 0.0
    %5526 = vmatprep.subr.mxu0 0.0
    %5527 = vmatpush1.msra.mxu0 0.0
    %5528 = vmatprep.subr.mxu0 0.0
    %5529 = vmatpush1.msra.mxu0 0.0
    %5530 = vmatprep.subr.mxu0 0.0
    %5531 = vmatpush1.msra.mxu0 0.0
    %5532 = vmatprep.subr.mxu0 0.0
    %5533 = vmatpush1.msra.mxu0 0.0
    %5534 = vmatprep.subr.mxu0 0.0
    %5535 = vmatpush1.msra.mxu0 0.0
    %5536 = vmatprep.subr.mxu0 0.0
    %5537 = vmatpush1.msra.mxu0 0.0
    %5538 = vmatprep.subr.mxu0 0.0
    %5539 = vmatpush1.msra.mxu0 0.0
    %5540 = vmatprep.subr.mxu0 0.0
    %5541 = vmatpush1.msra.mxu0 0.0
    %5542 = vmatprep.subr.mxu0 0.0
    %5543 = vmatpush1.msra.mxu0 0.0
    %5544 = vmatprep.subr.mxu0 0.0
    %5545 = vmatpush1.msra.mxu0 0.0
    %5546 = vmatprep.subr.mxu0 0.0
    %5547 = vmatpush1.msra.mxu0 0.0
    %5548 = vmatprep.subr.mxu0 0.0
    %5549 = vmatpush1.msra.mxu0 0.0
    %5550 = vmatprep.subr.mxu0 0.0
    %5551 = vmatpush1.msra.mxu0 0.0
    %5552 = vmatprep.subr.mxu0 0.0
    %5553 = vmatpush1.msra.mxu0 0.0
    %5554 = vmatprep.subr.mxu0 0.0
    %5555 = vmatpush1.msra.mxu0 0.0
    %5556 = vmatprep.subr.mxu0 0.0
    %5557 = vmatpush1.msra.mxu0 0.0
    %5558 = vmatprep.subr.mxu0 0.0
    %5559 = vmatpush1.msra.mxu0 0.0
    %5560 = vmatprep.subr.mxu0 0.0
    %5561 = vmatpush1.msra.mxu0 0.0
    %5562 = vmatprep.subr.mxu0 0.0
    %5563 = vmatpush1.msra.mxu0 0.0
    %5564 = vmatprep.subr.mxu0 0.0
    %5565 = vmatpush1.msra.mxu0 0.0
    %5566 = vmatprep.subr.mxu0 0.0
    %5567 = vmatpush1.msra.mxu0 0.0
    %5568 = vmatprep.subr.mxu0 0.0
    %5569 = vmatpush1.msra.mxu0 0.0
    %5570 = vmatprep.subr.mxu0 0.0
    %5571 = vmatpush1.msra.mxu0 0.0
    %5572 = vmatprep.subr.mxu0 0.0
    %5573 = vmatpush1.msra.mxu0 0.0
    %5574 = vmatprep.subr.mxu0 0.0
    %5575 = vmatpush1.msra.mxu0 0.0
    %5576 = vmatprep.subr.mxu0 0.0
    %5577 = vmatpush1.msra.mxu0 0.0
    %5578 = vmatprep.subr.mxu0 0.0
    %5579 = vmatpush1.msra.mxu0 0.0
    %5580 = vmatprep.subr.mxu0 0.0
    %5581 = vmatpush1.msra.mxu0 0.0
    %5582 = vmatprep.subr.mxu0 0.0
    %5583 = vmatpush1.msra.mxu0 0.0
    %5584 = vmatprep.mubr.f32.mxu0 0.0
    %v5585 = vand.u32 %v5495, 4294901760
    %v5586 = vsub.f32 %v5495, %v5585
    %v5587 = vand.u32 %v5586, 4294901760
    %v5588 = vsub.f32 %v5586, %v5587
    %v5589 = vand.u32 %v5588, 4294901760
    %5590 = vmatmul.mubr.f32.gmra.mrb[0].mxu0 %v5589
    %v5591 = vpop.f32.mrb[0].mxu0
    %v5592 = vadd.f32 0.0, %v5591
    %v5593 = vpop.f32.mrb[0].mxu0
    %5594 = vmatprep.mubr.f32.mxu0 0.0
    %v5595 = vand.u32 %v5498, 4294901760
    %v5596 = vsub.f32 %v5498, %v5595
    %v5597 = vand.u32 %v5596, 4294901760
    %v5598 = vsub.f32 %v5596, %v5597
    %v5599 = vand.u32 %v5598, 4294901760
    %5600 = vmatmul.mubr.f32.gmra.mrb[0].mxu0 %v5599
    %v5601 = vpop.f32.mrb[0].mxu0
    %v5602 = vadd.f32 0.0, %v5601
    %v5603 = vpop.f32.mrb[0].mxu0
    %5604 = vmatprep.mubr.f32.mxu0 0.0
    %v5605 = vand.u32 %v5501, 4294901760
    %v5606 = vsub.f32 %v5501, %v5605
    %v5607 = vand.u32 %v5606, 4294901760
    %v5608 = vsub.f32 %v5606, %v5607
    %v5609 = vand.u32 %v5608, 4294901760
    %5610 = vmatmul.mubr.f32.gmra.mrb[0].mxu0 %v5609
    %v5611 = vpop.f32.mrb[0].mxu0
    %v5612 = vadd.f32 0.0, %v5611
    %v5613 = vpop.f32.mrb[0].mxu0
    %5614 = vmatprep.mubr.f32.mxu0 0.0
    %v5615 = vand.u32 %v5504, 4294901760
    %v5616 = vsub.f32 %v5504, %v5615
    %v5617 = vand.u32 %v5616, 4294901760
    %v5618 = vsub.f32 %v5616, %v5617
    %v5619 = vand.u32 %v5618, 4294901760
    %5620 = vmatmul.mubr.f32.gmra.mrb[0].mxu0 %v5619
    %v5621 = vpop.f32.mrb[0].mxu0
    %v5622 = vadd.f32 0.0, %v5621
    %v5623 = vpop.f32.mrb[0].mxu0
    %5624 = vmatprep.mubr.f32.mxu0 0.0
    %v5625 = vand.u32 %v5507, 4294901760
    %v5626 = vsub.f32 %v5507, %v5625
    %v5627 = vand.u32 %v5626, 4294901760
    %v5628 = vsub.f32 %v5626, %v5627
    %v5629 = vand.u32 %v5628, 4294901760
    %5630 = vmatmul.mubr.f32.gmra.mrb[0].mxu0 %v5629
    %v5631 = vpop.f32.mrb[0].mxu0
    %v5632 = vadd.f32 0.0, %v5631
    %v5633 = vpop.f32.mrb[0].mxu0
    %5634 = vmatprep.mubr.f32.mxu0 0.0
    %v5635 = vand.u32 %v5510, 4294901760
    %v5636 = vsub.f32 %v5510, %v5635
    %v5637 = vand.u32 %v5636, 4294901760
    %v5638 = vsub.f32 %v5636, %v5637
    %v5639 = vand.u32 %v5638, 4294901760
    %5640 = vmatmul.mubr.f32.gmra.mrb[0].mxu0 %v5639
    %v5641 = vpop.f32.mrb[0].mxu0
    %v5642 = vadd.f32 0.0, %v5641
    %v5643 = vpop.f32.mrb[0].mxu0
    %5644 = vmatprep.mubr.f32.mxu0 0.0
    %v5645 = vand.u32 %v5513, 4294901760
    %v5646 = vsub.f32 %v5513, %v5645
    %v5647 = vand.u32 %v5646, 4294901760
    %v5648 = vsub.f32 %v5646, %v5647
    %v5649 = vand.u32 %v5648, 4294901760
    %5650 = vmatmul.mubr.f32.gmra.mrb[0].mxu0 %v5649
    %v5651 = vpop.f32.mrb[0].mxu0
    %v5652 = vadd.f32 0.0, %v5651
    %v5653 = vpop.f32.mrb[0].mxu0
    %5654 = vmatprep.mubr.f32.mxu0 0.0
    %v5655 = vand.u32 %v5516, 4294901760
    %v5656 = vsub.f32 %v5516, %v5655
    %v5657 = vand.u32 %v5656, 4294901760
    %v5658 = vsub.f32 %v5656, %v5657
    %v5659 = vand.u32 %v5658, 4294901760
    %5660 = vmatmul.mubr.f32.gmra.mrb[0].mxu0 %v5659
    %v5661 = vpop.f32.mrb[0].mxu0
    %v5662 = vadd.f32 0.0, %v5661
    %v5663 = vpop.f32.mrb[0].mxu0
    %5664 = vdwg.mxu0
    %5665 = vmatprep.subr.mxu0 0.0
    %v5666 = vand.u32 %v37, 4294901760
    %v5667 = vsub.f32 %v37, %v5666
    %v5668 = vand.u32 %v5667, 4294901760
    %v5669 = vsub.f32 %v5667, %v5668
    %v5670 = vand.u32 %v5669, 4294901760
    %5671 = vmatpush1.msra.mxu0 %v5670
    %5672 = vmatprep.subr.mxu0 0.0
    %v5673 = vand.u32 %v38, 4294901760
    %v5674 = vsub.f32 %v38, %v5673
    %v5675 = vand.u32 %v5674, 4294901760
    %v5676 = vsub.f32 %v5674, %v5675
    %v5677 = vand.u32 %v5676, 4294901760
    %5678 = vmatpush1.msra.mxu0 %v5677
    %5679 = vmatprep.subr.mxu0 0.0
    %5680 = vmatpush1.msra.mxu0 0.0
    %5681 = vmatprep.subr.mxu0 0.0
    %5682 = vmatpush1.msra.mxu0 0.0
    %5683 = vmatprep.subr.mxu0 0.0
    %5684 = vmatpush1.msra.mxu0 0.0
    %5685 = vmatprep.subr.mxu0 0.0
    %5686 = vmatpush1.msra.mxu0 0.0
    %5687 = vmatprep.subr.mxu0 0.0
    %5688 = vmatpush1.msra.mxu0 0.0
    %5689 = vmatprep.subr.mxu0 0.0
    %5690 = vmatpush1.msra.mxu0 0.0
    %5691 = vmatprep.subr.mxu0 0.0
    %5692 = vmatpush1.msra.mxu0 0.0
    %5693 = vmatprep.subr.mxu0 0.0
    %5694 = vmatpush1.msra.mxu0 0.0
    %5695 = vmatprep.subr.mxu0 0.0
    %5696 = vmatpush1.msra.mxu0 0.0
    %5697 = vmatprep.subr.mxu0 0.0
    %5698 = vmatpush1.msra.mxu0 0.0
    %5699 = vmatprep.subr.mxu0 0.0
    %5700 = vmatpush1.msra.mxu0 0.0
    %5701 = vmatprep.subr.mxu0 0.0
    %5702 = vmatpush1.msra.mxu0 0.0
    %5703 = vmatprep.subr.mxu0 0.0
    %5704 = vmatpush1.msra.mxu0 0.0
    %5705 = vmatprep.subr.mxu0 0.0
    %5706 = vmatpush1.msra.mxu0 0.0
    %5707 = vmatprep.subr.mxu0 0.0
    %5708 = vmatpush1.msra.mxu0 0.0
    %5709 = vmatprep.subr.mxu0 0.0
    %5710 = vmatpush1.msra.mxu0 0.0
    %5711 = vmatprep.subr.mxu0 0.0
    %5712 = vmatpush1.msra.mxu0 0.0
    %5713 = vmatprep.subr.mxu0 0.0
    %5714 = vmatpush1.msra.mxu0 0.0
    %5715 = vmatprep.subr.mxu0 0.0
    %5716 = vmatpush1.msra.mxu0 0.0
    %5717 = vmatprep.subr.mxu0 0.0
    %5718 = vmatpush1.msra.mxu0 0.0
    %5719 = vmatprep.subr.mxu0 0.0
    %5720 = vmatpush1.msra.mxu0 0.0
    %5721 = vmatprep.subr.mxu0 0.0
    %5722 = vmatpush1.msra.mxu0 0.0
    %5723 = vmatprep.subr.mxu0 0.0
    %5724 = vmatpush1.msra.mxu0 0.0
    %5725 = vmatprep.subr.mxu0 0.0
    %5726 = vmatpush1.msra.mxu0 0.0
    %5727 = vmatprep.subr.mxu0 0.0
    %5728 = vmatpush1.msra.mxu0 0.0
    %5729 = vmatprep.subr.mxu0 0.0
    %5730 = vmatpush1.msra.mxu0 0.0
    %5731 = vmatprep.subr.mxu0 0.0
    %5732 = vmatpush1.msra.mxu0 0.0
    %5733 = vmatprep.subr.mxu0 0.0
    %5734 = vmatpush1.msra.mxu0 0.0
    %5735 = vmatprep.subr.mxu0 0.0
    %5736 = vmatpush1.msra.mxu0 0.0
    %5737 = vmatprep.subr.mxu0 0.0
    %5738 = vmatpush1.msra.mxu0 0.0
    %5739 = vmatprep.mubr.f32.mxu0 0.0
    %v5740 = vand.u32 %v5495, 4294901760
    %5741 = vmatmul.mubr.f32.gmra.mrb[0].mxu0 %v5740
    %v5742 = vpop.f32.mrb[0].mxu0
    %v5743 = vadd.f32 %v5592, %v5742
    %v5744 = vpop.f32.mrb[0].mxu0
    %5745 = vmatprep.mubr.f32.mxu0 0.0
    %v5746 = vand.u32 %v5498, 4294901760
    %5747 = vmatmul.mubr.f32.gmra.mrb[0].mxu0 %v5746
    %v5748 = vpop.f32.mrb[0].mxu0
    %v5749 = vadd.f32 %v5602, %v5748
    %v5750 = vpop.f32.mrb[0].mxu0
    %5751 = vmatprep.mubr.f32.mxu0 0.0
    %v5752 = vand.u32 %v5501, 4294901760
    %5753 = vmatmul.mubr.f32.gmra.mrb[0].mxu0 %v5752
    %v5754 = vpop.f32.mrb[0].mxu0
    %v5755 = vadd.f32 %v5612, %v5754
    %v5756 = vpop.f32.mrb[0].mxu0
    %5757 = vmatprep.mubr.f32.mxu0 0.0
    %v5758 = vand.u32 %v5504, 4294901760
    %5759 = vmatmul.mubr.f32.gmra.mrb[0].mxu0 %v5758
    %v5760 = vpop.f32.mrb[0].mxu0
    %v5761 = vadd.f32 %v5622, %v5760
    %v5762 = vpop.f32.mrb[0].mxu0
    %5763 = vmatprep.mubr.f32.mxu0 0.0
    %v5764 = vand.u32 %v5507, 4294901760
    %5765 = vmatmul.mubr.f32.gmra.mrb[0].mxu0 %v5764
    %v5766 = vpop.f32.mrb[0].mxu0
    %v5767 = vadd.f32 %v5632, %v5766
    %v5768 = vpop.f32.mrb[0].mxu0
    %5769 = vmatprep.mubr.f32.mxu0 0.0
    %v5770 = vand.u32 %v5510, 4294901760
    %5771 = vmatmul.mubr.f32.gmra.mrb[0].mxu0 %v5770
    %v5772 = vpop.f32.mrb[0].mxu0
    %v5773 = vadd.f32 %v5642, %v5772
    %v5774 = vpop.f32.mrb[0].mxu0
    %5775 = vmatprep.mubr.f32.mxu0 0.0
    %v5776 = vand.u32 %v5513, 4294901760
    %5777 = vmatmul.mubr.f32.gmra.mrb[0].mxu0 %v5776
    %v5778 = vpop.f32.mrb[0].mxu0
    %v5779 = vadd.f32 %v5652, %v5778
    %v5780 = vpop.f32.mrb[0].mxu0
    %5781 = vmatprep.mubr.f32.mxu0 0.0
    %v5782 = vand.u32 %v5516, 4294901760
    %5783 = vmatmul.mubr.f32.gmra.mrb[0].mxu0 %v5782
    %v5784 = vpop.f32.mrb[0].mxu0
    %v5785 = vadd.f32 %v5662, %v5784
    %v5786 = vpop.f32.mrb[0].mxu0
    %5787 = vdwg.mxu0
    %5788 = vmatprep.subr.mxu0 0.0
    %v5789 = vand.u32 %v37, 4294901760
    %v5790 = vsub.f32 %v37, %v5789
    %5791 = vmatpush1.msra.mxu0 %v5790
    %5792 = vmatprep.subr.mxu0 0.0
    %v5793 = vand.u32 %v38, 4294901760
    %v5794 = vsub.f32 %v38, %v5793
    %5795 = vmatpush1.msra.mxu0 %v5794
    %5796 = vmatprep.subr.mxu0 0.0
    %5797 = vmatpush1.msra.mxu0 0.0
    %5798 = vmatprep.subr.mxu0 0.0
    %5799 = vmatpush1.msra.mxu0 0.0
    %5800 = vmatprep.subr.mxu0 0.0
    %5801 = vmatpush1.msra.mxu0 0.0
    %5802 = vmatprep.subr.mxu0 0.0
    %5803 = vmatpush1.msra.mxu0 0.0
    %5804 = vmatprep.subr.mxu0 0.0
    %5805 = vmatpush1.msra.mxu0 0.0
    %5806 = vmatprep.subr.mxu0 0.0
    %5807 = vmatpush1.msra.mxu0 0.0
    %5808 = vmatprep.subr.mxu0 0.0
    %5809 = vmatpush1.msra.mxu0 0.0
    %5810 = vmatprep.subr.mxu0 0.0
    %5811 = vmatpush1.msra.mxu0 0.0
    %5812 = vmatprep.subr.mxu0 0.0
    %5813 = vmatpush1.msra.mxu0 0.0
    %5814 = vmatprep.subr.mxu0 0.0
    %5815 = vmatpush1.msra.mxu0 0.0
    %5816 = vmatprep.subr.mxu0 0.0
    %5817 = vmatpush1.msra.mxu0 0.0
    %5818 = vmatprep.subr.mxu0 0.0
    %5819 = vmatpush1.msra.mxu0 0.0
    %5820 = vmatprep.subr.mxu0 0.0
    %5821 = vmatpush1.msra.mxu0 0.0
    %5822 = vmatprep.subr.mxu0 0.0
    %5823 = vmatpush1.msra.mxu0 0.0
    %5824 = vmatprep.subr.mxu0 0.0
    %5825 = vmatpush1.msra.mxu0 0.0
    %5826 = vmatprep.subr.mxu0 0.0
    %5827 = vmatpush1.msra.mxu0 0.0
    %5828 = vmatprep.subr.mxu0 0.0
    %5829 = vmatpush1.msra.mxu0 0.0
    %5830 = vmatprep.subr.mxu0 0.0
    %5831 = vmatpush1.msra.mxu0 0.0
    %5832 = vmatprep.subr.mxu0 0.0
    %5833 = vmatpush1.msra.mxu0 0.0
    %5834 = vmatprep.subr.mxu0 0.0
    %5835 = vmatpush1.msra.mxu0 0.0
    %5836 = vmatprep.subr.mxu0 0.0
    %5837 = vmatpush1.msra.mxu0 0.0
    %5838 = vmatprep.subr.mxu0 0.0
    %5839 = vmatpush1.msra.mxu0 0.0
    %5840 = vmatprep.subr.mxu0 0.0
    %5841 = vmatpush1.msra.mxu0 0.0
    %5842 = vmatprep.subr.mxu0 0.0
    %5843 = vmatpush1.msra.mxu0 0.0
    %5844 = vmatprep.subr.mxu0 0.0
    %5845 = vmatpush1.msra.mxu0 0.0
    %5846 = vmatprep.subr.mxu0 0.0
    %5847 = vmatpush1.msra.mxu0 0.0
    %5848 = vmatprep.subr.mxu0 0.0
    %5849 = vmatpush1.msra.mxu0 0.0
    %5850 = vmatprep.subr.mxu0 0.0
    %5851 = vmatpush1.msra.mxu0 0.0
    %5852 = vmatprep.subr.mxu0 0.0
    %5853 = vmatpush1.msra.mxu0 0.0
    %5854 = vmatprep.subr.mxu0 0.0
    %5855 = vmatpush1.msra.mxu0 0.0
    %5856 = vmatprep.mubr.f32.mxu0 0.0
    %v5857 = vand.u32 %v5495, 4294901760
    %v5858 = vsub.f32 %v5495, %v5857
    %5859 = vmatmul.mubr.f32.gmra.mrb[0].mxu0 %v5858
    %v5860 = vpop.f32.mrb[0].mxu0
    %v5861 = vadd.f32 %v5743, %v5860
    %v5862 = vpop.f32.mrb[0].mxu0
    %5863 = vmatprep.mubr.f32.mxu0 0.0
    %v5864 = vand.u32 %v5498, 4294901760
    %v5865 = vsub.f32 %v5498, %v5864
    %5866 = vmatmul.mubr.f32.gmra.mrb[0].mxu0 %v5865
    %v5867 = vpop.f32.mrb[0].mxu0
    %v5868 = vadd.f32 %v5749, %v5867
    %v5869 = vpop.f32.mrb[0].mxu0
    %5870 = vmatprep.mubr.f32.mxu0 0.0
    %v5871 = vand.u32 %v5501, 4294901760
    %v5872 = vsub.f32 %v5501, %v5871
    %5873 = vmatmul.mubr.f32.gmra.mrb[0].mxu0 %v5872
    %v5874 = vpop.f32.mrb[0].mxu0
    %v5875 = vadd.f32 %v5755, %v5874
    %v5876 = vpop.f32.mrb[0].mxu0
    %5877 = vmatprep.mubr.f32.mxu0 0.0
    %v5878 = vand.u32 %v5504, 4294901760
    %v5879 = vsub.f32 %v5504, %v5878
    %5880 = vmatmul.mubr.f32.gmra.mrb[0].mxu0 %v5879
    %v5881 = vpop.f32.mrb[0].mxu0
    %v5882 = vadd.f32 %v5761, %v5881
    %v5883 = vpop.f32.mrb[0].mxu0
    %5884 = vmatprep.mubr.f32.mxu0 0.0
    %v5885 = vand.u32 %v5507, 4294901760
    %v5886 = vsub.f32 %v5507, %v5885
    %5887 = vmatmul.mubr.f32.gmra.mrb[0].mxu0 %v5886
    %v5888 = vpop.f32.mrb[0].mxu0
    %v5889 = vadd.f32 %v5767, %v5888
    %v5890 = vpop.f32.mrb[0].mxu0
    %5891 = vmatprep.mubr.f32.mxu0 0.0
    %v5892 = vand.u32 %v5510, 4294901760
    %v5893 = vsub.f32 %v5510, %v5892
    %5894 = vmatmul.mubr.f32.gmra.mrb[0].mxu0 %v5893
    %v5895 = vpop.f32.mrb[0].mxu0
    %v5896 = vadd.f32 %v5773, %v5895
    %v5897 = vpop.f32.mrb[0].mxu0
    %5898 = vmatprep.mubr.f32.mxu0 0.0
    %v5899 = vand.u32 %v5513, 4294901760
    %v5900 = vsub.f32 %v5513, %v5899
    %5901 = vmatmul.mubr.f32.gmra.mrb[0].mxu0 %v5900
    %v5902 = vpop.f32.mrb[0].mxu0
    %v5903 = vadd.f32 %v5779, %v5902
    %v5904 = vpop.f32.mrb[0].mxu0
    %5905 = vmatprep.mubr.f32.mxu0 0.0
    %v5906 = vand.u32 %v5516, 4294901760
    %v5907 = vsub.f32 %v5516, %v5906
    %5908 = vmatmul.mubr.f32.gmra.mrb[0].mxu0 %v5907
    %v5909 = vpop.f32.mrb[0].mxu0
    %v5910 = vadd.f32 %v5785, %v5909
    %v5911 = vpop.f32.mrb[0].mxu0
    %5912 = vdwg.mxu0
    %5913 = vmatprep.subr.mxu0 0.0
    %v5914 = vand.u32 %v37, 4294901760
    %5915 = vmatpush1.msra.mxu0 %v5914
    %5916 = vmatprep.subr.mxu0 0.0
    %v5917 = vand.u32 %v38, 4294901760
    %5918 = vmatpush1.msra.mxu0 %v5917
    %5919 = vmatprep.subr.mxu0 0.0
    %5920 = vmatpush1.msra.mxu0 0.0
    %5921 = vmatprep.subr.mxu0 0.0
    %5922 = vmatpush1.msra.mxu0 0.0
    %5923 = vmatprep.subr.mxu0 0.0
    %5924 = vmatpush1.msra.mxu0 0.0
    %5925 = vmatprep.subr.mxu0 0.0
    %5926 = vmatpush1.msra.mxu0 0.0
    %5927 = vmatprep.subr.mxu0 0.0
    %5928 = vmatpush1.msra.mxu0 0.0
    %5929 = vmatprep.subr.mxu0 0.0
    %5930 = vmatpush1.msra.mxu0 0.0
    %5931 = vmatprep.subr.mxu0 0.0
    %5932 = vmatpush1.msra.mxu0 0.0
    %5933 = vmatprep.subr.mxu0 0.0
    %5934 = vmatpush1.msra.mxu0 0.0
    %5935 = vmatprep.subr.mxu0 0.0
    %5936 = vmatpush1.msra.mxu0 0.0
    %5937 = vmatprep.subr.mxu0 0.0
    %5938 = vmatpush1.msra.mxu0 0.0
    %5939 = vmatprep.subr.mxu0 0.0
    %5940 = vmatpush1.msra.mxu0 0.0
    %5941 = vmatprep.subr.mxu0 0.0
    %5942 = vmatpush1.msra.mxu0 0.0
    %5943 = vmatprep.subr.mxu0 0.0
    %5944 = vmatpush1.msra.mxu0 0.0
    %5945 = vmatprep.subr.mxu0 0.0
    %5946 = vmatpush1.msra.mxu0 0.0
    %5947 = vmatprep.subr.mxu0 0.0
    %5948 = vmatpush1.msra.mxu0 0.0
    %5949 = vmatprep.subr.mxu0 0.0
    %5950 = vmatpush1.msra.mxu0 0.0
    %5951 = vmatprep.subr.mxu0 0.0
    %5952 = vmatpush1.msra.mxu0 0.0
    %5953 = vmatprep.subr.mxu0 0.0
    %5954 = vmatpush1.msra.mxu0 0.0
    %5955 = vmatprep.subr.mxu0 0.0
    %5956 = vmatpush1.msra.mxu0 0.0
    %5957 = vmatprep.subr.mxu0 0.0
    %5958 = vmatpush1.msra.mxu0 0.0
    %5959 = vmatprep.subr.mxu0 0.0
    %5960 = vmatpush1.msra.mxu0 0.0
    %5961 = vmatprep.subr.mxu0 0.0
    %5962 = vmatpush1.msra.mxu0 0.0
    %5963 = vmatprep.subr.mxu0 0.0
    %5964 = vmatpush1.msra.mxu0 0.0
    %5965 = vmatprep.subr.mxu0 0.0
    %5966 = vmatpush1.msra.mxu0 0.0
    %5967 = vmatprep.subr.mxu0 0.0
    %5968 = vmatpush1.msra.mxu0 0.0
    %5969 = vmatprep.subr.mxu0 0.0
    %5970 = vmatpush1.msra.mxu0 0.0
    %5971 = vmatprep.subr.mxu0 0.0
    %5972 = vmatpush1.msra.mxu0 0.0
    %5973 = vmatprep.subr.mxu0 0.0
    %5974 = vmatpush1.msra.mxu0 0.0
    %5975 = vmatprep.subr.mxu0 0.0
    %5976 = vmatpush1.msra.mxu0 0.0
    %5977 = vmatprep.subr.mxu0 0.0
    %5978 = vmatpush1.msra.mxu0 0.0
    %5979 = vmatprep.mubr.f32.mxu0 0.0
    %v5980 = vand.u32 %v5495, 4294901760
    %v5981 = vsub.f32 %v5495, %v5980
    %v5982 = vand.u32 %v5981, 4294901760
    %5983 = vmatmul.mubr.f32.gmra.mrb[0].mxu0 %v5982
    %v5984 = vpop.f32.mrb[0].mxu0
    %v5985 = vadd.f32 %v5861, %v5984
    %v5986 = vpop.f32.mrb[0].mxu0
    %5987 = vmatprep.mubr.f32.mxu0 0.0
    %v5988 = vand.u32 %v5498, 4294901760
    %v5989 = vsub.f32 %v5498, %v5988
    %v5990 = vand.u32 %v5989, 4294901760
    %5991 = vmatmul.mubr.f32.gmra.mrb[0].mxu0 %v5990
    %v5992 = vpop.f32.mrb[0].mxu0
    %v5993 = vadd.f32 %v5868, %v5992
    %v5994 = vpop.f32.mrb[0].mxu0
    %5995 = vmatprep.mubr.f32.mxu0 0.0
    %v5996 = vand.u32 %v5501, 4294901760
    %v5997 = vsub.f32 %v5501, %v5996
    %v5998 = vand.u32 %v5997, 4294901760
    %5999 = vmatmul.mubr.f32.gmra.mrb[0].mxu0 %v5998
    %v6000 = vpop.f32.mrb[0].mxu0
    %v6001 = vadd.f32 %v5875, %v6000
    %v6002 = vpop.f32.mrb[0].mxu0
    %6003 = vmatprep.mubr.f32.mxu0 0.0
    %v6004 = vand.u32 %v5504, 4294901760
    %v6005 = vsub.f32 %v5504, %v6004
    %v6006 = vand.u32 %v6005, 4294901760
    %6007 = vmatmul.mubr.f32.gmra.mrb[0].mxu0 %v6006
    %v6008 = vpop.f32.mrb[0].mxu0
    %v6009 = vadd.f32 %v5882, %v6008
    %v6010 = vpop.f32.mrb[0].mxu0
    %6011 = vmatprep.mubr.f32.mxu0 0.0
    %v6012 = vand.u32 %v5507, 4294901760
    %v6013 = vsub.f32 %v5507, %v6012
    %v6014 = vand.u32 %v6013, 4294901760
    %6015 = vmatmul.mubr.f32.gmra.mrb[0].mxu0 %v6014
    %v6016 = vpop.f32.mrb[0].mxu0
    %v6017 = vadd.f32 %v5889, %v6016
    %v6018 = vpop.f32.mrb[0].mxu0
    %6019 = vmatprep.mubr.f32.mxu0 0.0
    %v6020 = vand.u32 %v5510, 4294901760
    %v6021 = vsub.f32 %v5510, %v6020
    %v6022 = vand.u32 %v6021, 4294901760
    %6023 = vmatmul.mubr.f32.gmra.mrb[0].mxu0 %v6022
    %v6024 = vpop.f32.mrb[0].mxu0
    %v6025 = vadd.f32 %v5896, %v6024
    %v6026 = vpop.f32.mrb[0].mxu0
    %6027 = vmatprep.mubr.f32.mxu0 0.0
    %v6028 = vand.u32 %v5513, 4294901760
    %v6029 = vsub.f32 %v5513, %v6028
    %v6030 = vand.u32 %v6029, 4294901760
    %6031 = vmatmul.mubr.f32.gmra.mrb[0].mxu0 %v6030
    %v6032 = vpop.f32.mrb[0].mxu0
    %v6033 = vadd.f32 %v5903, %v6032
    %v6034 = vpop.f32.mrb[0].mxu0
    %6035 = vmatprep.mubr.f32.mxu0 0.0
    %v6036 = vand.u32 %v5516, 4294901760
    %v6037 = vsub.f32 %v5516, %v6036
    %v6038 = vand.u32 %v6037, 4294901760
    %6039 = vmatmul.mubr.f32.gmra.mrb[0].mxu0 %v6038
    %v6040 = vpop.f32.mrb[0].mxu0
    %v6041 = vadd.f32 %v5910, %v6040
    %v6042 = vpop.f32.mrb[0].mxu0
    %6043 = vdwg.mxu0
    %6044 = vmatprep.subr.mxu0 0.0
    %v6045 = vand.u32 %v37, 4294901760
    %v6046 = vsub.f32 %v37, %v6045
    %v6047 = vand.u32 %v6046, 4294901760
    %6048 = vmatpush1.msra.mxu0 %v6047
    %6049 = vmatprep.subr.mxu0 0.0
    %v6050 = vand.u32 %v38, 4294901760
    %v6051 = vsub.f32 %v38, %v6050
    %v6052 = vand.u32 %v6051, 4294901760
    %6053 = vmatpush1.msra.mxu0 %v6052
    %6054 = vmatprep.subr.mxu0 0.0
    %6055 = vmatpush1.msra.mxu0 0.0
    %6056 = vmatprep.subr.mxu0 0.0
    %6057 = vmatpush1.msra.mxu0 0.0
    %6058 = vmatprep.subr.mxu0 0.0
    %6059 = vmatpush1.msra.mxu0 0.0
    %6060 = vmatprep.subr.mxu0 0.0
    %6061 = vmatpush1.msra.mxu0 0.0
    %6062 = vmatprep.subr.mxu0 0.0
    %6063 = vmatpush1.msra.mxu0 0.0
    %6064 = vmatprep.subr.mxu0 0.0
    %6065 = vmatpush1.msra.mxu0 0.0
    %6066 = vmatprep.subr.mxu0 0.0
    %6067 = vmatpush1.msra.mxu0 0.0
    %6068 = vmatprep.subr.mxu0 0.0
    %6069 = vmatpush1.msra.mxu0 0.0
    %6070 = vmatprep.subr.mxu0 0.0
    %6071 = vmatpush1.msra.mxu0 0.0
    %6072 = vmatprep.subr.mxu0 0.0
    %6073 = vmatpush1.msra.mxu0 0.0
    %6074 = vmatprep.subr.mxu0 0.0
    %6075 = vmatpush1.msra.mxu0 0.0
    %6076 = vmatprep.subr.mxu0 0.0
    %6077 = vmatpush1.msra.mxu0 0.0
    %6078 = vmatprep.subr.mxu0 0.0
    %6079 = vmatpush1.msra.mxu0 0.0
    %6080 = vmatprep.subr.mxu0 0.0
    %6081 = vmatpush1.msra.mxu0 0.0
    %6082 = vmatprep.subr.mxu0 0.0
    %6083 = vmatpush1.msra.mxu0 0.0
    %6084 = vmatprep.subr.mxu0 0.0
    %6085 = vmatpush1.msra.mxu0 0.0
    %6086 = vmatprep.subr.mxu0 0.0
    %6087 = vmatpush1.msra.mxu0 0.0
    %6088 = vmatprep.subr.mxu0 0.0
    %6089 = vmatpush1.msra.mxu0 0.0
    %6090 = vmatprep.subr.mxu0 0.0
    %6091 = vmatpush1.msra.mxu0 0.0
    %6092 = vmatprep.subr.mxu0 0.0
    %6093 = vmatpush1.msra.mxu0 0.0
    %6094 = vmatprep.subr.mxu0 0.0
    %6095 = vmatpush1.msra.mxu0 0.0
    %6096 = vmatprep.subr.mxu0 0.0
    %6097 = vmatpush1.msra.mxu0 0.0
    %6098 = vmatprep.subr.mxu0 0.0
    %6099 = vmatpush1.msra.mxu0 0.0
    %6100 = vmatprep.subr.mxu0 0.0
    %6101 = vmatpush1.msra.mxu0 0.0
    %6102 = vmatprep.subr.mxu0 0.0
    %6103 = vmatpush1.msra.mxu0 0.0
    %6104 = vmatprep.subr.mxu0 0.0
    %6105 = vmatpush1.msra.mxu0 0.0
    %6106 = vmatprep.subr.mxu0 0.0
    %6107 = vmatpush1.msra.mxu0 0.0
    %6108 = vmatprep.subr.mxu0 0.0
    %6109 = vmatpush1.msra.mxu0 0.0
    %6110 = vmatprep.subr.mxu0 0.0
    %6111 = vmatpush1.msra.mxu0 0.0
    %6112 = vmatprep.subr.mxu0 0.0
    %6113 = vmatpush1.msra.mxu0 0.0
    %6114 = vmatprep.mubr.f32.mxu0 0.0
    %v6115 = vand.u32 %v5495, 4294901760
    %6116 = vmatmul.mubr.f32.gmra.mrb[0].mxu0 %v6115
    %v6117 = vpop.f32.mrb[0].mxu0
    %v6118 = vadd.f32 %v5985, %v6117
    %v6119 = vpop.f32.mrb[0].mxu0
    %6120 = vmatprep.mubr.f32.mxu0 0.0
    %v6121 = vand.u32 %v5498, 4294901760
    %6122 = vmatmul.mubr.f32.gmra.mrb[0].mxu0 %v6121
    %v6123 = vpop.f32.mrb[0].mxu0
    %v6124 = vadd.f32 %v5993, %v6123
    %v6125 = vpop.f32.mrb[0].mxu0
    %6126 = vmatprep.mubr.f32.mxu0 0.0
    %v6127 = vand.u32 %v5501, 4294901760
    %6128 = vmatmul.mubr.f32.gmra.mrb[0].mxu0 %v6127
    %v6129 = vpop.f32.mrb[0].mxu0
    %v6130 = vadd.f32 %v6001, %v6129
    %v6131 = vpop.f32.mrb[0].mxu0
    %6132 = vmatprep.mubr.f32.mxu0 0.0
    %v6133 = vand.u32 %v5504, 4294901760
    %6134 = vmatmul.mubr.f32.gmra.mrb[0].mxu0 %v6133
    %v6135 = vpop.f32.mrb[0].mxu0
    %v6136 = vadd.f32 %v6009, %v6135
    %v6137 = vpop.f32.mrb[0].mxu0
    %6138 = vmatprep.mubr.f32.mxu0 0.0
    %v6139 = vand.u32 %v5507, 4294901760
    %6140 = vmatmul.mubr.f32.gmra.mrb[0].mxu0 %v6139
    %v6141 = vpop.f32.mrb[0].mxu0
    %v6142 = vadd.f32 %v6017, %v6141
    %v6143 = vpop.f32.mrb[0].mxu0
    %6144 = vmatprep.mubr.f32.mxu0 0.0
    %v6145 = vand.u32 %v5510, 4294901760
    %6146 = vmatmul.mubr.f32.gmra.mrb[0].mxu0 %v6145
    %v6147 = vpop.f32.mrb[0].mxu0
    %v6148 = vadd.f32 %v6025, %v6147
    %v6149 = vpop.f32.mrb[0].mxu0
    %6150 = vmatprep.mubr.f32.mxu0 0.0
    %v6151 = vand.u32 %v5513, 4294901760
    %6152 = vmatmul.mubr.f32.gmra.mrb[0].mxu0 %v6151
    %v6153 = vpop.f32.mrb[0].mxu0
    %v6154 = vadd.f32 %v6033, %v6153
    %v6155 = vpop.f32.mrb[0].mxu0
    %6156 = vmatprep.mubr.f32.mxu0 0.0
    %v6157 = vand.u32 %v5516, 4294901760
    %6158 = vmatmul.mubr.f32.gmra.mrb[0].mxu0 %v6157
    %v6159 = vpop.f32.mrb[0].mxu0
    %v6160 = vadd.f32 %v6041, %v6159
    %v6161 = vpop.f32.mrb[0].mxu0
    %6162 = vdwg.mxu0
    %6163 = vmatprep.subr.mxu0 0.0
    %v6164 = vand.u32 %v37, 4294901760
    %6165 = vmatpush1.msra.mxu0 %v6164
    %6166 = vmatprep.subr.mxu0 0.0
    %v6167 = vand.u32 %v38, 4294901760
    %6168 = vmatpush1.msra.mxu0 %v6167
    %6169 = vmatprep.subr.mxu0 0.0
    %6170 = vmatpush1.msra.mxu0 0.0
    %6171 = vmatprep.subr.mxu0 0.0
    %6172 = vmatpush1.msra.mxu0 0.0
    %6173 = vmatprep.subr.mxu0 0.0
    %6174 = vmatpush1.msra.mxu0 0.0
    %6175 = vmatprep.subr.mxu0 0.0
    %6176 = vmatpush1.msra.mxu0 0.0
    %6177 = vmatprep.subr.mxu0 0.0
    %6178 = vmatpush1.msra.mxu0 0.0
    %6179 = vmatprep.subr.mxu0 0.0
    %6180 = vmatpush1.msra.mxu0 0.0
    %6181 = vmatprep.subr.mxu0 0.0
    %6182 = vmatpush1.msra.mxu0 0.0
    %6183 = vmatprep.subr.mxu0 0.0
    %6184 = vmatpush1.msra.mxu0 0.0
    %6185 = vmatprep.subr.mxu0 0.0
    %6186 = vmatpush1.msra.mxu0 0.0
    %6187 = vmatprep.subr.mxu0 0.0
    %6188 = vmatpush1.msra.mxu0 0.0
    %6189 = vmatprep.subr.mxu0 0.0
    %6190 = vmatpush1.msra.mxu0 0.0
    %6191 = vmatprep.subr.mxu0 0.0
    %6192 = vmatpush1.msra.mxu0 0.0
    %6193 = vmatprep.subr.mxu0 0.0
    %6194 = vmatpush1.msra.mxu0 0.0
    %6195 = vmatprep.subr.mxu0 0.0
    %6196 = vmatpush1.msra.mxu0 0.0
    %6197 = vmatprep.subr.mxu0 0.0
    %6198 = vmatpush1.msra.mxu0 0.0
    %6199 = vmatprep.subr.mxu0 0.0
    %6200 = vmatpush1.msra.mxu0 0.0
    %6201 = vmatprep.subr.mxu0 0.0
    %6202 = vmatpush1.msra.mxu0 0.0
    %6203 = vmatprep.subr.mxu0 0.0
    %6204 = vmatpush1.msra.mxu0 0.0
    %6205 = vmatprep.subr.mxu0 0.0
    %6206 = vmatpush1.msra.mxu0 0.0
    %6207 = vmatprep.subr.mxu0 0.0
    %6208 = vmatpush1.msra.mxu0 0.0
    %6209 = vmatprep.subr.mxu0 0.0
    %6210 = vmatpush1.msra.mxu0 0.0
    %6211 = vmatprep.subr.mxu0 0.0
    %6212 = vmatpush1.msra.mxu0 0.0
    %6213 = vmatprep.subr.mxu0 0.0
    %6214 = vmatpush1.msra.mxu0 0.0
    %6215 = vmatprep.subr.mxu0 0.0
    %6216 = vmatpush1.msra.mxu0 0.0
    %6217 = vmatprep.subr.mxu0 0.0
    %6218 = vmatpush1.msra.mxu0 0.0
    %6219 = vmatprep.subr.mxu0 0.0
    %6220 = vmatpush1.msra.mxu0 0.0
    %6221 = vmatprep.subr.mxu0 0.0
    %6222 = vmatpush1.msra.mxu0 0.0
    %6223 = vmatprep.subr.mxu0 0.0
    %6224 = vmatpush1.msra.mxu0 0.0
    %6225 = vmatprep.subr.mxu0 0.0
    %6226 = vmatpush1.msra.mxu0 0.0
    %6227 = vmatprep.subr.mxu0 0.0
    %6228 = vmatpush1.msra.mxu0 0.0
    %6229 = vmatprep.mubr.f32.mxu0 0.0
    %v6230 = vand.u32 %v5495, 4294901760
    %6231 = vmatmul.mubr.f32.gmra.mrb[0].mxu0 %v6230
    %v6232 = vpop.f32.mrb[0].mxu0
    %v6233 = vadd.f32 %v6118, %v6232
    %v6234 = vpop.f32.mrb[0].mxu0
    %6235 = vmatprep.mubr.f32.mxu0 0.0
    %v6236 = vand.u32 %v5498, 4294901760
    %6237 = vmatmul.mubr.f32.gmra.mrb[0].mxu0 %v6236
    %v6238 = vpop.f32.mrb[0].mxu0
    %v6239 = vadd.f32 %v6124, %v6238
    %v6240 = vpop.f32.mrb[0].mxu0
    %6241 = vmatprep.mubr.f32.mxu0 0.0
    %v6242 = vand.u32 %v5501, 4294901760
    %6243 = vmatmul.mubr.f32.gmra.mrb[0].mxu0 %v6242
    %v6244 = vpop.f32.mrb[0].mxu0
    %v6245 = vadd.f32 %v6130, %v6244
    %v6246 = vpop.f32.mrb[0].mxu0
    %6247 = vmatprep.mubr.f32.mxu0 0.0
    %v6248 = vand.u32 %v5504, 4294901760
    %6249 = vmatmul.mubr.f32.gmra.mrb[0].mxu0 %v6248
    %v6250 = vpop.f32.mrb[0].mxu0
    %v6251 = vadd.f32 %v6136, %v6250
    %v6252 = vpop.f32.mrb[0].mxu0
    %6253 = vmatprep.mubr.f32.mxu0 0.0
    %v6254 = vand.u32 %v5507, 4294901760
    %6255 = vmatmul.mubr.f32.gmra.mrb[0].mxu0 %v6254
    %v6256 = vpop.f32.mrb[0].mxu0
    %v6257 = vadd.f32 %v6142, %v6256
    %v6258 = vpop.f32.mrb[0].mxu0
    %6259 = vmatprep.mubr.f32.mxu0 0.0
    %v6260 = vand.u32 %v5510, 4294901760
    %6261 = vmatmul.mubr.f32.gmra.mrb[0].mxu0 %v6260
    %v6262 = vpop.f32.mrb[0].mxu0
    %v6263 = vadd.f32 %v6148, %v6262
    %v6264 = vpop.f32.mrb[0].mxu0
    %6265 = vmatprep.mubr.f32.mxu0 0.0
    %v6266 = vand.u32 %v5513, 4294901760
    %6267 = vmatmul.mubr.f32.gmra.mrb[0].mxu0 %v6266
    %v6268 = vpop.f32.mrb[0].mxu0
    %v6269 = vadd.f32 %v6154, %v6268
    %v6270 = vpop.f32.mrb[0].mxu0
    %6271 = vmatprep.mubr.f32.mxu0 0.0
    %v6272 = vand.u32 %v5516, 4294901760
    %6273 = vmatmul.mubr.f32.gmra.mrb[0].mxu0 %v6272
    %v6274 = vpop.f32.mrb[0].mxu0
    %v6275 = vadd.f32 %v6160, %v6274
    %v6276 = vpop.f32.mrb[0].mxu0
    %6277 = vdwg.mxu0
    %s6278 = scalar_lea.vmem [#allocation5], 192
    %6279 = vst.msk [vmem:[%s6278] sm:$0xff] %vm1610, %v6233
    %6280 = vst.msk [vmem:[%s6278 + $0x8] sm:$0xff] %vm1610, %v6239
    %6281 = vst.msk [vmem:[%s6278 + $0x10] sm:$0xff] %vm1610, %v6245
    %6282 = vst.msk [vmem:[%s6278 + $0x18] sm:$0xff] %vm1610, %v6251
    %6283 = vst.msk [vmem:[%s6278 + $0x20] sm:$0xff] %vm1610, %v6257
    %6284 = vst.msk [vmem:[%s6278 + $0x28] sm:$0xff] %vm1610, %v6263
    %6285 = vst.msk [vmem:[%s6278 + $0x30] sm:$0xff] %vm1610, %v6269
    %6286 = vst.msk [vmem:[%s6278 + $0x38] sm:$0xff] %vm1610, %v6275
    %s6287 = scalar_lea.vmem [#allocation2], 64
    %v6288 = vld [vmem:[%s6287] sm:$0xff]
    %v6289 = vld [vmem:[%s6287 + $0x8] sm:$0xff]
    %6290 = vmatprep.subr.mxu0 0.0
    %v6291 = vand.u32 %v6288, 4294901760
    %6292 = vmatpush1.msra.mxu0 %v6291
    %6293 = vmatprep.subr.mxu0 0.0
    %v6294 = vand.u32 %v6289, 4294901760
    %6295 = vmatpush1.msra.mxu0 %v6294
    %6296 = vmatprep.subr.mxu0 0.0
    %6297 = vmatpush1.msra.mxu0 0.0
    %6298 = vmatprep.subr.mxu0 0.0
    %6299 = vmatpush1.msra.mxu0 0.0
    %6300 = vmatprep.subr.mxu0 0.0
    %6301 = vmatpush1.msra.mxu0 0.0
    %6302 = vmatprep.subr.mxu0 0.0
    %6303 = vmatpush1.msra.mxu0 0.0
    %6304 = vmatprep.subr.mxu0 0.0
    %6305 = vmatpush1.msra.mxu0 0.0
    %6306 = vmatprep.subr.mxu0 0.0
    %6307 = vmatpush1.msra.mxu0 0.0
    %6308 = vmatprep.subr.mxu0 0.0
    %6309 = vmatpush1.msra.mxu0 0.0
    %6310 = vmatprep.subr.mxu0 0.0
    %6311 = vmatpush1.msra.mxu0 0.0
    %6312 = vmatprep.subr.mxu0 0.0
    %6313 = vmatpush1.msra.mxu0 0.0
    %6314 = vmatprep.subr.mxu0 0.0
    %6315 = vmatpush1.msra.mxu0 0.0
    %6316 = vmatprep.subr.mxu0 0.0
    %6317 = vmatpush1.msra.mxu0 0.0
    %6318 = vmatprep.subr.mxu0 0.0
    %6319 = vmatpush1.msra.mxu0 0.0
    %6320 = vmatprep.subr.mxu0 0.0
    %6321 = vmatpush1.msra.mxu0 0.0
    %6322 = vmatprep.subr.mxu0 0.0
    %6323 = vmatpush1.msra.mxu0 0.0
    %6324 = vmatprep.subr.mxu0 0.0
    %6325 = vmatpush1.msra.mxu0 0.0
    %6326 = vmatprep.subr.mxu0 0.0
    %6327 = vmatpush1.msra.mxu0 0.0
    %6328 = vmatprep.subr.mxu0 0.0
    %6329 = vmatpush1.msra.mxu0 0.0
    %6330 = vmatprep.subr.mxu0 0.0
    %6331 = vmatpush1.msra.mxu0 0.0
    %6332 = vmatprep.subr.mxu0 0.0
    %6333 = vmatpush1.msra.mxu0 0.0
    %6334 = vmatprep.subr.mxu0 0.0
    %6335 = vmatpush1.msra.mxu0 0.0
    %6336 = vmatprep.subr.mxu0 0.0
    %6337 = vmatpush1.msra.mxu0 0.0
    %6338 = vmatprep.subr.mxu0 0.0
    %6339 = vmatpush1.msra.mxu0 0.0
    %6340 = vmatprep.subr.mxu0 0.0
    %6341 = vmatpush1.msra.mxu0 0.0
    %6342 = vmatprep.subr.mxu0 0.0
    %6343 = vmatpush1.msra.mxu0 0.0
    %6344 = vmatprep.subr.mxu0 0.0
    %6345 = vmatpush1.msra.mxu0 0.0
    %6346 = vmatprep.subr.mxu0 0.0
    %6347 = vmatpush1.msra.mxu0 0.0
    %6348 = vmatprep.subr.mxu0 0.0
    %6349 = vmatpush1.msra.mxu0 0.0
    %6350 = vmatprep.subr.mxu0 0.0
    %6351 = vmatpush1.msra.mxu0 0.0
    %6352 = vmatprep.subr.mxu0 0.0
    %6353 = vmatpush1.msra.mxu0 0.0
    %6354 = vmatprep.subr.mxu0 0.0
    %6355 = vmatpush1.msra.mxu0 0.0
    %6356 = vmatprep.mubr.f32.mxu0 0.0
    %v6357 = vand.u32 %v43, 4294901760
    %v6358 = vsub.f32 %v43, %v6357
    %v6359 = vand.u32 %v6358, 4294901760
    %v6360 = vsub.f32 %v6358, %v6359
    %v6361 = vand.u32 %v6360, 4294901760
    %6362 = vmatmul.mubr.f32.gmra.mrb[0].mxu0 %v6361
    %v6363 = vpop.f32.mrb[0].mxu0
    %v6364 = vadd.f32 0.0, %v6363
    %v6365 = vpop.f32.mrb[0].mxu0
    %6366 = vmatprep.mubr.f32.mxu0 0.0
    %v6367 = vand.u32 %v46, 4294901760
    %v6368 = vsub.f32 %v46, %v6367
    %v6369 = vand.u32 %v6368, 4294901760
    %v6370 = vsub.f32 %v6368, %v6369
    %v6371 = vand.u32 %v6370, 4294901760
    %6372 = vmatmul.mubr.f32.gmra.mrb[0].mxu0 %v6371
    %v6373 = vpop.f32.mrb[0].mxu0
    %v6374 = vadd.f32 0.0, %v6373
    %v6375 = vpop.f32.mrb[0].mxu0
    %6376 = vmatprep.mubr.f32.mxu0 0.0
    %v6377 = vand.u32 %v49, 4294901760
    %v6378 = vsub.f32 %v49, %v6377
    %v6379 = vand.u32 %v6378, 4294901760
    %v6380 = vsub.f32 %v6378, %v6379
    %v6381 = vand.u32 %v6380, 4294901760
    %6382 = vmatmul.mubr.f32.gmra.mrb[0].mxu0 %v6381
    %v6383 = vpop.f32.mrb[0].mxu0
    %v6384 = vadd.f32 0.0, %v6383
    %v6385 = vpop.f32.mrb[0].mxu0
    %6386 = vmatprep.mubr.f32.mxu0 0.0
    %v6387 = vand.u32 %v52, 4294901760
    %v6388 = vsub.f32 %v52, %v6387
    %v6389 = vand.u32 %v6388, 4294901760
    %v6390 = vsub.f32 %v6388, %v6389
    %v6391 = vand.u32 %v6390, 4294901760
    %6392 = vmatmul.mubr.f32.gmra.mrb[0].mxu0 %v6391
    %v6393 = vpop.f32.mrb[0].mxu0
    %v6394 = vadd.f32 0.0, %v6393
    %v6395 = vpop.f32.mrb[0].mxu0
    %6396 = vmatprep.mubr.f32.mxu0 0.0
    %v6397 = vand.u32 %v55, 4294901760
    %v6398 = vsub.f32 %v55, %v6397
    %v6399 = vand.u32 %v6398, 4294901760
    %v6400 = vsub.f32 %v6398, %v6399
    %v6401 = vand.u32 %v6400, 4294901760
    %6402 = vmatmul.mubr.f32.gmra.mrb[0].mxu0 %v6401
    %v6403 = vpop.f32.mrb[0].mxu0
    %v6404 = vadd.f32 0.0, %v6403
    %v6405 = vpop.f32.mrb[0].mxu0
    %6406 = vmatprep.mubr.f32.mxu0 0.0
    %v6407 = vand.u32 %v58, 4294901760
    %v6408 = vsub.f32 %v58, %v6407
    %v6409 = vand.u32 %v6408, 4294901760
    %v6410 = vsub.f32 %v6408, %v6409
    %v6411 = vand.u32 %v6410, 4294901760
    %6412 = vmatmul.mubr.f32.gmra.mrb[0].mxu0 %v6411
    %v6413 = vpop.f32.mrb[0].mxu0
    %v6414 = vadd.f32 0.0, %v6413
    %v6415 = vpop.f32.mrb[0].mxu0
    %6416 = vmatprep.mubr.f32.mxu0 0.0
    %v6417 = vand.u32 %v61, 4294901760
    %v6418 = vsub.f32 %v61, %v6417
    %v6419 = vand.u32 %v6418, 4294901760
    %v6420 = vsub.f32 %v6418, %v6419
    %v6421 = vand.u32 %v6420, 4294901760
    %6422 = vmatmul.mubr.f32.gmra.mrb[0].mxu0 %v6421
    %v6423 = vpop.f32.mrb[0].mxu0
    %v6424 = vadd.f32 0.0, %v6423
    %v6425 = vpop.f32.mrb[0].mxu0
    %6426 = vmatprep.mubr.f32.mxu0 0.0
    %v6427 = vand.u32 %v64, 4294901760
    %v6428 = vsub.f32 %v64, %v6427
    %v6429 = vand.u32 %v6428, 4294901760
    %v6430 = vsub.f32 %v6428, %v6429
    %v6431 = vand.u32 %v6430, 4294901760
    %6432 = vmatmul.mubr.f32.gmra.mrb[0].mxu0 %v6431
    %v6433 = vpop.f32.mrb[0].mxu0
    %v6434 = vadd.f32 0.0, %v6433
    %v6435 = vpop.f32.mrb[0].mxu0
    %6436 = vdwg.mxu0
    %6437 = vmatprep.subr.mxu0 0.0
    %v6438 = vand.u32 %v6288, 4294901760
    %v6439 = vsub.f32 %v6288, %v6438
    %v6440 = vand.u32 %v6439, 4294901760
    %v6441 = vsub.f32 %v6439, %v6440
    %v6442 = vand.u32 %v6441, 4294901760
    %6443 = vmatpush1.msra.mxu0 %v6442
    %6444 = vmatprep.subr.mxu0 0.0
    %v6445 = vand.u32 %v6289, 4294901760
    %v6446 = vsub.f32 %v6289, %v6445
    %v6447 = vand.u32 %v6446, 4294901760
    %v6448 = vsub.f32 %v6446, %v6447
    %v6449 = vand.u32 %v6448, 4294901760
    %6450 = vmatpush1.msra.mxu0 %v6449
    %6451 = vmatprep.subr.mxu0 0.0
    %6452 = vmatpush1.msra.mxu0 0.0
    %6453 = vmatprep.subr.mxu0 0.0
    %6454 = vmatpush1.msra.mxu0 0.0
    %6455 = vmatprep.subr.mxu0 0.0
    %6456 = vmatpush1.msra.mxu0 0.0
    %6457 = vmatprep.subr.mxu0 0.0
    %6458 = vmatpush1.msra.mxu0 0.0
    %6459 = vmatprep.subr.mxu0 0.0
    %6460 = vmatpush1.msra.mxu0 0.0
    %6461 = vmatprep.subr.mxu0 0.0
    %6462 = vmatpush1.msra.mxu0 0.0
    %6463 = vmatprep.subr.mxu0 0.0
    %6464 = vmatpush1.msra.mxu0 0.0
    %6465 = vmatprep.subr.mxu0 0.0
    %6466 = vmatpush1.msra.mxu0 0.0
    %6467 = vmatprep.subr.mxu0 0.0
    %6468 = vmatpush1.msra.mxu0 0.0
    %6469 = vmatprep.subr.mxu0 0.0
    %6470 = vmatpush1.msra.mxu0 0.0
    %6471 = vmatprep.subr.mxu0 0.0
    %6472 = vmatpush1.msra.mxu0 0.0
    %6473 = vmatprep.subr.mxu0 0.0
    %6474 = vmatpush1.msra.mxu0 0.0
    %6475 = vmatprep.subr.mxu0 0.0
    %6476 = vmatpush1.msra.mxu0 0.0
    %6477 = vmatprep.subr.mxu0 0.0
    %6478 = vmatpush1.msra.mxu0 0.0
    %6479 = vmatprep.subr.mxu0 0.0
    %6480 = vmatpush1.msra.mxu0 0.0
    %6481 = vmatprep.subr.mxu0 0.0
    %6482 = vmatpush1.msra.mxu0 0.0
    %6483 = vmatprep.subr.mxu0 0.0
    %6484 = vmatpush1.msra.mxu0 0.0
    %6485 = vmatprep.subr.mxu0 0.0
    %6486 = vmatpush1.msra.mxu0 0.0
    %6487 = vmatprep.subr.mxu0 0.0
    %6488 = vmatpush1.msra.mxu0 0.0
    %6489 = vmatprep.subr.mxu0 0.0
    %6490 = vmatpush1.msra.mxu0 0.0
    %6491 = vmatprep.subr.mxu0 0.0
    %6492 = vmatpush1.msra.mxu0 0.0
    %6493 = vmatprep.subr.mxu0 0.0
    %6494 = vmatpush1.msra.mxu0 0.0
    %6495 = vmatprep.subr.mxu0 0.0
    %6496 = vmatpush1.msra.mxu0 0.0
    %6497 = vmatprep.subr.mxu0 0.0
    %6498 = vmatpush1.msra.mxu0 0.0
    %6499 = vmatprep.subr.mxu0 0.0
    %6500 = vmatpush1.msra.mxu0 0.0
    %6501 = vmatprep.subr.mxu0 0.0
    %6502 = vmatpush1.msra.mxu0 0.0
    %6503 = vmatprep.subr.mxu0 0.0
    %6504 = vmatpush1.msra.mxu0 0.0
    %6505 = vmatprep.subr.mxu0 0.0
    %6506 = vmatpush1.msra.mxu0 0.0
    %6507 = vmatprep.subr.mxu0 0.0
    %6508 = vmatpush1.msra.mxu0 0.0
    %6509 = vmatprep.subr.mxu0 0.0
    %6510 = vmatpush1.msra.mxu0 0.0
    %6511 = vmatprep.mubr.f32.mxu0 0.0
    %v6512 = vand.u32 %v43, 4294901760
    %6513 = vmatmul.mubr.f32.gmra.mrb[0].mxu0 %v6512
    %v6514 = vpop.f32.mrb[0].mxu0
    %v6515 = vadd.f32 %v6364, %v6514
    %v6516 = vpop.f32.mrb[0].mxu0
    %6517 = vmatprep.mubr.f32.mxu0 0.0
    %v6518 = vand.u32 %v46, 4294901760
    %6519 = vmatmul.mubr.f32.gmra.mrb[0].mxu0 %v6518
    %v6520 = vpop.f32.mrb[0].mxu0
    %v6521 = vadd.f32 %v6374, %v6520
    %v6522 = vpop.f32.mrb[0].mxu0
    %6523 = vmatprep.mubr.f32.mxu0 0.0
    %v6524 = vand.u32 %v49, 4294901760
    %6525 = vmatmul.mubr.f32.gmra.mrb[0].mxu0 %v6524
    %v6526 = vpop.f32.mrb[0].mxu0
    %v6527 = vadd.f32 %v6384, %v6526
    %v6528 = vpop.f32.mrb[0].mxu0
    %6529 = vmatprep.mubr.f32.mxu0 0.0
    %v6530 = vand.u32 %v52, 4294901760
    %6531 = vmatmul.mubr.f32.gmra.mrb[0].mxu0 %v6530
    %v6532 = vpop.f32.mrb[0].mxu0
    %v6533 = vadd.f32 %v6394, %v6532
    %v6534 = vpop.f32.mrb[0].mxu0
    %6535 = vmatprep.mubr.f32.mxu0 0.0
    %v6536 = vand.u32 %v55, 4294901760
    %6537 = vmatmul.mubr.f32.gmra.mrb[0].mxu0 %v6536
    %v6538 = vpop.f32.mrb[0].mxu0
    %v6539 = vadd.f32 %v6404, %v6538
    %v6540 = vpop.f32.mrb[0].mxu0
    %6541 = vmatprep.mubr.f32.mxu0 0.0
    %v6542 = vand.u32 %v58, 4294901760
    %6543 = vmatmul.mubr.f32.gmra.mrb[0].mxu0 %v6542
    %v6544 = vpop.f32.mrb[0].mxu0
    %v6545 = vadd.f32 %v6414, %v6544
    %v6546 = vpop.f32.mrb[0].mxu0
    %6547 = vmatprep.mubr.f32.mxu0 0.0
    %v6548 = vand.u32 %v61, 4294901760
    %6549 = vmatmul.mubr.f32.gmra.mrb[0].mxu0 %v6548
    %v6550 = vpop.f32.mrb[0].mxu0
    %v6551 = vadd.f32 %v6424, %v6550
    %v6552 = vpop.f32.mrb[0].mxu0
    %6553 = vmatprep.mubr.f32.mxu0 0.0
    %v6554 = vand.u32 %v64, 4294901760
    %6555 = vmatmul.mubr.f32.gmra.mrb[0].mxu0 %v6554
    %v6556 = vpop.f32.mrb[0].mxu0
    %v6557 = vadd.f32 %v6434, %v6556
    %v6558 = vpop.f32.mrb[0].mxu0
    %6559 = vdwg.mxu0
    %6560 = vmatprep.subr.mxu0 0.0
    %v6561 = vand.u32 %v6288, 4294901760
    %v6562 = vsub.f32 %v6288, %v6561
    %6563 = vmatpush1.msra.mxu0 %v6562
    %6564 = vmatprep.subr.mxu0 0.0
    %v6565 = vand.u32 %v6289, 4294901760
    %v6566 = vsub.f32 %v6289, %v6565
    %6567 = vmatpush1.msra.mxu0 %v6566
    %6568 = vmatprep.subr.mxu0 0.0
    %6569 = vmatpush1.msra.mxu0 0.0
    %6570 = vmatprep.subr.mxu0 0.0
    %6571 = vmatpush1.msra.mxu0 0.0
    %6572 = vmatprep.subr.mxu0 0.0
    %6573 = vmatpush1.msra.mxu0 0.0
    %6574 = vmatprep.subr.mxu0 0.0
    %6575 = vmatpush1.msra.mxu0 0.0
    %6576 = vmatprep.subr.mxu0 0.0
    %6577 = vmatpush1.msra.mxu0 0.0
    %6578 = vmatprep.subr.mxu0 0.0
    %6579 = vmatpush1.msra.mxu0 0.0
    %6580 = vmatprep.subr.mxu0 0.0
    %6581 = vmatpush1.msra.mxu0 0.0
    %6582 = vmatprep.subr.mxu0 0.0
    %6583 = vmatpush1.msra.mxu0 0.0
    %6584 = vmatprep.subr.mxu0 0.0
    %6585 = vmatpush1.msra.mxu0 0.0
    %6586 = vmatprep.subr.mxu0 0.0
    %6587 = vmatpush1.msra.mxu0 0.0
    %6588 = vmatprep.subr.mxu0 0.0
    %6589 = vmatpush1.msra.mxu0 0.0
    %6590 = vmatprep.subr.mxu0 0.0
    %6591 = vmatpush1.msra.mxu0 0.0
    %6592 = vmatprep.subr.mxu0 0.0
    %6593 = vmatpush1.msra.mxu0 0.0
    %6594 = vmatprep.subr.mxu0 0.0
    %6595 = vmatpush1.msra.mxu0 0.0
    %6596 = vmatprep.subr.mxu0 0.0
    %6597 = vmatpush1.msra.mxu0 0.0
    %6598 = vmatprep.subr.mxu0 0.0
    %6599 = vmatpush1.msra.mxu0 0.0
    %6600 = vmatprep.subr.mxu0 0.0
    %6601 = vmatpush1.msra.mxu0 0.0
    %6602 = vmatprep.subr.mxu0 0.0
    %6603 = vmatpush1.msra.mxu0 0.0
    %6604 = vmatprep.subr.mxu0 0.0
    %6605 = vmatpush1.msra.mxu0 0.0
    %6606 = vmatprep.subr.mxu0 0.0
    %6607 = vmatpush1.msra.mxu0 0.0
    %6608 = vmatprep.subr.mxu0 0.0
    %6609 = vmatpush1.msra.mxu0 0.0
    %6610 = vmatprep.subr.mxu0 0.0
    %6611 = vmatpush1.msra.mxu0 0.0
    %6612 = vmatprep.subr.mxu0 0.0
    %6613 = vmatpush1.msra.mxu0 0.0
    %6614 = vmatprep.subr.mxu0 0.0
    %6615 = vmatpush1.msra.mxu0 0.0
    %6616 = vmatprep.subr.mxu0 0.0
    %6617 = vmatpush1.msra.mxu0 0.0
    %6618 = vmatprep.subr.mxu0 0.0
    %6619 = vmatpush1.msra.mxu0 0.0
    %6620 = vmatprep.subr.mxu0 0.0
    %6621 = vmatpush1.msra.mxu0 0.0
    %6622 = vmatprep.subr.mxu0 0.0
    %6623 = vmatpush1.msra.mxu0 0.0
    %6624 = vmatprep.subr.mxu0 0.0
    %6625 = vmatpush1.msra.mxu0 0.0
    %6626 = vmatprep.subr.mxu0 0.0
    %6627 = vmatpush1.msra.mxu0 0.0
    %6628 = vmatprep.mubr.f32.mxu0 0.0
    %v6629 = vand.u32 %v43, 4294901760
    %v6630 = vsub.f32 %v43, %v6629
    %6631 = vmatmul.mubr.f32.gmra.mrb[0].mxu0 %v6630
    %v6632 = vpop.f32.mrb[0].mxu0
    %v6633 = vadd.f32 %v6515, %v6632
    %v6634 = vpop.f32.mrb[0].mxu0
    %6635 = vmatprep.mubr.f32.mxu0 0.0
    %v6636 = vand.u32 %v46, 4294901760
    %v6637 = vsub.f32 %v46, %v6636
    %6638 = vmatmul.mubr.f32.gmra.mrb[0].mxu0 %v6637
    %v6639 = vpop.f32.mrb[0].mxu0
    %v6640 = vadd.f32 %v6521, %v6639
    %v6641 = vpop.f32.mrb[0].mxu0
    %6642 = vmatprep.mubr.f32.mxu0 0.0
    %v6643 = vand.u32 %v49, 4294901760
    %v6644 = vsub.f32 %v49, %v6643
    %6645 = vmatmul.mubr.f32.gmra.mrb[0].mxu0 %v6644
    %v6646 = vpop.f32.mrb[0].mxu0
    %v6647 = vadd.f32 %v6527, %v6646
    %v6648 = vpop.f32.mrb[0].mxu0
    %6649 = vmatprep.mubr.f32.mxu0 0.0
    %v6650 = vand.u32 %v52, 4294901760
    %v6651 = vsub.f32 %v52, %v6650
    %6652 = vmatmul.mubr.f32.gmra.mrb[0].mxu0 %v6651
    %v6653 = vpop.f32.mrb[0].mxu0
    %v6654 = vadd.f32 %v6533, %v6653
    %v6655 = vpop.f32.mrb[0].mxu0
    %6656 = vmatprep.mubr.f32.mxu0 0.0
    %v6657 = vand.u32 %v55, 4294901760
    %v6658 = vsub.f32 %v55, %v6657
    %6659 = vmatmul.mubr.f32.gmra.mrb[0].mxu0 %v6658
    %v6660 = vpop.f32.mrb[0].mxu0
    %v6661 = vadd.f32 %v6539, %v6660
    %v6662 = vpop.f32.mrb[0].mxu0
    %6663 = vmatprep.mubr.f32.mxu0 0.0
    %v6664 = vand.u32 %v58, 4294901760
    %v6665 = vsub.f32 %v58, %v6664
    %6666 = vmatmul.mubr.f32.gmra.mrb[0].mxu0 %v6665
    %v6667 = vpop.f32.mrb[0].mxu0
    %v6668 = vadd.f32 %v6545, %v6667
    %v6669 = vpop.f32.mrb[0].mxu0
    %6670 = vmatprep.mubr.f32.mxu0 0.0
    %v6671 = vand.u32 %v61, 4294901760
    %v6672 = vsub.f32 %v61, %v6671
    %6673 = vmatmul.mubr.f32.gmra.mrb[0].mxu0 %v6672
    %v6674 = vpop.f32.mrb[0].mxu0
    %v6675 = vadd.f32 %v6551, %v6674
    %v6676 = vpop.f32.mrb[0].mxu0
    %6677 = vmatprep.mubr.f32.mxu0 0.0
    %v6678 = vand.u32 %v64, 4294901760
    %v6679 = vsub.f32 %v64, %v6678
    %6680 = vmatmul.mubr.f32.gmra.mrb[0].mxu0 %v6679
    %v6681 = vpop.f32.mrb[0].mxu0
    %v6682 = vadd.f32 %v6557, %v6681
    %v6683 = vpop.f32.mrb[0].mxu0
    %6684 = vdwg.mxu0
    %6685 = vmatprep.subr.mxu0 0.0
    %v6686 = vand.u32 %v6288, 4294901760
    %6687 = vmatpush1.msra.mxu0 %v6686
    %6688 = vmatprep.subr.mxu0 0.0
    %v6689 = vand.u32 %v6289, 4294901760
    %6690 = vmatpush1.msra.mxu0 %v6689
    %6691 = vmatprep.subr.mxu0 0.0
    %6692 = vmatpush1.msra.mxu0 0.0
    %6693 = vmatprep.subr.mxu0 0.0
    %6694 = vmatpush1.msra.mxu0 0.0
    %6695 = vmatprep.subr.mxu0 0.0
    %6696 = vmatpush1.msra.mxu0 0.0
    %6697 = vmatprep.subr.mxu0 0.0
    %6698 = vmatpush1.msra.mxu0 0.0
    %6699 = vmatprep.subr.mxu0 0.0
    %6700 = vmatpush1.msra.mxu0 0.0
    %6701 = vmatprep.subr.mxu0 0.0
    %6702 = vmatpush1.msra.mxu0 0.0
    %6703 = vmatprep.subr.mxu0 0.0
    %6704 = vmatpush1.msra.mxu0 0.0
    %6705 = vmatprep.subr.mxu0 0.0
    %6706 = vmatpush1.msra.mxu0 0.0
    %6707 = vmatprep.subr.mxu0 0.0
    %6708 = vmatpush1.msra.mxu0 0.0
    %6709 = vmatprep.subr.mxu0 0.0
    %6710 = vmatpush1.msra.mxu0 0.0
    %6711 = vmatprep.subr.mxu0 0.0
    %6712 = vmatpush1.msra.mxu0 0.0
    %6713 = vmatprep.subr.mxu0 0.0
    %6714 = vmatpush1.msra.mxu0 0.0
    %6715 = vmatprep.subr.mxu0 0.0
    %6716 = vmatpush1.msra.mxu0 0.0
    %6717 = vmatprep.subr.mxu0 0.0
    %6718 = vmatpush1.msra.mxu0 0.0
    %6719 = vmatprep.subr.mxu0 0.0
    %6720 = vmatpush1.msra.mxu0 0.0
    %6721 = vmatprep.subr.mxu0 0.0
    %6722 = vmatpush1.msra.mxu0 0.0
    %6723 = vmatprep.subr.mxu0 0.0
    %6724 = vmatpush1.msra.mxu0 0.0
    %6725 = vmatprep.subr.mxu0 0.0
    %6726 = vmatpush1.msra.mxu0 0.0
    %6727 = vmatprep.subr.mxu0 0.0
    %6728 = vmatpush1.msra.mxu0 0.0
    %6729 = vmatprep.subr.mxu0 0.0
    %6730 = vmatpush1.msra.mxu0 0.0
    %6731 = vmatprep.subr.mxu0 0.0
    %6732 = vmatpush1.msra.mxu0 0.0
    %6733 = vmatprep.subr.mxu0 0.0
    %6734 = vmatpush1.msra.mxu0 0.0
    %6735 = vmatprep.subr.mxu0 0.0
    %6736 = vmatpush1.msra.mxu0 0.0
    %6737 = vmatprep.subr.mxu0 0.0
    %6738 = vmatpush1.msra.mxu0 0.0
    %6739 = vmatprep.subr.mxu0 0.0
    %6740 = vmatpush1.msra.mxu0 0.0
    %6741 = vmatprep.subr.mxu0 0.0
    %6742 = vmatpush1.msra.mxu0 0.0
    %6743 = vmatprep.subr.mxu0 0.0
    %6744 = vmatpush1.msra.mxu0 0.0
    %6745 = vmatprep.subr.mxu0 0.0
    %6746 = vmatpush1.msra.mxu0 0.0
    %6747 = vmatprep.subr.mxu0 0.0
    %6748 = vmatpush1.msra.mxu0 0.0
    %6749 = vmatprep.subr.mxu0 0.0
    %6750 = vmatpush1.msra.mxu0 0.0
    %6751 = vmatprep.mubr.f32.mxu0 0.0
    %v6752 = vand.u32 %v43, 4294901760
    %v6753 = vsub.f32 %v43, %v6752
    %v6754 = vand.u32 %v6753, 4294901760
    %6755 = vmatmul.mubr.f32.gmra.mrb[0].mxu0 %v6754
    %v6756 = vpop.f32.mrb[0].mxu0
    %v6757 = vadd.f32 %v6633, %v6756
    %v6758 = vpop.f32.mrb[0].mxu0
    %6759 = vmatprep.mubr.f32.mxu0 0.0
    %v6760 = vand.u32 %v46, 4294901760
    %v6761 = vsub.f32 %v46, %v6760
    %v6762 = vand.u32 %v6761, 4294901760
    %6763 = vmatmul.mubr.f32.gmra.mrb[0].mxu0 %v6762
    %v6764 = vpop.f32.mrb[0].mxu0
    %v6765 = vadd.f32 %v6640, %v6764
    %v6766 = vpop.f32.mrb[0].mxu0
    %6767 = vmatprep.mubr.f32.mxu0 0.0
    %v6768 = vand.u32 %v49, 4294901760
    %v6769 = vsub.f32 %v49, %v6768
    %v6770 = vand.u32 %v6769, 4294901760
    %6771 = vmatmul.mubr.f32.gmra.mrb[0].mxu0 %v6770
    %v6772 = vpop.f32.mrb[0].mxu0
    %v6773 = vadd.f32 %v6647, %v6772
    %v6774 = vpop.f32.mrb[0].mxu0
    %6775 = vmatprep.mubr.f32.mxu0 0.0
    %v6776 = vand.u32 %v52, 4294901760
    %v6777 = vsub.f32 %v52, %v6776
    %v6778 = vand.u32 %v6777, 4294901760
    %6779 = vmatmul.mubr.f32.gmra.mrb[0].mxu0 %v6778
    %v6780 = vpop.f32.mrb[0].mxu0
    %v6781 = vadd.f32 %v6654, %v6780
    %v6782 = vpop.f32.mrb[0].mxu0
    %6783 = vmatprep.mubr.f32.mxu0 0.0
    %v6784 = vand.u32 %v55, 4294901760
    %v6785 = vsub.f32 %v55, %v6784
    %v6786 = vand.u32 %v6785, 4294901760
    %6787 = vmatmul.mubr.f32.gmra.mrb[0].mxu0 %v6786
    %v6788 = vpop.f32.mrb[0].mxu0
    %v6789 = vadd.f32 %v6661, %v6788
    %v6790 = vpop.f32.mrb[0].mxu0
    %6791 = vmatprep.mubr.f32.mxu0 0.0
    %v6792 = vand.u32 %v58, 4294901760
    %v6793 = vsub.f32 %v58, %v6792
    %v6794 = vand.u32 %v6793, 4294901760
    %6795 = vmatmul.mubr.f32.gmra.mrb[0].mxu0 %v6794
    %v6796 = vpop.f32.mrb[0].mxu0
    %v6797 = vadd.f32 %v6668, %v6796
    %v6798 = vpop.f32.mrb[0].mxu0
    %6799 = vmatprep.mubr.f32.mxu0 0.0
    %v6800 = vand.u32 %v61, 4294901760
    %v6801 = vsub.f32 %v61, %v6800
    %v6802 = vand.u32 %v6801, 4294901760
    %6803 = vmatmul.mubr.f32.gmra.mrb[0].mxu0 %v6802
    %v6804 = vpop.f32.mrb[0].mxu0
    %v6805 = vadd.f32 %v6675, %v6804
    %v6806 = vpop.f32.mrb[0].mxu0
    %6807 = vmatprep.mubr.f32.mxu0 0.0
    %v6808 = vand.u32 %v64, 4294901760
    %v6809 = vsub.f32 %v64, %v6808
    %v6810 = vand.u32 %v6809, 4294901760
    %6811 = vmatmul.mubr.f32.gmra.mrb[0].mxu0 %v6810
    %v6812 = vpop.f32.mrb[0].mxu0
    %v6813 = vadd.f32 %v6682, %v6812
    %v6814 = vpop.f32.mrb[0].mxu0
    %6815 = vdwg.mxu0
    %6816 = vmatprep.subr.mxu0 0.0
    %v6817 = vand.u32 %v6288, 4294901760
    %v6818 = vsub.f32 %v6288, %v6817
    %v6819 = vand.u32 %v6818, 4294901760
    %6820 = vmatpush1.msra.mxu0 %v6819
    %6821 = vmatprep.subr.mxu0 0.0
    %v6822 = vand.u32 %v6289, 4294901760
    %v6823 = vsub.f32 %v6289, %v6822
    %v6824 = vand.u32 %v6823, 4294901760
    %6825 = vmatpush1.msra.mxu0 %v6824
    %6826 = vmatprep.subr.mxu0 0.0
    %6827 = vmatpush1.msra.mxu0 0.0
    %6828 = vmatprep.subr.mxu0 0.0
    %6829 = vmatpush1.msra.mxu0 0.0
    %6830 = vmatprep.subr.mxu0 0.0
    %6831 = vmatpush1.msra.mxu0 0.0
    %6832 = vmatprep.subr.mxu0 0.0
    %6833 = vmatpush1.msra.mxu0 0.0
    %6834 = vmatprep.subr.mxu0 0.0
    %6835 = vmatpush1.msra.mxu0 0.0
    %6836 = vmatprep.subr.mxu0 0.0
    %6837 = vmatpush1.msra.mxu0 0.0
    %6838 = vmatprep.subr.mxu0 0.0
    %6839 = vmatpush1.msra.mxu0 0.0
    %6840 = vmatprep.subr.mxu0 0.0
    %6841 = vmatpush1.msra.mxu0 0.0
    %6842 = vmatprep.subr.mxu0 0.0
    %6843 = vmatpush1.msra.mxu0 0.0
    %6844 = vmatprep.subr.mxu0 0.0
    %6845 = vmatpush1.msra.mxu0 0.0
    %6846 = vmatprep.subr.mxu0 0.0
    %6847 = vmatpush1.msra.mxu0 0.0
    %6848 = vmatprep.subr.mxu0 0.0
    %6849 = vmatpush1.msra.mxu0 0.0
    %6850 = vmatprep.subr.mxu0 0.0
    %6851 = vmatpush1.msra.mxu0 0.0
    %6852 = vmatprep.subr.mxu0 0.0
    %6853 = vmatpush1.msra.mxu0 0.0
    %6854 = vmatprep.subr.mxu0 0.0
    %6855 = vmatpush1.msra.mxu0 0.0
    %6856 = vmatprep.subr.mxu0 0.0
    %6857 = vmatpush1.msra.mxu0 0.0
    %6858 = vmatprep.subr.mxu0 0.0
    %6859 = vmatpush1.msra.mxu0 0.0
    %6860 = vmatprep.subr.mxu0 0.0
    %6861 = vmatpush1.msra.mxu0 0.0
    %6862 = vmatprep.subr.mxu0 0.0
    %6863 = vmatpush1.msra.mxu0 0.0
    %6864 = vmatprep.subr.mxu0 0.0
    %6865 = vmatpush1.msra.mxu0 0.0
    %6866 = vmatprep.subr.mxu0 0.0
    %6867 = vmatpush1.msra.mxu0 0.0
    %6868 = vmatprep.subr.mxu0 0.0
    %6869 = vmatpush1.msra.mxu0 0.0
    %6870 = vmatprep.subr.mxu0 0.0
    %6871 = vmatpush1.msra.mxu0 0.0
    %6872 = vmatprep.subr.mxu0 0.0
    %6873 = vmatpush1.msra.mxu0 0.0
    %6874 = vmatprep.subr.mxu0 0.0
    %6875 = vmatpush1.msra.mxu0 0.0
    %6876 = vmatprep.subr.mxu0 0.0
    %6877 = vmatpush1.msra.mxu0 0.0
    %6878 = vmatprep.subr.mxu0 0.0
    %6879 = vmatpush1.msra.mxu0 0.0
    %6880 = vmatprep.subr.mxu0 0.0
    %6881 = vmatpush1.msra.mxu0 0.0
    %6882 = vmatprep.subr.mxu0 0.0
    %6883 = vmatpush1.msra.mxu0 0.0
    %6884 = vmatprep.subr.mxu0 0.0
    %6885 = vmatpush1.msra.mxu0 0.0
    %6886 = vmatprep.mubr.f32.mxu0 0.0
    %v6887 = vand.u32 %v43, 4294901760
    %6888 = vmatmul.mubr.f32.gmra.mrb[0].mxu0 %v6887
    %v6889 = vpop.f32.mrb[0].mxu0
    %v6890 = vadd.f32 %v6757, %v6889
    %v6891 = vpop.f32.mrb[0].mxu0
    %6892 = vmatprep.mubr.f32.mxu0 0.0
    %v6893 = vand.u32 %v46, 4294901760
    %6894 = vmatmul.mubr.f32.gmra.mrb[0].mxu0 %v6893
    %v6895 = vpop.f32.mrb[0].mxu0
    %v6896 = vadd.f32 %v6765, %v6895
    %v6897 = vpop.f32.mrb[0].mxu0
    %6898 = vmatprep.mubr.f32.mxu0 0.0
    %v6899 = vand.u32 %v49, 4294901760
    %6900 = vmatmul.mubr.f32.gmra.mrb[0].mxu0 %v6899
    %v6901 = vpop.f32.mrb[0].mxu0
    %v6902 = vadd.f32 %v6773, %v6901
    %v6903 = vpop.f32.mrb[0].mxu0
    %6904 = vmatprep.mubr.f32.mxu0 0.0
    %v6905 = vand.u32 %v52, 4294901760
    %6906 = vmatmul.mubr.f32.gmra.mrb[0].mxu0 %v6905
    %v6907 = vpop.f32.mrb[0].mxu0
    %v6908 = vadd.f32 %v6781, %v6907
    %v6909 = vpop.f32.mrb[0].mxu0
    %6910 = vmatprep.mubr.f32.mxu0 0.0
    %v6911 = vand.u32 %v55, 4294901760
    %6912 = vmatmul.mubr.f32.gmra.mrb[0].mxu0 %v6911
    %v6913 = vpop.f32.mrb[0].mxu0
    %v6914 = vadd.f32 %v6789, %v6913
    %v6915 = vpop.f32.mrb[0].mxu0
    %6916 = vmatprep.mubr.f32.mxu0 0.0
    %v6917 = vand.u32 %v58, 4294901760
    %6918 = vmatmul.mubr.f32.gmra.mrb[0].mxu0 %v6917
    %v6919 = vpop.f32.mrb[0].mxu0
    %v6920 = vadd.f32 %v6797, %v6919
    %v6921 = vpop.f32.mrb[0].mxu0
    %6922 = vmatprep.mubr.f32.mxu0 0.0
    %v6923 = vand.u32 %v61, 4294901760
    %6924 = vmatmul.mubr.f32.gmra.mrb[0].mxu0 %v6923
    %v6925 = vpop.f32.mrb[0].mxu0
    %v6926 = vadd.f32 %v6805, %v6925
    %v6927 = vpop.f32.mrb[0].mxu0
    %6928 = vmatprep.mubr.f32.mxu0 0.0
    %v6929 = vand.u32 %v64, 4294901760
    %6930 = vmatmul.mubr.f32.gmra.mrb[0].mxu0 %v6929
    %v6931 = vpop.f32.mrb[0].mxu0
    %v6932 = vadd.f32 %v6813, %v6931
    %v6933 = vpop.f32.mrb[0].mxu0
    %6934 = vdwg.mxu0
    %6935 = vmatprep.subr.mxu0 0.0
    %v6936 = vand.u32 %v6288, 4294901760
    %6937 = vmatpush1.msra.mxu0 %v6936
    %6938 = vmatprep.subr.mxu0 0.0
    %v6939 = vand.u32 %v6289, 4294901760
    %6940 = vmatpush1.msra.mxu0 %v6939
    %6941 = vmatprep.subr.mxu0 0.0
    %6942 = vmatpush1.msra.mxu0 0.0
    %6943 = vmatprep.subr.mxu0 0.0
    %6944 = vmatpush1.msra.mxu0 0.0
    %6945 = vmatprep.subr.mxu0 0.0
    %6946 = vmatpush1.msra.mxu0 0.0
    %6947 = vmatprep.subr.mxu0 0.0
    %6948 = vmatpush1.msra.mxu0 0.0
    %6949 = vmatprep.subr.mxu0 0.0
    %6950 = vmatpush1.msra.mxu0 0.0
    %6951 = vmatprep.subr.mxu0 0.0
    %6952 = vmatpush1.msra.mxu0 0.0
    %6953 = vmatprep.subr.mxu0 0.0
    %6954 = vmatpush1.msra.mxu0 0.0
    %6955 = vmatprep.subr.mxu0 0.0
    %6956 = vmatpush1.msra.mxu0 0.0
    %6957 = vmatprep.subr.mxu0 0.0
    %6958 = vmatpush1.msra.mxu0 0.0
    %6959 = vmatprep.subr.mxu0 0.0
    %6960 = vmatpush1.msra.mxu0 0.0
    %6961 = vmatprep.subr.mxu0 0.0
    %6962 = vmatpush1.msra.mxu0 0.0
    %6963 = vmatprep.subr.mxu0 0.0
    %6964 = vmatpush1.msra.mxu0 0.0
    %6965 = vmatprep.subr.mxu0 0.0
    %6966 = vmatpush1.msra.mxu0 0.0
    %6967 = vmatprep.subr.mxu0 0.0
    %6968 = vmatpush1.msra.mxu0 0.0
    %6969 = vmatprep.subr.mxu0 0.0
    %6970 = vmatpush1.msra.mxu0 0.0
    %6971 = vmatprep.subr.mxu0 0.0
    %6972 = vmatpush1.msra.mxu0 0.0
    %6973 = vmatprep.subr.mxu0 0.0
    %6974 = vmatpush1.msra.mxu0 0.0
    %6975 = vmatprep.subr.mxu0 0.0
    %6976 = vmatpush1.msra.mxu0 0.0
    %6977 = vmatprep.subr.mxu0 0.0
    %6978 = vmatpush1.msra.mxu0 0.0
    %6979 = vmatprep.subr.mxu0 0.0
    %6980 = vmatpush1.msra.mxu0 0.0
    %6981 = vmatprep.subr.mxu0 0.0
    %6982 = vmatpush1.msra.mxu0 0.0
    %6983 = vmatprep.subr.mxu0 0.0
    %6984 = vmatpush1.msra.mxu0 0.0
    %6985 = vmatprep.subr.mxu0 0.0
    %6986 = vmatpush1.msra.mxu0 0.0
    %6987 = vmatprep.subr.mxu0 0.0
    %6988 = vmatpush1.msra.mxu0 0.0
    %6989 = vmatprep.subr.mxu0 0.0
    %6990 = vmatpush1.msra.mxu0 0.0
    %6991 = vmatprep.subr.mxu0 0.0
    %6992 = vmatpush1.msra.mxu0 0.0
    %6993 = vmatprep.subr.mxu0 0.0
    %6994 = vmatpush1.msra.mxu0 0.0
    %6995 = vmatprep.subr.mxu0 0.0
    %6996 = vmatpush1.msra.mxu0 0.0
    %6997 = vmatprep.subr.mxu0 0.0
    %6998 = vmatpush1.msra.mxu0 0.0
    %6999 = vmatprep.subr.mxu0 0.0
    %7000 = vmatpush1.msra.mxu0 0.0
    %7001 = vmatprep.mubr.f32.mxu0 0.0
    %v7002 = vand.u32 %v43, 4294901760
    %7003 = vmatmul.mubr.f32.gmra.mrb[0].mxu0 %v7002
    %v7004 = vpop.f32.mrb[0].mxu0
    %v7005 = vadd.f32 %v6890, %v7004
    %v7006 = vpop.f32.mrb[0].mxu0
    %7007 = vmatprep.mubr.f32.mxu0 0.0
    %v7008 = vand.u32 %v46, 4294901760
    %7009 = vmatmul.mubr.f32.gmra.mrb[0].mxu0 %v7008
    %v7010 = vpop.f32.mrb[0].mxu0
    %v7011 = vadd.f32 %v6896, %v7010
    %v7012 = vpop.f32.mrb[0].mxu0
    %7013 = vmatprep.mubr.f32.mxu0 0.0
    %v7014 = vand.u32 %v49, 4294901760
    %7015 = vmatmul.mubr.f32.gmra.mrb[0].mxu0 %v7014
    %v7016 = vpop.f32.mrb[0].mxu0
    %v7017 = vadd.f32 %v6902, %v7016
    %v7018 = vpop.f32.mrb[0].mxu0
    %7019 = vmatprep.mubr.f32.mxu0 0.0
    %v7020 = vand.u32 %v52, 4294901760
    %7021 = vmatmul.mubr.f32.gmra.mrb[0].mxu0 %v7020
    %v7022 = vpop.f32.mrb[0].mxu0
    %v7023 = vadd.f32 %v6908, %v7022
    %v7024 = vpop.f32.mrb[0].mxu0
    %7025 = vmatprep.mubr.f32.mxu0 0.0
    %v7026 = vand.u32 %v55, 4294901760
    %7027 = vmatmul.mubr.f32.gmra.mrb[0].mxu0 %v7026
    %v7028 = vpop.f32.mrb[0].mxu0
    %v7029 = vadd.f32 %v6914, %v7028
    %v7030 = vpop.f32.mrb[0].mxu0
    %7031 = vmatprep.mubr.f32.mxu0 0.0
    %v7032 = vand.u32 %v58, 4294901760
    %7033 = vmatmul.mubr.f32.gmra.mrb[0].mxu0 %v7032
    %v7034 = vpop.f32.mrb[0].mxu0
    %v7035 = vadd.f32 %v6920, %v7034
    %v7036 = vpop.f32.mrb[0].mxu0
    %7037 = vmatprep.mubr.f32.mxu0 0.0
    %v7038 = vand.u32 %v61, 4294901760
    %7039 = vmatmul.mubr.f32.gmra.mrb[0].mxu0 %v7038
    %v7040 = vpop.f32.mrb[0].mxu0
    %v7041 = vadd.f32 %v6926, %v7040
    %v7042 = vpop.f32.mrb[0].mxu0
    %7043 = vmatprep.mubr.f32.mxu0 0.0
    %v7044 = vand.u32 %v64, 4294901760
    %7045 = vmatmul.mubr.f32.gmra.mrb[0].mxu0 %v7044
    %v7046 = vpop.f32.mrb[0].mxu0
    %v7047 = vadd.f32 %v6932, %v7046
    %v7048 = vpop.f32.mrb[0].mxu0
    %7049 = vdwg.mxu0
    %v7051 = vsel %vm41, %v7005, 0
    %v7054 = vsel %vm41, %v7011, 0
    %v7057 = vsel %vm41, %v7017, 0
    %v7060 = vsel %vm41, %v7023, 0
    %v7063 = vsel %vm41, %v7029, 0
    %v7066 = vsel %vm41, %v7035, 0
    %v7069 = vsel %vm41, %v7041, 0
    %v7072 = vsel %vm41, %v7047, 0
    %7074 = vmatprep.subr.mxu0 0.0
    %v7075 = vand.u32 %v37, 4294901760
    %7076 = vmatpush1.msra.mxu0 %v7075
    %7077 = vmatprep.subr.mxu0 0.0
    %v7078 = vand.u32 %v38, 4294901760
    %7079 = vmatpush1.msra.mxu0 %v7078
    %7080 = vmatprep.subr.mxu0 0.0
    %7081 = vmatpush1.msra.mxu0 0.0
    %7082 = vmatprep.subr.mxu0 0.0
    %7083 = vmatpush1.msra.mxu0 0.0
    %7084 = vmatprep.subr.mxu0 0.0
    %7085 = vmatpush1.msra.mxu0 0.0
    %7086 = vmatprep.subr.mxu0 0.0
    %7087 = vmatpush1.msra.mxu0 0.0
    %7088 = vmatprep.subr.mxu0 0.0
    %7089 = vmatpush1.msra.mxu0 0.0
    %7090 = vmatprep.subr.mxu0 0.0
    %7091 = vmatpush1.msra.mxu0 0.0
    %7092 = vmatprep.subr.mxu0 0.0
    %7093 = vmatpush1.msra.mxu0 0.0
    %7094 = vmatprep.subr.mxu0 0.0
    %7095 = vmatpush1.msra.mxu0 0.0
    %7096 = vmatprep.subr.mxu0 0.0
    %7097 = vmatpush1.msra.mxu0 0.0
    %7098 = vmatprep.subr.mxu0 0.0
    %7099 = vmatpush1.msra.mxu0 0.0
    %7100 = vmatprep.subr.mxu0 0.0
    %7101 = vmatpush1.msra.mxu0 0.0
    %7102 = vmatprep.subr.mxu0 0.0
    %7103 = vmatpush1.msra.mxu0 0.0
    %7104 = vmatprep.subr.mxu0 0.0
    %7105 = vmatpush1.msra.mxu0 0.0
    %7106 = vmatprep.subr.mxu0 0.0
    %7107 = vmatpush1.msra.mxu0 0.0
    %7108 = vmatprep.subr.mxu0 0.0
    %7109 = vmatpush1.msra.mxu0 0.0
    %7110 = vmatprep.subr.mxu0 0.0
    %7111 = vmatpush1.msra.mxu0 0.0
    %7112 = vmatprep.subr.mxu0 0.0
    %7113 = vmatpush1.msra.mxu0 0.0
    %7114 = vmatprep.subr.mxu0 0.0
    %7115 = vmatpush1.msra.mxu0 0.0
    %7116 = vmatprep.subr.mxu0 0.0
    %7117 = vmatpush1.msra.mxu0 0.0
    %7118 = vmatprep.subr.mxu0 0.0
    %7119 = vmatpush1.msra.mxu0 0.0
    %7120 = vmatprep.subr.mxu0 0.0
    %7121 = vmatpush1.msra.mxu0 0.0
    %7122 = vmatprep.subr.mxu0 0.0
    %7123 = vmatpush1.msra.mxu0 0.0
    %7124 = vmatprep.subr.mxu0 0.0
    %7125 = vmatpush1.msra.mxu0 0.0
    %7126 = vmatprep.subr.mxu0 0.0
    %7127 = vmatpush1.msra.mxu0 0.0
    %7128 = vmatprep.subr.mxu0 0.0
    %7129 = vmatpush1.msra.mxu0 0.0
    %7130 = vmatprep.subr.mxu0 0.0
    %7131 = vmatpush1.msra.mxu0 0.0
    %7132 = vmatprep.subr.mxu0 0.0
    %7133 = vmatpush1.msra.mxu0 0.0
    %7134 = vmatprep.subr.mxu0 0.0
    %7135 = vmatpush1.msra.mxu0 0.0
    %7136 = vmatprep.subr.mxu0 0.0
    %7137 = vmatpush1.msra.mxu0 0.0
    %7138 = vmatprep.subr.mxu0 0.0
    %7139 = vmatpush1.msra.mxu0 0.0
    %7140 = vmatprep.mubr.f32.mxu0 0.0
    %v7141 = vand.u32 %v7051, 4294901760
    %v7142 = vsub.f32 %v7051, %v7141
    %v7143 = vand.u32 %v7142, 4294901760
    %v7144 = vsub.f32 %v7142, %v7143
    %v7145 = vand.u32 %v7144, 4294901760
    %7146 = vmatmul.mubr.f32.gmra.mrb[0].mxu0 %v7145
    %v7147 = vpop.f32.mrb[0].mxu0
    %v7148 = vadd.f32 0.0, %v7147
    %v7149 = vpop.f32.mrb[0].mxu0
    %7150 = vmatprep.mubr.f32.mxu0 0.0
    %v7151 = vand.u32 %v7054, 4294901760
    %v7152 = vsub.f32 %v7054, %v7151
    %v7153 = vand.u32 %v7152, 4294901760
    %v7154 = vsub.f32 %v7152, %v7153
    %v7155 = vand.u32 %v7154, 4294901760
    %7156 = vmatmul.mubr.f32.gmra.mrb[0].mxu0 %v7155
    %v7157 = vpop.f32.mrb[0].mxu0
    %v7158 = vadd.f32 0.0, %v7157
    %v7159 = vpop.f32.mrb[0].mxu0
    %7160 = vmatprep.mubr.f32.mxu0 0.0
    %v7161 = vand.u32 %v7057, 4294901760
    %v7162 = vsub.f32 %v7057, %v7161
    %v7163 = vand.u32 %v7162, 4294901760
    %v7164 = vsub.f32 %v7162, %v7163
    %v7165 = vand.u32 %v7164, 4294901760
    %7166 = vmatmul.mubr.f32.gmra.mrb[0].mxu0 %v7165
    %v7167 = vpop.f32.mrb[0].mxu0
    %v7168 = vadd.f32 0.0, %v7167
    %v7169 = vpop.f32.mrb[0].mxu0
    %7170 = vmatprep.mubr.f32.mxu0 0.0
    %v7171 = vand.u32 %v7060, 4294901760
    %v7172 = vsub.f32 %v7060, %v7171
    %v7173 = vand.u32 %v7172, 4294901760
    %v7174 = vsub.f32 %v7172, %v7173
    %v7175 = vand.u32 %v7174, 4294901760
    %7176 = vmatmul.mubr.f32.gmra.mrb[0].mxu0 %v7175
    %v7177 = vpop.f32.mrb[0].mxu0
    %v7178 = vadd.f32 0.0, %v7177
    %v7179 = vpop.f32.mrb[0].mxu0
    %7180 = vmatprep.mubr.f32.mxu0 0.0
    %v7181 = vand.u32 %v7063, 4294901760
    %v7182 = vsub.f32 %v7063, %v7181
    %v7183 = vand.u32 %v7182, 4294901760
    %v7184 = vsub.f32 %v7182, %v7183
    %v7185 = vand.u32 %v7184, 4294901760
    %7186 = vmatmul.mubr.f32.gmra.mrb[0].mxu0 %v7185
    %v7187 = vpop.f32.mrb[0].mxu0
    %v7188 = vadd.f32 0.0, %v7187
    %v7189 = vpop.f32.mrb[0].mxu0
    %7190 = vmatprep.mubr.f32.mxu0 0.0
    %v7191 = vand.u32 %v7066, 4294901760
    %v7192 = vsub.f32 %v7066, %v7191
    %v7193 = vand.u32 %v7192, 4294901760
    %v7194 = vsub.f32 %v7192, %v7193
    %v7195 = vand.u32 %v7194, 4294901760
    %7196 = vmatmul.mubr.f32.gmra.mrb[0].mxu0 %v7195
    %v7197 = vpop.f32.mrb[0].mxu0
    %v7198 = vadd.f32 0.0, %v7197
    %v7199 = vpop.f32.mrb[0].mxu0
    %7200 = vmatprep.mubr.f32.mxu0 0.0
    %v7201 = vand.u32 %v7069, 4294901760
    %v7202 = vsub.f32 %v7069, %v7201
    %v7203 = vand.u32 %v7202, 4294901760
    %v7204 = vsub.f32 %v7202, %v7203
    %v7205 = vand.u32 %v7204, 4294901760
    %7206 = vmatmul.mubr.f32.gmra.mrb[0].mxu0 %v7205
    %v7207 = vpop.f32.mrb[0].mxu0
    %v7208 = vadd.f32 0.0, %v7207
    %v7209 = vpop.f32.mrb[0].mxu0
    %7210 = vmatprep.mubr.f32.mxu0 0.0
    %v7211 = vand.u32 %v7072, 4294901760
    %v7212 = vsub.f32 %v7072, %v7211
    %v7213 = vand.u32 %v7212, 4294901760
    %v7214 = vsub.f32 %v7212, %v7213
    %v7215 = vand.u32 %v7214, 4294901760
    %7216 = vmatmul.mubr.f32.gmra.mrb[0].mxu0 %v7215
    %v7217 = vpop.f32.mrb[0].mxu0
    %v7218 = vadd.f32 0.0, %v7217
    %v7219 = vpop.f32.mrb[0].mxu0
    %7220 = vdwg.mxu0
    %7221 = vmatprep.subr.mxu0 0.0
    %v7222 = vand.u32 %v37, 4294901760
    %v7223 = vsub.f32 %v37, %v7222
    %v7224 = vand.u32 %v7223, 4294901760
    %v7225 = vsub.f32 %v7223, %v7224
    %v7226 = vand.u32 %v7225, 4294901760
    %7227 = vmatpush1.msra.mxu0 %v7226
    %7228 = vmatprep.subr.mxu0 0.0
    %v7229 = vand.u32 %v38, 4294901760
    %v7230 = vsub.f32 %v38, %v7229
    %v7231 = vand.u32 %v7230, 4294901760
    %v7232 = vsub.f32 %v7230, %v7231
    %v7233 = vand.u32 %v7232, 4294901760
    %7234 = vmatpush1.msra.mxu0 %v7233
    %7235 = vmatprep.subr.mxu0 0.0
    %7236 = vmatpush1.msra.mxu0 0.0
    %7237 = vmatprep.subr.mxu0 0.0
    %7238 = vmatpush1.msra.mxu0 0.0
    %7239 = vmatprep.subr.mxu0 0.0
    %7240 = vmatpush1.msra.mxu0 0.0
    %7241 = vmatprep.subr.mxu0 0.0
    %7242 = vmatpush1.msra.mxu0 0.0
    %7243 = vmatprep.subr.mxu0 0.0
    %7244 = vmatpush1.msra.mxu0 0.0
    %7245 = vmatprep.subr.mxu0 0.0
    %7246 = vmatpush1.msra.mxu0 0.0
    %7247 = vmatprep.subr.mxu0 0.0
    %7248 = vmatpush1.msra.mxu0 0.0
    %7249 = vmatprep.subr.mxu0 0.0
    %7250 = vmatpush1.msra.mxu0 0.0
    %7251 = vmatprep.subr.mxu0 0.0
    %7252 = vmatpush1.msra.mxu0 0.0
    %7253 = vmatprep.subr.mxu0 0.0
    %7254 = vmatpush1.msra.mxu0 0.0
    %7255 = vmatprep.subr.mxu0 0.0
    %7256 = vmatpush1.msra.mxu0 0.0
    %7257 = vmatprep.subr.mxu0 0.0
    %7258 = vmatpush1.msra.mxu0 0.0
    %7259 = vmatprep.subr.mxu0 0.0
    %7260 = vmatpush1.msra.mxu0 0.0
    %7261 = vmatprep.subr.mxu0 0.0
    %7262 = vmatpush1.msra.mxu0 0.0
    %7263 = vmatprep.subr.mxu0 0.0
    %7264 = vmatpush1.msra.mxu0 0.0
    %7265 = vmatprep.subr.mxu0 0.0
    %7266 = vmatpush1.msra.mxu0 0.0
    %7267 = vmatprep.subr.mxu0 0.0
    %7268 = vmatpush1.msra.mxu0 0.0
    %7269 = vmatprep.subr.mxu0 0.0
    %7270 = vmatpush1.msra.mxu0 0.0
    %7271 = vmatprep.subr.mxu0 0.0
    %7272 = vmatpush1.msra.mxu0 0.0
    %7273 = vmatprep.subr.mxu0 0.0
    %7274 = vmatpush1.msra.mxu0 0.0
    %7275 = vmatprep.subr.mxu0 0.0
    %7276 = vmatpush1.msra.mxu0 0.0
    %7277 = vmatprep.subr.mxu0 0.0
    %7278 = vmatpush1.msra.mxu0 0.0
    %7279 = vmatprep.subr.mxu0 0.0
    %7280 = vmatpush1.msra.mxu0 0.0
    %7281 = vmatprep.subr.mxu0 0.0
    %7282 = vmatpush1.msra.mxu0 0.0
    %7283 = vmatprep.subr.mxu0 0.0
    %7284 = vmatpush1.msra.mxu0 0.0
    %7285 = vmatprep.subr.mxu0 0.0
    %7286 = vmatpush1.msra.mxu0 0.0
    %7287 = vmatprep.subr.mxu0 0.0
    %7288 = vmatpush1.msra.mxu0 0.0
    %7289 = vmatprep.subr.mxu0 0.0
    %7290 = vmatpush1.msra.mxu0 0.0
    %7291 = vmatprep.subr.mxu0 0.0
    %7292 = vmatpush1.msra.mxu0 0.0
    %7293 = vmatprep.subr.mxu0 0.0
    %7294 = vmatpush1.msra.mxu0 0.0
    %7295 = vmatprep.mubr.f32.mxu0 0.0
    %v7296 = vand.u32 %v7051, 4294901760
    %7297 = vmatmul.mubr.f32.gmra.mrb[0].mxu0 %v7296
    %v7298 = vpop.f32.mrb[0].mxu0
    %v7299 = vadd.f32 %v7148, %v7298
    %v7300 = vpop.f32.mrb[0].mxu0
    %7301 = vmatprep.mubr.f32.mxu0 0.0
    %v7302 = vand.u32 %v7054, 4294901760
    %7303 = vmatmul.mubr.f32.gmra.mrb[0].mxu0 %v7302
    %v7304 = vpop.f32.mrb[0].mxu0
    %v7305 = vadd.f32 %v7158, %v7304
    %v7306 = vpop.f32.mrb[0].mxu0
    %7307 = vmatprep.mubr.f32.mxu0 0.0
    %v7308 = vand.u32 %v7057, 4294901760
    %7309 = vmatmul.mubr.f32.gmra.mrb[0].mxu0 %v7308
    %v7310 = vpop.f32.mrb[0].mxu0
    %v7311 = vadd.f32 %v7168, %v7310
    %v7312 = vpop.f32.mrb[0].mxu0
    %7313 = vmatprep.mubr.f32.mxu0 0.0
    %v7314 = vand.u32 %v7060, 4294901760
    %7315 = vmatmul.mubr.f32.gmra.mrb[0].mxu0 %v7314
    %v7316 = vpop.f32.mrb[0].mxu0
    %v7317 = vadd.f32 %v7178, %v7316
    %v7318 = vpop.f32.mrb[0].mxu0
    %7319 = vmatprep.mubr.f32.mxu0 0.0
    %v7320 = vand.u32 %v7063, 4294901760
    %7321 = vmatmul.mubr.f32.gmra.mrb[0].mxu0 %v7320
    %v7322 = vpop.f32.mrb[0].mxu0
    %v7323 = vadd.f32 %v7188, %v7322
    %v7324 = vpop.f32.mrb[0].mxu0
    %7325 = vmatprep.mubr.f32.mxu0 0.0
    %v7326 = vand.u32 %v7066, 4294901760
    %7327 = vmatmul.mubr.f32.gmra.mrb[0].mxu0 %v7326
    %v7328 = vpop.f32.mrb[0].mxu0
    %v7329 = vadd.f32 %v7198, %v7328
    %v7330 = vpop.f32.mrb[0].mxu0
    %7331 = vmatprep.mubr.f32.mxu0 0.0
    %v7332 = vand.u32 %v7069, 4294901760
    %7333 = vmatmul.mubr.f32.gmra.mrb[0].mxu0 %v7332
    %v7334 = vpop.f32.mrb[0].mxu0
    %v7335 = vadd.f32 %v7208, %v7334
    %v7336 = vpop.f32.mrb[0].mxu0
    %7337 = vmatprep.mubr.f32.mxu0 0.0
    %v7338 = vand.u32 %v7072, 4294901760
    %7339 = vmatmul.mubr.f32.gmra.mrb[0].mxu0 %v7338
    %v7340 = vpop.f32.mrb[0].mxu0
    %v7341 = vadd.f32 %v7218, %v7340
    %v7342 = vpop.f32.mrb[0].mxu0
    %7343 = vdwg.mxu0
    %7344 = vmatprep.subr.mxu0 0.0
    %v7345 = vand.u32 %v37, 4294901760
    %v7346 = vsub.f32 %v37, %v7345
    %7347 = vmatpush1.msra.mxu0 %v7346
    %7348 = vmatprep.subr.mxu0 0.0
    %v7349 = vand.u32 %v38, 4294901760
    %v7350 = vsub.f32 %v38, %v7349
    %7351 = vmatpush1.msra.mxu0 %v7350
    %7352 = vmatprep.subr.mxu0 0.0
    %7353 = vmatpush1.msra.mxu0 0.0
    %7354 = vmatprep.subr.mxu0 0.0
    %7355 = vmatpush1.msra.mxu0 0.0
    %7356 = vmatprep.subr.mxu0 0.0
    %7357 = vmatpush1.msra.mxu0 0.0
    %7358 = vmatprep.subr.mxu0 0.0
    %7359 = vmatpush1.msra.mxu0 0.0
    %7360 = vmatprep.subr.mxu0 0.0
    %7361 = vmatpush1.msra.mxu0 0.0
    %7362 = vmatprep.subr.mxu0 0.0
    %7363 = vmatpush1.msra.mxu0 0.0
    %7364 = vmatprep.subr.mxu0 0.0
    %7365 = vmatpush1.msra.mxu0 0.0
    %7366 = vmatprep.subr.mxu0 0.0
    %7367 = vmatpush1.msra.mxu0 0.0
    %7368 = vmatprep.subr.mxu0 0.0
    %7369 = vmatpush1.msra.mxu0 0.0
    %7370 = vmatprep.subr.mxu0 0.0
    %7371 = vmatpush1.msra.mxu0 0.0
    %7372 = vmatprep.subr.mxu0 0.0
    %7373 = vmatpush1.msra.mxu0 0.0
    %7374 = vmatprep.subr.mxu0 0.0
    %7375 = vmatpush1.msra.mxu0 0.0
    %7376 = vmatprep.subr.mxu0 0.0
    %7377 = vmatpush1.msra.mxu0 0.0
    %7378 = vmatprep.subr.mxu0 0.0
    %7379 = vmatpush1.msra.mxu0 0.0
    %7380 = vmatprep.subr.mxu0 0.0
    %7381 = vmatpush1.msra.mxu0 0.0
    %7382 = vmatprep.subr.mxu0 0.0
    %7383 = vmatpush1.msra.mxu0 0.0
    %7384 = vmatprep.subr.mxu0 0.0
    %7385 = vmatpush1.msra.mxu0 0.0
    %7386 = vmatprep.subr.mxu0 0.0
    %7387 = vmatpush1.msra.mxu0 0.0
    %7388 = vmatprep.subr.mxu0 0.0
    %7389 = vmatpush1.msra.mxu0 0.0
    %7390 = vmatprep.subr.mxu0 0.0
    %7391 = vmatpush1.msra.mxu0 0.0
    %7392 = vmatprep.subr.mxu0 0.0
    %7393 = vmatpush1.msra.mxu0 0.0
    %7394 = vmatprep.subr.mxu0 0.0
    %7395 = vmatpush1.msra.mxu0 0.0
    %7396 = vmatprep.subr.mxu0 0.0
    %7397 = vmatpush1.msra.mxu0 0.0
    %7398 = vmatprep.subr.mxu0 0.0
    %7399 = vmatpush1.msra.mxu0 0.0
    %7400 = vmatprep.subr.mxu0 0.0
    %7401 = vmatpush1.msra.mxu0 0.0
    %7402 = vmatprep.subr.mxu0 0.0
    %7403 = vmatpush1.msra.mxu0 0.0
    %7404 = vmatprep.subr.mxu0 0.0
    %7405 = vmatpush1.msra.mxu0 0.0
    %7406 = vmatprep.subr.mxu0 0.0
    %7407 = vmatpush1.msra.mxu0 0.0
    %7408 = vmatprep.subr.mxu0 0.0
    %7409 = vmatpush1.msra.mxu0 0.0
    %7410 = vmatprep.subr.mxu0 0.0
    %7411 = vmatpush1.msra.mxu0 0.0
    %7412 = vmatprep.mubr.f32.mxu0 0.0
    %v7413 = vand.u32 %v7051, 4294901760
    %v7414 = vsub.f32 %v7051, %v7413
    %7415 = vmatmul.mubr.f32.gmra.mrb[0].mxu0 %v7414
    %v7416 = vpop.f32.mrb[0].mxu0
    %v7417 = vadd.f32 %v7299, %v7416
    %v7418 = vpop.f32.mrb[0].mxu0
    %7419 = vmatprep.mubr.f32.mxu0 0.0
    %v7420 = vand.u32 %v7054, 4294901760
    %v7421 = vsub.f32 %v7054, %v7420
    %7422 = vmatmul.mubr.f32.gmra.mrb[0].mxu0 %v7421
    %v7423 = vpop.f32.mrb[0].mxu0
    %v7424 = vadd.f32 %v7305, %v7423
    %v7425 = vpop.f32.mrb[0].mxu0
    %7426 = vmatprep.mubr.f32.mxu0 0.0
    %v7427 = vand.u32 %v7057, 4294901760
    %v7428 = vsub.f32 %v7057, %v7427
    %7429 = vmatmul.mubr.f32.gmra.mrb[0].mxu0 %v7428
    %v7430 = vpop.f32.mrb[0].mxu0
    %v7431 = vadd.f32 %v7311, %v7430
    %v7432 = vpop.f32.mrb[0].mxu0
    %7433 = vmatprep.mubr.f32.mxu0 0.0
    %v7434 = vand.u32 %v7060, 4294901760
    %v7435 = vsub.f32 %v7060, %v7434
    %7436 = vmatmul.mubr.f32.gmra.mrb[0].mxu0 %v7435
    %v7437 = vpop.f32.mrb[0].mxu0
    %v7438 = vadd.f32 %v7317, %v7437
    %v7439 = vpop.f32.mrb[0].mxu0
    %7440 = vmatprep.mubr.f32.mxu0 0.0
    %v7441 = vand.u32 %v7063, 4294901760
    %v7442 = vsub.f32 %v7063, %v7441
    %7443 = vmatmul.mubr.f32.gmra.mrb[0].mxu0 %v7442
    %v7444 = vpop.f32.mrb[0].mxu0
    %v7445 = vadd.f32 %v7323, %v7444
    %v7446 = vpop.f32.mrb[0].mxu0
    %7447 = vmatprep.mubr.f32.mxu0 0.0
    %v7448 = vand.u32 %v7066, 4294901760
    %v7449 = vsub.f32 %v7066, %v7448
    %7450 = vmatmul.mubr.f32.gmra.mrb[0].mxu0 %v7449
    %v7451 = vpop.f32.mrb[0].mxu0
    %v7452 = vadd.f32 %v7329, %v7451
    %v7453 = vpop.f32.mrb[0].mxu0
    %7454 = vmatprep.mubr.f32.mxu0 0.0
    %v7455 = vand.u32 %v7069, 4294901760
    %v7456 = vsub.f32 %v7069, %v7455
    %7457 = vmatmul.mubr.f32.gmra.mrb[0].mxu0 %v7456
    %v7458 = vpop.f32.mrb[0].mxu0
    %v7459 = vadd.f32 %v7335, %v7458
    %v7460 = vpop.f32.mrb[0].mxu0
    %7461 = vmatprep.mubr.f32.mxu0 0.0
    %v7462 = vand.u32 %v7072, 4294901760
    %v7463 = vsub.f32 %v7072, %v7462
    %7464 = vmatmul.mubr.f32.gmra.mrb[0].mxu0 %v7463
    %v7465 = vpop.f32.mrb[0].mxu0
    %v7466 = vadd.f32 %v7341, %v7465
    %v7467 = vpop.f32.mrb[0].mxu0
    %7468 = vdwg.mxu0
    %7469 = vmatprep.subr.mxu0 0.0
    %v7470 = vand.u32 %v37, 4294901760
    %7471 = vmatpush1.msra.mxu0 %v7470
    %7472 = vmatprep.subr.mxu0 0.0
    %v7473 = vand.u32 %v38, 4294901760
    %7474 = vmatpush1.msra.mxu0 %v7473
    %7475 = vmatprep.subr.mxu0 0.0
    %7476 = vmatpush1.msra.mxu0 0.0
    %7477 = vmatprep.subr.mxu0 0.0
    %7478 = vmatpush1.msra.mxu0 0.0
    %7479 = vmatprep.subr.mxu0 0.0
    %7480 = vmatpush1.msra.mxu0 0.0
    %7481 = vmatprep.subr.mxu0 0.0
    %7482 = vmatpush1.msra.mxu0 0.0
    %7483 = vmatprep.subr.mxu0 0.0
    %7484 = vmatpush1.msra.mxu0 0.0
    %7485 = vmatprep.subr.mxu0 0.0
    %7486 = vmatpush1.msra.mxu0 0.0
    %7487 = vmatprep.subr.mxu0 0.0
    %7488 = vmatpush1.msra.mxu0 0.0
    %7489 = vmatprep.subr.mxu0 0.0
    %7490 = vmatpush1.msra.mxu0 0.0
    %7491 = vmatprep.subr.mxu0 0.0
    %7492 = vmatpush1.msra.mxu0 0.0
    %7493 = vmatprep.subr.mxu0 0.0
    %7494 = vmatpush1.msra.mxu0 0.0
    %7495 = vmatprep.subr.mxu0 0.0
    %7496 = vmatpush1.msra.mxu0 0.0
    %7497 = vmatprep.subr.mxu0 0.0
    %7498 = vmatpush1.msra.mxu0 0.0
    %7499 = vmatprep.subr.mxu0 0.0
    %7500 = vmatpush1.msra.mxu0 0.0
    %7501 = vmatprep.subr.mxu0 0.0
    %7502 = vmatpush1.msra.mxu0 0.0
    %7503 = vmatprep.subr.mxu0 0.0
    %7504 = vmatpush1.msra.mxu0 0.0
    %7505 = vmatprep.subr.mxu0 0.0
    %7506 = vmatpush1.msra.mxu0 0.0
    %7507 = vmatprep.subr.mxu0 0.0
    %7508 = vmatpush1.msra.mxu0 0.0
    %7509 = vmatprep.subr.mxu0 0.0
    %7510 = vmatpush1.msra.mxu0 0.0
    %7511 = vmatprep.subr.mxu0 0.0
    %7512 = vmatpush1.msra.mxu0 0.0
    %7513 = vmatprep.subr.mxu0 0.0
    %7514 = vmatpush1.msra.mxu0 0.0
    %7515 = vmatprep.subr.mxu0 0.0
    %7516 = vmatpush1.msra.mxu0 0.0
    %7517 = vmatprep.subr.mxu0 0.0
    %7518 = vmatpush1.msra.mxu0 0.0
    %7519 = vmatprep.subr.mxu0 0.0
    %7520 = vmatpush1.msra.mxu0 0.0
    %7521 = vmatprep.subr.mxu0 0.0
    %7522 = vmatpush1.msra.mxu0 0.0
    %7523 = vmatprep.subr.mxu0 0.0
    %7524 = vmatpush1.msra.mxu0 0.0
    %7525 = vmatprep.subr.mxu0 0.0
    %7526 = vmatpush1.msra.mxu0 0.0
    %7527 = vmatprep.subr.mxu0 0.0
    %7528 = vmatpush1.msra.mxu0 0.0
    %7529 = vmatprep.subr.mxu0 0.0
    %7530 = vmatpush1.msra.mxu0 0.0
    %7531 = vmatprep.subr.mxu0 0.0
    %7532 = vmatpush1.msra.mxu0 0.0
    %7533 = vmatprep.subr.mxu0 0.0
    %7534 = vmatpush1.msra.mxu0 0.0
    %7535 = vmatprep.mubr.f32.mxu0 0.0
    %v7536 = vand.u32 %v7051, 4294901760
    %v7537 = vsub.f32 %v7051, %v7536
    %v7538 = vand.u32 %v7537, 4294901760
    %7539 = vmatmul.mubr.f32.gmra.mrb[0].mxu0 %v7538
    %v7540 = vpop.f32.mrb[0].mxu0
    %v7541 = vadd.f32 %v7417, %v7540
    %v7542 = vpop.f32.mrb[0].mxu0
    %7543 = vmatprep.mubr.f32.mxu0 0.0
    %v7544 = vand.u32 %v7054, 4294901760
    %v7545 = vsub.f32 %v7054, %v7544
    %v7546 = vand.u32 %v7545, 4294901760
    %7547 = vmatmul.mubr.f32.gmra.mrb[0].mxu0 %v7546
    %v7548 = vpop.f32.mrb[0].mxu0
    %v7549 = vadd.f32 %v7424, %v7548
    %v7550 = vpop.f32.mrb[0].mxu0
    %7551 = vmatprep.mubr.f32.mxu0 0.0
    %v7552 = vand.u32 %v7057, 4294901760
    %v7553 = vsub.f32 %v7057, %v7552
    %v7554 = vand.u32 %v7553, 4294901760
    %7555 = vmatmul.mubr.f32.gmra.mrb[0].mxu0 %v7554
    %v7556 = vpop.f32.mrb[0].mxu0
    %v7557 = vadd.f32 %v7431, %v7556
    %v7558 = vpop.f32.mrb[0].mxu0
    %7559 = vmatprep.mubr.f32.mxu0 0.0
    %v7560 = vand.u32 %v7060, 4294901760
    %v7561 = vsub.f32 %v7060, %v7560
    %v7562 = vand.u32 %v7561, 4294901760
    %7563 = vmatmul.mubr.f32.gmra.mrb[0].mxu0 %v7562
    %v7564 = vpop.f32.mrb[0].mxu0
    %v7565 = vadd.f32 %v7438, %v7564
    %v7566 = vpop.f32.mrb[0].mxu0
    %7567 = vmatprep.mubr.f32.mxu0 0.0
    %v7568 = vand.u32 %v7063, 4294901760
    %v7569 = vsub.f32 %v7063, %v7568
    %v7570 = vand.u32 %v7569, 4294901760
    %7571 = vmatmul.mubr.f32.gmra.mrb[0].mxu0 %v7570
    %v7572 = vpop.f32.mrb[0].mxu0
    %v7573 = vadd.f32 %v7445, %v7572
    %v7574 = vpop.f32.mrb[0].mxu0
    %7575 = vmatprep.mubr.f32.mxu0 0.0
    %v7576 = vand.u32 %v7066, 4294901760
    %v7577 = vsub.f32 %v7066, %v7576
    %v7578 = vand.u32 %v7577, 4294901760
    %7579 = vmatmul.mubr.f32.gmra.mrb[0].mxu0 %v7578
    %v7580 = vpop.f32.mrb[0].mxu0
    %v7581 = vadd.f32 %v7452, %v7580
    %v7582 = vpop.f32.mrb[0].mxu0
    %7583 = vmatprep.mubr.f32.mxu0 0.0
    %v7584 = vand.u32 %v7069, 4294901760
    %v7585 = vsub.f32 %v7069, %v7584
    %v7586 = vand.u32 %v7585, 4294901760
    %7587 = vmatmul.mubr.f32.gmra.mrb[0].mxu0 %v7586
    %v7588 = vpop.f32.mrb[0].mxu0
    %v7589 = vadd.f32 %v7459, %v7588
    %v7590 = vpop.f32.mrb[0].mxu0
    %7591 = vmatprep.mubr.f32.mxu0 0.0
    %v7592 = vand.u32 %v7072, 4294901760
    %v7593 = vsub.f32 %v7072, %v7592
    %v7594 = vand.u32 %v7593, 4294901760
    %7595 = vmatmul.mubr.f32.gmra.mrb[0].mxu0 %v7594
    %v7596 = vpop.f32.mrb[0].mxu0
    %v7597 = vadd.f32 %v7466, %v7596
    %v7598 = vpop.f32.mrb[0].mxu0
    %7599 = vdwg.mxu0
    %7600 = vmatprep.subr.mxu0 0.0
    %v7601 = vand.u32 %v37, 4294901760
    %v7602 = vsub.f32 %v37, %v7601
    %v7603 = vand.u32 %v7602, 4294901760
    %7604 = vmatpush1.msra.mxu0 %v7603
    %7605 = vmatprep.subr.mxu0 0.0
    %v7606 = vand.u32 %v38, 4294901760
    %v7607 = vsub.f32 %v38, %v7606
    %v7608 = vand.u32 %v7607, 4294901760
    %7609 = vmatpush1.msra.mxu0 %v7608
    %7610 = vmatprep.subr.mxu0 0.0
    %7611 = vmatpush1.msra.mxu0 0.0
    %7612 = vmatprep.subr.mxu0 0.0
    %7613 = vmatpush1.msra.mxu0 0.0
    %7614 = vmatprep.subr.mxu0 0.0
    %7615 = vmatpush1.msra.mxu0 0.0
    %7616 = vmatprep.subr.mxu0 0.0
    %7617 = vmatpush1.msra.mxu0 0.0
    %7618 = vmatprep.subr.mxu0 0.0
    %7619 = vmatpush1.msra.mxu0 0.0
    %7620 = vmatprep.subr.mxu0 0.0
    %7621 = vmatpush1.msra.mxu0 0.0
    %7622 = vmatprep.subr.mxu0 0.0
    %7623 = vmatpush1.msra.mxu0 0.0
    %7624 = vmatprep.subr.mxu0 0.0
    %7625 = vmatpush1.msra.mxu0 0.0
    %7626 = vmatprep.subr.mxu0 0.0
    %7627 = vmatpush1.msra.mxu0 0.0
    %7628 = vmatprep.subr.mxu0 0.0
    %7629 = vmatpush1.msra.mxu0 0.0
    %7630 = vmatprep.subr.mxu0 0.0
    %7631 = vmatpush1.msra.mxu0 0.0
    %7632 = vmatprep.subr.mxu0 0.0
    %7633 = vmatpush1.msra.mxu0 0.0
    %7634 = vmatprep.subr.mxu0 0.0
    %7635 = vmatpush1.msra.mxu0 0.0
    %7636 = vmatprep.subr.mxu0 0.0
    %7637 = vmatpush1.msra.mxu0 0.0
    %7638 = vmatprep.subr.mxu0 0.0
    %7639 = vmatpush1.msra.mxu0 0.0
    %7640 = vmatprep.subr.mxu0 0.0
    %7641 = vmatpush1.msra.mxu0 0.0
    %7642 = vmatprep.subr.mxu0 0.0
    %7643 = vmatpush1.msra.mxu0 0.0
    %7644 = vmatprep.subr.mxu0 0.0
    %7645 = vmatpush1.msra.mxu0 0.0
    %7646 = vmatprep.subr.mxu0 0.0
    %7647 = vmatpush1.msra.mxu0 0.0
    %7648 = vmatprep.subr.mxu0 0.0
    %7649 = vmatpush1.msra.mxu0 0.0
    %7650 = vmatprep.subr.mxu0 0.0
    %7651 = vmatpush1.msra.mxu0 0.0
    %7652 = vmatprep.subr.mxu0 0.0
    %7653 = vmatpush1.msra.mxu0 0.0
    %7654 = vmatprep.subr.mxu0 0.0
    %7655 = vmatpush1.msra.mxu0 0.0
    %7656 = vmatprep.subr.mxu0 0.0
    %7657 = vmatpush1.msra.mxu0 0.0
    %7658 = vmatprep.subr.mxu0 0.0
    %7659 = vmatpush1.msra.mxu0 0.0
    %7660 = vmatprep.subr.mxu0 0.0
    %7661 = vmatpush1.msra.mxu0 0.0
    %7662 = vmatprep.subr.mxu0 0.0
    %7663 = vmatpush1.msra.mxu0 0.0
    %7664 = vmatprep.subr.mxu0 0.0
    %7665 = vmatpush1.msra.mxu0 0.0
    %7666 = vmatprep.subr.mxu0 0.0
    %7667 = vmatpush1.msra.mxu0 0.0
    %7668 = vmatprep.subr.mxu0 0.0
    %7669 = vmatpush1.msra.mxu0 0.0
    %7670 = vmatprep.mubr.f32.mxu0 0.0
    %v7671 = vand.u32 %v7051, 4294901760
    %7672 = vmatmul.mubr.f32.gmra.mrb[0].mxu0 %v7671
    %v7673 = vpop.f32.mrb[0].mxu0
    %v7674 = vadd.f32 %v7541, %v7673
    %v7675 = vpop.f32.mrb[0].mxu0
    %7676 = vmatprep.mubr.f32.mxu0 0.0
    %v7677 = vand.u32 %v7054, 4294901760
    %7678 = vmatmul.mubr.f32.gmra.mrb[0].mxu0 %v7677
    %v7679 = vpop.f32.mrb[0].mxu0
    %v7680 = vadd.f32 %v7549, %v7679
    %v7681 = vpop.f32.mrb[0].mxu0
    %7682 = vmatprep.mubr.f32.mxu0 0.0
    %v7683 = vand.u32 %v7057, 4294901760
    %7684 = vmatmul.mubr.f32.gmra.mrb[0].mxu0 %v7683
    %v7685 = vpop.f32.mrb[0].mxu0
    %v7686 = vadd.f32 %v7557, %v7685
    %v7687 = vpop.f32.mrb[0].mxu0
    %7688 = vmatprep.mubr.f32.mxu0 0.0
    %v7689 = vand.u32 %v7060, 4294901760
    %7690 = vmatmul.mubr.f32.gmra.mrb[0].mxu0 %v7689
    %v7691 = vpop.f32.mrb[0].mxu0
    %v7692 = vadd.f32 %v7565, %v7691
    %v7693 = vpop.f32.mrb[0].mxu0
    %7694 = vmatprep.mubr.f32.mxu0 0.0
    %v7695 = vand.u32 %v7063, 4294901760
    %7696 = vmatmul.mubr.f32.gmra.mrb[0].mxu0 %v7695
    %v7697 = vpop.f32.mrb[0].mxu0
    %v7698 = vadd.f32 %v7573, %v7697
    %v7699 = vpop.f32.mrb[0].mxu0
    %7700 = vmatprep.mubr.f32.mxu0 0.0
    %v7701 = vand.u32 %v7066, 4294901760
    %7702 = vmatmul.mubr.f32.gmra.mrb[0].mxu0 %v7701
    %v7703 = vpop.f32.mrb[0].mxu0
    %v7704 = vadd.f32 %v7581, %v7703
    %v7705 = vpop.f32.mrb[0].mxu0
    %7706 = vmatprep.mubr.f32.mxu0 0.0
    %v7707 = vand.u32 %v7069, 4294901760
    %7708 = vmatmul.mubr.f32.gmra.mrb[0].mxu0 %v7707
    %v7709 = vpop.f32.mrb[0].mxu0
    %v7710 = vadd.f32 %v7589, %v7709
    %v7711 = vpop.f32.mrb[0].mxu0
    %7712 = vmatprep.mubr.f32.mxu0 0.0
    %v7713 = vand.u32 %v7072, 4294901760
    %7714 = vmatmul.mubr.f32.gmra.mrb[0].mxu0 %v7713
    %v7715 = vpop.f32.mrb[0].mxu0
    %v7716 = vadd.f32 %v7597, %v7715
    %v7717 = vpop.f32.mrb[0].mxu0
    %7718 = vdwg.mxu0
    %7719 = vmatprep.subr.mxu0 0.0
    %v7720 = vand.u32 %v37, 4294901760
    %7721 = vmatpush1.msra.mxu0 %v7720
    %7722 = vmatprep.subr.mxu0 0.0
    %v7723 = vand.u32 %v38, 4294901760
    %7724 = vmatpush1.msra.mxu0 %v7723
    %7725 = vmatprep.subr.mxu0 0.0
    %7726 = vmatpush1.msra.mxu0 0.0
    %7727 = vmatprep.subr.mxu0 0.0
    %7728 = vmatpush1.msra.mxu0 0.0
    %7729 = vmatprep.subr.mxu0 0.0
    %7730 = vmatpush1.msra.mxu0 0.0
    %7731 = vmatprep.subr.mxu0 0.0
    %7732 = vmatpush1.msra.mxu0 0.0
    %7733 = vmatprep.subr.mxu0 0.0
    %7734 = vmatpush1.msra.mxu0 0.0
    %7735 = vmatprep.subr.mxu0 0.0
    %7736 = vmatpush1.msra.mxu0 0.0
    %7737 = vmatprep.subr.mxu0 0.0
    %7738 = vmatpush1.msra.mxu0 0.0
    %7739 = vmatprep.subr.mxu0 0.0
    %7740 = vmatpush1.msra.mxu0 0.0
    %7741 = vmatprep.subr.mxu0 0.0
    %7742 = vmatpush1.msra.mxu0 0.0
    %7743 = vmatprep.subr.mxu0 0.0
    %7744 = vmatpush1.msra.mxu0 0.0
    %7745 = vmatprep.subr.mxu0 0.0
    %7746 = vmatpush1.msra.mxu0 0.0
    %7747 = vmatprep.subr.mxu0 0.0
    %7748 = vmatpush1.msra.mxu0 0.0
    %7749 = vmatprep.subr.mxu0 0.0
    %7750 = vmatpush1.msra.mxu0 0.0
    %7751 = vmatprep.subr.mxu0 0.0
    %7752 = vmatpush1.msra.mxu0 0.0
    %7753 = vmatprep.subr.mxu0 0.0
    %7754 = vmatpush1.msra.mxu0 0.0
    %7755 = vmatprep.subr.mxu0 0.0
    %7756 = vmatpush1.msra.mxu0 0.0
    %7757 = vmatprep.subr.mxu0 0.0
    %7758 = vmatpush1.msra.mxu0 0.0
    %7759 = vmatprep.subr.mxu0 0.0
    %7760 = vmatpush1.msra.mxu0 0.0
    %7761 = vmatprep.subr.mxu0 0.0
    %7762 = vmatpush1.msra.mxu0 0.0
    %7763 = vmatprep.subr.mxu0 0.0
    %7764 = vmatpush1.msra.mxu0 0.0
    %7765 = vmatprep.subr.mxu0 0.0
    %7766 = vmatpush1.msra.mxu0 0.0
    %7767 = vmatprep.subr.mxu0 0.0
    %7768 = vmatpush1.msra.mxu0 0.0
    %7769 = vmatprep.subr.mxu0 0.0
    %7770 = vmatpush1.msra.mxu0 0.0
    %7771 = vmatprep.subr.mxu0 0.0
    %7772 = vmatpush1.msra.mxu0 0.0
    %7773 = vmatprep.subr.mxu0 0.0
    %7774 = vmatpush1.msra.mxu0 0.0
    %7775 = vmatprep.subr.mxu0 0.0
    %7776 = vmatpush1.msra.mxu0 0.0
    %7777 = vmatprep.subr.mxu0 0.0
    %7778 = vmatpush1.msra.mxu0 0.0
    %7779 = vmatprep.subr.mxu0 0.0
    %7780 = vmatpush1.msra.mxu0 0.0
    %7781 = vmatprep.subr.mxu0 0.0
    %7782 = vmatpush1.msra.mxu0 0.0
    %7783 = vmatprep.subr.mxu0 0.0
    %7784 = vmatpush1.msra.mxu0 0.0
    %7785 = vmatprep.mubr.f32.mxu0 0.0
    %v7786 = vand.u32 %v7051, 4294901760
    %7787 = vmatmul.mubr.f32.gmra.mrb[0].mxu0 %v7786
    %v7788 = vpop.f32.mrb[0].mxu0
    %v7789 = vadd.f32 %v7674, %v7788
    %v7790 = vpop.f32.mrb[0].mxu0
    %7791 = vmatprep.mubr.f32.mxu0 0.0
    %v7792 = vand.u32 %v7054, 4294901760
    %7793 = vmatmul.mubr.f32.gmra.mrb[0].mxu0 %v7792
    %v7794 = vpop.f32.mrb[0].mxu0
    %v7795 = vadd.f32 %v7680, %v7794
    %v7796 = vpop.f32.mrb[0].mxu0
    %7797 = vmatprep.mubr.f32.mxu0 0.0
    %v7798 = vand.u32 %v7057, 4294901760
    %7799 = vmatmul.mubr.f32.gmra.mrb[0].mxu0 %v7798
    %v7800 = vpop.f32.mrb[0].mxu0
    %v7801 = vadd.f32 %v7686, %v7800
    %v7802 = vpop.f32.mrb[0].mxu0
    %7803 = vmatprep.mubr.f32.mxu0 0.0
    %v7804 = vand.u32 %v7060, 4294901760
    %7805 = vmatmul.mubr.f32.gmra.mrb[0].mxu0 %v7804
    %v7806 = vpop.f32.mrb[0].mxu0
    %v7807 = vadd.f32 %v7692, %v7806
    %v7808 = vpop.f32.mrb[0].mxu0
    %7809 = vmatprep.mubr.f32.mxu0 0.0
    %v7810 = vand.u32 %v7063, 4294901760
    %7811 = vmatmul.mubr.f32.gmra.mrb[0].mxu0 %v7810
    %v7812 = vpop.f32.mrb[0].mxu0
    %v7813 = vadd.f32 %v7698, %v7812
    %v7814 = vpop.f32.mrb[0].mxu0
    %7815 = vmatprep.mubr.f32.mxu0 0.0
    %v7816 = vand.u32 %v7066, 4294901760
    %7817 = vmatmul.mubr.f32.gmra.mrb[0].mxu0 %v7816
    %v7818 = vpop.f32.mrb[0].mxu0
    %v7819 = vadd.f32 %v7704, %v7818
    %v7820 = vpop.f32.mrb[0].mxu0
    %7821 = vmatprep.mubr.f32.mxu0 0.0
    %v7822 = vand.u32 %v7069, 4294901760
    %7823 = vmatmul.mubr.f32.gmra.mrb[0].mxu0 %v7822
    %v7824 = vpop.f32.mrb[0].mxu0
    %v7825 = vadd.f32 %v7710, %v7824
    %v7826 = vpop.f32.mrb[0].mxu0
    %7827 = vmatprep.mubr.f32.mxu0 0.0
    %v7828 = vand.u32 %v7072, 4294901760
    %7829 = vmatmul.mubr.f32.gmra.mrb[0].mxu0 %v7828
    %v7830 = vpop.f32.mrb[0].mxu0
    %v7831 = vadd.f32 %v7716, %v7830
    %v7832 = vpop.f32.mrb[0].mxu0
    %7833 = vdwg.mxu0
    %s7834 = scalar_lea.vmem [#allocation5], 256
    %7835 = vst.msk [vmem:[%s7834] sm:$0xff] %vm1610, %v7789
    %7836 = vst.msk [vmem:[%s7834 + $0x8] sm:$0xff] %vm1610, %v7795
    %7837 = vst.msk [vmem:[%s7834 + $0x10] sm:$0xff] %vm1610, %v7801
    %7838 = vst.msk [vmem:[%s7834 + $0x18] sm:$0xff] %vm1610, %v7807
    %7839 = vst.msk [vmem:[%s7834 + $0x20] sm:$0xff] %vm1610, %v7813
    %7840 = vst.msk [vmem:[%s7834 + $0x28] sm:$0xff] %vm1610, %v7819
    %7841 = vst.msk [vmem:[%s7834 + $0x30] sm:$0xff] %vm1610, %v7825
    %7842 = vst.msk [vmem:[%s7834 + $0x38] sm:$0xff] %vm1610, %v7831
    %s7843 = scalar_lea.vmem [#allocation2], 80
    %v7844 = vld [vmem:[%s7843] sm:$0xff]
    %v7845 = vld [vmem:[%s7843 + $0x8] sm:$0xff]
    %7846 = vmatprep.subr.mxu0 0.0
    %v7847 = vand.u32 %v7844, 4294901760
    %7848 = vmatpush1.msra.mxu0 %v7847
    %7849 = vmatprep.subr.mxu0 0.0
    %v7850 = vand.u32 %v7845, 4294901760
    %7851 = vmatpush1.msra.mxu0 %v7850
    %7852 = vmatprep.subr.mxu0 0.0
    %7853 = vmatpush1.msra.mxu0 0.0
    %7854 = vmatprep.subr.mxu0 0.0
    %7855 = vmatpush1.msra.mxu0 0.0
    %7856 = vmatprep.subr.mxu0 0.0
    %7857 = vmatpush1.msra.mxu0 0.0
    %7858 = vmatprep.subr.mxu0 0.0
    %7859 = vmatpush1.msra.mxu0 0.0
    %7860 = vmatprep.subr.mxu0 0.0
    %7861 = vmatpush1.msra.mxu0 0.0
    %7862 = vmatprep.subr.mxu0 0.0
    %7863 = vmatpush1.msra.mxu0 0.0
    %7864 = vmatprep.subr.mxu0 0.0
    %7865 = vmatpush1.msra.mxu0 0.0
    %7866 = vmatprep.subr.mxu0 0.0
    %7867 = vmatpush1.msra.mxu0 0.0
    %7868 = vmatprep.subr.mxu0 0.0
    %7869 = vmatpush1.msra.mxu0 0.0
    %7870 = vmatprep.subr.mxu0 0.0
    %7871 = vmatpush1.msra.mxu0 0.0
    %7872 = vmatprep.subr.mxu0 0.0
    %7873 = vmatpush1.msra.mxu0 0.0
    %7874 = vmatprep.subr.mxu0 0.0
    %7875 = vmatpush1.msra.mxu0 0.0
    %7876 = vmatprep.subr.mxu0 0.0
    %7877 = vmatpush1.msra.mxu0 0.0
    %7878 = vmatprep.subr.mxu0 0.0
    %7879 = vmatpush1.msra.mxu0 0.0
    %7880 = vmatprep.subr.mxu0 0.0
    %7881 = vmatpush1.msra.mxu0 0.0
    %7882 = vmatprep.subr.mxu0 0.0
    %7883 = vmatpush1.msra.mxu0 0.0
    %7884 = vmatprep.subr.mxu0 0.0
    %7885 = vmatpush1.msra.mxu0 0.0
    %7886 = vmatprep.subr.mxu0 0.0
    %7887 = vmatpush1.msra.mxu0 0.0
    %7888 = vmatprep.subr.mxu0 0.0
    %7889 = vmatpush1.msra.mxu0 0.0
    %7890 = vmatprep.subr.mxu0 0.0
    %7891 = vmatpush1.msra.mxu0 0.0
    %7892 = vmatprep.subr.mxu0 0.0
    %7893 = vmatpush1.msra.mxu0 0.0
    %7894 = vmatprep.subr.mxu0 0.0
    %7895 = vmatpush1.msra.mxu0 0.0
    %7896 = vmatprep.subr.mxu0 0.0
    %7897 = vmatpush1.msra.mxu0 0.0
    %7898 = vmatprep.subr.mxu0 0.0
    %7899 = vmatpush1.msra.mxu0 0.0
    %7900 = vmatprep.subr.mxu0 0.0
    %7901 = vmatpush1.msra.mxu0 0.0
    %7902 = vmatprep.subr.mxu0 0.0
    %7903 = vmatpush1.msra.mxu0 0.0
    %7904 = vmatprep.subr.mxu0 0.0
    %7905 = vmatpush1.msra.mxu0 0.0
    %7906 = vmatprep.subr.mxu0 0.0
    %7907 = vmatpush1.msra.mxu0 0.0
    %7908 = vmatprep.subr.mxu0 0.0
    %7909 = vmatpush1.msra.mxu0 0.0
    %7910 = vmatprep.subr.mxu0 0.0
    %7911 = vmatpush1.msra.mxu0 0.0
    %7912 = vmatprep.mubr.f32.mxu0 0.0
    %v7913 = vand.u32 %v43, 4294901760
    %v7914 = vsub.f32 %v43, %v7913
    %v7915 = vand.u32 %v7914, 4294901760
    %v7916 = vsub.f32 %v7914, %v7915
    %v7917 = vand.u32 %v7916, 4294901760
    %7918 = vmatmul.mubr.f32.gmra.mrb[0].mxu0 %v7917
    %v7919 = vpop.f32.mrb[0].mxu0
    %v7920 = vadd.f32 0.0, %v7919
    %v7921 = vpop.f32.mrb[0].mxu0
    %7922 = vmatprep.mubr.f32.mxu0 0.0
    %v7923 = vand.u32 %v46, 4294901760
    %v7924 = vsub.f32 %v46, %v7923
    %v7925 = vand.u32 %v7924, 4294901760
    %v7926 = vsub.f32 %v7924, %v7925
    %v7927 = vand.u32 %v7926, 4294901760
    %7928 = vmatmul.mubr.f32.gmra.mrb[0].mxu0 %v7927
    %v7929 = vpop.f32.mrb[0].mxu0
    %v7930 = vadd.f32 0.0, %v7929
    %v7931 = vpop.f32.mrb[0].mxu0
    %7932 = vmatprep.mubr.f32.mxu0 0.0
    %v7933 = vand.u32 %v49, 4294901760
    %v7934 = vsub.f32 %v49, %v7933
    %v7935 = vand.u32 %v7934, 4294901760
    %v7936 = vsub.f32 %v7934, %v7935
    %v7937 = vand.u32 %v7936, 4294901760
    %7938 = vmatmul.mubr.f32.gmra.mrb[0].mxu0 %v7937
    %v7939 = vpop.f32.mrb[0].mxu0
    %v7940 = vadd.f32 0.0, %v7939
    %v7941 = vpop.f32.mrb[0].mxu0
    %7942 = vmatprep.mubr.f32.mxu0 0.0
    %v7943 = vand.u32 %v52, 4294901760
    %v7944 = vsub.f32 %v52, %v7943
    %v7945 = vand.u32 %v7944, 4294901760
    %v7946 = vsub.f32 %v7944, %v7945
    %v7947 = vand.u32 %v7946, 4294901760
    %7948 = vmatmul.mubr.f32.gmra.mrb[0].mxu0 %v7947
    %v7949 = vpop.f32.mrb[0].mxu0
    %v7950 = vadd.f32 0.0, %v7949
    %v7951 = vpop.f32.mrb[0].mxu0
    %7952 = vmatprep.mubr.f32.mxu0 0.0
    %v7953 = vand.u32 %v55, 4294901760
    %v7954 = vsub.f32 %v55, %v7953
    %v7955 = vand.u32 %v7954, 4294901760
    %v7956 = vsub.f32 %v7954, %v7955
    %v7957 = vand.u32 %v7956, 4294901760
    %7958 = vmatmul.mubr.f32.gmra.mrb[0].mxu0 %v7957
    %v7959 = vpop.f32.mrb[0].mxu0
    %v7960 = vadd.f32 0.0, %v7959
    %v7961 = vpop.f32.mrb[0].mxu0
    %7962 = vmatprep.mubr.f32.mxu0 0.0
    %v7963 = vand.u32 %v58, 4294901760
    %v7964 = vsub.f32 %v58, %v7963
    %v7965 = vand.u32 %v7964, 4294901760
    %v7966 = vsub.f32 %v7964, %v7965
    %v7967 = vand.u32 %v7966, 4294901760
    %7968 = vmatmul.mubr.f32.gmra.mrb[0].mxu0 %v7967
    %v7969 = vpop.f32.mrb[0].mxu0
    %v7970 = vadd.f32 0.0, %v7969
    %v7971 = vpop.f32.mrb[0].mxu0
    %7972 = vmatprep.mubr.f32.mxu0 0.0
    %v7973 = vand.u32 %v61, 4294901760
    %v7974 = vsub.f32 %v61, %v7973
    %v7975 = vand.u32 %v7974, 4294901760
    %v7976 = vsub.f32 %v7974, %v7975
    %v7977 = vand.u32 %v7976, 4294901760
    %7978 = vmatmul.mubr.f32.gmra.mrb[0].mxu0 %v7977
    %v7979 = vpop.f32.mrb[0].mxu0
    %v7980 = vadd.f32 0.0, %v7979
    %v7981 = vpop.f32.mrb[0].mxu0
    %7982 = vmatprep.mubr.f32.mxu0 0.0
    %v7983 = vand.u32 %v64, 4294901760
    %v7984 = vsub.f32 %v64, %v7983
    %v7985 = vand.u32 %v7984, 4294901760
    %v7986 = vsub.f32 %v7984, %v7985
    %v7987 = vand.u32 %v7986, 4294901760
    %7988 = vmatmul.mubr.f32.gmra.mrb[0].mxu0 %v7987
    %v7989 = vpop.f32.mrb[0].mxu0
    %v7990 = vadd.f32 0.0, %v7989
    %v7991 = vpop.f32.mrb[0].mxu0
    %7992 = vdwg.mxu0
    %7993 = vmatprep.subr.mxu0 0.0
    %v7994 = vand.u32 %v7844, 4294901760
    %v7995 = vsub.f32 %v7844, %v7994
    %v7996 = vand.u32 %v7995, 4294901760
    %v7997 = vsub.f32 %v7995, %v7996
    %v7998 = vand.u32 %v7997, 4294901760
    %7999 = vmatpush1.msra.mxu0 %v7998
    %8000 = vmatprep.subr.mxu0 0.0
    %v8001 = vand.u32 %v7845, 4294901760
    %v8002 = vsub.f32 %v7845, %v8001
    %v8003 = vand.u32 %v8002, 4294901760
    %v8004 = vsub.f32 %v8002, %v8003
    %v8005 = vand.u32 %v8004, 4294901760
    %8006 = vmatpush1.msra.mxu0 %v8005
    %8007 = vmatprep.subr.mxu0 0.0
    %8008 = vmatpush1.msra.mxu0 0.0
    %8009 = vmatprep.subr.mxu0 0.0
    %8010 = vmatpush1.msra.mxu0 0.0
    %8011 = vmatprep.subr.mxu0 0.0
    %8012 = vmatpush1.msra.mxu0 0.0
    %8013 = vmatprep.subr.mxu0 0.0
    %8014 = vmatpush1.msra.mxu0 0.0
    %8015 = vmatprep.subr.mxu0 0.0
    %8016 = vmatpush1.msra.mxu0 0.0
    %8017 = vmatprep.subr.mxu0 0.0
    %8018 = vmatpush1.msra.mxu0 0.0
    %8019 = vmatprep.subr.mxu0 0.0
    %8020 = vmatpush1.msra.mxu0 0.0
    %8021 = vmatprep.subr.mxu0 0.0
    %8022 = vmatpush1.msra.mxu0 0.0
    %8023 = vmatprep.subr.mxu0 0.0
    %8024 = vmatpush1.msra.mxu0 0.0
    %8025 = vmatprep.subr.mxu0 0.0
    %8026 = vmatpush1.msra.mxu0 0.0
    %8027 = vmatprep.subr.mxu0 0.0
    %8028 = vmatpush1.msra.mxu0 0.0
    %8029 = vmatprep.subr.mxu0 0.0
    %8030 = vmatpush1.msra.mxu0 0.0
    %8031 = vmatprep.subr.mxu0 0.0
    %8032 = vmatpush1.msra.mxu0 0.0
    %8033 = vmatprep.subr.mxu0 0.0
    %8034 = vmatpush1.msra.mxu0 0.0
    %8035 = vmatprep.subr.mxu0 0.0
    %8036 = vmatpush1.msra.mxu0 0.0
    %8037 = vmatprep.subr.mxu0 0.0
    %8038 = vmatpush1.msra.mxu0 0.0
    %8039 = vmatprep.subr.mxu0 0.0
    %8040 = vmatpush1.msra.mxu0 0.0
    %8041 = vmatprep.subr.mxu0 0.0
    %8042 = vmatpush1.msra.mxu0 0.0
    %8043 = vmatprep.subr.mxu0 0.0
    %8044 = vmatpush1.msra.mxu0 0.0
    %8045 = vmatprep.subr.mxu0 0.0
    %8046 = vmatpush1.msra.mxu0 0.0
    %8047 = vmatprep.subr.mxu0 0.0
    %8048 = vmatpush1.msra.mxu0 0.0
    %8049 = vmatprep.subr.mxu0 0.0
    %8050 = vmatpush1.msra.mxu0 0.0
    %8051 = vmatprep.subr.mxu0 0.0
    %8052 = vmatpush1.msra.mxu0 0.0
    %8053 = vmatprep.subr.mxu0 0.0
    %8054 = vmatpush1.msra.mxu0 0.0
    %8055 = vmatprep.subr.mxu0 0.0
    %8056 = vmatpush1.msra.mxu0 0.0
    %8057 = vmatprep.subr.mxu0 0.0
    %8058 = vmatpush1.msra.mxu0 0.0
    %8059 = vmatprep.subr.mxu0 0.0
    %8060 = vmatpush1.msra.mxu0 0.0
    %8061 = vmatprep.subr.mxu0 0.0
    %8062 = vmatpush1.msra.mxu0 0.0
    %8063 = vmatprep.subr.mxu0 0.0
    %8064 = vmatpush1.msra.mxu0 0.0
    %8065 = vmatprep.subr.mxu0 0.0
    %8066 = vmatpush1.msra.mxu0 0.0
    %8067 = vmatprep.mubr.f32.mxu0 0.0
    %v8068 = vand.u32 %v43, 4294901760
    %8069 = vmatmul.mubr.f32.gmra.mrb[0].mxu0 %v8068
    %v8070 = vpop.f32.mrb[0].mxu0
    %v8071 = vadd.f32 %v7920, %v8070
    %v8072 = vpop.f32.mrb[0].mxu0
    %8073 = vmatprep.mubr.f32.mxu0 0.0
    %v8074 = vand.u32 %v46, 4294901760
    %8075 = vmatmul.mubr.f32.gmra.mrb[0].mxu0 %v8074
    %v8076 = vpop.f32.mrb[0].mxu0
    %v8077 = vadd.f32 %v7930, %v8076
    %v8078 = vpop.f32.mrb[0].mxu0
    %8079 = vmatprep.mubr.f32.mxu0 0.0
    %v8080 = vand.u32 %v49, 4294901760
    %8081 = vmatmul.mubr.f32.gmra.mrb[0].mxu0 %v8080
    %v8082 = vpop.f32.mrb[0].mxu0
    %v8083 = vadd.f32 %v7940, %v8082
    %v8084 = vpop.f32.mrb[0].mxu0
    %8085 = vmatprep.mubr.f32.mxu0 0.0
    %v8086 = vand.u32 %v52, 4294901760
    %8087 = vmatmul.mubr.f32.gmra.mrb[0].mxu0 %v8086
    %v8088 = vpop.f32.mrb[0].mxu0
    %v8089 = vadd.f32 %v7950, %v8088
    %v8090 = vpop.f32.mrb[0].mxu0
    %8091 = vmatprep.mubr.f32.mxu0 0.0
    %v8092 = vand.u32 %v55, 4294901760
    %8093 = vmatmul.mubr.f32.gmra.mrb[0].mxu0 %v8092
    %v8094 = vpop.f32.mrb[0].mxu0
    %v8095 = vadd.f32 %v7960, %v8094
    %v8096 = vpop.f32.mrb[0].mxu0
    %8097 = vmatprep.mubr.f32.mxu0 0.0
    %v8098 = vand.u32 %v58, 4294901760
    %8099 = vmatmul.mubr.f32.gmra.mrb[0].mxu0 %v8098
    %v8100 = vpop.f32.mrb[0].mxu0
    %v8101 = vadd.f32 %v7970, %v8100
    %v8102 = vpop.f32.mrb[0].mxu0
    %8103 = vmatprep.mubr.f32.mxu0 0.0
    %v8104 = vand.u32 %v61, 4294901760
    %8105 = vmatmul.mubr.f32.gmra.mrb[0].mxu0 %v8104
    %v8106 = vpop.f32.mrb[0].mxu0
    %v8107 = vadd.f32 %v7980, %v8106
    %v8108 = vpop.f32.mrb[0].mxu0
    %8109 = vmatprep.mubr.f32.mxu0 0.0
    %v8110 = vand.u32 %v64, 4294901760
    %8111 = vmatmul.mubr.f32.gmra.mrb[0].mxu0 %v8110
    %v8112 = vpop.f32.mrb[0].mxu0
    %v8113 = vadd.f32 %v7990, %v8112
    %v8114 = vpop.f32.mrb[0].mxu0
    %8115 = vdwg.mxu0
    %8116 = vmatprep.subr.mxu0 0.0
    %v8117 = vand.u32 %v7844, 4294901760
    %v8118 = vsub.f32 %v7844, %v8117
    %8119 = vmatpush1.msra.mxu0 %v8118
    %8120 = vmatprep.subr.mxu0 0.0
    %v8121 = vand.u32 %v7845, 4294901760
    %v8122 = vsub.f32 %v7845, %v8121
    %8123 = vmatpush1.msra.mxu0 %v8122
    %8124 = vmatprep.subr.mxu0 0.0
    %8125 = vmatpush1.msra.mxu0 0.0
    %8126 = vmatprep.subr.mxu0 0.0
    %8127 = vmatpush1.msra.mxu0 0.0
    %8128 = vmatprep.subr.mxu0 0.0
    %8129 = vmatpush1.msra.mxu0 0.0
    %8130 = vmatprep.subr.mxu0 0.0
    %8131 = vmatpush1.msra.mxu0 0.0
    %8132 = vmatprep.subr.mxu0 0.0
    %8133 = vmatpush1.msra.mxu0 0.0
    %8134 = vmatprep.subr.mxu0 0.0
    %8135 = vmatpush1.msra.mxu0 0.0
    %8136 = vmatprep.subr.mxu0 0.0
    %8137 = vmatpush1.msra.mxu0 0.0
    %8138 = vmatprep.subr.mxu0 0.0
    %8139 = vmatpush1.msra.mxu0 0.0
    %8140 = vmatprep.subr.mxu0 0.0
    %8141 = vmatpush1.msra.mxu0 0.0
    %8142 = vmatprep.subr.mxu0 0.0
    %8143 = vmatpush1.msra.mxu0 0.0
    %8144 = vmatprep.subr.mxu0 0.0
    %8145 = vmatpush1.msra.mxu0 0.0
    %8146 = vmatprep.subr.mxu0 0.0
    %8147 = vmatpush1.msra.mxu0 0.0
    %8148 = vmatprep.subr.mxu0 0.0
    %8149 = vmatpush1.msra.mxu0 0.0
    %8150 = vmatprep.subr.mxu0 0.0
    %8151 = vmatpush1.msra.mxu0 0.0
    %8152 = vmatprep.subr.mxu0 0.0
    %8153 = vmatpush1.msra.mxu0 0.0
    %8154 = vmatprep.subr.mxu0 0.0
    %8155 = vmatpush1.msra.mxu0 0.0
    %8156 = vmatprep.subr.mxu0 0.0
    %8157 = vmatpush1.msra.mxu0 0.0
    %8158 = vmatprep.subr.mxu0 0.0
    %8159 = vmatpush1.msra.mxu0 0.0
    %8160 = vmatprep.subr.mxu0 0.0
    %8161 = vmatpush1.msra.mxu0 0.0
    %8162 = vmatprep.subr.mxu0 0.0
    %8163 = vmatpush1.msra.mxu0 0.0
    %8164 = vmatprep.subr.mxu0 0.0
    %8165 = vmatpush1.msra.mxu0 0.0
    %8166 = vmatprep.subr.mxu0 0.0
    %8167 = vmatpush1.msra.mxu0 0.0
    %8168 = vmatprep.subr.mxu0 0.0
    %8169 = vmatpush1.msra.mxu0 0.0
    %8170 = vmatprep.subr.mxu0 0.0
    %8171 = vmatpush1.msra.mxu0 0.0
    %8172 = vmatprep.subr.mxu0 0.0
    %8173 = vmatpush1.msra.mxu0 0.0
    %8174 = vmatprep.subr.mxu0 0.0
    %8175 = vmatpush1.msra.mxu0 0.0
    %8176 = vmatprep.subr.mxu0 0.0
    %8177 = vmatpush1.msra.mxu0 0.0
    %8178 = vmatprep.subr.mxu0 0.0
    %8179 = vmatpush1.msra.mxu0 0.0
    %8180 = vmatprep.subr.mxu0 0.0
    %8181 = vmatpush1.msra.mxu0 0.0
    %8182 = vmatprep.subr.mxu0 0.0
    %8183 = vmatpush1.msra.mxu0 0.0
    %8184 = vmatprep.mubr.f32.mxu0 0.0
    %v8185 = vand.u32 %v43, 4294901760
    %v8186 = vsub.f32 %v43, %v8185
    %8187 = vmatmul.mubr.f32.gmra.mrb[0].mxu0 %v8186
    %v8188 = vpop.f32.mrb[0].mxu0
    %v8189 = vadd.f32 %v8071, %v8188
    %v8190 = vpop.f32.mrb[0].mxu0
    %8191 = vmatprep.mubr.f32.mxu0 0.0
    %v8192 = vand.u32 %v46, 4294901760
    %v8193 = vsub.f32 %v46, %v8192
    %8194 = vmatmul.mubr.f32.gmra.mrb[0].mxu0 %v8193
    %v8195 = vpop.f32.mrb[0].mxu0
    %v8196 = vadd.f32 %v8077, %v8195
    %v8197 = vpop.f32.mrb[0].mxu0
    %8198 = vmatprep.mubr.f32.mxu0 0.0
    %v8199 = vand.u32 %v49, 4294901760
    %v8200 = vsub.f32 %v49, %v8199
    %8201 = vmatmul.mubr.f32.gmra.mrb[0].mxu0 %v8200
    %v8202 = vpop.f32.mrb[0].mxu0
    %v8203 = vadd.f32 %v8083, %v8202
    %v8204 = vpop.f32.mrb[0].mxu0
    %8205 = vmatprep.mubr.f32.mxu0 0.0
    %v8206 = vand.u32 %v52, 4294901760
    %v8207 = vsub.f32 %v52, %v8206
    %8208 = vmatmul.mubr.f32.gmra.mrb[0].mxu0 %v8207
    %v8209 = vpop.f32.mrb[0].mxu0
    %v8210 = vadd.f32 %v8089, %v8209
    %v8211 = vpop.f32.mrb[0].mxu0
    %8212 = vmatprep.mubr.f32.mxu0 0.0
    %v8213 = vand.u32 %v55, 4294901760
    %v8214 = vsub.f32 %v55, %v8213
    %8215 = vmatmul.mubr.f32.gmra.mrb[0].mxu0 %v8214
    %v8216 = vpop.f32.mrb[0].mxu0
    %v8217 = vadd.f32 %v8095, %v8216
    %v8218 = vpop.f32.mrb[0].mxu0
    %8219 = vmatprep.mubr.f32.mxu0 0.0
    %v8220 = vand.u32 %v58, 4294901760
    %v8221 = vsub.f32 %v58, %v8220
    %8222 = vmatmul.mubr.f32.gmra.mrb[0].mxu0 %v8221
    %v8223 = vpop.f32.mrb[0].mxu0
    %v8224 = vadd.f32 %v8101, %v8223
    %v8225 = vpop.f32.mrb[0].mxu0
    %8226 = vmatprep.mubr.f32.mxu0 0.0
    %v8227 = vand.u32 %v61, 4294901760
    %v8228 = vsub.f32 %v61, %v8227
    %8229 = vmatmul.mubr.f32.gmra.mrb[0].mxu0 %v8228
    %v8230 = vpop.f32.mrb[0].mxu0
    %v8231 = vadd.f32 %v8107, %v8230
    %v8232 = vpop.f32.mrb[0].mxu0
    %8233 = vmatprep.mubr.f32.mxu0 0.0
    %v8234 = vand.u32 %v64, 4294901760
    %v8235 = vsub.f32 %v64, %v8234
    %8236 = vmatmul.mubr.f32.gmra.mrb[0].mxu0 %v8235
    %v8237 = vpop.f32.mrb[0].mxu0
    %v8238 = vadd.f32 %v8113, %v8237
    %v8239 = vpop.f32.mrb[0].mxu0
    %8240 = vdwg.mxu0
    %8241 = vmatprep.subr.mxu0 0.0
    %v8242 = vand.u32 %v7844, 4294901760
    %8243 = vmatpush1.msra.mxu0 %v8242
    %8244 = vmatprep.subr.mxu0 0.0
    %v8245 = vand.u32 %v7845, 4294901760
    %8246 = vmatpush1.msra.mxu0 %v8245
    %8247 = vmatprep.subr.mxu0 0.0
    %8248 = vmatpush1.msra.mxu0 0.0
    %8249 = vmatprep.subr.mxu0 0.0
    %8250 = vmatpush1.msra.mxu0 0.0
    %8251 = vmatprep.subr.mxu0 0.0
    %8252 = vmatpush1.msra.mxu0 0.0
    %8253 = vmatprep.subr.mxu0 0.0
    %8254 = vmatpush1.msra.mxu0 0.0
    %8255 = vmatprep.subr.mxu0 0.0
    %8256 = vmatpush1.msra.mxu0 0.0
    %8257 = vmatprep.subr.mxu0 0.0
    %8258 = vmatpush1.msra.mxu0 0.0
    %8259 = vmatprep.subr.mxu0 0.0
    %8260 = vmatpush1.msra.mxu0 0.0
    %8261 = vmatprep.subr.mxu0 0.0
    %8262 = vmatpush1.msra.mxu0 0.0
    %8263 = vmatprep.subr.mxu0 0.0
    %8264 = vmatpush1.msra.mxu0 0.0
    %8265 = vmatprep.subr.mxu0 0.0
    %8266 = vmatpush1.msra.mxu0 0.0
    %8267 = vmatprep.subr.mxu0 0.0
    %8268 = vmatpush1.msra.mxu0 0.0
    %8269 = vmatprep.subr.mxu0 0.0
    %8270 = vmatpush1.msra.mxu0 0.0
    %8271 = vmatprep.subr.mxu0 0.0
    %8272 = vmatpush1.msra.mxu0 0.0
    %8273 = vmatprep.subr.mxu0 0.0
    %8274 = vmatpush1.msra.mxu0 0.0
    %8275 = vmatprep.subr.mxu0 0.0
    %8276 = vmatpush1.msra.mxu0 0.0
    %8277 = vmatprep.subr.mxu0 0.0
    %8278 = vmatpush1.msra.mxu0 0.0
    %8279 = vmatprep.subr.mxu0 0.0
    %8280 = vmatpush1.msra.mxu0 0.0
    %8281 = vmatprep.subr.mxu0 0.0
    %8282 = vmatpush1.msra.mxu0 0.0
    %8283 = vmatprep.subr.mxu0 0.0
    %8284 = vmatpush1.msra.mxu0 0.0
    %8285 = vmatprep.subr.mxu0 0.0
    %8286 = vmatpush1.msra.mxu0 0.0
    %8287 = vmatprep.subr.mxu0 0.0
    %8288 = vmatpush1.msra.mxu0 0.0
    %8289 = vmatprep.subr.mxu0 0.0
    %8290 = vmatpush1.msra.mxu0 0.0
    %8291 = vmatprep.subr.mxu0 0.0
    %8292 = vmatpush1.msra.mxu0 0.0
    %8293 = vmatprep.subr.mxu0 0.0
    %8294 = vmatpush1.msra.mxu0 0.0
    %8295 = vmatprep.subr.mxu0 0.0
    %8296 = vmatpush1.msra.mxu0 0.0
    %8297 = vmatprep.subr.mxu0 0.0
    %8298 = vmatpush1.msra.mxu0 0.0
    %8299 = vmatprep.subr.mxu0 0.0
    %8300 = vmatpush1.msra.mxu0 0.0
    %8301 = vmatprep.subr.mxu0 0.0
    %8302 = vmatpush1.msra.mxu0 0.0
    %8303 = vmatprep.subr.mxu0 0.0
    %8304 = vmatpush1.msra.mxu0 0.0
    %8305 = vmatprep.subr.mxu0 0.0
    %8306 = vmatpush1.msra.mxu0 0.0
    %8307 = vmatprep.mubr.f32.mxu0 0.0
    %v8308 = vand.u32 %v43, 4294901760
    %v8309 = vsub.f32 %v43, %v8308
    %v8310 = vand.u32 %v8309, 4294901760
    %8311 = vmatmul.mubr.f32.gmra.mrb[0].mxu0 %v8310
    %v8312 = vpop.f32.mrb[0].mxu0
    %v8313 = vadd.f32 %v8189, %v8312
    %v8314 = vpop.f32.mrb[0].mxu0
    %8315 = vmatprep.mubr.f32.mxu0 0.0
    %v8316 = vand.u32 %v46, 4294901760
    %v8317 = vsub.f32 %v46, %v8316
    %v8318 = vand.u32 %v8317, 4294901760
    %8319 = vmatmul.mubr.f32.gmra.mrb[0].mxu0 %v8318
    %v8320 = vpop.f32.mrb[0].mxu0
    %v8321 = vadd.f32 %v8196, %v8320
    %v8322 = vpop.f32.mrb[0].mxu0
    %8323 = vmatprep.mubr.f32.mxu0 0.0
    %v8324 = vand.u32 %v49, 4294901760
    %v8325 = vsub.f32 %v49, %v8324
    %v8326 = vand.u32 %v8325, 4294901760
    %8327 = vmatmul.mubr.f32.gmra.mrb[0].mxu0 %v8326
    %v8328 = vpop.f32.mrb[0].mxu0
    %v8329 = vadd.f32 %v8203, %v8328
    %v8330 = vpop.f32.mrb[0].mxu0
    %8331 = vmatprep.mubr.f32.mxu0 0.0
    %v8332 = vand.u32 %v52, 4294901760
    %v8333 = vsub.f32 %v52, %v8332
    %v8334 = vand.u32 %v8333, 4294901760
    %8335 = vmatmul.mubr.f32.gmra.mrb[0].mxu0 %v8334
    %v8336 = vpop.f32.mrb[0].mxu0
    %v8337 = vadd.f32 %v8210, %v8336
    %v8338 = vpop.f32.mrb[0].mxu0
    %8339 = vmatprep.mubr.f32.mxu0 0.0
    %v8340 = vand.u32 %v55, 4294901760
    %v8341 = vsub.f32 %v55, %v8340
    %v8342 = vand.u32 %v8341, 4294901760
    %8343 = vmatmul.mubr.f32.gmra.mrb[0].mxu0 %v8342
    %v8344 = vpop.f32.mrb[0].mxu0
    %v8345 = vadd.f32 %v8217, %v8344
    %v8346 = vpop.f32.mrb[0].mxu0
    %8347 = vmatprep.mubr.f32.mxu0 0.0
    %v8348 = vand.u32 %v58, 4294901760
    %v8349 = vsub.f32 %v58, %v8348
    %v8350 = vand.u32 %v8349, 4294901760
    %8351 = vmatmul.mubr.f32.gmra.mrb[0].mxu0 %v8350
    %v8352 = vpop.f32.mrb[0].mxu0
    %v8353 = vadd.f32 %v8224, %v8352
    %v8354 = vpop.f32.mrb[0].mxu0
    %8355 = vmatprep.mubr.f32.mxu0 0.0
    %v8356 = vand.u32 %v61, 4294901760
    %v8357 = vsub.f32 %v61, %v8356
    %v8358 = vand.u32 %v8357, 4294901760
    %8359 = vmatmul.mubr.f32.gmra.mrb[0].mxu0 %v8358
    %v8360 = vpop.f32.mrb[0].mxu0
    %v8361 = vadd.f32 %v8231, %v8360
    %v8362 = vpop.f32.mrb[0].mxu0
    %8363 = vmatprep.mubr.f32.mxu0 0.0
    %v8364 = vand.u32 %v64, 4294901760
    %v8365 = vsub.f32 %v64, %v8364
    %v8366 = vand.u32 %v8365, 4294901760
    %8367 = vmatmul.mubr.f32.gmra.mrb[0].mxu0 %v8366
    %v8368 = vpop.f32.mrb[0].mxu0
    %v8369 = vadd.f32 %v8238, %v8368
    %v8370 = vpop.f32.mrb[0].mxu0
    %8371 = vdwg.mxu0
    %8372 = vmatprep.subr.mxu0 0.0
    %v8373 = vand.u32 %v7844, 4294901760
    %v8374 = vsub.f32 %v7844, %v8373
    %v8375 = vand.u32 %v8374, 4294901760
    %8376 = vmatpush1.msra.mxu0 %v8375
    %8377 = vmatprep.subr.mxu0 0.0
    %v8378 = vand.u32 %v7845, 4294901760
    %v8379 = vsub.f32 %v7845, %v8378
    %v8380 = vand.u32 %v8379, 4294901760
    %8381 = vmatpush1.msra.mxu0 %v8380
    %8382 = vmatprep.subr.mxu0 0.0
    %8383 = vmatpush1.msra.mxu0 0.0
    %8384 = vmatprep.subr.mxu0 0.0
    %8385 = vmatpush1.msra.mxu0 0.0
    %8386 = vmatprep.subr.mxu0 0.0
    %8387 = vmatpush1.msra.mxu0 0.0
    %8388 = vmatprep.subr.mxu0 0.0
    %8389 = vmatpush1.msra.mxu0 0.0
    %8390 = vmatprep.subr.mxu0 0.0
    %8391 = vmatpush1.msra.mxu0 0.0
    %8392 = vmatprep.subr.mxu0 0.0
    %8393 = vmatpush1.msra.mxu0 0.0
    %8394 = vmatprep.subr.mxu0 0.0
    %8395 = vmatpush1.msra.mxu0 0.0
    %8396 = vmatprep.subr.mxu0 0.0
    %8397 = vmatpush1.msra.mxu0 0.0
    %8398 = vmatprep.subr.mxu0 0.0
    %8399 = vmatpush1.msra.mxu0 0.0
    %8400 = vmatprep.subr.mxu0 0.0
    %8401 = vmatpush1.msra.mxu0 0.0
    %8402 = vmatprep.subr.mxu0 0.0
    %8403 = vmatpush1.msra.mxu0 0.0
    %8404 = vmatprep.subr.mxu0 0.0
    %8405 = vmatpush1.msra.mxu0 0.0
    %8406 = vmatprep.subr.mxu0 0.0
    %8407 = vmatpush1.msra.mxu0 0.0
    %8408 = vmatprep.subr.mxu0 0.0
    %8409 = vmatpush1.msra.mxu0 0.0
    %8410 = vmatprep.subr.mxu0 0.0
    %8411 = vmatpush1.msra.mxu0 0.0
    %8412 = vmatprep.subr.mxu0 0.0
    %8413 = vmatpush1.msra.mxu0 0.0
    %8414 = vmatprep.subr.mxu0 0.0
    %8415 = vmatpush1.msra.mxu0 0.0
    %8416 = vmatprep.subr.mxu0 0.0
    %8417 = vmatpush1.msra.mxu0 0.0
    %8418 = vmatprep.subr.mxu0 0.0
    %8419 = vmatpush1.msra.mxu0 0.0
    %8420 = vmatprep.subr.mxu0 0.0
    %8421 = vmatpush1.msra.mxu0 0.0
    %8422 = vmatprep.subr.mxu0 0.0
    %8423 = vmatpush1.msra.mxu0 0.0
    %8424 = vmatprep.subr.mxu0 0.0
    %8425 = vmatpush1.msra.mxu0 0.0
    %8426 = vmatprep.subr.mxu0 0.0
    %8427 = vmatpush1.msra.mxu0 0.0
    %8428 = vmatprep.subr.mxu0 0.0
    %8429 = vmatpush1.msra.mxu0 0.0
    %8430 = vmatprep.subr.mxu0 0.0
    %8431 = vmatpush1.msra.mxu0 0.0
    %8432 = vmatprep.subr.mxu0 0.0
    %8433 = vmatpush1.msra.mxu0 0.0
    %8434 = vmatprep.subr.mxu0 0.0
    %8435 = vmatpush1.msra.mxu0 0.0
    %8436 = vmatprep.subr.mxu0 0.0
    %8437 = vmatpush1.msra.mxu0 0.0
    %8438 = vmatprep.subr.mxu0 0.0
    %8439 = vmatpush1.msra.mxu0 0.0
    %8440 = vmatprep.subr.mxu0 0.0
    %8441 = vmatpush1.msra.mxu0 0.0
    %8442 = vmatprep.mubr.f32.mxu0 0.0
    %v8443 = vand.u32 %v43, 4294901760
    %8444 = vmatmul.mubr.f32.gmra.mrb[0].mxu0 %v8443
    %v8445 = vpop.f32.mrb[0].mxu0
    %v8446 = vadd.f32 %v8313, %v8445
    %v8447 = vpop.f32.mrb[0].mxu0
    %8448 = vmatprep.mubr.f32.mxu0 0.0
    %v8449 = vand.u32 %v46, 4294901760
    %8450 = vmatmul.mubr.f32.gmra.mrb[0].mxu0 %v8449
    %v8451 = vpop.f32.mrb[0].mxu0
    %v8452 = vadd.f32 %v8321, %v8451
    %v8453 = vpop.f32.mrb[0].mxu0
    %8454 = vmatprep.mubr.f32.mxu0 0.0
    %v8455 = vand.u32 %v49, 4294901760
    %8456 = vmatmul.mubr.f32.gmra.mrb[0].mxu0 %v8455
    %v8457 = vpop.f32.mrb[0].mxu0
    %v8458 = vadd.f32 %v8329, %v8457
    %v8459 = vpop.f32.mrb[0].mxu0
    %8460 = vmatprep.mubr.f32.mxu0 0.0
    %v8461 = vand.u32 %v52, 4294901760
    %8462 = vmatmul.mubr.f32.gmra.mrb[0].mxu0 %v8461
    %v8463 = vpop.f32.mrb[0].mxu0
    %v8464 = vadd.f32 %v8337, %v8463
    %v8465 = vpop.f32.mrb[0].mxu0
    %8466 = vmatprep.mubr.f32.mxu0 0.0
    %v8467 = vand.u32 %v55, 4294901760
    %8468 = vmatmul.mubr.f32.gmra.mrb[0].mxu0 %v8467
    %v8469 = vpop.f32.mrb[0].mxu0
    %v8470 = vadd.f32 %v8345, %v8469
    %v8471 = vpop.f32.mrb[0].mxu0
    %8472 = vmatprep.mubr.f32.mxu0 0.0
    %v8473 = vand.u32 %v58, 4294901760
    %8474 = vmatmul.mubr.f32.gmra.mrb[0].mxu0 %v8473
    %v8475 = vpop.f32.mrb[0].mxu0
    %v8476 = vadd.f32 %v8353, %v8475
    %v8477 = vpop.f32.mrb[0].mxu0
    %8478 = vmatprep.mubr.f32.mxu0 0.0
    %v8479 = vand.u32 %v61, 4294901760
    %8480 = vmatmul.mubr.f32.gmra.mrb[0].mxu0 %v8479
    %v8481 = vpop.f32.mrb[0].mxu0
    %v8482 = vadd.f32 %v8361, %v8481
    %v8483 = vpop.f32.mrb[0].mxu0
    %8484 = vmatprep.mubr.f32.mxu0 0.0
    %v8485 = vand.u32 %v64, 4294901760
    %8486 = vmatmul.mubr.f32.gmra.mrb[0].mxu0 %v8485
    %v8487 = vpop.f32.mrb[0].mxu0
    %v8488 = vadd.f32 %v8369, %v8487
    %v8489 = vpop.f32.mrb[0].mxu0
    %8490 = vdwg.mxu0
    %8491 = vmatprep.subr.mxu0 0.0
    %v8492 = vand.u32 %v7844, 4294901760
    %8493 = vmatpush1.msra.mxu0 %v8492
    %8494 = vmatprep.subr.mxu0 0.0
    %v8495 = vand.u32 %v7845, 4294901760
    %8496 = vmatpush1.msra.mxu0 %v8495
    %8497 = vmatprep.subr.mxu0 0.0
    %8498 = vmatpush1.msra.mxu0 0.0
    %8499 = vmatprep.subr.mxu0 0.0
    %8500 = vmatpush1.msra.mxu0 0.0
    %8501 = vmatprep.subr.mxu0 0.0
    %8502 = vmatpush1.msra.mxu0 0.0
    %8503 = vmatprep.subr.mxu0 0.0
    %8504 = vmatpush1.msra.mxu0 0.0
    %8505 = vmatprep.subr.mxu0 0.0
    %8506 = vmatpush1.msra.mxu0 0.0
    %8507 = vmatprep.subr.mxu0 0.0
    %8508 = vmatpush1.msra.mxu0 0.0
    %8509 = vmatprep.subr.mxu0 0.0
    %8510 = vmatpush1.msra.mxu0 0.0
    %8511 = vmatprep.subr.mxu0 0.0
    %8512 = vmatpush1.msra.mxu0 0.0
    %8513 = vmatprep.subr.mxu0 0.0
    %8514 = vmatpush1.msra.mxu0 0.0
    %8515 = vmatprep.subr.mxu0 0.0
    %8516 = vmatpush1.msra.mxu0 0.0
    %8517 = vmatprep.subr.mxu0 0.0
    %8518 = vmatpush1.msra.mxu0 0.0
    %8519 = vmatprep.subr.mxu0 0.0
    %8520 = vmatpush1.msra.mxu0 0.0
    %8521 = vmatprep.subr.mxu0 0.0
    %8522 = vmatpush1.msra.mxu0 0.0
    %8523 = vmatprep.subr.mxu0 0.0
    %8524 = vmatpush1.msra.mxu0 0.0
    %8525 = vmatprep.subr.mxu0 0.0
    %8526 = vmatpush1.msra.mxu0 0.0
    %8527 = vmatprep.subr.mxu0 0.0
    %8528 = vmatpush1.msra.mxu0 0.0
    %8529 = vmatprep.subr.mxu0 0.0
    %8530 = vmatpush1.msra.mxu0 0.0
    %8531 = vmatprep.subr.mxu0 0.0
    %8532 = vmatpush1.msra.mxu0 0.0
    %8533 = vmatprep.subr.mxu0 0.0
    %8534 = vmatpush1.msra.mxu0 0.0
    %8535 = vmatprep.subr.mxu0 0.0
    %8536 = vmatpush1.msra.mxu0 0.0
    %8537 = vmatprep.subr.mxu0 0.0
    %8538 = vmatpush1.msra.mxu0 0.0
    %8539 = vmatprep.subr.mxu0 0.0
    %8540 = vmatpush1.msra.mxu0 0.0
    %8541 = vmatprep.subr.mxu0 0.0
    %8542 = vmatpush1.msra.mxu0 0.0
    %8543 = vmatprep.subr.mxu0 0.0
    %8544 = vmatpush1.msra.mxu0 0.0
    %8545 = vmatprep.subr.mxu0 0.0
    %8546 = vmatpush1.msra.mxu0 0.0
    %8547 = vmatprep.subr.mxu0 0.0
    %8548 = vmatpush1.msra.mxu0 0.0
    %8549 = vmatprep.subr.mxu0 0.0
    %8550 = vmatpush1.msra.mxu0 0.0
    %8551 = vmatprep.subr.mxu0 0.0
    %8552 = vmatpush1.msra.mxu0 0.0
    %8553 = vmatprep.subr.mxu0 0.0
    %8554 = vmatpush1.msra.mxu0 0.0
    %8555 = vmatprep.subr.mxu0 0.0
    %8556 = vmatpush1.msra.mxu0 0.0
    %8557 = vmatprep.mubr.f32.mxu0 0.0
    %v8558 = vand.u32 %v43, 4294901760
    %8559 = vmatmul.mubr.f32.gmra.mrb[0].mxu0 %v8558
    %v8560 = vpop.f32.mrb[0].mxu0
    %v8561 = vadd.f32 %v8446, %v8560
    %v8562 = vpop.f32.mrb[0].mxu0
    %8563 = vmatprep.mubr.f32.mxu0 0.0
    %v8564 = vand.u32 %v46, 4294901760
    %8565 = vmatmul.mubr.f32.gmra.mrb[0].mxu0 %v8564
    %v8566 = vpop.f32.mrb[0].mxu0
    %v8567 = vadd.f32 %v8452, %v8566
    %v8568 = vpop.f32.mrb[0].mxu0
    %8569 = vmatprep.mubr.f32.mxu0 0.0
    %v8570 = vand.u32 %v49, 4294901760
    %8571 = vmatmul.mubr.f32.gmra.mrb[0].mxu0 %v8570
    %v8572 = vpop.f32.mrb[0].mxu0
    %v8573 = vadd.f32 %v8458, %v8572
    %v8574 = vpop.f32.mrb[0].mxu0
    %8575 = vmatprep.mubr.f32.mxu0 0.0
    %v8576 = vand.u32 %v52, 4294901760
    %8577 = vmatmul.mubr.f32.gmra.mrb[0].mxu0 %v8576
    %v8578 = vpop.f32.mrb[0].mxu0
    %v8579 = vadd.f32 %v8464, %v8578
    %v8580 = vpop.f32.mrb[0].mxu0
    %8581 = vmatprep.mubr.f32.mxu0 0.0
    %v8582 = vand.u32 %v55, 4294901760
    %8583 = vmatmul.mubr.f32.gmra.mrb[0].mxu0 %v8582
    %v8584 = vpop.f32.mrb[0].mxu0
    %v8585 = vadd.f32 %v8470, %v8584
    %v8586 = vpop.f32.mrb[0].mxu0
    %8587 = vmatprep.mubr.f32.mxu0 0.0
    %v8588 = vand.u32 %v58, 4294901760
    %8589 = vmatmul.mubr.f32.gmra.mrb[0].mxu0 %v8588
    %v8590 = vpop.f32.mrb[0].mxu0
    %v8591 = vadd.f32 %v8476, %v8590
    %v8592 = vpop.f32.mrb[0].mxu0
    %8593 = vmatprep.mubr.f32.mxu0 0.0
    %v8594 = vand.u32 %v61, 4294901760
    %8595 = vmatmul.mubr.f32.gmra.mrb[0].mxu0 %v8594
    %v8596 = vpop.f32.mrb[0].mxu0
    %v8597 = vadd.f32 %v8482, %v8596
    %v8598 = vpop.f32.mrb[0].mxu0
    %8599 = vmatprep.mubr.f32.mxu0 0.0
    %v8600 = vand.u32 %v64, 4294901760
    %8601 = vmatmul.mubr.f32.gmra.mrb[0].mxu0 %v8600
    %v8602 = vpop.f32.mrb[0].mxu0
    %v8603 = vadd.f32 %v8488, %v8602
    %v8604 = vpop.f32.mrb[0].mxu0
    %8605 = vdwg.mxu0
    %v8607 = vsel %vm41, %v8561, 0
    %v8610 = vsel %vm41, %v8567, 0
    %v8613 = vsel %vm41, %v8573, 0
    %v8616 = vsel %vm41, %v8579, 0
    %v8619 = vsel %vm41, %v8585, 0
    %v8622 = vsel %vm41, %v8591, 0
    %v8625 = vsel %vm41, %v8597, 0
    %v8628 = vsel %vm41, %v8603, 0
    %8630 = vmatprep.subr.mxu0 0.0
    %v8631 = vand.u32 %v37, 4294901760
    %8632 = vmatpush1.msra.mxu0 %v8631
    %8633 = vmatprep.subr.mxu0 0.0
    %v8634 = vand.u32 %v38, 4294901760
    %8635 = vmatpush1.msra.mxu0 %v8634
    %8636 = vmatprep.subr.mxu0 0.0
    %8637 = vmatpush1.msra.mxu0 0.0
    %8638 = vmatprep.subr.mxu0 0.0
    %8639 = vmatpush1.msra.mxu0 0.0
    %8640 = vmatprep.subr.mxu0 0.0
    %8641 = vmatpush1.msra.mxu0 0.0
    %8642 = vmatprep.subr.mxu0 0.0
    %8643 = vmatpush1.msra.mxu0 0.0
    %8644 = vmatprep.subr.mxu0 0.0
    %8645 = vmatpush1.msra.mxu0 0.0
    %8646 = vmatprep.subr.mxu0 0.0
    %8647 = vmatpush1.msra.mxu0 0.0
    %8648 = vmatprep.subr.mxu0 0.0
    %8649 = vmatpush1.msra.mxu0 0.0
    %8650 = vmatprep.subr.mxu0 0.0
    %8651 = vmatpush1.msra.mxu0 0.0
    %8652 = vmatprep.subr.mxu0 0.0
    %8653 = vmatpush1.msra.mxu0 0.0
    %8654 = vmatprep.subr.mxu0 0.0
    %8655 = vmatpush1.msra.mxu0 0.0
    %8656 = vmatprep.subr.mxu0 0.0
    %8657 = vmatpush1.msra.mxu0 0.0
    %8658 = vmatprep.subr.mxu0 0.0
    %8659 = vmatpush1.msra.mxu0 0.0
    %8660 = vmatprep.subr.mxu0 0.0
    %8661 = vmatpush1.msra.mxu0 0.0
    %8662 = vmatprep.subr.mxu0 0.0
    %8663 = vmatpush1.msra.mxu0 0.0
    %8664 = vmatprep.subr.mxu0 0.0
    %8665 = vmatpush1.msra.mxu0 0.0
    %8666 = vmatprep.subr.mxu0 0.0
    %8667 = vmatpush1.msra.mxu0 0.0
    %8668 = vmatprep.subr.mxu0 0.0
    %8669 = vmatpush1.msra.mxu0 0.0
    %8670 = vmatprep.subr.mxu0 0.0
    %8671 = vmatpush1.msra.mxu0 0.0
    %8672 = vmatprep.subr.mxu0 0.0
    %8673 = vmatpush1.msra.mxu0 0.0
    %8674 = vmatprep.subr.mxu0 0.0
    %8675 = vmatpush1.msra.mxu0 0.0
    %8676 = vmatprep.subr.mxu0 0.0
    %8677 = vmatpush1.msra.mxu0 0.0
    %8678 = vmatprep.subr.mxu0 0.0
    %8679 = vmatpush1.msra.mxu0 0.0
    %8680 = vmatprep.subr.mxu0 0.0
    %8681 = vmatpush1.msra.mxu0 0.0
    %8682 = vmatprep.subr.mxu0 0.0
    %8683 = vmatpush1.msra.mxu0 0.0
    %8684 = vmatprep.subr.mxu0 0.0
    %8685 = vmatpush1.msra.mxu0 0.0
    %8686 = vmatprep.subr.mxu0 0.0
    %8687 = vmatpush1.msra.mxu0 0.0
    %8688 = vmatprep.subr.mxu0 0.0
    %8689 = vmatpush1.msra.mxu0 0.0
    %8690 = vmatprep.subr.mxu0 0.0
    %8691 = vmatpush1.msra.mxu0 0.0
    %8692 = vmatprep.subr.mxu0 0.0
    %8693 = vmatpush1.msra.mxu0 0.0
    %8694 = vmatprep.subr.mxu0 0.0
    %8695 = vmatpush1.msra.mxu0 0.0
    %8696 = vmatprep.mubr.f32.mxu0 0.0
    %v8697 = vand.u32 %v8607, 4294901760
    %v8698 = vsub.f32 %v8607, %v8697
    %v8699 = vand.u32 %v8698, 4294901760
    %v8700 = vsub.f32 %v8698, %v8699
    %v8701 = vand.u32 %v8700, 4294901760
    %8702 = vmatmul.mubr.f32.gmra.mrb[0].mxu0 %v8701
    %v8703 = vpop.f32.mrb[0].mxu0
    %v8704 = vadd.f32 0.0, %v8703
    %v8705 = vpop.f32.mrb[0].mxu0
    %8706 = vmatprep.mubr.f32.mxu0 0.0
    %v8707 = vand.u32 %v8610, 4294901760
    %v8708 = vsub.f32 %v8610, %v8707
    %v8709 = vand.u32 %v8708, 4294901760
    %v8710 = vsub.f32 %v8708, %v8709
    %v8711 = vand.u32 %v8710, 4294901760
    %8712 = vmatmul.mubr.f32.gmra.mrb[0].mxu0 %v8711
    %v8713 = vpop.f32.mrb[0].mxu0
    %v8714 = vadd.f32 0.0, %v8713
    %v8715 = vpop.f32.mrb[0].mxu0
    %8716 = vmatprep.mubr.f32.mxu0 0.0
    %v8717 = vand.u32 %v8613, 4294901760
    %v8718 = vsub.f32 %v8613, %v8717
    %v8719 = vand.u32 %v8718, 4294901760
    %v8720 = vsub.f32 %v8718, %v8719
    %v8721 = vand.u32 %v8720, 4294901760
    %8722 = vmatmul.mubr.f32.gmra.mrb[0].mxu0 %v8721
    %v8723 = vpop.f32.mrb[0].mxu0
    %v8724 = vadd.f32 0.0, %v8723
    %v8725 = vpop.f32.mrb[0].mxu0
    %8726 = vmatprep.mubr.f32.mxu0 0.0
    %v8727 = vand.u32 %v8616, 4294901760
    %v8728 = vsub.f32 %v8616, %v8727
    %v8729 = vand.u32 %v8728, 4294901760
    %v8730 = vsub.f32 %v8728, %v8729
    %v8731 = vand.u32 %v8730, 4294901760
    %8732 = vmatmul.mubr.f32.gmra.mrb[0].mxu0 %v8731
    %v8733 = vpop.f32.mrb[0].mxu0
    %v8734 = vadd.f32 0.0, %v8733
    %v8735 = vpop.f32.mrb[0].mxu0
    %8736 = vmatprep.mubr.f32.mxu0 0.0
    %v8737 = vand.u32 %v8619, 4294901760
    %v8738 = vsub.f32 %v8619, %v8737
    %v8739 = vand.u32 %v8738, 4294901760
    %v8740 = vsub.f32 %v8738, %v8739
    %v8741 = vand.u32 %v8740, 4294901760
    %8742 = vmatmul.mubr.f32.gmra.mrb[0].mxu0 %v8741
    %v8743 = vpop.f32.mrb[0].mxu0
    %v8744 = vadd.f32 0.0, %v8743
    %v8745 = vpop.f32.mrb[0].mxu0
    %8746 = vmatprep.mubr.f32.mxu0 0.0
    %v8747 = vand.u32 %v8622, 4294901760
    %v8748 = vsub.f32 %v8622, %v8747
    %v8749 = vand.u32 %v8748, 4294901760
    %v8750 = vsub.f32 %v8748, %v8749
    %v8751 = vand.u32 %v8750, 4294901760
    %8752 = vmatmul.mubr.f32.gmra.mrb[0].mxu0 %v8751
    %v8753 = vpop.f32.mrb[0].mxu0
    %v8754 = vadd.f32 0.0, %v8753
    %v8755 = vpop.f32.mrb[0].mxu0
    %8756 = vmatprep.mubr.f32.mxu0 0.0
    %v8757 = vand.u32 %v8625, 4294901760
    %v8758 = vsub.f32 %v8625, %v8757
    %v8759 = vand.u32 %v8758, 4294901760
    %v8760 = vsub.f32 %v8758, %v8759
    %v8761 = vand.u32 %v8760, 4294901760
    %8762 = vmatmul.mubr.f32.gmra.mrb[0].mxu0 %v8761
    %v8763 = vpop.f32.mrb[0].mxu0
    %v8764 = vadd.f32 0.0, %v8763
    %v8765 = vpop.f32.mrb[0].mxu0
    %8766 = vmatprep.mubr.f32.mxu0 0.0
    %v8767 = vand.u32 %v8628, 4294901760
    %v8768 = vsub.f32 %v8628, %v8767
    %v8769 = vand.u32 %v8768, 4294901760
    %v8770 = vsub.f32 %v8768, %v8769
    %v8771 = vand.u32 %v8770, 4294901760
    %8772 = vmatmul.mubr.f32.gmra.mrb[0].mxu0 %v8771
    %v8773 = vpop.f32.mrb[0].mxu0
    %v8774 = vadd.f32 0.0, %v8773
    %v8775 = vpop.f32.mrb[0].mxu0
    %8776 = vdwg.mxu0
    %8777 = vmatprep.subr.mxu0 0.0
    %v8778 = vand.u32 %v37, 4294901760
    %v8779 = vsub.f32 %v37, %v8778
    %v8780 = vand.u32 %v8779, 4294901760
    %v8781 = vsub.f32 %v8779, %v8780
    %v8782 = vand.u32 %v8781, 4294901760
    %8783 = vmatpush1.msra.mxu0 %v8782
    %8784 = vmatprep.subr.mxu0 0.0
    %v8785 = vand.u32 %v38, 4294901760
    %v8786 = vsub.f32 %v38, %v8785
    %v8787 = vand.u32 %v8786, 4294901760
    %v8788 = vsub.f32 %v8786, %v8787
    %v8789 = vand.u32 %v8788, 4294901760
    %8790 = vmatpush1.msra.mxu0 %v8789
    %8791 = vmatprep.subr.mxu0 0.0
    %8792 = vmatpush1.msra.mxu0 0.0
    %8793 = vmatprep.subr.mxu0 0.0
    %8794 = vmatpush1.msra.mxu0 0.0
    %8795 = vmatprep.subr.mxu0 0.0
    %8796 = vmatpush1.msra.mxu0 0.0
    %8797 = vmatprep.subr.mxu0 0.0
    %8798 = vmatpush1.msra.mxu0 0.0
    %8799 = vmatprep.subr.mxu0 0.0
    %8800 = vmatpush1.msra.mxu0 0.0
    %8801 = vmatprep.subr.mxu0 0.0
    %8802 = vmatpush1.msra.mxu0 0.0
    %8803 = vmatprep.subr.mxu0 0.0
    %8804 = vmatpush1.msra.mxu0 0.0
    %8805 = vmatprep.subr.mxu0 0.0
    %8806 = vmatpush1.msra.mxu0 0.0
    %8807 = vmatprep.subr.mxu0 0.0
    %8808 = vmatpush1.msra.mxu0 0.0
    %8809 = vmatprep.subr.mxu0 0.0
    %8810 = vmatpush1.msra.mxu0 0.0
    %8811 = vmatprep.subr.mxu0 0.0
    %8812 = vmatpush1.msra.mxu0 0.0
    %8813 = vmatprep.subr.mxu0 0.0
    %8814 = vmatpush1.msra.mxu0 0.0
    %8815 = vmatprep.subr.mxu0 0.0
    %8816 = vmatpush1.msra.mxu0 0.0
    %8817 = vmatprep.subr.mxu0 0.0
    %8818 = vmatpush1.msra.mxu0 0.0
    %8819 = vmatprep.subr.mxu0 0.0
    %8820 = vmatpush1.msra.mxu0 0.0
    %8821 = vmatprep.subr.mxu0 0.0
    %8822 = vmatpush1.msra.mxu0 0.0
    %8823 = vmatprep.subr.mxu0 0.0
    %8824 = vmatpush1.msra.mxu0 0.0
    %8825 = vmatprep.subr.mxu0 0.0
    %8826 = vmatpush1.msra.mxu0 0.0
    %8827 = vmatprep.subr.mxu0 0.0
    %8828 = vmatpush1.msra.mxu0 0.0
    %8829 = vmatprep.subr.mxu0 0.0
    %8830 = vmatpush1.msra.mxu0 0.0
    %8831 = vmatprep.subr.mxu0 0.0
    %8832 = vmatpush1.msra.mxu0 0.0
    %8833 = vmatprep.subr.mxu0 0.0
    %8834 = vmatpush1.msra.mxu0 0.0
    %8835 = vmatprep.subr.mxu0 0.0
    %8836 = vmatpush1.msra.mxu0 0.0
    %8837 = vmatprep.subr.mxu0 0.0
    %8838 = vmatpush1.msra.mxu0 0.0
    %8839 = vmatprep.subr.mxu0 0.0
    %8840 = vmatpush1.msra.mxu0 0.0
    %8841 = vmatprep.subr.mxu0 0.0
    %8842 = vmatpush1.msra.mxu0 0.0
    %8843 = vmatprep.subr.mxu0 0.0
    %8844 = vmatpush1.msra.mxu0 0.0
    %8845 = vmatprep.subr.mxu0 0.0
    %8846 = vmatpush1.msra.mxu0 0.0
    %8847 = vmatprep.subr.mxu0 0.0
    %8848 = vmatpush1.msra.mxu0 0.0
    %8849 = vmatprep.subr.mxu0 0.0
    %8850 = vmatpush1.msra.mxu0 0.0
    %8851 = vmatprep.mubr.f32.mxu0 0.0
    %v8852 = vand.u32 %v8607, 4294901760
    %8853 = vmatmul.mubr.f32.gmra.mrb[0].mxu0 %v8852
    %v8854 = vpop.f32.mrb[0].mxu0
    %v8855 = vadd.f32 %v8704, %v8854
    %v8856 = vpop.f32.mrb[0].mxu0
    %8857 = vmatprep.mubr.f32.mxu0 0.0
    %v8858 = vand.u32 %v8610, 4294901760
    %8859 = vmatmul.mubr.f32.gmra.mrb[0].mxu0 %v8858
    %v8860 = vpop.f32.mrb[0].mxu0
    %v8861 = vadd.f32 %v8714, %v8860
    %v8862 = vpop.f32.mrb[0].mxu0
    %8863 = vmatprep.mubr.f32.mxu0 0.0
    %v8864 = vand.u32 %v8613, 4294901760
    %8865 = vmatmul.mubr.f32.gmra.mrb[0].mxu0 %v8864
    %v8866 = vpop.f32.mrb[0].mxu0
    %v8867 = vadd.f32 %v8724, %v8866
    %v8868 = vpop.f32.mrb[0].mxu0
    %8869 = vmatprep.mubr.f32.mxu0 0.0
    %v8870 = vand.u32 %v8616, 4294901760
    %8871 = vmatmul.mubr.f32.gmra.mrb[0].mxu0 %v8870
    %v8872 = vpop.f32.mrb[0].mxu0
    %v8873 = vadd.f32 %v8734, %v8872
    %v8874 = vpop.f32.mrb[0].mxu0
    %8875 = vmatprep.mubr.f32.mxu0 0.0
    %v8876 = vand.u32 %v8619, 4294901760
    %8877 = vmatmul.mubr.f32.gmra.mrb[0].mxu0 %v8876
    %v8878 = vpop.f32.mrb[0].mxu0
    %v8879 = vadd.f32 %v8744, %v8878
    %v8880 = vpop.f32.mrb[0].mxu0
    %8881 = vmatprep.mubr.f32.mxu0 0.0
    %v8882 = vand.u32 %v8622, 4294901760
    %8883 = vmatmul.mubr.f32.gmra.mrb[0].mxu0 %v8882
    %v8884 = vpop.f32.mrb[0].mxu0
    %v8885 = vadd.f32 %v8754, %v8884
    %v8886 = vpop.f32.mrb[0].mxu0
    %8887 = vmatprep.mubr.f32.mxu0 0.0
    %v8888 = vand.u32 %v8625, 4294901760
    %8889 = vmatmul.mubr.f32.gmra.mrb[0].mxu0 %v8888
    %v8890 = vpop.f32.mrb[0].mxu0
    %v8891 = vadd.f32 %v8764, %v8890
    %v8892 = vpop.f32.mrb[0].mxu0
    %8893 = vmatprep.mubr.f32.mxu0 0.0
    %v8894 = vand.u32 %v8628, 4294901760
    %8895 = vmatmul.mubr.f32.gmra.mrb[0].mxu0 %v8894
    %v8896 = vpop.f32.mrb[0].mxu0
    %v8897 = vadd.f32 %v8774, %v8896
    %v8898 = vpop.f32.mrb[0].mxu0
    %8899 = vdwg.mxu0
    %8900 = vmatprep.subr.mxu0 0.0
    %v8901 = vand.u32 %v37, 4294901760
    %v8902 = vsub.f32 %v37, %v8901
    %8903 = vmatpush1.msra.mxu0 %v8902
    %8904 = vmatprep.subr.mxu0 0.0
    %v8905 = vand.u32 %v38, 4294901760
    %v8906 = vsub.f32 %v38, %v8905
    %8907 = vmatpush1.msra.mxu0 %v8906
    %8908 = vmatprep.subr.mxu0 0.0
    %8909 = vmatpush1.msra.mxu0 0.0
    %8910 = vmatprep.subr.mxu0 0.0
    %8911 = vmatpush1.msra.mxu0 0.0
    %8912 = vmatprep.subr.mxu0 0.0
    %8913 = vmatpush1.msra.mxu0 0.0
    %8914 = vmatprep.subr.mxu0 0.0
    %8915 = vmatpush1.msra.mxu0 0.0
    %8916 = vmatprep.subr.mxu0 0.0
    %8917 = vmatpush1.msra.mxu0 0.0
    %8918 = vmatprep.subr.mxu0 0.0
    %8919 = vmatpush1.msra.mxu0 0.0
    %8920 = vmatprep.subr.mxu0 0.0
    %8921 = vmatpush1.msra.mxu0 0.0
    %8922 = vmatprep.subr.mxu0 0.0
    %8923 = vmatpush1.msra.mxu0 0.0
    %8924 = vmatprep.subr.mxu0 0.0
    %8925 = vmatpush1.msra.mxu0 0.0
    %8926 = vmatprep.subr.mxu0 0.0
    %8927 = vmatpush1.msra.mxu0 0.0
    %8928 = vmatprep.subr.mxu0 0.0
    %8929 = vmatpush1.msra.mxu0 0.0
    %8930 = vmatprep.subr.mxu0 0.0
    %8931 = vmatpush1.msra.mxu0 0.0
    %8932 = vmatprep.subr.mxu0 0.0
    %8933 = vmatpush1.msra.mxu0 0.0
    %8934 = vmatprep.subr.mxu0 0.0
    %8935 = vmatpush1.msra.mxu0 0.0
    %8936 = vmatprep.subr.mxu0 0.0
    %8937 = vmatpush1.msra.mxu0 0.0
    %8938 = vmatprep.subr.mxu0 0.0
    %8939 = vmatpush1.msra.mxu0 0.0
    %8940 = vmatprep.subr.mxu0 0.0
    %8941 = vmatpush1.msra.mxu0 0.0
    %8942 = vmatprep.subr.mxu0 0.0
    %8943 = vmatpush1.msra.mxu0 0.0
    %8944 = vmatprep.subr.mxu0 0.0
    %8945 = vmatpush1.msra.mxu0 0.0
    %8946 = vmatprep.subr.mxu0 0.0
    %8947 = vmatpush1.msra.mxu0 0.0
    %8948 = vmatprep.subr.mxu0 0.0
    %8949 = vmatpush1.msra.mxu0 0.0
    %8950 = vmatprep.subr.mxu0 0.0
    %8951 = vmatpush1.msra.mxu0 0.0
    %8952 = vmatprep.subr.mxu0 0.0
    %8953 = vmatpush1.msra.mxu0 0.0
    %8954 = vmatprep.subr.mxu0 0.0
    %8955 = vmatpush1.msra.mxu0 0.0
    %8956 = vmatprep.subr.mxu0 0.0
    %8957 = vmatpush1.msra.mxu0 0.0
    %8958 = vmatprep.subr.mxu0 0.0
    %8959 = vmatpush1.msra.mxu0 0.0
    %8960 = vmatprep.subr.mxu0 0.0
    %8961 = vmatpush1.msra.mxu0 0.0
    %8962 = vmatprep.subr.mxu0 0.0
    %8963 = vmatpush1.msra.mxu0 0.0
    %8964 = vmatprep.subr.mxu0 0.0
    %8965 = vmatpush1.msra.mxu0 0.0
    %8966 = vmatprep.subr.mxu0 0.0
    %8967 = vmatpush1.msra.mxu0 0.0
    %8968 = vmatprep.mubr.f32.mxu0 0.0
    %v8969 = vand.u32 %v8607, 4294901760
    %v8970 = vsub.f32 %v8607, %v8969
    %8971 = vmatmul.mubr.f32.gmra.mrb[0].mxu0 %v8970
    %v8972 = vpop.f32.mrb[0].mxu0
    %v8973 = vadd.f32 %v8855, %v8972
    %v8974 = vpop.f32.mrb[0].mxu0
    %8975 = vmatprep.mubr.f32.mxu0 0.0
    %v8976 = vand.u32 %v8610, 4294901760
    %v8977 = vsub.f32 %v8610, %v8976
    %8978 = vmatmul.mubr.f32.gmra.mrb[0].mxu0 %v8977
    %v8979 = vpop.f32.mrb[0].mxu0
    %v8980 = vadd.f32 %v8861, %v8979
    %v8981 = vpop.f32.mrb[0].mxu0
    %8982 = vmatprep.mubr.f32.mxu0 0.0
    %v8983 = vand.u32 %v8613, 4294901760
    %v8984 = vsub.f32 %v8613, %v8983
    %8985 = vmatmul.mubr.f32.gmra.mrb[0].mxu0 %v8984
    %v8986 = vpop.f32.mrb[0].mxu0
    %v8987 = vadd.f32 %v8867, %v8986
    %v8988 = vpop.f32.mrb[0].mxu0
    %8989 = vmatprep.mubr.f32.mxu0 0.0
    %v8990 = vand.u32 %v8616, 4294901760
    %v8991 = vsub.f32 %v8616, %v8990
    %8992 = vmatmul.mubr.f32.gmra.mrb[0].mxu0 %v8991
    %v8993 = vpop.f32.mrb[0].mxu0
    %v8994 = vadd.f32 %v8873, %v8993
    %v8995 = vpop.f32.mrb[0].mxu0
    %8996 = vmatprep.mubr.f32.mxu0 0.0
    %v8997 = vand.u32 %v8619, 4294901760
    %v8998 = vsub.f32 %v8619, %v8997
    %8999 = vmatmul.mubr.f32.gmra.mrb[0].mxu0 %v8998
    %v9000 = vpop.f32.mrb[0].mxu0
    %v9001 = vadd.f32 %v8879, %v9000
    %v9002 = vpop.f32.mrb[0].mxu0
    %9003 = vmatprep.mubr.f32.mxu0 0.0
    %v9004 = vand.u32 %v8622, 4294901760
    %v9005 = vsub.f32 %v8622, %v9004
    %9006 = vmatmul.mubr.f32.gmra.mrb[0].mxu0 %v9005
    %v9007 = vpop.f32.mrb[0].mxu0
    %v9008 = vadd.f32 %v8885, %v9007
    %v9009 = vpop.f32.mrb[0].mxu0
    %9010 = vmatprep.mubr.f32.mxu0 0.0
    %v9011 = vand.u32 %v8625, 4294901760
    %v9012 = vsub.f32 %v8625, %v9011
    %9013 = vmatmul.mubr.f32.gmra.mrb[0].mxu0 %v9012
    %v9014 = vpop.f32.mrb[0].mxu0
    %v9015 = vadd.f32 %v8891, %v9014
    %v9016 = vpop.f32.mrb[0].mxu0
    %9017 = vmatprep.mubr.f32.mxu0 0.0
    %v9018 = vand.u32 %v8628, 4294901760
    %v9019 = vsub.f32 %v8628, %v9018
    %9020 = vmatmul.mubr.f32.gmra.mrb[0].mxu0 %v9019
    %v9021 = vpop.f32.mrb[0].mxu0
    %v9022 = vadd.f32 %v8897, %v9021
    %v9023 = vpop.f32.mrb[0].mxu0
    %9024 = vdwg.mxu0
    %9025 = vmatprep.subr.mxu0 0.0
    %v9026 = vand.u32 %v37, 4294901760
    %9027 = vmatpush1.msra.mxu0 %v9026
    %9028 = vmatprep.subr.mxu0 0.0
    %v9029 = vand.u32 %v38, 4294901760
    %9030 = vmatpush1.msra.mxu0 %v9029
    %9031 = vmatprep.subr.mxu0 0.0
    %9032 = vmatpush1.msra.mxu0 0.0
    %9033 = vmatprep.subr.mxu0 0.0
    %9034 = vmatpush1.msra.mxu0 0.0
    %9035 = vmatprep.subr.mxu0 0.0
    %9036 = vmatpush1.msra.mxu0 0.0
    %9037 = vmatprep.subr.mxu0 0.0
    %9038 = vmatpush1.msra.mxu0 0.0
    %9039 = vmatprep.subr.mxu0 0.0
    %9040 = vmatpush1.msra.mxu0 0.0
    %9041 = vmatprep.subr.mxu0 0.0
    %9042 = vmatpush1.msra.mxu0 0.0
    %9043 = vmatprep.subr.mxu0 0.0
    %9044 = vmatpush1.msra.mxu0 0.0
    %9045 = vmatprep.subr.mxu0 0.0
    %9046 = vmatpush1.msra.mxu0 0.0
    %9047 = vmatprep.subr.mxu0 0.0
    %9048 = vmatpush1.msra.mxu0 0.0
    %9049 = vmatprep.subr.mxu0 0.0
    %9050 = vmatpush1.msra.mxu0 0.0
    %9051 = vmatprep.subr.mxu0 0.0
    %9052 = vmatpush1.msra.mxu0 0.0
    %9053 = vmatprep.subr.mxu0 0.0
    %9054 = vmatpush1.msra.mxu0 0.0
    %9055 = vmatprep.subr.mxu0 0.0
    %9056 = vmatpush1.msra.mxu0 0.0
    %9057 = vmatprep.subr.mxu0 0.0
    %9058 = vmatpush1.msra.mxu0 0.0
    %9059 = vmatprep.subr.mxu0 0.0
    %9060 = vmatpush1.msra.mxu0 0.0
    %9061 = vmatprep.subr.mxu0 0.0
    %9062 = vmatpush1.msra.mxu0 0.0
    %9063 = vmatprep.subr.mxu0 0.0
    %9064 = vmatpush1.msra.mxu0 0.0
    %9065 = vmatprep.subr.mxu0 0.0
    %9066 = vmatpush1.msra.mxu0 0.0
    %9067 = vmatprep.subr.mxu0 0.0
    %9068 = vmatpush1.msra.mxu0 0.0
    %9069 = vmatprep.subr.mxu0 0.0
    %9070 = vmatpush1.msra.mxu0 0.0
    %9071 = vmatprep.subr.mxu0 0.0
    %9072 = vmatpush1.msra.mxu0 0.0
    %9073 = vmatprep.subr.mxu0 0.0
    %9074 = vmatpush1.msra.mxu0 0.0
    %9075 = vmatprep.subr.mxu0 0.0
    %9076 = vmatpush1.msra.mxu0 0.0
    %9077 = vmatprep.subr.mxu0 0.0
    %9078 = vmatpush1.msra.mxu0 0.0
    %9079 = vmatprep.subr.mxu0 0.0
    %9080 = vmatpush1.msra.mxu0 0.0
    %9081 = vmatprep.subr.mxu0 0.0
    %9082 = vmatpush1.msra.mxu0 0.0
    %9083 = vmatprep.subr.mxu0 0.0
    %9084 = vmatpush1.msra.mxu0 0.0
    %9085 = vmatprep.subr.mxu0 0.0
    %9086 = vmatpush1.msra.mxu0 0.0
    %9087 = vmatprep.subr.mxu0 0.0
    %9088 = vmatpush1.msra.mxu0 0.0
    %9089 = vmatprep.subr.mxu0 0.0
    %9090 = vmatpush1.msra.mxu0 0.0
    %9091 = vmatprep.mubr.f32.mxu0 0.0
    %v9092 = vand.u32 %v8607, 4294901760
    %v9093 = vsub.f32 %v8607, %v9092
    %v9094 = vand.u32 %v9093, 4294901760
    %9095 = vmatmul.mubr.f32.gmra.mrb[0].mxu0 %v9094
    %v9096 = vpop.f32.mrb[0].mxu0
    %v9097 = vadd.f32 %v8973, %v9096
    %v9098 = vpop.f32.mrb[0].mxu0
    %9099 = vmatprep.mubr.f32.mxu0 0.0
    %v9100 = vand.u32 %v8610, 4294901760
    %v9101 = vsub.f32 %v8610, %v9100
    %v9102 = vand.u32 %v9101, 4294901760
    %9103 = vmatmul.mubr.f32.gmra.mrb[0].mxu0 %v9102
    %v9104 = vpop.f32.mrb[0].mxu0
    %v9105 = vadd.f32 %v8980, %v9104
    %v9106 = vpop.f32.mrb[0].mxu0
    %9107 = vmatprep.mubr.f32.mxu0 0.0
    %v9108 = vand.u32 %v8613, 4294901760
    %v9109 = vsub.f32 %v8613, %v9108
    %v9110 = vand.u32 %v9109, 4294901760
    %9111 = vmatmul.mubr.f32.gmra.mrb[0].mxu0 %v9110
    %v9112 = vpop.f32.mrb[0].mxu0
    %v9113 = vadd.f32 %v8987, %v9112
    %v9114 = vpop.f32.mrb[0].mxu0
    %9115 = vmatprep.mubr.f32.mxu0 0.0
    %v9116 = vand.u32 %v8616, 4294901760
    %v9117 = vsub.f32 %v8616, %v9116
    %v9118 = vand.u32 %v9117, 4294901760
    %9119 = vmatmul.mubr.f32.gmra.mrb[0].mxu0 %v9118
    %v9120 = vpop.f32.mrb[0].mxu0
    %v9121 = vadd.f32 %v8994, %v9120
    %v9122 = vpop.f32.mrb[0].mxu0
    %9123 = vmatprep.mubr.f32.mxu0 0.0
    %v9124 = vand.u32 %v8619, 4294901760
    %v9125 = vsub.f32 %v8619, %v9124
    %v9126 = vand.u32 %v9125, 4294901760
    %9127 = vmatmul.mubr.f32.gmra.mrb[0].mxu0 %v9126
    %v9128 = vpop.f32.mrb[0].mxu0
    %v9129 = vadd.f32 %v9001, %v9128
    %v9130 = vpop.f32.mrb[0].mxu0
    %9131 = vmatprep.mubr.f32.mxu0 0.0
    %v9132 = vand.u32 %v8622, 4294901760
    %v9133 = vsub.f32 %v8622, %v9132
    %v9134 = vand.u32 %v9133, 4294901760
    %9135 = vmatmul.mubr.f32.gmra.mrb[0].mxu0 %v9134
    %v9136 = vpop.f32.mrb[0].mxu0
    %v9137 = vadd.f32 %v9008, %v9136
    %v9138 = vpop.f32.mrb[0].mxu0
    %9139 = vmatprep.mubr.f32.mxu0 0.0
    %v9140 = vand.u32 %v8625, 4294901760
    %v9141 = vsub.f32 %v8625, %v9140
    %v9142 = vand.u32 %v9141, 4294901760
    %9143 = vmatmul.mubr.f32.gmra.mrb[0].mxu0 %v9142
    %v9144 = vpop.f32.mrb[0].mxu0
    %v9145 = vadd.f32 %v9015, %v9144
    %v9146 = vpop.f32.mrb[0].mxu0
    %9147 = vmatprep.mubr.f32.mxu0 0.0
    %v9148 = vand.u32 %v8628, 4294901760
    %v9149 = vsub.f32 %v8628, %v9148
    %v9150 = vand.u32 %v9149, 4294901760
    %9151 = vmatmul.mubr.f32.gmra.mrb[0].mxu0 %v9150
    %v9152 = vpop.f32.mrb[0].mxu0
    %v9153 = vadd.f32 %v9022, %v9152
    %v9154 = vpop.f32.mrb[0].mxu0
    %9155 = vdwg.mxu0
    %9156 = vmatprep.subr.mxu0 0.0
    %v9157 = vand.u32 %v37, 4294901760
    %v9158 = vsub.f32 %v37, %v9157
    %v9159 = vand.u32 %v9158, 4294901760
    %9160 = vmatpush1.msra.mxu0 %v9159
    %9161 = vmatprep.subr.mxu0 0.0
    %v9162 = vand.u32 %v38, 4294901760
    %v9163 = vsub.f32 %v38, %v9162
    %v9164 = vand.u32 %v9163, 4294901760
    %9165 = vmatpush1.msra.mxu0 %v9164
    %9166 = vmatprep.subr.mxu0 0.0
    %9167 = vmatpush1.msra.mxu0 0.0
    %9168 = vmatprep.subr.mxu0 0.0
    %9169 = vmatpush1.msra.mxu0 0.0
    %9170 = vmatprep.subr.mxu0 0.0
    %9171 = vmatpush1.msra.mxu0 0.0
    %9172 = vmatprep.subr.mxu0 0.0
    %9173 = vmatpush1.msra.mxu0 0.0
    %9174 = vmatprep.subr.mxu0 0.0
    %9175 = vmatpush1.msra.mxu0 0.0
    %9176 = vmatprep.subr.mxu0 0.0
    %9177 = vmatpush1.msra.mxu0 0.0
    %9178 = vmatprep.subr.mxu0 0.0
    %9179 = vmatpush1.msra.mxu0 0.0
    %9180 = vmatprep.subr.mxu0 0.0
    %9181 = vmatpush1.msra.mxu0 0.0
    %9182 = vmatprep.subr.mxu0 0.0
    %9183 = vmatpush1.msra.mxu0 0.0
    %9184 = vmatprep.subr.mxu0 0.0
    %9185 = vmatpush1.msra.mxu0 0.0
    %9186 = vmatprep.subr.mxu0 0.0
    %9187 = vmatpush1.msra.mxu0 0.0
    %9188 = vmatprep.subr.mxu0 0.0
    %9189 = vmatpush1.msra.mxu0 0.0
    %9190 = vmatprep.subr.mxu0 0.0
    %9191 = vmatpush1.msra.mxu0 0.0
    %9192 = vmatprep.subr.mxu0 0.0
    %9193 = vmatpush1.msra.mxu0 0.0
    %9194 = vmatprep.subr.mxu0 0.0
    %9195 = vmatpush1.msra.mxu0 0.0
    %9196 = vmatprep.subr.mxu0 0.0
    %9197 = vmatpush1.msra.mxu0 0.0
    %9198 = vmatprep.subr.mxu0 0.0
    %9199 = vmatpush1.msra.mxu0 0.0
    %9200 = vmatprep.subr.mxu0 0.0
    %9201 = vmatpush1.msra.mxu0 0.0
    %9202 = vmatprep.subr.mxu0 0.0
    %9203 = vmatpush1.msra.mxu0 0.0
    %9204 = vmatprep.subr.mxu0 0.0
    %9205 = vmatpush1.msra.mxu0 0.0
    %9206 = vmatprep.subr.mxu0 0.0
    %9207 = vmatpush1.msra.mxu0 0.0
    %9208 = vmatprep.subr.mxu0 0.0
    %9209 = vmatpush1.msra.mxu0 0.0
    %9210 = vmatprep.subr.mxu0 0.0
    %9211 = vmatpush1.msra.mxu0 0.0
    %9212 = vmatprep.subr.mxu0 0.0
    %9213 = vmatpush1.msra.mxu0 0.0
    %9214 = vmatprep.subr.mxu0 0.0
    %9215 = vmatpush1.msra.mxu0 0.0
    %9216 = vmatprep.subr.mxu0 0.0
    %9217 = vmatpush1.msra.mxu0 0.0
    %9218 = vmatprep.subr.mxu0 0.0
    %9219 = vmatpush1.msra.mxu0 0.0
    %9220 = vmatprep.subr.mxu0 0.0
    %9221 = vmatpush1.msra.mxu0 0.0
    %9222 = vmatprep.subr.mxu0 0.0
    %9223 = vmatpush1.msra.mxu0 0.0
    %9224 = vmatprep.subr.mxu0 0.0
    %9225 = vmatpush1.msra.mxu0 0.0
    %9226 = vmatprep.mubr.f32.mxu0 0.0
    %v9227 = vand.u32 %v8607, 4294901760
    %9228 = vmatmul.mubr.f32.gmra.mrb[0].mxu0 %v9227
    %v9229 = vpop.f32.mrb[0].mxu0
    %v9230 = vadd.f32 %v9097, %v9229
    %v9231 = vpop.f32.mrb[0].mxu0
    %9232 = vmatprep.mubr.f32.mxu0 0.0
    %v9233 = vand.u32 %v8610, 4294901760
    %9234 = vmatmul.mubr.f32.gmra.mrb[0].mxu0 %v9233
    %v9235 = vpop.f32.mrb[0].mxu0
    %v9236 = vadd.f32 %v9105, %v9235
    %v9237 = vpop.f32.mrb[0].mxu0
    %9238 = vmatprep.mubr.f32.mxu0 0.0
    %v9239 = vand.u32 %v8613, 4294901760
    %9240 = vmatmul.mubr.f32.gmra.mrb[0].mxu0 %v9239
    %v9241 = vpop.f32.mrb[0].mxu0
    %v9242 = vadd.f32 %v9113, %v9241
    %v9243 = vpop.f32.mrb[0].mxu0
    %9244 = vmatprep.mubr.f32.mxu0 0.0
    %v9245 = vand.u32 %v8616, 4294901760
    %9246 = vmatmul.mubr.f32.gmra.mrb[0].mxu0 %v9245
    %v9247 = vpop.f32.mrb[0].mxu0
    %v9248 = vadd.f32 %v9121, %v9247
    %v9249 = vpop.f32.mrb[0].mxu0
    %9250 = vmatprep.mubr.f32.mxu0 0.0
    %v9251 = vand.u32 %v8619, 4294901760
    %9252 = vmatmul.mubr.f32.gmra.mrb[0].mxu0 %v9251
    %v9253 = vpop.f32.mrb[0].mxu0
    %v9254 = vadd.f32 %v9129, %v9253
    %v9255 = vpop.f32.mrb[0].mxu0
    %9256 = vmatprep.mubr.f32.mxu0 0.0
    %v9257 = vand.u32 %v8622, 4294901760
    %9258 = vmatmul.mubr.f32.gmra.mrb[0].mxu0 %v9257
    %v9259 = vpop.f32.mrb[0].mxu0
    %v9260 = vadd.f32 %v9137, %v9259
    %v9261 = vpop.f32.mrb[0].mxu0
    %9262 = vmatprep.mubr.f32.mxu0 0.0
    %v9263 = vand.u32 %v8625, 4294901760
    %9264 = vmatmul.mubr.f32.gmra.mrb[0].mxu0 %v9263
    %v9265 = vpop.f32.mrb[0].mxu0
    %v9266 = vadd.f32 %v9145, %v9265
    %v9267 = vpop.f32.mrb[0].mxu0
    %9268 = vmatprep.mubr.f32.mxu0 0.0
    %v9269 = vand.u32 %v8628, 4294901760
    %9270 = vmatmul.mubr.f32.gmra.mrb[0].mxu0 %v9269
    %v9271 = vpop.f32.mrb[0].mxu0
    %v9272 = vadd.f32 %v9153, %v9271
    %v9273 = vpop.f32.mrb[0].mxu0
    %9274 = vdwg.mxu0
    %9275 = vmatprep.subr.mxu0 0.0
    %v9276 = vand.u32 %v37, 4294901760
    %9277 = vmatpush1.msra.mxu0 %v9276
    %9278 = vmatprep.subr.mxu0 0.0
    %v9279 = vand.u32 %v38, 4294901760
    %9280 = vmatpush1.msra.mxu0 %v9279
    %9281 = vmatprep.subr.mxu0 0.0
    %9282 = vmatpush1.msra.mxu0 0.0
    %9283 = vmatprep.subr.mxu0 0.0
    %9284 = vmatpush1.msra.mxu0 0.0
    %9285 = vmatprep.subr.mxu0 0.0
    %9286 = vmatpush1.msra.mxu0 0.0
    %9287 = vmatprep.subr.mxu0 0.0
    %9288 = vmatpush1.msra.mxu0 0.0
    %9289 = vmatprep.subr.mxu0 0.0
    %9290 = vmatpush1.msra.mxu0 0.0
    %9291 = vmatprep.subr.mxu0 0.0
    %9292 = vmatpush1.msra.mxu0 0.0
    %9293 = vmatprep.subr.mxu0 0.0
    %9294 = vmatpush1.msra.mxu0 0.0
    %9295 = vmatprep.subr.mxu0 0.0
    %9296 = vmatpush1.msra.mxu0 0.0
    %9297 = vmatprep.subr.mxu0 0.0
    %9298 = vmatpush1.msra.mxu0 0.0
    %9299 = vmatprep.subr.mxu0 0.0
    %9300 = vmatpush1.msra.mxu0 0.0
    %9301 = vmatprep.subr.mxu0 0.0
    %9302 = vmatpush1.msra.mxu0 0.0
    %9303 = vmatprep.subr.mxu0 0.0
    %9304 = vmatpush1.msra.mxu0 0.0
    %9305 = vmatprep.subr.mxu0 0.0
    %9306 = vmatpush1.msra.mxu0 0.0
    %9307 = vmatprep.subr.mxu0 0.0
    %9308 = vmatpush1.msra.mxu0 0.0
    %9309 = vmatprep.subr.mxu0 0.0
    %9310 = vmatpush1.msra.mxu0 0.0
    %9311 = vmatprep.subr.mxu0 0.0
    %9312 = vmatpush1.msra.mxu0 0.0
    %9313 = vmatprep.subr.mxu0 0.0
    %9314 = vmatpush1.msra.mxu0 0.0
    %9315 = vmatprep.subr.mxu0 0.0
    %9316 = vmatpush1.msra.mxu0 0.0
    %9317 = vmatprep.subr.mxu0 0.0
    %9318 = vmatpush1.msra.mxu0 0.0
    %9319 = vmatprep.subr.mxu0 0.0
    %9320 = vmatpush1.msra.mxu0 0.0
    %9321 = vmatprep.subr.mxu0 0.0
    %9322 = vmatpush1.msra.mxu0 0.0
    %9323 = vmatprep.subr.mxu0 0.0
    %9324 = vmatpush1.msra.mxu0 0.0
    %9325 = vmatprep.subr.mxu0 0.0
    %9326 = vmatpush1.msra.mxu0 0.0
    %9327 = vmatprep.subr.mxu0 0.0
    %9328 = vmatpush1.msra.mxu0 0.0
    %9329 = vmatprep.subr.mxu0 0.0
    %9330 = vmatpush1.msra.mxu0 0.0
    %9331 = vmatprep.subr.mxu0 0.0
    %9332 = vmatpush1.msra.mxu0 0.0
    %9333 = vmatprep.subr.mxu0 0.0
    %9334 = vmatpush1.msra.mxu0 0.0
    %9335 = vmatprep.subr.mxu0 0.0
    %9336 = vmatpush1.msra.mxu0 0.0
    %9337 = vmatprep.subr.mxu0 0.0
    %9338 = vmatpush1.msra.mxu0 0.0
    %9339 = vmatprep.subr.mxu0 0.0
    %9340 = vmatpush1.msra.mxu0 0.0
    %9341 = vmatprep.mubr.f32.mxu0 0.0
    %v9342 = vand.u32 %v8607, 4294901760
    %9343 = vmatmul.mubr.f32.gmra.mrb[0].mxu0 %v9342
    %v9344 = vpop.f32.mrb[0].mxu0
    %v9345 = vadd.f32 %v9230, %v9344
    %v9346 = vpop.f32.mrb[0].mxu0
    %9347 = vmatprep.mubr.f32.mxu0 0.0
    %v9348 = vand.u32 %v8610, 4294901760
    %9349 = vmatmul.mubr.f32.gmra.mrb[0].mxu0 %v9348
    %v9350 = vpop.f32.mrb[0].mxu0
    %v9351 = vadd.f32 %v9236, %v9350
    %v9352 = vpop.f32.mrb[0].mxu0
    %9353 = vmatprep.mubr.f32.mxu0 0.0
    %v9354 = vand.u32 %v8613, 4294901760
    %9355 = vmatmul.mubr.f32.gmra.mrb[0].mxu0 %v9354
    %v9356 = vpop.f32.mrb[0].mxu0
    %v9357 = vadd.f32 %v9242, %v9356
    %v9358 = vpop.f32.mrb[0].mxu0
    %9359 = vmatprep.mubr.f32.mxu0 0.0
    %v9360 = vand.u32 %v8616, 4294901760
    %9361 = vmatmul.mubr.f32.gmra.mrb[0].mxu0 %v9360
    %v9362 = vpop.f32.mrb[0].mxu0
    %v9363 = vadd.f32 %v9248, %v9362
    %v9364 = vpop.f32.mrb[0].mxu0
    %9365 = vmatprep.mubr.f32.mxu0 0.0
    %v9366 = vand.u32 %v8619, 4294901760
    %9367 = vmatmul.mubr.f32.gmra.mrb[0].mxu0 %v9366
    %v9368 = vpop.f32.mrb[0].mxu0
    %v9369 = vadd.f32 %v9254, %v9368
    %v9370 = vpop.f32.mrb[0].mxu0
    %9371 = vmatprep.mubr.f32.mxu0 0.0
    %v9372 = vand.u32 %v8622, 4294901760
    %9373 = vmatmul.mubr.f32.gmra.mrb[0].mxu0 %v9372
    %v9374 = vpop.f32.mrb[0].mxu0
    %v9375 = vadd.f32 %v9260, %v9374
    %v9376 = vpop.f32.mrb[0].mxu0
    %9377 = vmatprep.mubr.f32.mxu0 0.0
    %v9378 = vand.u32 %v8625, 4294901760
    %9379 = vmatmul.mubr.f32.gmra.mrb[0].mxu0 %v9378
    %v9380 = vpop.f32.mrb[0].mxu0
    %v9381 = vadd.f32 %v9266, %v9380
    %v9382 = vpop.f32.mrb[0].mxu0
    %9383 = vmatprep.mubr.f32.mxu0 0.0
    %v9384 = vand.u32 %v8628, 4294901760
    %9385 = vmatmul.mubr.f32.gmra.mrb[0].mxu0 %v9384
    %v9386 = vpop.f32.mrb[0].mxu0
    %v9387 = vadd.f32 %v9272, %v9386
    %v9388 = vpop.f32.mrb[0].mxu0
    %9389 = vdwg.mxu0
    %s9390 = scalar_lea.vmem [#allocation5], 320
    %9391 = vst.msk [vmem:[%s9390] sm:$0xff] %vm1610, %v9345
    %9392 = vst.msk [vmem:[%s9390 + $0x8] sm:$0xff] %vm1610, %v9351
    %9393 = vst.msk [vmem:[%s9390 + $0x10] sm:$0xff] %vm1610, %v9357
    %9394 = vst.msk [vmem:[%s9390 + $0x18] sm:$0xff] %vm1610, %v9363
    %9395 = vst.msk [vmem:[%s9390 + $0x20] sm:$0xff] %vm1610, %v9369
    %9396 = vst.msk [vmem:[%s9390 + $0x28] sm:$0xff] %vm1610, %v9375
    %9397 = vst.msk [vmem:[%s9390 + $0x30] sm:$0xff] %vm1610, %v9381
    %9398 = vst.msk [vmem:[%s9390 + $0x38] sm:$0xff] %vm1610, %v9387
    %s9399 = scalar_lea.vmem [#allocation2], 96
    %v9400 = vld [vmem:[%s9399] sm:$0xff]
    %v9401 = vld [vmem:[%s9399 + $0x8] sm:$0xff]
    %9402 = vmatprep.subr.mxu0 0.0
    %v9403 = vand.u32 %v9400, 4294901760
    %9404 = vmatpush1.msra.mxu0 %v9403
    %9405 = vmatprep.subr.mxu0 0.0
    %v9406 = vand.u32 %v9401, 4294901760
    %9407 = vmatpush1.msra.mxu0 %v9406
    %9408 = vmatprep.subr.mxu0 0.0
    %9409 = vmatpush1.msra.mxu0 0.0
    %9410 = vmatprep.subr.mxu0 0.0
    %9411 = vmatpush1.msra.mxu0 0.0
    %9412 = vmatprep.subr.mxu0 0.0
    %9413 = vmatpush1.msra.mxu0 0.0
    %9414 = vmatprep.subr.mxu0 0.0
    %9415 = vmatpush1.msra.mxu0 0.0
    %9416 = vmatprep.subr.mxu0 0.0
    %9417 = vmatpush1.msra.mxu0 0.0
    %9418 = vmatprep.subr.mxu0 0.0
    %9419 = vmatpush1.msra.mxu0 0.0
    %9420 = vmatprep.subr.mxu0 0.0
    %9421 = vmatpush1.msra.mxu0 0.0
    %9422 = vmatprep.subr.mxu0 0.0
    %9423 = vmatpush1.msra.mxu0 0.0
    %9424 = vmatprep.subr.mxu0 0.0
    %9425 = vmatpush1.msra.mxu0 0.0
    %9426 = vmatprep.subr.mxu0 0.0
    %9427 = vmatpush1.msra.mxu0 0.0
    %9428 = vmatprep.subr.mxu0 0.0
    %9429 = vmatpush1.msra.mxu0 0.0
    %9430 = vmatprep.subr.mxu0 0.0
    %9431 = vmatpush1.msra.mxu0 0.0
    %9432 = vmatprep.subr.mxu0 0.0
    %9433 = vmatpush1.msra.mxu0 0.0
    %9434 = vmatprep.subr.mxu0 0.0
    %9435 = vmatpush1.msra.mxu0 0.0
    %9436 = vmatprep.subr.mxu0 0.0
    %9437 = vmatpush1.msra.mxu0 0.0
    %9438 = vmatprep.subr.mxu0 0.0
    %9439 = vmatpush1.msra.mxu0 0.0
    %9440 = vmatprep.subr.mxu0 0.0
    %9441 = vmatpush1.msra.mxu0 0.0
    %9442 = vmatprep.subr.mxu0 0.0
    %9443 = vmatpush1.msra.mxu0 0.0
    %9444 = vmatprep.subr.mxu0 0.0
    %9445 = vmatpush1.msra.mxu0 0.0
    %9446 = vmatprep.subr.mxu0 0.0
    %9447 = vmatpush1.msra.mxu0 0.0
    %9448 = vmatprep.subr.mxu0 0.0
    %9449 = vmatpush1.msra.mxu0 0.0
    %9450 = vmatprep.subr.mxu0 0.0
    %9451 = vmatpush1.msra.mxu0 0.0
    %9452 = vmatprep.subr.mxu0 0.0
    %9453 = vmatpush1.msra.mxu0 0.0
    %9454 = vmatprep.subr.mxu0 0.0
    %9455 = vmatpush1.msra.mxu0 0.0
    %9456 = vmatprep.subr.mxu0 0.0
    %9457 = vmatpush1.msra.mxu0 0.0
    %9458 = vmatprep.subr.mxu0 0.0
    %9459 = vmatpush1.msra.mxu0 0.0
    %9460 = vmatprep.subr.mxu0 0.0
    %9461 = vmatpush1.msra.mxu0 0.0
    %9462 = vmatprep.subr.mxu0 0.0
    %9463 = vmatpush1.msra.mxu0 0.0
    %9464 = vmatprep.subr.mxu0 0.0
    %9465 = vmatpush1.msra.mxu0 0.0
    %9466 = vmatprep.subr.mxu0 0.0
    %9467 = vmatpush1.msra.mxu0 0.0
    %9468 = vmatprep.mubr.f32.mxu0 0.0
    %v9469 = vand.u32 %v43, 4294901760
    %v9470 = vsub.f32 %v43, %v9469
    %v9471 = vand.u32 %v9470, 4294901760
    %v9472 = vsub.f32 %v9470, %v9471
    %v9473 = vand.u32 %v9472, 4294901760
    %9474 = vmatmul.mubr.f32.gmra.mrb[0].mxu0 %v9473
    %v9475 = vpop.f32.mrb[0].mxu0
    %v9476 = vadd.f32 0.0, %v9475
    %v9477 = vpop.f32.mrb[0].mxu0
    %9478 = vmatprep.mubr.f32.mxu0 0.0
    %v9479 = vand.u32 %v46, 4294901760
    %v9480 = vsub.f32 %v46, %v9479
    %v9481 = vand.u32 %v9480, 4294901760
    %v9482 = vsub.f32 %v9480, %v9481
    %v9483 = vand.u32 %v9482, 4294901760
    %9484 = vmatmul.mubr.f32.gmra.mrb[0].mxu0 %v9483
    %v9485 = vpop.f32.mrb[0].mxu0
    %v9486 = vadd.f32 0.0, %v9485
    %v9487 = vpop.f32.mrb[0].mxu0
    %9488 = vmatprep.mubr.f32.mxu0 0.0
    %v9489 = vand.u32 %v49, 4294901760
    %v9490 = vsub.f32 %v49, %v9489
    %v9491 = vand.u32 %v9490, 4294901760
    %v9492 = vsub.f32 %v9490, %v9491
    %v9493 = vand.u32 %v9492, 4294901760
    %9494 = vmatmul.mubr.f32.gmra.mrb[0].mxu0 %v9493
    %v9495 = vpop.f32.mrb[0].mxu0
    %v9496 = vadd.f32 0.0, %v9495
    %v9497 = vpop.f32.mrb[0].mxu0
    %9498 = vmatprep.mubr.f32.mxu0 0.0
    %v9499 = vand.u32 %v52, 4294901760
    %v9500 = vsub.f32 %v52, %v9499
    %v9501 = vand.u32 %v9500, 4294901760
    %v9502 = vsub.f32 %v9500, %v9501
    %v9503 = vand.u32 %v9502, 4294901760
    %9504 = vmatmul.mubr.f32.gmra.mrb[0].mxu0 %v9503
    %v9505 = vpop.f32.mrb[0].mxu0
    %v9506 = vadd.f32 0.0, %v9505
    %v9507 = vpop.f32.mrb[0].mxu0
    %9508 = vmatprep.mubr.f32.mxu0 0.0
    %v9509 = vand.u32 %v55, 4294901760
    %v9510 = vsub.f32 %v55, %v9509
    %v9511 = vand.u32 %v9510, 4294901760
    %v9512 = vsub.f32 %v9510, %v9511
    %v9513 = vand.u32 %v9512, 4294901760
    %9514 = vmatmul.mubr.f32.gmra.mrb[0].mxu0 %v9513
    %v9515 = vpop.f32.mrb[0].mxu0
    %v9516 = vadd.f32 0.0, %v9515
    %v9517 = vpop.f32.mrb[0].mxu0
    %9518 = vmatprep.mubr.f32.mxu0 0.0
    %v9519 = vand.u32 %v58, 4294901760
    %v9520 = vsub.f32 %v58, %v9519
    %v9521 = vand.u32 %v9520, 4294901760
    %v9522 = vsub.f32 %v9520, %v9521
    %v9523 = vand.u32 %v9522, 4294901760
    %9524 = vmatmul.mubr.f32.gmra.mrb[0].mxu0 %v9523
    %v9525 = vpop.f32.mrb[0].mxu0
    %v9526 = vadd.f32 0.0, %v9525
    %v9527 = vpop.f32.mrb[0].mxu0
    %9528 = vmatprep.mubr.f32.mxu0 0.0
    %v9529 = vand.u32 %v61, 4294901760
    %v9530 = vsub.f32 %v61, %v9529
    %v9531 = vand.u32 %v9530, 4294901760
    %v9532 = vsub.f32 %v9530, %v9531
    %v9533 = vand.u32 %v9532, 4294901760
    %9534 = vmatmul.mubr.f32.gmra.mrb[0].mxu0 %v9533
    %v9535 = vpop.f32.mrb[0].mxu0
    %v9536 = vadd.f32 0.0, %v9535
    %v9537 = vpop.f32.mrb[0].mxu0
    %9538 = vmatprep.mubr.f32.mxu0 0.0
    %v9539 = vand.u32 %v64, 4294901760
    %v9540 = vsub.f32 %v64, %v9539
    %v9541 = vand.u32 %v9540, 4294901760
    %v9542 = vsub.f32 %v9540, %v9541
    %v9543 = vand.u32 %v9542, 4294901760
    %9544 = vmatmul.mubr.f32.gmra.mrb[0].mxu0 %v9543
    %v9545 = vpop.f32.mrb[0].mxu0
    %v9546 = vadd.f32 0.0, %v9545
    %v9547 = vpop.f32.mrb[0].mxu0
    %9548 = vdwg.mxu0
    %9549 = vmatprep.subr.mxu0 0.0
    %v9550 = vand.u32 %v9400, 4294901760
    %v9551 = vsub.f32 %v9400, %v9550
    %v9552 = vand.u32 %v9551, 4294901760
    %v9553 = vsub.f32 %v9551, %v9552
    %v9554 = vand.u32 %v9553, 4294901760
    %9555 = vmatpush1.msra.mxu0 %v9554
    %9556 = vmatprep.subr.mxu0 0.0
    %v9557 = vand.u32 %v9401, 4294901760
    %v9558 = vsub.f32 %v9401, %v9557
    %v9559 = vand.u32 %v9558, 4294901760
    %v9560 = vsub.f32 %v9558, %v9559
    %v9561 = vand.u32 %v9560, 4294901760
    %9562 = vmatpush1.msra.mxu0 %v9561
    %9563 = vmatprep.subr.mxu0 0.0
    %9564 = vmatpush1.msra.mxu0 0.0
    %9565 = vmatprep.subr.mxu0 0.0
    %9566 = vmatpush1.msra.mxu0 0.0
    %9567 = vmatprep.subr.mxu0 0.0
    %9568 = vmatpush1.msra.mxu0 0.0
    %9569 = vmatprep.subr.mxu0 0.0
    %9570 = vmatpush1.msra.mxu0 0.0
    %9571 = vmatprep.subr.mxu0 0.0
    %9572 = vmatpush1.msra.mxu0 0.0
    %9573 = vmatprep.subr.mxu0 0.0
    %9574 = vmatpush1.msra.mxu0 0.0
    %9575 = vmatprep.subr.mxu0 0.0
    %9576 = vmatpush1.msra.mxu0 0.0
    %9577 = vmatprep.subr.mxu0 0.0
    %9578 = vmatpush1.msra.mxu0 0.0
    %9579 = vmatprep.subr.mxu0 0.0
    %9580 = vmatpush1.msra.mxu0 0.0
    %9581 = vmatprep.subr.mxu0 0.0
    %9582 = vmatpush1.msra.mxu0 0.0
    %9583 = vmatprep.subr.mxu0 0.0
    %9584 = vmatpush1.msra.mxu0 0.0
    %9585 = vmatprep.subr.mxu0 0.0
    %9586 = vmatpush1.msra.mxu0 0.0
    %9587 = vmatprep.subr.mxu0 0.0
    %9588 = vmatpush1.msra.mxu0 0.0
    %9589 = vmatprep.subr.mxu0 0.0
    %9590 = vmatpush1.msra.mxu0 0.0
    %9591 = vmatprep.subr.mxu0 0.0
    %9592 = vmatpush1.msra.mxu0 0.0
    %9593 = vmatprep.subr.mxu0 0.0
    %9594 = vmatpush1.msra.mxu0 0.0
    %9595 = vmatprep.subr.mxu0 0.0
    %9596 = vmatpush1.msra.mxu0 0.0
    %9597 = vmatprep.subr.mxu0 0.0
    %9598 = vmatpush1.msra.mxu0 0.0
    %9599 = vmatprep.subr.mxu0 0.0
    %9600 = vmatpush1.msra.mxu0 0.0
    %9601 = vmatprep.subr.mxu0 0.0
    %9602 = vmatpush1.msra.mxu0 0.0
    %9603 = vmatprep.subr.mxu0 0.0
    %9604 = vmatpush1.msra.mxu0 0.0
    %9605 = vmatprep.subr.mxu0 0.0
    %9606 = vmatpush1.msra.mxu0 0.0
    %9607 = vmatprep.subr.mxu0 0.0
    %9608 = vmatpush1.msra.mxu0 0.0
    %9609 = vmatprep.subr.mxu0 0.0
    %9610 = vmatpush1.msra.mxu0 0.0
    %9611 = vmatprep.subr.mxu0 0.0
    %9612 = vmatpush1.msra.mxu0 0.0
    %9613 = vmatprep.subr.mxu0 0.0
    %9614 = vmatpush1.msra.mxu0 0.0
    %9615 = vmatprep.subr.mxu0 0.0
    %9616 = vmatpush1.msra.mxu0 0.0
    %9617 = vmatprep.subr.mxu0 0.0
    %9618 = vmatpush1.msra.mxu0 0.0
    %9619 = vmatprep.subr.mxu0 0.0
    %9620 = vmatpush1.msra.mxu0 0.0
    %9621 = vmatprep.subr.mxu0 0.0
    %9622 = vmatpush1.msra.mxu0 0.0
    %9623 = vmatprep.mubr.f32.mxu0 0.0
    %v9624 = vand.u32 %v43, 4294901760
    %9625 = vmatmul.mubr.f32.gmra.mrb[0].mxu0 %v9624
    %v9626 = vpop.f32.mrb[0].mxu0
    %v9627 = vadd.f32 %v9476, %v9626
    %v9628 = vpop.f32.mrb[0].mxu0
    %9629 = vmatprep.mubr.f32.mxu0 0.0
    %v9630 = vand.u32 %v46, 4294901760
    %9631 = vmatmul.mubr.f32.gmra.mrb[0].mxu0 %v9630
    %v9632 = vpop.f32.mrb[0].mxu0
    %v9633 = vadd.f32 %v9486, %v9632
    %v9634 = vpop.f32.mrb[0].mxu0
    %9635 = vmatprep.mubr.f32.mxu0 0.0
    %v9636 = vand.u32 %v49, 4294901760
    %9637 = vmatmul.mubr.f32.gmra.mrb[0].mxu0 %v9636
    %v9638 = vpop.f32.mrb[0].mxu0
    %v9639 = vadd.f32 %v9496, %v9638
    %v9640 = vpop.f32.mrb[0].mxu0
    %9641 = vmatprep.mubr.f32.mxu0 0.0
    %v9642 = vand.u32 %v52, 4294901760
    %9643 = vmatmul.mubr.f32.gmra.mrb[0].mxu0 %v9642
    %v9644 = vpop.f32.mrb[0].mxu0
    %v9645 = vadd.f32 %v9506, %v9644
    %v9646 = vpop.f32.mrb[0].mxu0
    %9647 = vmatprep.mubr.f32.mxu0 0.0
    %v9648 = vand.u32 %v55, 4294901760
    %9649 = vmatmul.mubr.f32.gmra.mrb[0].mxu0 %v9648
    %v9650 = vpop.f32.mrb[0].mxu0
    %v9651 = vadd.f32 %v9516, %v9650
    %v9652 = vpop.f32.mrb[0].mxu0
    %9653 = vmatprep.mubr.f32.mxu0 0.0
    %v9654 = vand.u32 %v58, 4294901760
    %9655 = vmatmul.mubr.f32.gmra.mrb[0].mxu0 %v9654
    %v9656 = vpop.f32.mrb[0].mxu0
    %v9657 = vadd.f32 %v9526, %v9656
    %v9658 = vpop.f32.mrb[0].mxu0
    %9659 = vmatprep.mubr.f32.mxu0 0.0
    %v9660 = vand.u32 %v61, 4294901760
    %9661 = vmatmul.mubr.f32.gmra.mrb[0].mxu0 %v9660
    %v9662 = vpop.f32.mrb[0].mxu0
    %v9663 = vadd.f32 %v9536, %v9662
    %v9664 = vpop.f32.mrb[0].mxu0
    %9665 = vmatprep.mubr.f32.mxu0 0.0
    %v9666 = vand.u32 %v64, 4294901760
    %9667 = vmatmul.mubr.f32.gmra.mrb[0].mxu0 %v9666
    %v9668 = vpop.f32.mrb[0].mxu0
    %v9669 = vadd.f32 %v9546, %v9668
    %v9670 = vpop.f32.mrb[0].mxu0
    %9671 = vdwg.mxu0
    %9672 = vmatprep.subr.mxu0 0.0
    %v9673 = vand.u32 %v9400, 4294901760
    %v9674 = vsub.f32 %v9400, %v9673
    %9675 = vmatpush1.msra.mxu0 %v9674
    %9676 = vmatprep.subr.mxu0 0.0
    %v9677 = vand.u32 %v9401, 4294901760
    %v9678 = vsub.f32 %v9401, %v9677
    %9679 = vmatpush1.msra.mxu0 %v9678
    %9680 = vmatprep.subr.mxu0 0.0
    %9681 = vmatpush1.msra.mxu0 0.0
    %9682 = vmatprep.subr.mxu0 0.0
    %9683 = vmatpush1.msra.mxu0 0.0
    %9684 = vmatprep.subr.mxu0 0.0
    %9685 = vmatpush1.msra.mxu0 0.0
    %9686 = vmatprep.subr.mxu0 0.0
    %9687 = vmatpush1.msra.mxu0 0.0
    %9688 = vmatprep.subr.mxu0 0.0
    %9689 = vmatpush1.msra.mxu0 0.0
    %9690 = vmatprep.subr.mxu0 0.0
    %9691 = vmatpush1.msra.mxu0 0.0
    %9692 = vmatprep.subr.mxu0 0.0
    %9693 = vmatpush1.msra.mxu0 0.0
    %9694 = vmatprep.subr.mxu0 0.0
    %9695 = vmatpush1.msra.mxu0 0.0
    %9696 = vmatprep.subr.mxu0 0.0
    %9697 = vmatpush1.msra.mxu0 0.0
    %9698 = vmatprep.subr.mxu0 0.0
    %9699 = vmatpush1.msra.mxu0 0.0
    %9700 = vmatprep.subr.mxu0 0.0
    %9701 = vmatpush1.msra.mxu0 0.0
    %9702 = vmatprep.subr.mxu0 0.0
    %9703 = vmatpush1.msra.mxu0 0.0
    %9704 = vmatprep.subr.mxu0 0.0
    %9705 = vmatpush1.msra.mxu0 0.0
    %9706 = vmatprep.subr.mxu0 0.0
    %9707 = vmatpush1.msra.mxu0 0.0
    %9708 = vmatprep.subr.mxu0 0.0
    %9709 = vmatpush1.msra.mxu0 0.0
    %9710 = vmatprep.subr.mxu0 0.0
    %9711 = vmatpush1.msra.mxu0 0.0
    %9712 = vmatprep.subr.mxu0 0.0
    %9713 = vmatpush1.msra.mxu0 0.0
    %9714 = vmatprep.subr.mxu0 0.0
    %9715 = vmatpush1.msra.mxu0 0.0
    %9716 = vmatprep.subr.mxu0 0.0
    %9717 = vmatpush1.msra.mxu0 0.0
    %9718 = vmatprep.subr.mxu0 0.0
    %9719 = vmatpush1.msra.mxu0 0.0
    %9720 = vmatprep.subr.mxu0 0.0
    %9721 = vmatpush1.msra.mxu0 0.0
    %9722 = vmatprep.subr.mxu0 0.0
    %9723 = vmatpush1.msra.mxu0 0.0
    %9724 = vmatprep.subr.mxu0 0.0
    %9725 = vmatpush1.msra.mxu0 0.0
    %9726 = vmatprep.subr.mxu0 0.0
    %9727 = vmatpush1.msra.mxu0 0.0
    %9728 = vmatprep.subr.mxu0 0.0
    %9729 = vmatpush1.msra.mxu0 0.0
    %9730 = vmatprep.subr.mxu0 0.0
    %9731 = vmatpush1.msra.mxu0 0.0
    %9732 = vmatprep.subr.mxu0 0.0
    %9733 = vmatpush1.msra.mxu0 0.0
    %9734 = vmatprep.subr.mxu0 0.0
    %9735 = vmatpush1.msra.mxu0 0.0
    %9736 = vmatprep.subr.mxu0 0.0
    %9737 = vmatpush1.msra.mxu0 0.0
    %9738 = vmatprep.subr.mxu0 0.0
    %9739 = vmatpush1.msra.mxu0 0.0
    %9740 = vmatprep.mubr.f32.mxu0 0.0
    %v9741 = vand.u32 %v43, 4294901760
    %v9742 = vsub.f32 %v43, %v9741
    %9743 = vmatmul.mubr.f32.gmra.mrb[0].mxu0 %v9742
    %v9744 = vpop.f32.mrb[0].mxu0
    %v9745 = vadd.f32 %v9627, %v9744
    %v9746 = vpop.f32.mrb[0].mxu0
    %9747 = vmatprep.mubr.f32.mxu0 0.0
    %v9748 = vand.u32 %v46, 4294901760
    %v9749 = vsub.f32 %v46, %v9748
    %9750 = vmatmul.mubr.f32.gmra.mrb[0].mxu0 %v9749
    %v9751 = vpop.f32.mrb[0].mxu0
    %v9752 = vadd.f32 %v9633, %v9751
    %v9753 = vpop.f32.mrb[0].mxu0
    %9754 = vmatprep.mubr.f32.mxu0 0.0
    %v9755 = vand.u32 %v49, 4294901760
    %v9756 = vsub.f32 %v49, %v9755
    %9757 = vmatmul.mubr.f32.gmra.mrb[0].mxu0 %v9756
    %v9758 = vpop.f32.mrb[0].mxu0
    %v9759 = vadd.f32 %v9639, %v9758
    %v9760 = vpop.f32.mrb[0].mxu0
    %9761 = vmatprep.mubr.f32.mxu0 0.0
    %v9762 = vand.u32 %v52, 4294901760
    %v9763 = vsub.f32 %v52, %v9762
    %9764 = vmatmul.mubr.f32.gmra.mrb[0].mxu0 %v9763
    %v9765 = vpop.f32.mrb[0].mxu0
    %v9766 = vadd.f32 %v9645, %v9765
    %v9767 = vpop.f32.mrb[0].mxu0
    %9768 = vmatprep.mubr.f32.mxu0 0.0
    %v9769 = vand.u32 %v55, 4294901760
    %v9770 = vsub.f32 %v55, %v9769
    %9771 = vmatmul.mubr.f32.gmra.mrb[0].mxu0 %v9770
    %v9772 = vpop.f32.mrb[0].mxu0
    %v9773 = vadd.f32 %v9651, %v9772
    %v9774 = vpop.f32.mrb[0].mxu0
    %9775 = vmatprep.mubr.f32.mxu0 0.0
    %v9776 = vand.u32 %v58, 4294901760
    %v9777 = vsub.f32 %v58, %v9776
    %9778 = vmatmul.mubr.f32.gmra.mrb[0].mxu0 %v9777
    %v9779 = vpop.f32.mrb[0].mxu0
    %v9780 = vadd.f32 %v9657, %v9779
    %v9781 = vpop.f32.mrb[0].mxu0
    %9782 = vmatprep.mubr.f32.mxu0 0.0
    %v9783 = vand.u32 %v61, 4294901760
    %v9784 = vsub.f32 %v61, %v9783
    %9785 = vmatmul.mubr.f32.gmra.mrb[0].mxu0 %v9784
    %v9786 = vpop.f32.mrb[0].mxu0
    %v9787 = vadd.f32 %v9663, %v9786
    %v9788 = vpop.f32.mrb[0].mxu0
    %9789 = vmatprep.mubr.f32.mxu0 0.0
    %v9790 = vand.u32 %v64, 4294901760
    %v9791 = vsub.f32 %v64, %v9790
    %9792 = vmatmul.mubr.f32.gmra.mrb[0].mxu0 %v9791
    %v9793 = vpop.f32.mrb[0].mxu0
    %v9794 = vadd.f32 %v9669, %v9793
    %v9795 = vpop.f32.mrb[0].mxu0
    %9796 = vdwg.mxu0
    %9797 = vmatprep.subr.mxu0 0.0
    %v9798 = vand.u32 %v9400, 4294901760
    %9799 = vmatpush1.msra.mxu0 %v9798
    %9800 = vmatprep.subr.mxu0 0.0
    %v9801 = vand.u32 %v9401, 4294901760
    %9802 = vmatpush1.msra.mxu0 %v9801
    %9803 = vmatprep.subr.mxu0 0.0
    %9804 = vmatpush1.msra.mxu0 0.0
    %9805 = vmatprep.subr.mxu0 0.0
    %9806 = vmatpush1.msra.mxu0 0.0
    %9807 = vmatprep.subr.mxu0 0.0
    %9808 = vmatpush1.msra.mxu0 0.0
    %9809 = vmatprep.subr.mxu0 0.0
    %9810 = vmatpush1.msra.mxu0 0.0
    %9811 = vmatprep.subr.mxu0 0.0
    %9812 = vmatpush1.msra.mxu0 0.0
    %9813 = vmatprep.subr.mxu0 0.0
    %9814 = vmatpush1.msra.mxu0 0.0
    %9815 = vmatprep.subr.mxu0 0.0
    %9816 = vmatpush1.msra.mxu0 0.0
    %9817 = vmatprep.subr.mxu0 0.0
    %9818 = vmatpush1.msra.mxu0 0.0
    %9819 = vmatprep.subr.mxu0 0.0
    %9820 = vmatpush1.msra.mxu0 0.0
    %9821 = vmatprep.subr.mxu0 0.0
    %9822 = vmatpush1.msra.mxu0 0.0
    %9823 = vmatprep.subr.mxu0 0.0
    %9824 = vmatpush1.msra.mxu0 0.0
    %9825 = vmatprep.subr.mxu0 0.0
    %9826 = vmatpush1.msra.mxu0 0.0
    %9827 = vmatprep.subr.mxu0 0.0
    %9828 = vmatpush1.msra.mxu0 0.0
    %9829 = vmatprep.subr.mxu0 0.0
    %9830 = vmatpush1.msra.mxu0 0.0
    %9831 = vmatprep.subr.mxu0 0.0
    %9832 = vmatpush1.msra.mxu0 0.0
    %9833 = vmatprep.subr.mxu0 0.0
    %9834 = vmatpush1.msra.mxu0 0.0
    %9835 = vmatprep.subr.mxu0 0.0
    %9836 = vmatpush1.msra.mxu0 0.0
    %9837 = vmatprep.subr.mxu0 0.0
    %9838 = vmatpush1.msra.mxu0 0.0
    %9839 = vmatprep.subr.mxu0 0.0
    %9840 = vmatpush1.msra.mxu0 0.0
    %9841 = vmatprep.subr.mxu0 0.0
    %9842 = vmatpush1.msra.mxu0 0.0
    %9843 = vmatprep.subr.mxu0 0.0
    %9844 = vmatpush1.msra.mxu0 0.0
    %9845 = vmatprep.subr.mxu0 0.0
    %9846 = vmatpush1.msra.mxu0 0.0
    %9847 = vmatprep.subr.mxu0 0.0
    %9848 = vmatpush1.msra.mxu0 0.0
    %9849 = vmatprep.subr.mxu0 0.0
    %9850 = vmatpush1.msra.mxu0 0.0
    %9851 = vmatprep.subr.mxu0 0.0
    %9852 = vmatpush1.msra.mxu0 0.0
    %9853 = vmatprep.subr.mxu0 0.0
    %9854 = vmatpush1.msra.mxu0 0.0
    %9855 = vmatprep.subr.mxu0 0.0
    %9856 = vmatpush1.msra.mxu0 0.0
    %9857 = vmatprep.subr.mxu0 0.0
    %9858 = vmatpush1.msra.mxu0 0.0
    %9859 = vmatprep.subr.mxu0 0.0
    %9860 = vmatpush1.msra.mxu0 0.0
    %9861 = vmatprep.subr.mxu0 0.0
    %9862 = vmatpush1.msra.mxu0 0.0
    %9863 = vmatprep.mubr.f32.mxu0 0.0
    %v9864 = vand.u32 %v43, 4294901760
    %v9865 = vsub.f32 %v43, %v9864
    %v9866 = vand.u32 %v9865, 4294901760
    %9867 = vmatmul.mubr.f32.gmra.mrb[0].mxu0 %v9866
    %v9868 = vpop.f32.mrb[0].mxu0
    %v9869 = vadd.f32 %v9745, %v9868
    %v9870 = vpop.f32.mrb[0].mxu0
    %9871 = vmatprep.mubr.f32.mxu0 0.0
    %v9872 = vand.u32 %v46, 4294901760
    %v9873 = vsub.f32 %v46, %v9872
    %v9874 = vand.u32 %v9873, 4294901760
    %9875 = vmatmul.mubr.f32.gmra.mrb[0].mxu0 %v9874
    %v9876 = vpop.f32.mrb[0].mxu0
    %v9877 = vadd.f32 %v9752, %v9876
    %v9878 = vpop.f32.mrb[0].mxu0
    %9879 = vmatprep.mubr.f32.mxu0 0.0
    %v9880 = vand.u32 %v49, 4294901760
    %v9881 = vsub.f32 %v49, %v9880
    %v9882 = vand.u32 %v9881, 4294901760
    %9883 = vmatmul.mubr.f32.gmra.mrb[0].mxu0 %v9882
    %v9884 = vpop.f32.mrb[0].mxu0
    %v9885 = vadd.f32 %v9759, %v9884
    %v9886 = vpop.f32.mrb[0].mxu0
    %9887 = vmatprep.mubr.f32.mxu0 0.0
    %v9888 = vand.u32 %v52, 4294901760
    %v9889 = vsub.f32 %v52, %v9888
    %v9890 = vand.u32 %v9889, 4294901760
    %9891 = vmatmul.mubr.f32.gmra.mrb[0].mxu0 %v9890
    %v9892 = vpop.f32.mrb[0].mxu0
    %v9893 = vadd.f32 %v9766, %v9892
    %v9894 = vpop.f32.mrb[0].mxu0
    %9895 = vmatprep.mubr.f32.mxu0 0.0
    %v9896 = vand.u32 %v55, 4294901760
    %v9897 = vsub.f32 %v55, %v9896
    %v9898 = vand.u32 %v9897, 4294901760
    %9899 = vmatmul.mubr.f32.gmra.mrb[0].mxu0 %v9898
    %v9900 = vpop.f32.mrb[0].mxu0
    %v9901 = vadd.f32 %v9773, %v9900
    %v9902 = vpop.f32.mrb[0].mxu0
    %9903 = vmatprep.mubr.f32.mxu0 0.0
    %v9904 = vand.u32 %v58, 4294901760
    %v9905 = vsub.f32 %v58, %v9904
    %v9906 = vand.u32 %v9905, 4294901760
    %9907 = vmatmul.mubr.f32.gmra.mrb[0].mxu0 %v9906
    %v9908 = vpop.f32.mrb[0].mxu0
    %v9909 = vadd.f32 %v9780, %v9908
    %v9910 = vpop.f32.mrb[0].mxu0
    %9911 = vmatprep.mubr.f32.mxu0 0.0
    %v9912 = vand.u32 %v61, 4294901760
    %v9913 = vsub.f32 %v61, %v9912
    %v9914 = vand.u32 %v9913, 4294901760
    %9915 = vmatmul.mubr.f32.gmra.mrb[0].mxu0 %v9914
    %v9916 = vpop.f32.mrb[0].mxu0
    %v9917 = vadd.f32 %v9787, %v9916
    %v9918 = vpop.f32.mrb[0].mxu0
    %9919 = vmatprep.mubr.f32.mxu0 0.0
    %v9920 = vand.u32 %v64, 4294901760
    %v9921 = vsub.f32 %v64, %v9920
    %v9922 = vand.u32 %v9921, 4294901760
    %9923 = vmatmul.mubr.f32.gmra.mrb[0].mxu0 %v9922
    %v9924 = vpop.f32.mrb[0].mxu0
    %v9925 = vadd.f32 %v9794, %v9924
    %v9926 = vpop.f32.mrb[0].mxu0
    %9927 = vdwg.mxu0
    %9928 = vmatprep.subr.mxu0 0.0
    %v9929 = vand.u32 %v9400, 4294901760
    %v9930 = vsub.f32 %v9400, %v9929
    %v9931 = vand.u32 %v9930, 4294901760
    %9932 = vmatpush1.msra.mxu0 %v9931
    %9933 = vmatprep.subr.mxu0 0.0
    %v9934 = vand.u32 %v9401, 4294901760
    %v9935 = vsub.f32 %v9401, %v9934
    %v9936 = vand.u32 %v9935, 4294901760
    %9937 = vmatpush1.msra.mxu0 %v9936
    %9938 = vmatprep.subr.mxu0 0.0
    %9939 = vmatpush1.msra.mxu0 0.0
    %9940 = vmatprep.subr.mxu0 0.0
    %9941 = vmatpush1.msra.mxu0 0.0
    %9942 = vmatprep.subr.mxu0 0.0
    %9943 = vmatpush1.msra.mxu0 0.0
    %9944 = vmatprep.subr.mxu0 0.0
    %9945 = vmatpush1.msra.mxu0 0.0
    %9946 = vmatprep.subr.mxu0 0.0
    %9947 = vmatpush1.msra.mxu0 0.0
    %9948 = vmatprep.subr.mxu0 0.0
    %9949 = vmatpush1.msra.mxu0 0.0
    %9950 = vmatprep.subr.mxu0 0.0
    %9951 = vmatpush1.msra.mxu0 0.0
    %9952 = vmatprep.subr.mxu0 0.0
    %9953 = vmatpush1.msra.mxu0 0.0
    %9954 = vmatprep.subr.mxu0 0.0
    %9955 = vmatpush1.msra.mxu0 0.0
    %9956 = vmatprep.subr.mxu0 0.0
    %9957 = vmatpush1.msra.mxu0 0.0
    %9958 = vmatprep.subr.mxu0 0.0
    %9959 = vmatpush1.msra.mxu0 0.0
    %9960 = vmatprep.subr.mxu0 0.0
    %9961 = vmatpush1.msra.mxu0 0.0
    %9962 = vmatprep.subr.mxu0 0.0
    %9963 = vmatpush1.msra.mxu0 0.0
    %9964 = vmatprep.subr.mxu0 0.0
    %9965 = vmatpush1.msra.mxu0 0.0
    %9966 = vmatprep.subr.mxu0 0.0
    %9967 = vmatpush1.msra.mxu0 0.0
    %9968 = vmatprep.subr.mxu0 0.0
    %9969 = vmatpush1.msra.mxu0 0.0
    %9970 = vmatprep.subr.mxu0 0.0
    %9971 = vmatpush1.msra.mxu0 0.0
    %9972 = vmatprep.subr.mxu0 0.0
    %9973 = vmatpush1.msra.mxu0 0.0
    %9974 = vmatprep.subr.mxu0 0.0
    %9975 = vmatpush1.msra.mxu0 0.0
    %9976 = vmatprep.subr.mxu0 0.0
    %9977 = vmatpush1.msra.mxu0 0.0
    %9978 = vmatprep.subr.mxu0 0.0
    %9979 = vmatpush1.msra.mxu0 0.0
    %9980 = vmatprep.subr.mxu0 0.0
    %9981 = vmatpush1.msra.mxu0 0.0
    %9982 = vmatprep.subr.mxu0 0.0
    %9983 = vmatpush1.msra.mxu0 0.0
    %9984 = vmatprep.subr.mxu0 0.0
    %9985 = vmatpush1.msra.mxu0 0.0
    %9986 = vmatprep.subr.mxu0 0.0
    %9987 = vmatpush1.msra.mxu0 0.0
    %9988 = vmatprep.subr.mxu0 0.0
    %9989 = vmatpush1.msra.mxu0 0.0
    %9990 = vmatprep.subr.mxu0 0.0
    %9991 = vmatpush1.msra.mxu0 0.0
    %9992 = vmatprep.subr.mxu0 0.0
    %9993 = vmatpush1.msra.mxu0 0.0
    %9994 = vmatprep.subr.mxu0 0.0
    %9995 = vmatpush1.msra.mxu0 0.0
    %9996 = vmatprep.subr.mxu0 0.0
    %9997 = vmatpush1.msra.mxu0 0.0
    %9998 = vmatprep.mubr.f32.mxu0 0.0
    %v9999 = vand.u32 %v43, 4294901760
    %10000 = vmatmul.mubr.f32.gmra.mrb[0].mxu0 %v9999
    %v10001 = vpop.f32.mrb[0].mxu0
    %v10002 = vadd.f32 %v9869, %v10001
    %v10003 = vpop.f32.mrb[0].mxu0
    %10004 = vmatprep.mubr.f32.mxu0 0.0
    %v10005 = vand.u32 %v46, 4294901760
    %10006 = vmatmul.mubr.f32.gmra.mrb[0].mxu0 %v10005
    %v10007 = vpop.f32.mrb[0].mxu0
    %v10008 = vadd.f32 %v9877, %v10007
    %v10009 = vpop.f32.mrb[0].mxu0
    %10010 = vmatprep.mubr.f32.mxu0 0.0
    %v10011 = vand.u32 %v49, 4294901760
    %10012 = vmatmul.mubr.f32.gmra.mrb[0].mxu0 %v10011
    %v10013 = vpop.f32.mrb[0].mxu0
    %v10014 = vadd.f32 %v9885, %v10013
    %v10015 = vpop.f32.mrb[0].mxu0
    %10016 = vmatprep.mubr.f32.mxu0 0.0
    %v10017 = vand.u32 %v52, 4294901760
    %10018 = vmatmul.mubr.f32.gmra.mrb[0].mxu0 %v10017
    %v10019 = vpop.f32.mrb[0].mxu0
    %v10020 = vadd.f32 %v9893, %v10019
    %v10021 = vpop.f32.mrb[0].mxu0
    %10022 = vmatprep.mubr.f32.mxu0 0.0
    %v10023 = vand.u32 %v55, 4294901760
    %10024 = vmatmul.mubr.f32.gmra.mrb[0].mxu0 %v10023
    %v10025 = vpop.f32.mrb[0].mxu0
    %v10026 = vadd.f32 %v9901, %v10025
    %v10027 = vpop.f32.mrb[0].mxu0
    %10028 = vmatprep.mubr.f32.mxu0 0.0
    %v10029 = vand.u32 %v58, 4294901760
    %10030 = vmatmul.mubr.f32.gmra.mrb[0].mxu0 %v10029
    %v10031 = vpop.f32.mrb[0].mxu0
    %v10032 = vadd.f32 %v9909, %v10031
    %v10033 = vpop.f32.mrb[0].mxu0
    %10034 = vmatprep.mubr.f32.mxu0 0.0
    %v10035 = vand.u32 %v61, 4294901760
    %10036 = vmatmul.mubr.f32.gmra.mrb[0].mxu0 %v10035
    %v10037 = vpop.f32.mrb[0].mxu0
    %v10038 = vadd.f32 %v9917, %v10037
    %v10039 = vpop.f32.mrb[0].mxu0
    %10040 = vmatprep.mubr.f32.mxu0 0.0
    %v10041 = vand.u32 %v64, 4294901760
    %10042 = vmatmul.mubr.f32.gmra.mrb[0].mxu0 %v10041
    %v10043 = vpop.f32.mrb[0].mxu0
    %v10044 = vadd.f32 %v9925, %v10043
    %v10045 = vpop.f32.mrb[0].mxu0
    %10046 = vdwg.mxu0
    %10047 = vmatprep.subr.mxu0 0.0
    %v10048 = vand.u32 %v9400, 4294901760
    %10049 = vmatpush1.msra.mxu0 %v10048
    %10050 = vmatprep.subr.mxu0 0.0
    %v10051 = vand.u32 %v9401, 4294901760
    %10052 = vmatpush1.msra.mxu0 %v10051
    %10053 = vmatprep.subr.mxu0 0.0
    %10054 = vmatpush1.msra.mxu0 0.0
    %10055 = vmatprep.subr.mxu0 0.0
    %10056 = vmatpush1.msra.mxu0 0.0
    %10057 = vmatprep.subr.mxu0 0.0
    %10058 = vmatpush1.msra.mxu0 0.0
    %10059 = vmatprep.subr.mxu0 0.0
    %10060 = vmatpush1.msra.mxu0 0.0
    %10061 = vmatprep.subr.mxu0 0.0
    %10062 = vmatpush1.msra.mxu0 0.0
    %10063 = vmatprep.subr.mxu0 0.0
    %10064 = vmatpush1.msra.mxu0 0.0
    %10065 = vmatprep.subr.mxu0 0.0
    %10066 = vmatpush1.msra.mxu0 0.0
    %10067 = vmatprep.subr.mxu0 0.0
    %10068 = vmatpush1.msra.mxu0 0.0
    %10069 = vmatprep.subr.mxu0 0.0
    %10070 = vmatpush1.msra.mxu0 0.0
    %10071 = vmatprep.subr.mxu0 0.0
    %10072 = vmatpush1.msra.mxu0 0.0
    %10073 = vmatprep.subr.mxu0 0.0
    %10074 = vmatpush1.msra.mxu0 0.0
    %10075 = vmatprep.subr.mxu0 0.0
    %10076 = vmatpush1.msra.mxu0 0.0
    %10077 = vmatprep.subr.mxu0 0.0
    %10078 = vmatpush1.msra.mxu0 0.0
    %10079 = vmatprep.subr.mxu0 0.0
    %10080 = vmatpush1.msra.mxu0 0.0
    %10081 = vmatprep.subr.mxu0 0.0
    %10082 = vmatpush1.msra.mxu0 0.0
    %10083 = vmatprep.subr.mxu0 0.0
    %10084 = vmatpush1.msra.mxu0 0.0
    %10085 = vmatprep.subr.mxu0 0.0
    %10086 = vmatpush1.msra.mxu0 0.0
    %10087 = vmatprep.subr.mxu0 0.0
    %10088 = vmatpush1.msra.mxu0 0.0
    %10089 = vmatprep.subr.mxu0 0.0
    %10090 = vmatpush1.msra.mxu0 0.0
    %10091 = vmatprep.subr.mxu0 0.0
    %10092 = vmatpush1.msra.mxu0 0.0
    %10093 = vmatprep.subr.mxu0 0.0
    %10094 = vmatpush1.msra.mxu0 0.0
    %10095 = vmatprep.subr.mxu0 0.0
    %10096 = vmatpush1.msra.mxu0 0.0
    %10097 = vmatprep.subr.mxu0 0.0
    %10098 = vmatpush1.msra.mxu0 0.0
    %10099 = vmatprep.subr.mxu0 0.0
    %10100 = vmatpush1.msra.mxu0 0.0
    %10101 = vmatprep.subr.mxu0 0.0
    %10102 = vmatpush1.msra.mxu0 0.0
    %10103 = vmatprep.subr.mxu0 0.0
    %10104 = vmatpush1.msra.mxu0 0.0
    %10105 = vmatprep.subr.mxu0 0.0
    %10106 = vmatpush1.msra.mxu0 0.0
    %10107 = vmatprep.subr.mxu0 0.0
    %10108 = vmatpush1.msra.mxu0 0.0
    %10109 = vmatprep.subr.mxu0 0.0
    %10110 = vmatpush1.msra.mxu0 0.0
    %10111 = vmatprep.subr.mxu0 0.0
    %10112 = vmatpush1.msra.mxu0 0.0
    %10113 = vmatprep.mubr.f32.mxu0 0.0
    %v10114 = vand.u32 %v43, 4294901760
    %10115 = vmatmul.mubr.f32.gmra.mrb[0].mxu0 %v10114
    %v10116 = vpop.f32.mrb[0].mxu0
    %v10117 = vadd.f32 %v10002, %v10116
    %v10118 = vpop.f32.mrb[0].mxu0
    %10119 = vmatprep.mubr.f32.mxu0 0.0
    %v10120 = vand.u32 %v46, 4294901760
    %10121 = vmatmul.mubr.f32.gmra.mrb[0].mxu0 %v10120
    %v10122 = vpop.f32.mrb[0].mxu0
    %v10123 = vadd.f32 %v10008, %v10122
    %v10124 = vpop.f32.mrb[0].mxu0
    %10125 = vmatprep.mubr.f32.mxu0 0.0
    %v10126 = vand.u32 %v49, 4294901760
    %10127 = vmatmul.mubr.f32.gmra.mrb[0].mxu0 %v10126
    %v10128 = vpop.f32.mrb[0].mxu0
    %v10129 = vadd.f32 %v10014, %v10128
    %v10130 = vpop.f32.mrb[0].mxu0
    %10131 = vmatprep.mubr.f32.mxu0 0.0
    %v10132 = vand.u32 %v52, 4294901760
    %10133 = vmatmul.mubr.f32.gmra.mrb[0].mxu0 %v10132
    %v10134 = vpop.f32.mrb[0].mxu0
    %v10135 = vadd.f32 %v10020, %v10134
    %v10136 = vpop.f32.mrb[0].mxu0
    %10137 = vmatprep.mubr.f32.mxu0 0.0
    %v10138 = vand.u32 %v55, 4294901760
    %10139 = vmatmul.mubr.f32.gmra.mrb[0].mxu0 %v10138
    %v10140 = vpop.f32.mrb[0].mxu0
    %v10141 = vadd.f32 %v10026, %v10140
    %v10142 = vpop.f32.mrb[0].mxu0
    %10143 = vmatprep.mubr.f32.mxu0 0.0
    %v10144 = vand.u32 %v58, 4294901760
    %10145 = vmatmul.mubr.f32.gmra.mrb[0].mxu0 %v10144
    %v10146 = vpop.f32.mrb[0].mxu0
    %v10147 = vadd.f32 %v10032, %v10146
    %v10148 = vpop.f32.mrb[0].mxu0
    %10149 = vmatprep.mubr.f32.mxu0 0.0
    %v10150 = vand.u32 %v61, 4294901760
    %10151 = vmatmul.mubr.f32.gmra.mrb[0].mxu0 %v10150
    %v10152 = vpop.f32.mrb[0].mxu0
    %v10153 = vadd.f32 %v10038, %v10152
    %v10154 = vpop.f32.mrb[0].mxu0
    %10155 = vmatprep.mubr.f32.mxu0 0.0
    %v10156 = vand.u32 %v64, 4294901760
    %10157 = vmatmul.mubr.f32.gmra.mrb[0].mxu0 %v10156
    %v10158 = vpop.f32.mrb[0].mxu0
    %v10159 = vadd.f32 %v10044, %v10158
    %v10160 = vpop.f32.mrb[0].mxu0
    %10161 = vdwg.mxu0
    %v10163 = vsel %vm41, %v10117, 0
    %v10166 = vsel %vm41, %v10123, 0
    %v10169 = vsel %vm41, %v10129, 0
    %v10172 = vsel %vm41, %v10135, 0
    %v10175 = vsel %vm41, %v10141, 0
    %v10178 = vsel %vm41, %v10147, 0
    %v10181 = vsel %vm41, %v10153, 0
    %v10184 = vsel %vm41, %v10159, 0
    %10186 = vmatprep.subr.mxu0 0.0
    %v10187 = vand.u32 %v37, 4294901760
    %10188 = vmatpush1.msra.mxu0 %v10187
    %10189 = vmatprep.subr.mxu0 0.0
    %v10190 = vand.u32 %v38, 4294901760
    %10191 = vmatpush1.msra.mxu0 %v10190
    %10192 = vmatprep.subr.mxu0 0.0
    %10193 = vmatpush1.msra.mxu0 0.0
    %10194 = vmatprep.subr.mxu0 0.0
    %10195 = vmatpush1.msra.mxu0 0.0
    %10196 = vmatprep.subr.mxu0 0.0
    %10197 = vmatpush1.msra.mxu0 0.0
    %10198 = vmatprep.subr.mxu0 0.0
    %10199 = vmatpush1.msra.mxu0 0.0
    %10200 = vmatprep.subr.mxu0 0.0
    %10201 = vmatpush1.msra.mxu0 0.0
    %10202 = vmatprep.subr.mxu0 0.0
    %10203 = vmatpush1.msra.mxu0 0.0
    %10204 = vmatprep.subr.mxu0 0.0
    %10205 = vmatpush1.msra.mxu0 0.0
    %10206 = vmatprep.subr.mxu0 0.0
    %10207 = vmatpush1.msra.mxu0 0.0
    %10208 = vmatprep.subr.mxu0 0.0
    %10209 = vmatpush1.msra.mxu0 0.0
    %10210 = vmatprep.subr.mxu0 0.0
    %10211 = vmatpush1.msra.mxu0 0.0
    %10212 = vmatprep.subr.mxu0 0.0
    %10213 = vmatpush1.msra.mxu0 0.0
    %10214 = vmatprep.subr.mxu0 0.0
    %10215 = vmatpush1.msra.mxu0 0.0
    %10216 = vmatprep.subr.mxu0 0.0
    %10217 = vmatpush1.msra.mxu0 0.0
    %10218 = vmatprep.subr.mxu0 0.0
    %10219 = vmatpush1.msra.mxu0 0.0
    %10220 = vmatprep.subr.mxu0 0.0
    %10221 = vmatpush1.msra.mxu0 0.0
    %10222 = vmatprep.subr.mxu0 0.0
    %10223 = vmatpush1.msra.mxu0 0.0
    %10224 = vmatprep.subr.mxu0 0.0
    %10225 = vmatpush1.msra.mxu0 0.0
    %10226 = vmatprep.subr.mxu0 0.0
    %10227 = vmatpush1.msra.mxu0 0.0
    %10228 = vmatprep.subr.mxu0 0.0
    %10229 = vmatpush1.msra.mxu0 0.0
    %10230 = vmatprep.subr.mxu0 0.0
    %10231 = vmatpush1.msra.mxu0 0.0
    %10232 = vmatprep.subr.mxu0 0.0
    %10233 = vmatpush1.msra.mxu0 0.0
    %10234 = vmatprep.subr.mxu0 0.0
    %10235 = vmatpush1.msra.mxu0 0.0
    %10236 = vmatprep.subr.mxu0 0.0
    %10237 = vmatpush1.msra.mxu0 0.0
    %10238 = vmatprep.subr.mxu0 0.0
    %10239 = vmatpush1.msra.mxu0 0.0
    %10240 = vmatprep.subr.mxu0 0.0
    %10241 = vmatpush1.msra.mxu0 0.0
    %10242 = vmatprep.subr.mxu0 0.0
    %10243 = vmatpush1.msra.mxu0 0.0
    %10244 = vmatprep.subr.mxu0 0.0
    %10245 = vmatpush1.msra.mxu0 0.0
    %10246 = vmatprep.subr.mxu0 0.0
    %10247 = vmatpush1.msra.mxu0 0.0
    %10248 = vmatprep.subr.mxu0 0.0
    %10249 = vmatpush1.msra.mxu0 0.0
    %10250 = vmatprep.subr.mxu0 0.0
    %10251 = vmatpush1.msra.mxu0 0.0
    %10252 = vmatprep.mubr.f32.mxu0 0.0
    %v10253 = vand.u32 %v10163, 4294901760
    %v10254 = vsub.f32 %v10163, %v10253
    %v10255 = vand.u32 %v10254, 4294901760
    %v10256 = vsub.f32 %v10254, %v10255
    %v10257 = vand.u32 %v10256, 4294901760
    %10258 = vmatmul.mubr.f32.gmra.mrb[0].mxu0 %v10257
    %v10259 = vpop.f32.mrb[0].mxu0
    %v10260 = vadd.f32 0.0, %v10259
    %v10261 = vpop.f32.mrb[0].mxu0
    %10262 = vmatprep.mubr.f32.mxu0 0.0
    %v10263 = vand.u32 %v10166, 4294901760
    %v10264 = vsub.f32 %v10166, %v10263
    %v10265 = vand.u32 %v10264, 4294901760
    %v10266 = vsub.f32 %v10264, %v10265
    %v10267 = vand.u32 %v10266, 4294901760
    %10268 = vmatmul.mubr.f32.gmra.mrb[0].mxu0 %v10267
    %v10269 = vpop.f32.mrb[0].mxu0
    %v10270 = vadd.f32 0.0, %v10269
    %v10271 = vpop.f32.mrb[0].mxu0
    %10272 = vmatprep.mubr.f32.mxu0 0.0
    %v10273 = vand.u32 %v10169, 4294901760
    %v10274 = vsub.f32 %v10169, %v10273
    %v10275 = vand.u32 %v10274, 4294901760
    %v10276 = vsub.f32 %v10274, %v10275
    %v10277 = vand.u32 %v10276, 4294901760
    %10278 = vmatmul.mubr.f32.gmra.mrb[0].mxu0 %v10277
    %v10279 = vpop.f32.mrb[0].mxu0
    %v10280 = vadd.f32 0.0, %v10279
    %v10281 = vpop.f32.mrb[0].mxu0
    %10282 = vmatprep.mubr.f32.mxu0 0.0
    %v10283 = vand.u32 %v10172, 4294901760
    %v10284 = vsub.f32 %v10172, %v10283
    %v10285 = vand.u32 %v10284, 4294901760
    %v10286 = vsub.f32 %v10284, %v10285
    %v10287 = vand.u32 %v10286, 4294901760
    %10288 = vmatmul.mubr.f32.gmra.mrb[0].mxu0 %v10287
    %v10289 = vpop.f32.mrb[0].mxu0
    %v10290 = vadd.f32 0.0, %v10289
    %v10291 = vpop.f32.mrb[0].mxu0
    %10292 = vmatprep.mubr.f32.mxu0 0.0
    %v10293 = vand.u32 %v10175, 4294901760
    %v10294 = vsub.f32 %v10175, %v10293
    %v10295 = vand.u32 %v10294, 4294901760
    %v10296 = vsub.f32 %v10294, %v10295
    %v10297 = vand.u32 %v10296, 4294901760
    %10298 = vmatmul.mubr.f32.gmra.mrb[0].mxu0 %v10297
    %v10299 = vpop.f32.mrb[0].mxu0
    %v10300 = vadd.f32 0.0, %v10299
    %v10301 = vpop.f32.mrb[0].mxu0
    %10302 = vmatprep.mubr.f32.mxu0 0.0
    %v10303 = vand.u32 %v10178, 4294901760
    %v10304 = vsub.f32 %v10178, %v10303
    %v10305 = vand.u32 %v10304, 4294901760
    %v10306 = vsub.f32 %v10304, %v10305
    %v10307 = vand.u32 %v10306, 4294901760
    %10308 = vmatmul.mubr.f32.gmra.mrb[0].mxu0 %v10307
    %v10309 = vpop.f32.mrb[0].mxu0
    %v10310 = vadd.f32 0.0, %v10309
    %v10311 = vpop.f32.mrb[0].mxu0
    %10312 = vmatprep.mubr.f32.mxu0 0.0
    %v10313 = vand.u32 %v10181, 4294901760
    %v10314 = vsub.f32 %v10181, %v10313
    %v10315 = vand.u32 %v10314, 4294901760
    %v10316 = vsub.f32 %v10314, %v10315
    %v10317 = vand.u32 %v10316, 4294901760
    %10318 = vmatmul.mubr.f32.gmra.mrb[0].mxu0 %v10317
    %v10319 = vpop.f32.mrb[0].mxu0
    %v10320 = vadd.f32 0.0, %v10319
    %v10321 = vpop.f32.mrb[0].mxu0
    %10322 = vmatprep.mubr.f32.mxu0 0.0
    %v10323 = vand.u32 %v10184, 4294901760
    %v10324 = vsub.f32 %v10184, %v10323
    %v10325 = vand.u32 %v10324, 4294901760
    %v10326 = vsub.f32 %v10324, %v10325
    %v10327 = vand.u32 %v10326, 4294901760
    %10328 = vmatmul.mubr.f32.gmra.mrb[0].mxu0 %v10327
    %v10329 = vpop.f32.mrb[0].mxu0
    %v10330 = vadd.f32 0.0, %v10329
    %v10331 = vpop.f32.mrb[0].mxu0
    %10332 = vdwg.mxu0
    %10333 = vmatprep.subr.mxu0 0.0
    %v10334 = vand.u32 %v37, 4294901760
    %v10335 = vsub.f32 %v37, %v10334
    %v10336 = vand.u32 %v10335, 4294901760
    %v10337 = vsub.f32 %v10335, %v10336
    %v10338 = vand.u32 %v10337, 4294901760
    %10339 = vmatpush1.msra.mxu0 %v10338
    %10340 = vmatprep.subr.mxu0 0.0
    %v10341 = vand.u32 %v38, 4294901760
    %v10342 = vsub.f32 %v38, %v10341
    %v10343 = vand.u32 %v10342, 4294901760
    %v10344 = vsub.f32 %v10342, %v10343
    %v10345 = vand.u32 %v10344, 4294901760
    %10346 = vmatpush1.msra.mxu0 %v10345
    %10347 = vmatprep.subr.mxu0 0.0
    %10348 = vmatpush1.msra.mxu0 0.0
    %10349 = vmatprep.subr.mxu0 0.0
    %10350 = vmatpush1.msra.mxu0 0.0
    %10351 = vmatprep.subr.mxu0 0.0
    %10352 = vmatpush1.msra.mxu0 0.0
    %10353 = vmatprep.subr.mxu0 0.0
    %10354 = vmatpush1.msra.mxu0 0.0
    %10355 = vmatprep.subr.mxu0 0.0
    %10356 = vmatpush1.msra.mxu0 0.0
    %10357 = vmatprep.subr.mxu0 0.0
    %10358 = vmatpush1.msra.mxu0 0.0
    %10359 = vmatprep.subr.mxu0 0.0
    %10360 = vmatpush1.msra.mxu0 0.0
    %10361 = vmatprep.subr.mxu0 0.0
    %10362 = vmatpush1.msra.mxu0 0.0
    %10363 = vmatprep.subr.mxu0 0.0
    %10364 = vmatpush1.msra.mxu0 0.0
    %10365 = vmatprep.subr.mxu0 0.0
    %10366 = vmatpush1.msra.mxu0 0.0
    %10367 = vmatprep.subr.mxu0 0.0
    %10368 = vmatpush1.msra.mxu0 0.0
    %10369 = vmatprep.subr.mxu0 0.0
    %10370 = vmatpush1.msra.mxu0 0.0
    %10371 = vmatprep.subr.mxu0 0.0
    %10372 = vmatpush1.msra.mxu0 0.0
    %10373 = vmatprep.subr.mxu0 0.0
    %10374 = vmatpush1.msra.mxu0 0.0
    %10375 = vmatprep.subr.mxu0 0.0
    %10376 = vmatpush1.msra.mxu0 0.0
    %10377 = vmatprep.subr.mxu0 0.0
    %10378 = vmatpush1.msra.mxu0 0.0
    %10379 = vmatprep.subr.mxu0 0.0
    %10380 = vmatpush1.msra.mxu0 0.0
    %10381 = vmatprep.subr.mxu0 0.0
    %10382 = vmatpush1.msra.mxu0 0.0
    %10383 = vmatprep.subr.mxu0 0.0
    %10384 = vmatpush1.msra.mxu0 0.0
    %10385 = vmatprep.subr.mxu0 0.0
    %10386 = vmatpush1.msra.mxu0 0.0
    %10387 = vmatprep.subr.mxu0 0.0
    %10388 = vmatpush1.msra.mxu0 0.0
    %10389 = vmatprep.subr.mxu0 0.0
    %10390 = vmatpush1.msra.mxu0 0.0
    %10391 = vmatprep.subr.mxu0 0.0
    %10392 = vmatpush1.msra.mxu0 0.0
    %10393 = vmatprep.subr.mxu0 0.0
    %10394 = vmatpush1.msra.mxu0 0.0
    %10395 = vmatprep.subr.mxu0 0.0
    %10396 = vmatpush1.msra.mxu0 0.0
    %10397 = vmatprep.subr.mxu0 0.0
    %10398 = vmatpush1.msra.mxu0 0.0
    %10399 = vmatprep.subr.mxu0 0.0
    %10400 = vmatpush1.msra.mxu0 0.0
    %10401 = vmatprep.subr.mxu0 0.0
    %10402 = vmatpush1.msra.mxu0 0.0
    %10403 = vmatprep.subr.mxu0 0.0
    %10404 = vmatpush1.msra.mxu0 0.0
    %10405 = vmatprep.subr.mxu0 0.0
    %10406 = vmatpush1.msra.mxu0 0.0
    %10407 = vmatprep.mubr.f32.mxu0 0.0
    %v10408 = vand.u32 %v10163, 4294901760
    %10409 = vmatmul.mubr.f32.gmra.mrb[0].mxu0 %v10408
    %v10410 = vpop.f32.mrb[0].mxu0
    %v10411 = vadd.f32 %v10260, %v10410
    %v10412 = vpop.f32.mrb[0].mxu0
    %10413 = vmatprep.mubr.f32.mxu0 0.0
    %v10414 = vand.u32 %v10166, 4294901760
    %10415 = vmatmul.mubr.f32.gmra.mrb[0].mxu0 %v10414
    %v10416 = vpop.f32.mrb[0].mxu0
    %v10417 = vadd.f32 %v10270, %v10416
    %v10418 = vpop.f32.mrb[0].mxu0
    %10419 = vmatprep.mubr.f32.mxu0 0.0
    %v10420 = vand.u32 %v10169, 4294901760
    %10421 = vmatmul.mubr.f32.gmra.mrb[0].mxu0 %v10420
    %v10422 = vpop.f32.mrb[0].mxu0
    %v10423 = vadd.f32 %v10280, %v10422
    %v10424 = vpop.f32.mrb[0].mxu0
    %10425 = vmatprep.mubr.f32.mxu0 0.0
    %v10426 = vand.u32 %v10172, 4294901760
    %10427 = vmatmul.mubr.f32.gmra.mrb[0].mxu0 %v10426
    %v10428 = vpop.f32.mrb[0].mxu0
    %v10429 = vadd.f32 %v10290, %v10428
    %v10430 = vpop.f32.mrb[0].mxu0
    %10431 = vmatprep.mubr.f32.mxu0 0.0
    %v10432 = vand.u32 %v10175, 4294901760
    %10433 = vmatmul.mubr.f32.gmra.mrb[0].mxu0 %v10432
    %v10434 = vpop.f32.mrb[0].mxu0
    %v10435 = vadd.f32 %v10300, %v10434
    %v10436 = vpop.f32.mrb[0].mxu0
    %10437 = vmatprep.mubr.f32.mxu0 0.0
    %v10438 = vand.u32 %v10178, 4294901760
    %10439 = vmatmul.mubr.f32.gmra.mrb[0].mxu0 %v10438
    %v10440 = vpop.f32.mrb[0].mxu0
    %v10441 = vadd.f32 %v10310, %v10440
    %v10442 = vpop.f32.mrb[0].mxu0
    %10443 = vmatprep.mubr.f32.mxu0 0.0
    %v10444 = vand.u32 %v10181, 4294901760
    %10445 = vmatmul.mubr.f32.gmra.mrb[0].mxu0 %v10444
    %v10446 = vpop.f32.mrb[0].mxu0
    %v10447 = vadd.f32 %v10320, %v10446
    %v10448 = vpop.f32.mrb[0].mxu0
    %10449 = vmatprep.mubr.f32.mxu0 0.0
    %v10450 = vand.u32 %v10184, 4294901760
    %10451 = vmatmul.mubr.f32.gmra.mrb[0].mxu0 %v10450
    %v10452 = vpop.f32.mrb[0].mxu0
    %v10453 = vadd.f32 %v10330, %v10452
    %v10454 = vpop.f32.mrb[0].mxu0
    %10455 = vdwg.mxu0
    %10456 = vmatprep.subr.mxu0 0.0
    %v10457 = vand.u32 %v37, 4294901760
    %v10458 = vsub.f32 %v37, %v10457
    %10459 = vmatpush1.msra.mxu0 %v10458
    %10460 = vmatprep.subr.mxu0 0.0
    %v10461 = vand.u32 %v38, 4294901760
    %v10462 = vsub.f32 %v38, %v10461
    %10463 = vmatpush1.msra.mxu0 %v10462
    %10464 = vmatprep.subr.mxu0 0.0
    %10465 = vmatpush1.msra.mxu0 0.0
    %10466 = vmatprep.subr.mxu0 0.0
    %10467 = vmatpush1.msra.mxu0 0.0
    %10468 = vmatprep.subr.mxu0 0.0
    %10469 = vmatpush1.msra.mxu0 0.0
    %10470 = vmatprep.subr.mxu0 0.0
    %10471 = vmatpush1.msra.mxu0 0.0
    %10472 = vmatprep.subr.mxu0 0.0
    %10473 = vmatpush1.msra.mxu0 0.0
    %10474 = vmatprep.subr.mxu0 0.0
    %10475 = vmatpush1.msra.mxu0 0.0
    %10476 = vmatprep.subr.mxu0 0.0
    %10477 = vmatpush1.msra.mxu0 0.0
    %10478 = vmatprep.subr.mxu0 0.0
    %10479 = vmatpush1.msra.mxu0 0.0
    %10480 = vmatprep.subr.mxu0 0.0
    %10481 = vmatpush1.msra.mxu0 0.0
    %10482 = vmatprep.subr.mxu0 0.0
    %10483 = vmatpush1.msra.mxu0 0.0
    %10484 = vmatprep.subr.mxu0 0.0
    %10485 = vmatpush1.msra.mxu0 0.0
    %10486 = vmatprep.subr.mxu0 0.0
    %10487 = vmatpush1.msra.mxu0 0.0
    %10488 = vmatprep.subr.mxu0 0.0
    %10489 = vmatpush1.msra.mxu0 0.0
    %10490 = vmatprep.subr.mxu0 0.0
    %10491 = vmatpush1.msra.mxu0 0.0
    %10492 = vmatprep.subr.mxu0 0.0
    %10493 = vmatpush1.msra.mxu0 0.0
    %10494 = vmatprep.subr.mxu0 0.0
    %10495 = vmatpush1.msra.mxu0 0.0
    %10496 = vmatprep.subr.mxu0 0.0
    %10497 = vmatpush1.msra.mxu0 0.0
    %10498 = vmatprep.subr.mxu0 0.0
    %10499 = vmatpush1.msra.mxu0 0.0
    %10500 = vmatprep.subr.mxu0 0.0
    %10501 = vmatpush1.msra.mxu0 0.0
    %10502 = vmatprep.subr.mxu0 0.0
    %10503 = vmatpush1.msra.mxu0 0.0
    %10504 = vmatprep.subr.mxu0 0.0
    %10505 = vmatpush1.msra.mxu0 0.0
    %10506 = vmatprep.subr.mxu0 0.0
    %10507 = vmatpush1.msra.mxu0 0.0
    %10508 = vmatprep.subr.mxu0 0.0
    %10509 = vmatpush1.msra.mxu0 0.0
    %10510 = vmatprep.subr.mxu0 0.0
    %10511 = vmatpush1.msra.mxu0 0.0
    %10512 = vmatprep.subr.mxu0 0.0
    %10513 = vmatpush1.msra.mxu0 0.0
    %10514 = vmatprep.subr.mxu0 0.0
    %10515 = vmatpush1.msra.mxu0 0.0
    %10516 = vmatprep.subr.mxu0 0.0
    %10517 = vmatpush1.msra.mxu0 0.0
    %10518 = vmatprep.subr.mxu0 0.0
    %10519 = vmatpush1.msra.mxu0 0.0
    %10520 = vmatprep.subr.mxu0 0.0
    %10521 = vmatpush1.msra.mxu0 0.0
    %10522 = vmatprep.subr.mxu0 0.0
    %10523 = vmatpush1.msra.mxu0 0.0
    %10524 = vmatprep.mubr.f32.mxu0 0.0
    %v10525 = vand.u32 %v10163, 4294901760
    %v10526 = vsub.f32 %v10163, %v10525
    %10527 = vmatmul.mubr.f32.gmra.mrb[0].mxu0 %v10526
    %v10528 = vpop.f32.mrb[0].mxu0
    %v10529 = vadd.f32 %v10411, %v10528
    %v10530 = vpop.f32.mrb[0].mxu0
    %10531 = vmatprep.mubr.f32.mxu0 0.0
    %v10532 = vand.u32 %v10166, 4294901760
    %v10533 = vsub.f32 %v10166, %v10532
    %10534 = vmatmul.mubr.f32.gmra.mrb[0].mxu0 %v10533
    %v10535 = vpop.f32.mrb[0].mxu0
    %v10536 = vadd.f32 %v10417, %v10535
    %v10537 = vpop.f32.mrb[0].mxu0
    %10538 = vmatprep.mubr.f32.mxu0 0.0
    %v10539 = vand.u32 %v10169, 4294901760
    %v10540 = vsub.f32 %v10169, %v10539
    %10541 = vmatmul.mubr.f32.gmra.mrb[0].mxu0 %v10540
    %v10542 = vpop.f32.mrb[0].mxu0
    %v10543 = vadd.f32 %v10423, %v10542
    %v10544 = vpop.f32.mrb[0].mxu0
    %10545 = vmatprep.mubr.f32.mxu0 0.0
    %v10546 = vand.u32 %v10172, 4294901760
    %v10547 = vsub.f32 %v10172, %v10546
    %10548 = vmatmul.mubr.f32.gmra.mrb[0].mxu0 %v10547
    %v10549 = vpop.f32.mrb[0].mxu0
    %v10550 = vadd.f32 %v10429, %v10549
    %v10551 = vpop.f32.mrb[0].mxu0
    %10552 = vmatprep.mubr.f32.mxu0 0.0
    %v10553 = vand.u32 %v10175, 4294901760
    %v10554 = vsub.f32 %v10175, %v10553
    %10555 = vmatmul.mubr.f32.gmra.mrb[0].mxu0 %v10554
    %v10556 = vpop.f32.mrb[0].mxu0
    %v10557 = vadd.f32 %v10435, %v10556
    %v10558 = vpop.f32.mrb[0].mxu0
    %10559 = vmatprep.mubr.f32.mxu0 0.0
    %v10560 = vand.u32 %v10178, 4294901760
    %v10561 = vsub.f32 %v10178, %v10560
    %10562 = vmatmul.mubr.f32.gmra.mrb[0].mxu0 %v10561
    %v10563 = vpop.f32.mrb[0].mxu0
    %v10564 = vadd.f32 %v10441, %v10563
    %v10565 = vpop.f32.mrb[0].mxu0
    %10566 = vmatprep.mubr.f32.mxu0 0.0
    %v10567 = vand.u32 %v10181, 4294901760
    %v10568 = vsub.f32 %v10181, %v10567
    %10569 = vmatmul.mubr.f32.gmra.mrb[0].mxu0 %v10568
    %v10570 = vpop.f32.mrb[0].mxu0
    %v10571 = vadd.f32 %v10447, %v10570
    %v10572 = vpop.f32.mrb[0].mxu0
    %10573 = vmatprep.mubr.f32.mxu0 0.0
    %v10574 = vand.u32 %v10184, 4294901760
    %v10575 = vsub.f32 %v10184, %v10574
    %10576 = vmatmul.mubr.f32.gmra.mrb[0].mxu0 %v10575
    %v10577 = vpop.f32.mrb[0].mxu0
    %v10578 = vadd.f32 %v10453, %v10577
    %v10579 = vpop.f32.mrb[0].mxu0
    %10580 = vdwg.mxu0
    %10581 = vmatprep.subr.mxu0 0.0
    %v10582 = vand.u32 %v37, 4294901760
    %10583 = vmatpush1.msra.mxu0 %v10582
    %10584 = vmatprep.subr.mxu0 0.0
    %v10585 = vand.u32 %v38, 4294901760
    %10586 = vmatpush1.msra.mxu0 %v10585
    %10587 = vmatprep.subr.mxu0 0.0
    %10588 = vmatpush1.msra.mxu0 0.0
    %10589 = vmatprep.subr.mxu0 0.0
    %10590 = vmatpush1.msra.mxu0 0.0
    %10591 = vmatprep.subr.mxu0 0.0
    %10592 = vmatpush1.msra.mxu0 0.0
    %10593 = vmatprep.subr.mxu0 0.0
    %10594 = vmatpush1.msra.mxu0 0.0
    %10595 = vmatprep.subr.mxu0 0.0
    %10596 = vmatpush1.msra.mxu0 0.0
    %10597 = vmatprep.subr.mxu0 0.0
    %10598 = vmatpush1.msra.mxu0 0.0
    %10599 = vmatprep.subr.mxu0 0.0
    %10600 = vmatpush1.msra.mxu0 0.0
    %10601 = vmatprep.subr.mxu0 0.0
    %10602 = vmatpush1.msra.mxu0 0.0
    %10603 = vmatprep.subr.mxu0 0.0
    %10604 = vmatpush1.msra.mxu0 0.0
    %10605 = vmatprep.subr.mxu0 0.0
    %10606 = vmatpush1.msra.mxu0 0.0
    %10607 = vmatprep.subr.mxu0 0.0
    %10608 = vmatpush1.msra.mxu0 0.0
    %10609 = vmatprep.subr.mxu0 0.0
    %10610 = vmatpush1.msra.mxu0 0.0
    %10611 = vmatprep.subr.mxu0 0.0
    %10612 = vmatpush1.msra.mxu0 0.0
    %10613 = vmatprep.subr.mxu0 0.0
    %10614 = vmatpush1.msra.mxu0 0.0
    %10615 = vmatprep.subr.mxu0 0.0
    %10616 = vmatpush1.msra.mxu0 0.0
    %10617 = vmatprep.subr.mxu0 0.0
    %10618 = vmatpush1.msra.mxu0 0.0
    %10619 = vmatprep.subr.mxu0 0.0
    %10620 = vmatpush1.msra.mxu0 0.0
    %10621 = vmatprep.subr.mxu0 0.0
    %10622 = vmatpush1.msra.mxu0 0.0
    %10623 = vmatprep.subr.mxu0 0.0
    %10624 = vmatpush1.msra.mxu0 0.0
    %10625 = vmatprep.subr.mxu0 0.0
    %10626 = vmatpush1.msra.mxu0 0.0
    %10627 = vmatprep.subr.mxu0 0.0
    %10628 = vmatpush1.msra.mxu0 0.0
    %10629 = vmatprep.subr.mxu0 0.0
    %10630 = vmatpush1.msra.mxu0 0.0
    %10631 = vmatprep.subr.mxu0 0.0
    %10632 = vmatpush1.msra.mxu0 0.0
    %10633 = vmatprep.subr.mxu0 0.0
    %10634 = vmatpush1.msra.mxu0 0.0
    %10635 = vmatprep.subr.mxu0 0.0
    %10636 = vmatpush1.msra.mxu0 0.0
    %10637 = vmatprep.subr.mxu0 0.0
    %10638 = vmatpush1.msra.mxu0 0.0
    %10639 = vmatprep.subr.mxu0 0.0
    %10640 = vmatpush1.msra.mxu0 0.0
    %10641 = vmatprep.subr.mxu0 0.0
    %10642 = vmatpush1.msra.mxu0 0.0
    %10643 = vmatprep.subr.mxu0 0.0
    %10644 = vmatpush1.msra.mxu0 0.0
    %10645 = vmatprep.subr.mxu0 0.0
    %10646 = vmatpush1.msra.mxu0 0.0
    %10647 = vmatprep.mubr.f32.mxu0 0.0
    %v10648 = vand.u32 %v10163, 4294901760
    %v10649 = vsub.f32 %v10163, %v10648
    %v10650 = vand.u32 %v10649, 4294901760
    %10651 = vmatmul.mubr.f32.gmra.mrb[0].mxu0 %v10650
    %v10652 = vpop.f32.mrb[0].mxu0
    %v10653 = vadd.f32 %v10529, %v10652
    %v10654 = vpop.f32.mrb[0].mxu0
    %10655 = vmatprep.mubr.f32.mxu0 0.0
    %v10656 = vand.u32 %v10166, 4294901760
    %v10657 = vsub.f32 %v10166, %v10656
    %v10658 = vand.u32 %v10657, 4294901760
    %10659 = vmatmul.mubr.f32.gmra.mrb[0].mxu0 %v10658
    %v10660 = vpop.f32.mrb[0].mxu0
    %v10661 = vadd.f32 %v10536, %v10660
    %v10662 = vpop.f32.mrb[0].mxu0
    %10663 = vmatprep.mubr.f32.mxu0 0.0
    %v10664 = vand.u32 %v10169, 4294901760
    %v10665 = vsub.f32 %v10169, %v10664
    %v10666 = vand.u32 %v10665, 4294901760
    %10667 = vmatmul.mubr.f32.gmra.mrb[0].mxu0 %v10666
    %v10668 = vpop.f32.mrb[0].mxu0
    %v10669 = vadd.f32 %v10543, %v10668
    %v10670 = vpop.f32.mrb[0].mxu0
    %10671 = vmatprep.mubr.f32.mxu0 0.0
    %v10672 = vand.u32 %v10172, 4294901760
    %v10673 = vsub.f32 %v10172, %v10672
    %v10674 = vand.u32 %v10673, 4294901760
    %10675 = vmatmul.mubr.f32.gmra.mrb[0].mxu0 %v10674
    %v10676 = vpop.f32.mrb[0].mxu0
    %v10677 = vadd.f32 %v10550, %v10676
    %v10678 = vpop.f32.mrb[0].mxu0
    %10679 = vmatprep.mubr.f32.mxu0 0.0
    %v10680 = vand.u32 %v10175, 4294901760
    %v10681 = vsub.f32 %v10175, %v10680
    %v10682 = vand.u32 %v10681, 4294901760
    %10683 = vmatmul.mubr.f32.gmra.mrb[0].mxu0 %v10682
    %v10684 = vpop.f32.mrb[0].mxu0
    %v10685 = vadd.f32 %v10557, %v10684
    %v10686 = vpop.f32.mrb[0].mxu0
    %10687 = vmatprep.mubr.f32.mxu0 0.0
    %v10688 = vand.u32 %v10178, 4294901760
    %v10689 = vsub.f32 %v10178, %v10688
    %v10690 = vand.u32 %v10689, 4294901760
    %10691 = vmatmul.mubr.f32.gmra.mrb[0].mxu0 %v10690
    %v10692 = vpop.f32.mrb[0].mxu0
    %v10693 = vadd.f32 %v10564, %v10692
    %v10694 = vpop.f32.mrb[0].mxu0
    %10695 = vmatprep.mubr.f32.mxu0 0.0
    %v10696 = vand.u32 %v10181, 4294901760
    %v10697 = vsub.f32 %v10181, %v10696
    %v10698 = vand.u32 %v10697, 4294901760
    %10699 = vmatmul.mubr.f32.gmra.mrb[0].mxu0 %v10698
    %v10700 = vpop.f32.mrb[0].mxu0
    %v10701 = vadd.f32 %v10571, %v10700
    %v10702 = vpop.f32.mrb[0].mxu0
    %10703 = vmatprep.mubr.f32.mxu0 0.0
    %v10704 = vand.u32 %v10184, 4294901760
    %v10705 = vsub.f32 %v10184, %v10704
    %v10706 = vand.u32 %v10705, 4294901760
    %10707 = vmatmul.mubr.f32.gmra.mrb[0].mxu0 %v10706
    %v10708 = vpop.f32.mrb[0].mxu0
    %v10709 = vadd.f32 %v10578, %v10708
    %v10710 = vpop.f32.mrb[0].mxu0
    %10711 = vdwg.mxu0
    %10712 = vmatprep.subr.mxu0 0.0
    %v10713 = vand.u32 %v37, 4294901760
    %v10714 = vsub.f32 %v37, %v10713
    %v10715 = vand.u32 %v10714, 4294901760
    %10716 = vmatpush1.msra.mxu0 %v10715
    %10717 = vmatprep.subr.mxu0 0.0
    %v10718 = vand.u32 %v38, 4294901760
    %v10719 = vsub.f32 %v38, %v10718
    %v10720 = vand.u32 %v10719, 4294901760
    %10721 = vmatpush1.msra.mxu0 %v10720
    %10722 = vmatprep.subr.mxu0 0.0
    %10723 = vmatpush1.msra.mxu0 0.0
    %10724 = vmatprep.subr.mxu0 0.0
    %10725 = vmatpush1.msra.mxu0 0.0
    %10726 = vmatprep.subr.mxu0 0.0
    %10727 = vmatpush1.msra.mxu0 0.0
    %10728 = vmatprep.subr.mxu0 0.0
    %10729 = vmatpush1.msra.mxu0 0.0
    %10730 = vmatprep.subr.mxu0 0.0
    %10731 = vmatpush1.msra.mxu0 0.0
    %10732 = vmatprep.subr.mxu0 0.0
    %10733 = vmatpush1.msra.mxu0 0.0
    %10734 = vmatprep.subr.mxu0 0.0
    %10735 = vmatpush1.msra.mxu0 0.0
    %10736 = vmatprep.subr.mxu0 0.0
    %10737 = vmatpush1.msra.mxu0 0.0
    %10738 = vmatprep.subr.mxu0 0.0
    %10739 = vmatpush1.msra.mxu0 0.0
    %10740 = vmatprep.subr.mxu0 0.0
    %10741 = vmatpush1.msra.mxu0 0.0
    %10742 = vmatprep.subr.mxu0 0.0
    %10743 = vmatpush1.msra.mxu0 0.0
    %10744 = vmatprep.subr.mxu0 0.0
    %10745 = vmatpush1.msra.mxu0 0.0
    %10746 = vmatprep.subr.mxu0 0.0
    %10747 = vmatpush1.msra.mxu0 0.0
    %10748 = vmatprep.subr.mxu0 0.0
    %10749 = vmatpush1.msra.mxu0 0.0
    %10750 = vmatprep.subr.mxu0 0.0
    %10751 = vmatpush1.msra.mxu0 0.0
    %10752 = vmatprep.subr.mxu0 0.0
    %10753 = vmatpush1.msra.mxu0 0.0
    %10754 = vmatprep.subr.mxu0 0.0
    %10755 = vmatpush1.msra.mxu0 0.0
    %10756 = vmatprep.subr.mxu0 0.0
    %10757 = vmatpush1.msra.mxu0 0.0
    %10758 = vmatprep.subr.mxu0 0.0
    %10759 = vmatpush1.msra.mxu0 0.0
    %10760 = vmatprep.subr.mxu0 0.0
    %10761 = vmatpush1.msra.mxu0 0.0
    %10762 = vmatprep.subr.mxu0 0.0
    %10763 = vmatpush1.msra.mxu0 0.0
    %10764 = vmatprep.subr.mxu0 0.0
    %10765 = vmatpush1.msra.mxu0 0.0
    %10766 = vmatprep.subr.mxu0 0.0
    %10767 = vmatpush1.msra.mxu0 0.0
    %10768 = vmatprep.subr.mxu0 0.0
    %10769 = vmatpush1.msra.mxu0 0.0
    %10770 = vmatprep.subr.mxu0 0.0
    %10771 = vmatpush1.msra.mxu0 0.0
    %10772 = vmatprep.subr.mxu0 0.0
    %10773 = vmatpush1.msra.mxu0 0.0
    %10774 = vmatprep.subr.mxu0 0.0
    %10775 = vmatpush1.msra.mxu0 0.0
    %10776 = vmatprep.subr.mxu0 0.0
    %10777 = vmatpush1.msra.mxu0 0.0
    %10778 = vmatprep.subr.mxu0 0.0
    %10779 = vmatpush1.msra.mxu0 0.0
    %10780 = vmatprep.subr.mxu0 0.0
    %10781 = vmatpush1.msra.mxu0 0.0
    %10782 = vmatprep.mubr.f32.mxu0 0.0
    %v10783 = vand.u32 %v10163, 4294901760
    %10784 = vmatmul.mubr.f32.gmra.mrb[0].mxu0 %v10783
    %v10785 = vpop.f32.mrb[0].mxu0
    %v10786 = vadd.f32 %v10653, %v10785
    %v10787 = vpop.f32.mrb[0].mxu0
    %10788 = vmatprep.mubr.f32.mxu0 0.0
    %v10789 = vand.u32 %v10166, 4294901760
    %10790 = vmatmul.mubr.f32.gmra.mrb[0].mxu0 %v10789
    %v10791 = vpop.f32.mrb[0].mxu0
    %v10792 = vadd.f32 %v10661, %v10791
    %v10793 = vpop.f32.mrb[0].mxu0
    %10794 = vmatprep.mubr.f32.mxu0 0.0
    %v10795 = vand.u32 %v10169, 4294901760
    %10796 = vmatmul.mubr.f32.gmra.mrb[0].mxu0 %v10795
    %v10797 = vpop.f32.mrb[0].mxu0
    %v10798 = vadd.f32 %v10669, %v10797
    %v10799 = vpop.f32.mrb[0].mxu0
    %10800 = vmatprep.mubr.f32.mxu0 0.0
    %v10801 = vand.u32 %v10172, 4294901760
    %10802 = vmatmul.mubr.f32.gmra.mrb[0].mxu0 %v10801
    %v10803 = vpop.f32.mrb[0].mxu0
    %v10804 = vadd.f32 %v10677, %v10803
    %v10805 = vpop.f32.mrb[0].mxu0
    %10806 = vmatprep.mubr.f32.mxu0 0.0
    %v10807 = vand.u32 %v10175, 4294901760
    %10808 = vmatmul.mubr.f32.gmra.mrb[0].mxu0 %v10807
    %v10809 = vpop.f32.mrb[0].mxu0
    %v10810 = vadd.f32 %v10685, %v10809
    %v10811 = vpop.f32.mrb[0].mxu0
    %10812 = vmatprep.mubr.f32.mxu0 0.0
    %v10813 = vand.u32 %v10178, 4294901760
    %10814 = vmatmul.mubr.f32.gmra.mrb[0].mxu0 %v10813
    %v10815 = vpop.f32.mrb[0].mxu0
    %v10816 = vadd.f32 %v10693, %v10815
    %v10817 = vpop.f32.mrb[0].mxu0
    %10818 = vmatprep.mubr.f32.mxu0 0.0
    %v10819 = vand.u32 %v10181, 4294901760
    %10820 = vmatmul.mubr.f32.gmra.mrb[0].mxu0 %v10819
    %v10821 = vpop.f32.mrb[0].mxu0
    %v10822 = vadd.f32 %v10701, %v10821
    %v10823 = vpop.f32.mrb[0].mxu0
    %10824 = vmatprep.mubr.f32.mxu0 0.0
    %v10825 = vand.u32 %v10184, 4294901760
    %10826 = vmatmul.mubr.f32.gmra.mrb[0].mxu0 %v10825
    %v10827 = vpop.f32.mrb[0].mxu0
    %v10828 = vadd.f32 %v10709, %v10827
    %v10829 = vpop.f32.mrb[0].mxu0
    %10830 = vdwg.mxu0
    %10831 = vmatprep.subr.mxu0 0.0
    %v10832 = vand.u32 %v37, 4294901760
    %10833 = vmatpush1.msra.mxu0 %v10832
    %10834 = vmatprep.subr.mxu0 0.0
    %v10835 = vand.u32 %v38, 4294901760
    %10836 = vmatpush1.msra.mxu0 %v10835
    %10837 = vmatprep.subr.mxu0 0.0
    %10838 = vmatpush1.msra.mxu0 0.0
    %10839 = vmatprep.subr.mxu0 0.0
    %10840 = vmatpush1.msra.mxu0 0.0
    %10841 = vmatprep.subr.mxu0 0.0
    %10842 = vmatpush1.msra.mxu0 0.0
    %10843 = vmatprep.subr.mxu0 0.0
    %10844 = vmatpush1.msra.mxu0 0.0
    %10845 = vmatprep.subr.mxu0 0.0
    %10846 = vmatpush1.msra.mxu0 0.0
    %10847 = vmatprep.subr.mxu0 0.0
    %10848 = vmatpush1.msra.mxu0 0.0
    %10849 = vmatprep.subr.mxu0 0.0
    %10850 = vmatpush1.msra.mxu0 0.0
    %10851 = vmatprep.subr.mxu0 0.0
    %10852 = vmatpush1.msra.mxu0 0.0
    %10853 = vmatprep.subr.mxu0 0.0
    %10854 = vmatpush1.msra.mxu0 0.0
    %10855 = vmatprep.subr.mxu0 0.0
    %10856 = vmatpush1.msra.mxu0 0.0
    %10857 = vmatprep.subr.mxu0 0.0
    %10858 = vmatpush1.msra.mxu0 0.0
    %10859 = vmatprep.subr.mxu0 0.0
    %10860 = vmatpush1.msra.mxu0 0.0
    %10861 = vmatprep.subr.mxu0 0.0
    %10862 = vmatpush1.msra.mxu0 0.0
    %10863 = vmatprep.subr.mxu0 0.0
    %10864 = vmatpush1.msra.mxu0 0.0
    %10865 = vmatprep.subr.mxu0 0.0
    %10866 = vmatpush1.msra.mxu0 0.0
    %10867 = vmatprep.subr.mxu0 0.0
    %10868 = vmatpush1.msra.mxu0 0.0
    %10869 = vmatprep.subr.mxu0 0.0
    %10870 = vmatpush1.msra.mxu0 0.0
    %10871 = vmatprep.subr.mxu0 0.0
    %10872 = vmatpush1.msra.mxu0 0.0
    %10873 = vmatprep.subr.mxu0 0.0
    %10874 = vmatpush1.msra.mxu0 0.0
    %10875 = vmatprep.subr.mxu0 0.0
    %10876 = vmatpush1.msra.mxu0 0.0
    %10877 = vmatprep.subr.mxu0 0.0
    %10878 = vmatpush1.msra.mxu0 0.0
    %10879 = vmatprep.subr.mxu0 0.0
    %10880 = vmatpush1.msra.mxu0 0.0
    %10881 = vmatprep.subr.mxu0 0.0
    %10882 = vmatpush1.msra.mxu0 0.0
    %10883 = vmatprep.subr.mxu0 0.0
    %10884 = vmatpush1.msra.mxu0 0.0
    %10885 = vmatprep.subr.mxu0 0.0
    %10886 = vmatpush1.msra.mxu0 0.0
    %10887 = vmatprep.subr.mxu0 0.0
    %10888 = vmatpush1.msra.mxu0 0.0
    %10889 = vmatprep.subr.mxu0 0.0
    %10890 = vmatpush1.msra.mxu0 0.0
    %10891 = vmatprep.subr.mxu0 0.0
    %10892 = vmatpush1.msra.mxu0 0.0
    %10893 = vmatprep.subr.mxu0 0.0
    %10894 = vmatpush1.msra.mxu0 0.0
    %10895 = vmatprep.subr.mxu0 0.0
    %10896 = vmatpush1.msra.mxu0 0.0
    %10897 = vmatprep.mubr.f32.mxu0 0.0
    %v10898 = vand.u32 %v10163, 4294901760
    %10899 = vmatmul.mubr.f32.gmra.mrb[0].mxu0 %v10898
    %v10900 = vpop.f32.mrb[0].mxu0
    %v10901 = vadd.f32 %v10786, %v10900
    %v10902 = vpop.f32.mrb[0].mxu0
    %10903 = vmatprep.mubr.f32.mxu0 0.0
    %v10904 = vand.u32 %v10166, 4294901760
    %10905 = vmatmul.mubr.f32.gmra.mrb[0].mxu0 %v10904
    %v10906 = vpop.f32.mrb[0].mxu0
    %v10907 = vadd.f32 %v10792, %v10906
    %v10908 = vpop.f32.mrb[0].mxu0
    %10909 = vmatprep.mubr.f32.mxu0 0.0
    %v10910 = vand.u32 %v10169, 4294901760
    %10911 = vmatmul.mubr.f32.gmra.mrb[0].mxu0 %v10910
    %v10912 = vpop.f32.mrb[0].mxu0
    %v10913 = vadd.f32 %v10798, %v10912
    %v10914 = vpop.f32.mrb[0].mxu0
    %10915 = vmatprep.mubr.f32.mxu0 0.0
    %v10916 = vand.u32 %v10172, 4294901760
    %10917 = vmatmul.mubr.f32.gmra.mrb[0].mxu0 %v10916
    %v10918 = vpop.f32.mrb[0].mxu0
    %v10919 = vadd.f32 %v10804, %v10918
    %v10920 = vpop.f32.mrb[0].mxu0
    %10921 = vmatprep.mubr.f32.mxu0 0.0
    %v10922 = vand.u32 %v10175, 4294901760
    %10923 = vmatmul.mubr.f32.gmra.mrb[0].mxu0 %v10922
    %v10924 = vpop.f32.mrb[0].mxu0
    %v10925 = vadd.f32 %v10810, %v10924
    %v10926 = vpop.f32.mrb[0].mxu0
    %10927 = vmatprep.mubr.f32.mxu0 0.0
    %v10928 = vand.u32 %v10178, 4294901760
    %10929 = vmatmul.mubr.f32.gmra.mrb[0].mxu0 %v10928
    %v10930 = vpop.f32.mrb[0].mxu0
    %v10931 = vadd.f32 %v10816, %v10930
    %v10932 = vpop.f32.mrb[0].mxu0
    %10933 = vmatprep.mubr.f32.mxu0 0.0
    %v10934 = vand.u32 %v10181, 4294901760
    %10935 = vmatmul.mubr.f32.gmra.mrb[0].mxu0 %v10934
    %v10936 = vpop.f32.mrb[0].mxu0
    %v10937 = vadd.f32 %v10822, %v10936
    %v10938 = vpop.f32.mrb[0].mxu0
    %10939 = vmatprep.mubr.f32.mxu0 0.0
    %v10940 = vand.u32 %v10184, 4294901760
    %10941 = vmatmul.mubr.f32.gmra.mrb[0].mxu0 %v10940
    %v10942 = vpop.f32.mrb[0].mxu0
    %v10943 = vadd.f32 %v10828, %v10942
    %v10944 = vpop.f32.mrb[0].mxu0
    %10945 = vdwg.mxu0
    %s10946 = scalar_lea.vmem [#allocation5], 384
    %10947 = vst.msk [vmem:[%s10946] sm:$0xff] %vm1610, %v10901
    %10948 = vst.msk [vmem:[%s10946 + $0x8] sm:$0xff] %vm1610, %v10907
    %10949 = vst.msk [vmem:[%s10946 + $0x10] sm:$0xff] %vm1610, %v10913
    %10950 = vst.msk [vmem:[%s10946 + $0x18] sm:$0xff] %vm1610, %v10919
    %10951 = vst.msk [vmem:[%s10946 + $0x20] sm:$0xff] %vm1610, %v10925
    %10952 = vst.msk [vmem:[%s10946 + $0x28] sm:$0xff] %vm1610, %v10931
    %10953 = vst.msk [vmem:[%s10946 + $0x30] sm:$0xff] %vm1610, %v10937
    %10954 = vst.msk [vmem:[%s10946 + $0x38] sm:$0xff] %vm1610, %v10943
    %s10955 = scalar_lea.vmem [#allocation2], 112
    %v10956 = vld [vmem:[%s10955] sm:$0xff]
    %v10957 = vld [vmem:[%s10955 + $0x8] sm:$0xff]
    %10958 = vmatprep.subr.mxu0 0.0
    %v10959 = vand.u32 %v10956, 4294901760
    %10960 = vmatpush1.msra.mxu0 %v10959
    %10961 = vmatprep.subr.mxu0 0.0
    %v10962 = vand.u32 %v10957, 4294901760
    %10963 = vmatpush1.msra.mxu0 %v10962
    %10964 = vmatprep.subr.mxu0 0.0
    %10965 = vmatpush1.msra.mxu0 0.0
    %10966 = vmatprep.subr.mxu0 0.0
    %10967 = vmatpush1.msra.mxu0 0.0
    %10968 = vmatprep.subr.mxu0 0.0
    %10969 = vmatpush1.msra.mxu0 0.0
    %10970 = vmatprep.subr.mxu0 0.0
    %10971 = vmatpush1.msra.mxu0 0.0
    %10972 = vmatprep.subr.mxu0 0.0
    %10973 = vmatpush1.msra.mxu0 0.0
    %10974 = vmatprep.subr.mxu0 0.0
    %10975 = vmatpush1.msra.mxu0 0.0
    %10976 = vmatprep.subr.mxu0 0.0
    %10977 = vmatpush1.msra.mxu0 0.0
    %10978 = vmatprep.subr.mxu0 0.0
    %10979 = vmatpush1.msra.mxu0 0.0
    %10980 = vmatprep.subr.mxu0 0.0
    %10981 = vmatpush1.msra.mxu0 0.0
    %10982 = vmatprep.subr.mxu0 0.0
    %10983 = vmatpush1.msra.mxu0 0.0
    %10984 = vmatprep.subr.mxu0 0.0
    %10985 = vmatpush1.msra.mxu0 0.0
    %10986 = vmatprep.subr.mxu0 0.0
    %10987 = vmatpush1.msra.mxu0 0.0
    %10988 = vmatprep.subr.mxu0 0.0
    %10989 = vmatpush1.msra.mxu0 0.0
    %10990 = vmatprep.subr.mxu0 0.0
    %10991 = vmatpush1.msra.mxu0 0.0
    %10992 = vmatprep.subr.mxu0 0.0
    %10993 = vmatpush1.msra.mxu0 0.0
    %10994 = vmatprep.subr.mxu0 0.0
    %10995 = vmatpush1.msra.mxu0 0.0
    %10996 = vmatprep.subr.mxu0 0.0
    %10997 = vmatpush1.msra.mxu0 0.0
    %10998 = vmatprep.subr.mxu0 0.0
    %10999 = vmatpush1.msra.mxu0 0.0
    %11000 = vmatprep.subr.mxu0 0.0
    %11001 = vmatpush1.msra.mxu0 0.0
    %11002 = vmatprep.subr.mxu0 0.0
    %11003 = vmatpush1.msra.mxu0 0.0
    %11004 = vmatprep.subr.mxu0 0.0
    %11005 = vmatpush1.msra.mxu0 0.0
    %11006 = vmatprep.subr.mxu0 0.0
    %11007 = vmatpush1.msra.mxu0 0.0
    %11008 = vmatprep.subr.mxu0 0.0
    %11009 = vmatpush1.msra.mxu0 0.0
    %11010 = vmatprep.subr.mxu0 0.0
    %11011 = vmatpush1.msra.mxu0 0.0
    %11012 = vmatprep.subr.mxu0 0.0
    %11013 = vmatpush1.msra.mxu0 0.0
    %11014 = vmatprep.subr.mxu0 0.0
    %11015 = vmatpush1.msra.mxu0 0.0
    %11016 = vmatprep.subr.mxu0 0.0
    %11017 = vmatpush1.msra.mxu0 0.0
    %11018 = vmatprep.subr.mxu0 0.0
    %11019 = vmatpush1.msra.mxu0 0.0
    %11020 = vmatprep.subr.mxu0 0.0
    %11021 = vmatpush1.msra.mxu0 0.0
    %11022 = vmatprep.subr.mxu0 0.0
    %11023 = vmatpush1.msra.mxu0 0.0
    %11024 = vmatprep.mubr.f32.mxu0 0.0
    %v11025 = vand.u32 %v43, 4294901760
    %v11026 = vsub.f32 %v43, %v11025
    %v11027 = vand.u32 %v11026, 4294901760
    %v11028 = vsub.f32 %v11026, %v11027
    %v11029 = vand.u32 %v11028, 4294901760
    %11030 = vmatmul.mubr.f32.gmra.mrb[0].mxu0 %v11029
    %v11031 = vpop.f32.mrb[0].mxu0
    %v11032 = vadd.f32 0.0, %v11031
    %v11033 = vpop.f32.mrb[0].mxu0
    %11034 = vmatprep.mubr.f32.mxu0 0.0
    %v11035 = vand.u32 %v46, 4294901760
    %v11036 = vsub.f32 %v46, %v11035
    %v11037 = vand.u32 %v11036, 4294901760
    %v11038 = vsub.f32 %v11036, %v11037
    %v11039 = vand.u32 %v11038, 4294901760
    %11040 = vmatmul.mubr.f32.gmra.mrb[0].mxu0 %v11039
    %v11041 = vpop.f32.mrb[0].mxu0
    %v11042 = vadd.f32 0.0, %v11041
    %v11043 = vpop.f32.mrb[0].mxu0
    %11044 = vmatprep.mubr.f32.mxu0 0.0
    %v11045 = vand.u32 %v49, 4294901760
    %v11046 = vsub.f32 %v49, %v11045
    %v11047 = vand.u32 %v11046, 4294901760
    %v11048 = vsub.f32 %v11046, %v11047
    %v11049 = vand.u32 %v11048, 4294901760
    %11050 = vmatmul.mubr.f32.gmra.mrb[0].mxu0 %v11049
    %v11051 = vpop.f32.mrb[0].mxu0
    %v11052 = vadd.f32 0.0, %v11051
    %v11053 = vpop.f32.mrb[0].mxu0
    %11054 = vmatprep.mubr.f32.mxu0 0.0
    %v11055 = vand.u32 %v52, 4294901760
    %v11056 = vsub.f32 %v52, %v11055
    %v11057 = vand.u32 %v11056, 4294901760
    %v11058 = vsub.f32 %v11056, %v11057
    %v11059 = vand.u32 %v11058, 4294901760
    %11060 = vmatmul.mubr.f32.gmra.mrb[0].mxu0 %v11059
    %v11061 = vpop.f32.mrb[0].mxu0
    %v11062 = vadd.f32 0.0, %v11061
    %v11063 = vpop.f32.mrb[0].mxu0
    %11064 = vmatprep.mubr.f32.mxu0 0.0
    %v11065 = vand.u32 %v55, 4294901760
    %v11066 = vsub.f32 %v55, %v11065
    %v11067 = vand.u32 %v11066, 4294901760
    %v11068 = vsub.f32 %v11066, %v11067
    %v11069 = vand.u32 %v11068, 4294901760
    %11070 = vmatmul.mubr.f32.gmra.mrb[0].mxu0 %v11069
    %v11071 = vpop.f32.mrb[0].mxu0
    %v11072 = vadd.f32 0.0, %v11071
    %v11073 = vpop.f32.mrb[0].mxu0
    %11074 = vmatprep.mubr.f32.mxu0 0.0
    %v11075 = vand.u32 %v58, 4294901760
    %v11076 = vsub.f32 %v58, %v11075
    %v11077 = vand.u32 %v11076, 4294901760
    %v11078 = vsub.f32 %v11076, %v11077
    %v11079 = vand.u32 %v11078, 4294901760
    %11080 = vmatmul.mubr.f32.gmra.mrb[0].mxu0 %v11079
    %v11081 = vpop.f32.mrb[0].mxu0
    %v11082 = vadd.f32 0.0, %v11081
    %v11083 = vpop.f32.mrb[0].mxu0
    %11084 = vmatprep.mubr.f32.mxu0 0.0
    %v11085 = vand.u32 %v61, 4294901760
    %v11086 = vsub.f32 %v61, %v11085
    %v11087 = vand.u32 %v11086, 4294901760
    %v11088 = vsub.f32 %v11086, %v11087
    %v11089 = vand.u32 %v11088, 4294901760
    %11090 = vmatmul.mubr.f32.gmra.mrb[0].mxu0 %v11089
    %v11091 = vpop.f32.mrb[0].mxu0
    %v11092 = vadd.f32 0.0, %v11091
    %v11093 = vpop.f32.mrb[0].mxu0
    %11094 = vmatprep.mubr.f32.mxu0 0.0
    %v11095 = vand.u32 %v64, 4294901760
    %v11096 = vsub.f32 %v64, %v11095
    %v11097 = vand.u32 %v11096, 4294901760
    %v11098 = vsub.f32 %v11096, %v11097
    %v11099 = vand.u32 %v11098, 4294901760
    %11100 = vmatmul.mubr.f32.gmra.mrb[0].mxu0 %v11099
    %v11101 = vpop.f32.mrb[0].mxu0
    %v11102 = vadd.f32 0.0, %v11101
    %v11103 = vpop.f32.mrb[0].mxu0
    %11104 = vdwg.mxu0
    %11105 = vmatprep.subr.mxu0 0.0
    %v11106 = vand.u32 %v10956, 4294901760
    %v11107 = vsub.f32 %v10956, %v11106
    %v11108 = vand.u32 %v11107, 4294901760
    %v11109 = vsub.f32 %v11107, %v11108
    %v11110 = vand.u32 %v11109, 4294901760
    %11111 = vmatpush1.msra.mxu0 %v11110
    %11112 = vmatprep.subr.mxu0 0.0
    %v11113 = vand.u32 %v10957, 4294901760
    %v11114 = vsub.f32 %v10957, %v11113
    %v11115 = vand.u32 %v11114, 4294901760
    %v11116 = vsub.f32 %v11114, %v11115
    %v11117 = vand.u32 %v11116, 4294901760
    %11118 = vmatpush1.msra.mxu0 %v11117
    %11119 = vmatprep.subr.mxu0 0.0
    %11120 = vmatpush1.msra.mxu0 0.0
    %11121 = vmatprep.subr.mxu0 0.0
    %11122 = vmatpush1.msra.mxu0 0.0
    %11123 = vmatprep.subr.mxu0 0.0
    %11124 = vmatpush1.msra.mxu0 0.0
    %11125 = vmatprep.subr.mxu0 0.0
    %11126 = vmatpush1.msra.mxu0 0.0
    %11127 = vmatprep.subr.mxu0 0.0
    %11128 = vmatpush1.msra.mxu0 0.0
    %11129 = vmatprep.subr.mxu0 0.0
    %11130 = vmatpush1.msra.mxu0 0.0
    %11131 = vmatprep.subr.mxu0 0.0
    %11132 = vmatpush1.msra.mxu0 0.0
    %11133 = vmatprep.subr.mxu0 0.0
    %11134 = vmatpush1.msra.mxu0 0.0
    %11135 = vmatprep.subr.mxu0 0.0
    %11136 = vmatpush1.msra.mxu0 0.0
    %11137 = vmatprep.subr.mxu0 0.0
    %11138 = vmatpush1.msra.mxu0 0.0
    %11139 = vmatprep.subr.mxu0 0.0
    %11140 = vmatpush1.msra.mxu0 0.0
    %11141 = vmatprep.subr.mxu0 0.0
    %11142 = vmatpush1.msra.mxu0 0.0
    %11143 = vmatprep.subr.mxu0 0.0
    %11144 = vmatpush1.msra.mxu0 0.0
    %11145 = vmatprep.subr.mxu0 0.0
    %11146 = vmatpush1.msra.mxu0 0.0
    %11147 = vmatprep.subr.mxu0 0.0
    %11148 = vmatpush1.msra.mxu0 0.0
    %11149 = vmatprep.subr.mxu0 0.0
    %11150 = vmatpush1.msra.mxu0 0.0
    %11151 = vmatprep.subr.mxu0 0.0
    %11152 = vmatpush1.msra.mxu0 0.0
    %11153 = vmatprep.subr.mxu0 0.0
    %11154 = vmatpush1.msra.mxu0 0.0
    %11155 = vmatprep.subr.mxu0 0.0
    %11156 = vmatpush1.msra.mxu0 0.0
    %11157 = vmatprep.subr.mxu0 0.0
    %11158 = vmatpush1.msra.mxu0 0.0
    %11159 = vmatprep.subr.mxu0 0.0
    %11160 = vmatpush1.msra.mxu0 0.0
    %11161 = vmatprep.subr.mxu0 0.0
    %11162 = vmatpush1.msra.mxu0 0.0
    %11163 = vmatprep.subr.mxu0 0.0
    %11164 = vmatpush1.msra.mxu0 0.0
    %11165 = vmatprep.subr.mxu0 0.0
    %11166 = vmatpush1.msra.mxu0 0.0
    %11167 = vmatprep.subr.mxu0 0.0
    %11168 = vmatpush1.msra.mxu0 0.0
    %11169 = vmatprep.subr.mxu0 0.0
    %11170 = vmatpush1.msra.mxu0 0.0
    %11171 = vmatprep.subr.mxu0 0.0
    %11172 = vmatpush1.msra.mxu0 0.0
    %11173 = vmatprep.subr.mxu0 0.0
    %11174 = vmatpush1.msra.mxu0 0.0
    %11175 = vmatprep.subr.mxu0 0.0
    %11176 = vmatpush1.msra.mxu0 0.0
    %11177 = vmatprep.subr.mxu0 0.0
    %11178 = vmatpush1.msra.mxu0 0.0
    %11179 = vmatprep.mubr.f32.mxu0 0.0
    %v11180 = vand.u32 %v43, 4294901760
    %11181 = vmatmul.mubr.f32.gmra.mrb[0].mxu0 %v11180
    %v11182 = vpop.f32.mrb[0].mxu0
    %v11183 = vadd.f32 %v11032, %v11182
    %v11184 = vpop.f32.mrb[0].mxu0
    %11185 = vmatprep.mubr.f32.mxu0 0.0
    %v11186 = vand.u32 %v46, 4294901760
    %11187 = vmatmul.mubr.f32.gmra.mrb[0].mxu0 %v11186
    %v11188 = vpop.f32.mrb[0].mxu0
    %v11189 = vadd.f32 %v11042, %v11188
    %v11190 = vpop.f32.mrb[0].mxu0
    %11191 = vmatprep.mubr.f32.mxu0 0.0
    %v11192 = vand.u32 %v49, 4294901760
    %11193 = vmatmul.mubr.f32.gmra.mrb[0].mxu0 %v11192
    %v11194 = vpop.f32.mrb[0].mxu0
    %v11195 = vadd.f32 %v11052, %v11194
    %v11196 = vpop.f32.mrb[0].mxu0
    %11197 = vmatprep.mubr.f32.mxu0 0.0
    %v11198 = vand.u32 %v52, 4294901760
    %11199 = vmatmul.mubr.f32.gmra.mrb[0].mxu0 %v11198
    %v11200 = vpop.f32.mrb[0].mxu0
    %v11201 = vadd.f32 %v11062, %v11200
    %v11202 = vpop.f32.mrb[0].mxu0
    %11203 = vmatprep.mubr.f32.mxu0 0.0
    %v11204 = vand.u32 %v55, 4294901760
    %11205 = vmatmul.mubr.f32.gmra.mrb[0].mxu0 %v11204
    %v11206 = vpop.f32.mrb[0].mxu0
    %v11207 = vadd.f32 %v11072, %v11206
    %v11208 = vpop.f32.mrb[0].mxu0
    %11209 = vmatprep.mubr.f32.mxu0 0.0
    %v11210 = vand.u32 %v58, 4294901760
    %11211 = vmatmul.mubr.f32.gmra.mrb[0].mxu0 %v11210
    %v11212 = vpop.f32.mrb[0].mxu0
    %v11213 = vadd.f32 %v11082, %v11212
    %v11214 = vpop.f32.mrb[0].mxu0
    %11215 = vmatprep.mubr.f32.mxu0 0.0
    %v11216 = vand.u32 %v61, 4294901760
    %11217 = vmatmul.mubr.f32.gmra.mrb[0].mxu0 %v11216
    %v11218 = vpop.f32.mrb[0].mxu0
    %v11219 = vadd.f32 %v11092, %v11218
    %v11220 = vpop.f32.mrb[0].mxu0
    %11221 = vmatprep.mubr.f32.mxu0 0.0
    %v11222 = vand.u32 %v64, 4294901760
    %11223 = vmatmul.mubr.f32.gmra.mrb[0].mxu0 %v11222
    %v11224 = vpop.f32.mrb[0].mxu0
    %v11225 = vadd.f32 %v11102, %v11224
    %v11226 = vpop.f32.mrb[0].mxu0
    %11227 = vdwg.mxu0
    %11228 = vmatprep.subr.mxu0 0.0
    %v11229 = vand.u32 %v10956, 4294901760
    %v11230 = vsub.f32 %v10956, %v11229
    %11231 = vmatpush1.msra.mxu0 %v11230
    %11232 = vmatprep.subr.mxu0 0.0
    %v11233 = vand.u32 %v10957, 4294901760
    %v11234 = vsub.f32 %v10957, %v11233
    %11235 = vmatpush1.msra.mxu0 %v11234
    %11236 = vmatprep.subr.mxu0 0.0
    %11237 = vmatpush1.msra.mxu0 0.0
    %11238 = vmatprep.subr.mxu0 0.0
    %11239 = vmatpush1.msra.mxu0 0.0
    %11240 = vmatprep.subr.mxu0 0.0
    %11241 = vmatpush1.msra.mxu0 0.0
    %11242 = vmatprep.subr.mxu0 0.0
    %11243 = vmatpush1.msra.mxu0 0.0
    %11244 = vmatprep.subr.mxu0 0.0
    %11245 = vmatpush1.msra.mxu0 0.0
    %11246 = vmatprep.subr.mxu0 0.0
    %11247 = vmatpush1.msra.mxu0 0.0
    %11248 = vmatprep.subr.mxu0 0.0
    %11249 = vmatpush1.msra.mxu0 0.0
    %11250 = vmatprep.subr.mxu0 0.0
    %11251 = vmatpush1.msra.mxu0 0.0
    %11252 = vmatprep.subr.mxu0 0.0
    %11253 = vmatpush1.msra.mxu0 0.0
    %11254 = vmatprep.subr.mxu0 0.0
    %11255 = vmatpush1.msra.mxu0 0.0
    %11256 = vmatprep.subr.mxu0 0.0
    %11257 = vmatpush1.msra.mxu0 0.0
    %11258 = vmatprep.subr.mxu0 0.0
    %11259 = vmatpush1.msra.mxu0 0.0
    %11260 = vmatprep.subr.mxu0 0.0
    %11261 = vmatpush1.msra.mxu0 0.0
    %11262 = vmatprep.subr.mxu0 0.0
    %11263 = vmatpush1.msra.mxu0 0.0
    %11264 = vmatprep.subr.mxu0 0.0
    %11265 = vmatpush1.msra.mxu0 0.0
    %11266 = vmatprep.subr.mxu0 0.0
    %11267 = vmatpush1.msra.mxu0 0.0
    %11268 = vmatprep.subr.mxu0 0.0
    %11269 = vmatpush1.msra.mxu0 0.0
    %11270 = vmatprep.subr.mxu0 0.0
    %11271 = vmatpush1.msra.mxu0 0.0
    %11272 = vmatprep.subr.mxu0 0.0
    %11273 = vmatpush1.msra.mxu0 0.0
    %11274 = vmatprep.subr.mxu0 0.0
    %11275 = vmatpush1.msra.mxu0 0.0
    %11276 = vmatprep.subr.mxu0 0.0
    %11277 = vmatpush1.msra.mxu0 0.0
    %11278 = vmatprep.subr.mxu0 0.0
    %11279 = vmatpush1.msra.mxu0 0.0
    %11280 = vmatprep.subr.mxu0 0.0
    %11281 = vmatpush1.msra.mxu0 0.0
    %11282 = vmatprep.subr.mxu0 0.0
    %11283 = vmatpush1.msra.mxu0 0.0
    %11284 = vmatprep.subr.mxu0 0.0
    %11285 = vmatpush1.msra.mxu0 0.0
    %11286 = vmatprep.subr.mxu0 0.0
    %11287 = vmatpush1.msra.mxu0 0.0
    %11288 = vmatprep.subr.mxu0 0.0
    %11289 = vmatpush1.msra.mxu0 0.0
    %11290 = vmatprep.subr.mxu0 0.0
    %11291 = vmatpush1.msra.mxu0 0.0
    %11292 = vmatprep.subr.mxu0 0.0
    %11293 = vmatpush1.msra.mxu0 0.0
    %11294 = vmatprep.subr.mxu0 0.0
    %11295 = vmatpush1.msra.mxu0 0.0
    %11296 = vmatprep.mubr.f32.mxu0 0.0
    %v11297 = vand.u32 %v43, 4294901760
    %v11298 = vsub.f32 %v43, %v11297
    %11299 = vmatmul.mubr.f32.gmra.mrb[0].mxu0 %v11298
    %v11300 = vpop.f32.mrb[0].mxu0
    %v11301 = vadd.f32 %v11183, %v11300
    %v11302 = vpop.f32.mrb[0].mxu0
    %11303 = vmatprep.mubr.f32.mxu0 0.0
    %v11304 = vand.u32 %v46, 4294901760
    %v11305 = vsub.f32 %v46, %v11304
    %11306 = vmatmul.mubr.f32.gmra.mrb[0].mxu0 %v11305
    %v11307 = vpop.f32.mrb[0].mxu0
    %v11308 = vadd.f32 %v11189, %v11307
    %v11309 = vpop.f32.mrb[0].mxu0
    %11310 = vmatprep.mubr.f32.mxu0 0.0
    %v11311 = vand.u32 %v49, 4294901760
    %v11312 = vsub.f32 %v49, %v11311
    %11313 = vmatmul.mubr.f32.gmra.mrb[0].mxu0 %v11312
    %v11314 = vpop.f32.mrb[0].mxu0
    %v11315 = vadd.f32 %v11195, %v11314
    %v11316 = vpop.f32.mrb[0].mxu0
    %11317 = vmatprep.mubr.f32.mxu0 0.0
    %v11318 = vand.u32 %v52, 4294901760
    %v11319 = vsub.f32 %v52, %v11318
    %11320 = vmatmul.mubr.f32.gmra.mrb[0].mxu0 %v11319
    %v11321 = vpop.f32.mrb[0].mxu0
    %v11322 = vadd.f32 %v11201, %v11321
    %v11323 = vpop.f32.mrb[0].mxu0
    %11324 = vmatprep.mubr.f32.mxu0 0.0
    %v11325 = vand.u32 %v55, 4294901760
    %v11326 = vsub.f32 %v55, %v11325
    %11327 = vmatmul.mubr.f32.gmra.mrb[0].mxu0 %v11326
    %v11328 = vpop.f32.mrb[0].mxu0
    %v11329 = vadd.f32 %v11207, %v11328
    %v11330 = vpop.f32.mrb[0].mxu0
    %11331 = vmatprep.mubr.f32.mxu0 0.0
    %v11332 = vand.u32 %v58, 4294901760
    %v11333 = vsub.f32 %v58, %v11332
    %11334 = vmatmul.mubr.f32.gmra.mrb[0].mxu0 %v11333
    %v11335 = vpop.f32.mrb[0].mxu0
    %v11336 = vadd.f32 %v11213, %v11335
    %v11337 = vpop.f32.mrb[0].mxu0
    %11338 = vmatprep.mubr.f32.mxu0 0.0
    %v11339 = vand.u32 %v61, 4294901760
    %v11340 = vsub.f32 %v61, %v11339
    %11341 = vmatmul.mubr.f32.gmra.mrb[0].mxu0 %v11340
    %v11342 = vpop.f32.mrb[0].mxu0
    %v11343 = vadd.f32 %v11219, %v11342
    %v11344 = vpop.f32.mrb[0].mxu0
    %11345 = vmatprep.mubr.f32.mxu0 0.0
    %v11346 = vand.u32 %v64, 4294901760
    %v11347 = vsub.f32 %v64, %v11346
    %11348 = vmatmul.mubr.f32.gmra.mrb[0].mxu0 %v11347
    %v11349 = vpop.f32.mrb[0].mxu0
    %v11350 = vadd.f32 %v11225, %v11349
    %v11351 = vpop.f32.mrb[0].mxu0
    %11352 = vdwg.mxu0
    %11353 = vmatprep.subr.mxu0 0.0
    %v11354 = vand.u32 %v10956, 4294901760
    %11355 = vmatpush1.msra.mxu0 %v11354
    %11356 = vmatprep.subr.mxu0 0.0
    %v11357 = vand.u32 %v10957, 4294901760
    %11358 = vmatpush1.msra.mxu0 %v11357
    %11359 = vmatprep.subr.mxu0 0.0
    %11360 = vmatpush1.msra.mxu0 0.0
    %11361 = vmatprep.subr.mxu0 0.0
    %11362 = vmatpush1.msra.mxu0 0.0
    %11363 = vmatprep.subr.mxu0 0.0
    %11364 = vmatpush1.msra.mxu0 0.0
    %11365 = vmatprep.subr.mxu0 0.0
    %11366 = vmatpush1.msra.mxu0 0.0
    %11367 = vmatprep.subr.mxu0 0.0
    %11368 = vmatpush1.msra.mxu0 0.0
    %11369 = vmatprep.subr.mxu0 0.0
    %11370 = vmatpush1.msra.mxu0 0.0
    %11371 = vmatprep.subr.mxu0 0.0
    %11372 = vmatpush1.msra.mxu0 0.0
    %11373 = vmatprep.subr.mxu0 0.0
    %11374 = vmatpush1.msra.mxu0 0.0
    %11375 = vmatprep.subr.mxu0 0.0
    %11376 = vmatpush1.msra.mxu0 0.0
    %11377 = vmatprep.subr.mxu0 0.0
    %11378 = vmatpush1.msra.mxu0 0.0
    %11379 = vmatprep.subr.mxu0 0.0
    %11380 = vmatpush1.msra.mxu0 0.0
    %11381 = vmatprep.subr.mxu0 0.0
    %11382 = vmatpush1.msra.mxu0 0.0
    %11383 = vmatprep.subr.mxu0 0.0
    %11384 = vmatpush1.msra.mxu0 0.0
    %11385 = vmatprep.subr.mxu0 0.0
    %11386 = vmatpush1.msra.mxu0 0.0
    %11387 = vmatprep.subr.mxu0 0.0
    %11388 = vmatpush1.msra.mxu0 0.0
    %11389 = vmatprep.subr.mxu0 0.0
    %11390 = vmatpush1.msra.mxu0 0.0
    %11391 = vmatprep.subr.mxu0 0.0
    %11392 = vmatpush1.msra.mxu0 0.0
    %11393 = vmatprep.subr.mxu0 0.0
    %11394 = vmatpush1.msra.mxu0 0.0
    %11395 = vmatprep.subr.mxu0 0.0
    %11396 = vmatpush1.msra.mxu0 0.0
    %11397 = vmatprep.subr.mxu0 0.0
    %11398 = vmatpush1.msra.mxu0 0.0
    %11399 = vmatprep.subr.mxu0 0.0
    %11400 = vmatpush1.msra.mxu0 0.0
    %11401 = vmatprep.subr.mxu0 0.0
    %11402 = vmatpush1.msra.mxu0 0.0
    %11403 = vmatprep.subr.mxu0 0.0
    %11404 = vmatpush1.msra.mxu0 0.0
    %11405 = vmatprep.subr.mxu0 0.0
    %11406 = vmatpush1.msra.mxu0 0.0
    %11407 = vmatprep.subr.mxu0 0.0
    %11408 = vmatpush1.msra.mxu0 0.0
    %11409 = vmatprep.subr.mxu0 0.0
    %11410 = vmatpush1.msra.mxu0 0.0
    %11411 = vmatprep.subr.mxu0 0.0
    %11412 = vmatpush1.msra.mxu0 0.0
    %11413 = vmatprep.subr.mxu0 0.0
    %11414 = vmatpush1.msra.mxu0 0.0
    %11415 = vmatprep.subr.mxu0 0.0
    %11416 = vmatpush1.msra.mxu0 0.0
    %11417 = vmatprep.subr.mxu0 0.0
    %11418 = vmatpush1.msra.mxu0 0.0
    %11419 = vmatprep.mubr.f32.mxu0 0.0
    %v11420 = vand.u32 %v43, 4294901760
    %v11421 = vsub.f32 %v43, %v11420
    %v11422 = vand.u32 %v11421, 4294901760
    %11423 = vmatmul.mubr.f32.gmra.mrb[0].mxu0 %v11422
    %v11424 = vpop.f32.mrb[0].mxu0
    %v11425 = vadd.f32 %v11301, %v11424
    %v11426 = vpop.f32.mrb[0].mxu0
    %11427 = vmatprep.mubr.f32.mxu0 0.0
    %v11428 = vand.u32 %v46, 4294901760
    %v11429 = vsub.f32 %v46, %v11428
    %v11430 = vand.u32 %v11429, 4294901760
    %11431 = vmatmul.mubr.f32.gmra.mrb[0].mxu0 %v11430
    %v11432 = vpop.f32.mrb[0].mxu0
    %v11433 = vadd.f32 %v11308, %v11432
    %v11434 = vpop.f32.mrb[0].mxu0
    %11435 = vmatprep.mubr.f32.mxu0 0.0
    %v11436 = vand.u32 %v49, 4294901760
    %v11437 = vsub.f32 %v49, %v11436
    %v11438 = vand.u32 %v11437, 4294901760
    %11439 = vmatmul.mubr.f32.gmra.mrb[0].mxu0 %v11438
    %v11440 = vpop.f32.mrb[0].mxu0
    %v11441 = vadd.f32 %v11315, %v11440
    %v11442 = vpop.f32.mrb[0].mxu0
    %11443 = vmatprep.mubr.f32.mxu0 0.0
    %v11444 = vand.u32 %v52, 4294901760
    %v11445 = vsub.f32 %v52, %v11444
    %v11446 = vand.u32 %v11445, 4294901760
    %11447 = vmatmul.mubr.f32.gmra.mrb[0].mxu0 %v11446
    %v11448 = vpop.f32.mrb[0].mxu0
    %v11449 = vadd.f32 %v11322, %v11448
    %v11450 = vpop.f32.mrb[0].mxu0
    %11451 = vmatprep.mubr.f32.mxu0 0.0
    %v11452 = vand.u32 %v55, 4294901760
    %v11453 = vsub.f32 %v55, %v11452
    %v11454 = vand.u32 %v11453, 4294901760
    %11455 = vmatmul.mubr.f32.gmra.mrb[0].mxu0 %v11454
    %v11456 = vpop.f32.mrb[0].mxu0
    %v11457 = vadd.f32 %v11329, %v11456
    %v11458 = vpop.f32.mrb[0].mxu0
    %11459 = vmatprep.mubr.f32.mxu0 0.0
    %v11460 = vand.u32 %v58, 4294901760
    %v11461 = vsub.f32 %v58, %v11460
    %v11462 = vand.u32 %v11461, 4294901760
    %11463 = vmatmul.mubr.f32.gmra.mrb[0].mxu0 %v11462
    %v11464 = vpop.f32.mrb[0].mxu0
    %v11465 = vadd.f32 %v11336, %v11464
    %v11466 = vpop.f32.mrb[0].mxu0
    %11467 = vmatprep.mubr.f32.mxu0 0.0
    %v11468 = vand.u32 %v61, 4294901760
    %v11469 = vsub.f32 %v61, %v11468
    %v11470 = vand.u32 %v11469, 4294901760
    %11471 = vmatmul.mubr.f32.gmra.mrb[0].mxu0 %v11470
    %v11472 = vpop.f32.mrb[0].mxu0
    %v11473 = vadd.f32 %v11343, %v11472
    %v11474 = vpop.f32.mrb[0].mxu0
    %11475 = vmatprep.mubr.f32.mxu0 0.0
    %v11476 = vand.u32 %v64, 4294901760
    %v11477 = vsub.f32 %v64, %v11476
    %v11478 = vand.u32 %v11477, 4294901760
    %11479 = vmatmul.mubr.f32.gmra.mrb[0].mxu0 %v11478
    %v11480 = vpop.f32.mrb[0].mxu0
    %v11481 = vadd.f32 %v11350, %v11480
    %v11482 = vpop.f32.mrb[0].mxu0
    %11483 = vdwg.mxu0
    %11484 = vmatprep.subr.mxu0 0.0
    %v11485 = vand.u32 %v10956, 4294901760
    %v11486 = vsub.f32 %v10956, %v11485
    %v11487 = vand.u32 %v11486, 4294901760
    %11488 = vmatpush1.msra.mxu0 %v11487
    %11489 = vmatprep.subr.mxu0 0.0
    %v11490 = vand.u32 %v10957, 4294901760
    %v11491 = vsub.f32 %v10957, %v11490
    %v11492 = vand.u32 %v11491, 4294901760
    %11493 = vmatpush1.msra.mxu0 %v11492
    %11494 = vmatprep.subr.mxu0 0.0
    %11495 = vmatpush1.msra.mxu0 0.0
    %11496 = vmatprep.subr.mxu0 0.0
    %11497 = vmatpush1.msra.mxu0 0.0
    %11498 = vmatprep.subr.mxu0 0.0
    %11499 = vmatpush1.msra.mxu0 0.0
    %11500 = vmatprep.subr.mxu0 0.0
    %11501 = vmatpush1.msra.mxu0 0.0
    %11502 = vmatprep.subr.mxu0 0.0
    %11503 = vmatpush1.msra.mxu0 0.0
    %11504 = vmatprep.subr.mxu0 0.0
    %11505 = vmatpush1.msra.mxu0 0.0
    %11506 = vmatprep.subr.mxu0 0.0
    %11507 = vmatpush1.msra.mxu0 0.0
    %11508 = vmatprep.subr.mxu0 0.0
    %11509 = vmatpush1.msra.mxu0 0.0
    %11510 = vmatprep.subr.mxu0 0.0
    %11511 = vmatpush1.msra.mxu0 0.0
    %11512 = vmatprep.subr.mxu0 0.0
    %11513 = vmatpush1.msra.mxu0 0.0
    %11514 = vmatprep.subr.mxu0 0.0
    %11515 = vmatpush1.msra.mxu0 0.0
    %11516 = vmatprep.subr.mxu0 0.0
    %11517 = vmatpush1.msra.mxu0 0.0
    %11518 = vmatprep.subr.mxu0 0.0
    %11519 = vmatpush1.msra.mxu0 0.0
    %11520 = vmatprep.subr.mxu0 0.0
    %11521 = vmatpush1.msra.mxu0 0.0
    %11522 = vmatprep.subr.mxu0 0.0
    %11523 = vmatpush1.msra.mxu0 0.0
    %11524 = vmatprep.subr.mxu0 0.0
    %11525 = vmatpush1.msra.mxu0 0.0
    %11526 = vmatprep.subr.mxu0 0.0
    %11527 = vmatpush1.msra.mxu0 0.0
    %11528 = vmatprep.subr.mxu0 0.0
    %11529 = vmatpush1.msra.mxu0 0.0
    %11530 = vmatprep.subr.mxu0 0.0
    %11531 = vmatpush1.msra.mxu0 0.0
    %11532 = vmatprep.subr.mxu0 0.0
    %11533 = vmatpush1.msra.mxu0 0.0
    %11534 = vmatprep.subr.mxu0 0.0
    %11535 = vmatpush1.msra.mxu0 0.0
    %11536 = vmatprep.subr.mxu0 0.0
    %11537 = vmatpush1.msra.mxu0 0.0
    %11538 = vmatprep.subr.mxu0 0.0
    %11539 = vmatpush1.msra.mxu0 0.0
    %11540 = vmatprep.subr.mxu0 0.0
    %11541 = vmatpush1.msra.mxu0 0.0
    %11542 = vmatprep.subr.mxu0 0.0
    %11543 = vmatpush1.msra.mxu0 0.0
    %11544 = vmatprep.subr.mxu0 0.0
    %11545 = vmatpush1.msra.mxu0 0.0
    %11546 = vmatprep.subr.mxu0 0.0
    %11547 = vmatpush1.msra.mxu0 0.0
    %11548 = vmatprep.subr.mxu0 0.0
    %11549 = vmatpush1.msra.mxu0 0.0
    %11550 = vmatprep.subr.mxu0 0.0
    %11551 = vmatpush1.msra.mxu0 0.0
    %11552 = vmatprep.subr.mxu0 0.0
    %11553 = vmatpush1.msra.mxu0 0.0
    %11554 = vmatprep.mubr.f32.mxu0 0.0
    %v11555 = vand.u32 %v43, 4294901760
    %11556 = vmatmul.mubr.f32.gmra.mrb[0].mxu0 %v11555
    %v11557 = vpop.f32.mrb[0].mxu0
    %v11558 = vadd.f32 %v11425, %v11557
    %v11559 = vpop.f32.mrb[0].mxu0
    %11560 = vmatprep.mubr.f32.mxu0 0.0
    %v11561 = vand.u32 %v46, 4294901760
    %11562 = vmatmul.mubr.f32.gmra.mrb[0].mxu0 %v11561
    %v11563 = vpop.f32.mrb[0].mxu0
    %v11564 = vadd.f32 %v11433, %v11563
    %v11565 = vpop.f32.mrb[0].mxu0
    %11566 = vmatprep.mubr.f32.mxu0 0.0
    %v11567 = vand.u32 %v49, 4294901760
    %11568 = vmatmul.mubr.f32.gmra.mrb[0].mxu0 %v11567
    %v11569 = vpop.f32.mrb[0].mxu0
    %v11570 = vadd.f32 %v11441, %v11569
    %v11571 = vpop.f32.mrb[0].mxu0
    %11572 = vmatprep.mubr.f32.mxu0 0.0
    %v11573 = vand.u32 %v52, 4294901760
    %11574 = vmatmul.mubr.f32.gmra.mrb[0].mxu0 %v11573
    %v11575 = vpop.f32.mrb[0].mxu0
    %v11576 = vadd.f32 %v11449, %v11575
    %v11577 = vpop.f32.mrb[0].mxu0
    %11578 = vmatprep.mubr.f32.mxu0 0.0
    %v11579 = vand.u32 %v55, 4294901760
    %11580 = vmatmul.mubr.f32.gmra.mrb[0].mxu0 %v11579
    %v11581 = vpop.f32.mrb[0].mxu0
    %v11582 = vadd.f32 %v11457, %v11581
    %v11583 = vpop.f32.mrb[0].mxu0
    %11584 = vmatprep.mubr.f32.mxu0 0.0
    %v11585 = vand.u32 %v58, 4294901760
    %11586 = vmatmul.mubr.f32.gmra.mrb[0].mxu0 %v11585
    %v11587 = vpop.f32.mrb[0].mxu0
    %v11588 = vadd.f32 %v11465, %v11587
    %v11589 = vpop.f32.mrb[0].mxu0
    %11590 = vmatprep.mubr.f32.mxu0 0.0
    %v11591 = vand.u32 %v61, 4294901760
    %11592 = vmatmul.mubr.f32.gmra.mrb[0].mxu0 %v11591
    %v11593 = vpop.f32.mrb[0].mxu0
    %v11594 = vadd.f32 %v11473, %v11593
    %v11595 = vpop.f32.mrb[0].mxu0
    %11596 = vmatprep.mubr.f32.mxu0 0.0
    %v11597 = vand.u32 %v64, 4294901760
    %11598 = vmatmul.mubr.f32.gmra.mrb[0].mxu0 %v11597
    %v11599 = vpop.f32.mrb[0].mxu0
    %v11600 = vadd.f32 %v11481, %v11599
    %v11601 = vpop.f32.mrb[0].mxu0
    %11602 = vdwg.mxu0
    %11603 = vmatprep.subr.mxu0 0.0
    %v11604 = vand.u32 %v10956, 4294901760
    %11605 = vmatpush1.msra.mxu0 %v11604
    %11606 = vmatprep.subr.mxu0 0.0
    %v11607 = vand.u32 %v10957, 4294901760
    %11608 = vmatpush1.msra.mxu0 %v11607
    %11609 = vmatprep.subr.mxu0 0.0
    %11610 = vmatpush1.msra.mxu0 0.0
    %11611 = vmatprep.subr.mxu0 0.0
    %11612 = vmatpush1.msra.mxu0 0.0
    %11613 = vmatprep.subr.mxu0 0.0
    %11614 = vmatpush1.msra.mxu0 0.0
    %11615 = vmatprep.subr.mxu0 0.0
    %11616 = vmatpush1.msra.mxu0 0.0
    %11617 = vmatprep.subr.mxu0 0.0
    %11618 = vmatpush1.msra.mxu0 0.0
    %11619 = vmatprep.subr.mxu0 0.0
    %11620 = vmatpush1.msra.mxu0 0.0
    %11621 = vmatprep.subr.mxu0 0.0
    %11622 = vmatpush1.msra.mxu0 0.0
    %11623 = vmatprep.subr.mxu0 0.0
    %11624 = vmatpush1.msra.mxu0 0.0
    %11625 = vmatprep.subr.mxu0 0.0
    %11626 = vmatpush1.msra.mxu0 0.0
    %11627 = vmatprep.subr.mxu0 0.0
    %11628 = vmatpush1.msra.mxu0 0.0
    %11629 = vmatprep.subr.mxu0 0.0
    %11630 = vmatpush1.msra.mxu0 0.0
    %11631 = vmatprep.subr.mxu0 0.0
    %11632 = vmatpush1.msra.mxu0 0.0
    %11633 = vmatprep.subr.mxu0 0.0
    %11634 = vmatpush1.msra.mxu0 0.0
    %11635 = vmatprep.subr.mxu0 0.0
    %11636 = vmatpush1.msra.mxu0 0.0
    %11637 = vmatprep.subr.mxu0 0.0
    %11638 = vmatpush1.msra.mxu0 0.0
    %11639 = vmatprep.subr.mxu0 0.0
    %11640 = vmatpush1.msra.mxu0 0.0
    %11641 = vmatprep.subr.mxu0 0.0
    %11642 = vmatpush1.msra.mxu0 0.0
    %11643 = vmatprep.subr.mxu0 0.0
    %11644 = vmatpush1.msra.mxu0 0.0
    %11645 = vmatprep.subr.mxu0 0.0
    %11646 = vmatpush1.msra.mxu0 0.0
    %11647 = vmatprep.subr.mxu0 0.0
    %11648 = vmatpush1.msra.mxu0 0.0
    %11649 = vmatprep.subr.mxu0 0.0
    %11650 = vmatpush1.msra.mxu0 0.0
    %11651 = vmatprep.subr.mxu0 0.0
    %11652 = vmatpush1.msra.mxu0 0.0
    %11653 = vmatprep.subr.mxu0 0.0
    %11654 = vmatpush1.msra.mxu0 0.0
    %11655 = vmatprep.subr.mxu0 0.0
    %11656 = vmatpush1.msra.mxu0 0.0
    %11657 = vmatprep.subr.mxu0 0.0
    %11658 = vmatpush1.msra.mxu0 0.0
    %11659 = vmatprep.subr.mxu0 0.0
    %11660 = vmatpush1.msra.mxu0 0.0
    %11661 = vmatprep.subr.mxu0 0.0
    %11662 = vmatpush1.msra.mxu0 0.0
    %11663 = vmatprep.subr.mxu0 0.0
    %11664 = vmatpush1.msra.mxu0 0.0
    %11665 = vmatprep.subr.mxu0 0.0
    %11666 = vmatpush1.msra.mxu0 0.0
    %11667 = vmatprep.subr.mxu0 0.0
    %11668 = vmatpush1.msra.mxu0 0.0
    %11669 = vmatprep.mubr.f32.mxu0 0.0
    %v11670 = vand.u32 %v43, 4294901760
    %11671 = vmatmul.mubr.f32.gmra.mrb[0].mxu0 %v11670
    %v11672 = vpop.f32.mrb[0].mxu0
    %v11673 = vadd.f32 %v11558, %v11672
    %v11674 = vpop.f32.mrb[0].mxu0
    %11675 = vmatprep.mubr.f32.mxu0 0.0
    %v11676 = vand.u32 %v46, 4294901760
    %11677 = vmatmul.mubr.f32.gmra.mrb[0].mxu0 %v11676
    %v11678 = vpop.f32.mrb[0].mxu0
    %v11679 = vadd.f32 %v11564, %v11678
    %v11680 = vpop.f32.mrb[0].mxu0
    %11681 = vmatprep.mubr.f32.mxu0 0.0
    %v11682 = vand.u32 %v49, 4294901760
    %11683 = vmatmul.mubr.f32.gmra.mrb[0].mxu0 %v11682
    %v11684 = vpop.f32.mrb[0].mxu0
    %v11685 = vadd.f32 %v11570, %v11684
    %v11686 = vpop.f32.mrb[0].mxu0
    %11687 = vmatprep.mubr.f32.mxu0 0.0
    %v11688 = vand.u32 %v52, 4294901760
    %11689 = vmatmul.mubr.f32.gmra.mrb[0].mxu0 %v11688
    %v11690 = vpop.f32.mrb[0].mxu0
    %v11691 = vadd.f32 %v11576, %v11690
    %v11692 = vpop.f32.mrb[0].mxu0
    %11693 = vmatprep.mubr.f32.mxu0 0.0
    %v11694 = vand.u32 %v55, 4294901760
    %11695 = vmatmul.mubr.f32.gmra.mrb[0].mxu0 %v11694
    %v11696 = vpop.f32.mrb[0].mxu0
    %v11697 = vadd.f32 %v11582, %v11696
    %v11698 = vpop.f32.mrb[0].mxu0
    %11699 = vmatprep.mubr.f32.mxu0 0.0
    %v11700 = vand.u32 %v58, 4294901760
    %11701 = vmatmul.mubr.f32.gmra.mrb[0].mxu0 %v11700
    %v11702 = vpop.f32.mrb[0].mxu0
    %v11703 = vadd.f32 %v11588, %v11702
    %v11704 = vpop.f32.mrb[0].mxu0
    %11705 = vmatprep.mubr.f32.mxu0 0.0
    %v11706 = vand.u32 %v61, 4294901760
    %11707 = vmatmul.mubr.f32.gmra.mrb[0].mxu0 %v11706
    %v11708 = vpop.f32.mrb[0].mxu0
    %v11709 = vadd.f32 %v11594, %v11708
    %v11710 = vpop.f32.mrb[0].mxu0
    %11711 = vmatprep.mubr.f32.mxu0 0.0
    %v11712 = vand.u32 %v64, 4294901760
    %11713 = vmatmul.mubr.f32.gmra.mrb[0].mxu0 %v11712
    %v11714 = vpop.f32.mrb[0].mxu0
    %v11715 = vadd.f32 %v11600, %v11714
    %v11716 = vpop.f32.mrb[0].mxu0
    %11717 = vdwg.mxu0
    %v11719 = vsel %vm41, %v11673, 0
    %v11722 = vsel %vm41, %v11679, 0
    %v11725 = vsel %vm41, %v11685, 0
    %v11728 = vsel %vm41, %v11691, 0
    %v11731 = vsel %vm41, %v11697, 0
    %v11734 = vsel %vm41, %v11703, 0
    %v11737 = vsel %vm41, %v11709, 0
    %v11740 = vsel %vm41, %v11715, 0
    %11742 = vmatprep.subr.mxu0 0.0
    %v11743 = vand.u32 %v37, 4294901760
    %11744 = vmatpush1.msra.mxu0 %v11743
    %11745 = vmatprep.subr.mxu0 0.0
    %v11746 = vand.u32 %v38, 4294901760
    %11747 = vmatpush1.msra.mxu0 %v11746
    %11748 = vmatprep.subr.mxu0 0.0
    %11749 = vmatpush1.msra.mxu0 0.0
    %11750 = vmatprep.subr.mxu0 0.0
    %11751 = vmatpush1.msra.mxu0 0.0
    %11752 = vmatprep.subr.mxu0 0.0
    %11753 = vmatpush1.msra.mxu0 0.0
    %11754 = vmatprep.subr.mxu0 0.0
    %11755 = vmatpush1.msra.mxu0 0.0
    %11756 = vmatprep.subr.mxu0 0.0
    %11757 = vmatpush1.msra.mxu0 0.0
    %11758 = vmatprep.subr.mxu0 0.0
    %11759 = vmatpush1.msra.mxu0 0.0
    %11760 = vmatprep.subr.mxu0 0.0
    %11761 = vmatpush1.msra.mxu0 0.0
    %11762 = vmatprep.subr.mxu0 0.0
    %11763 = vmatpush1.msra.mxu0 0.0
    %11764 = vmatprep.subr.mxu0 0.0
    %11765 = vmatpush1.msra.mxu0 0.0
    %11766 = vmatprep.subr.mxu0 0.0
    %11767 = vmatpush1.msra.mxu0 0.0
    %11768 = vmatprep.subr.mxu0 0.0
    %11769 = vmatpush1.msra.mxu0 0.0
    %11770 = vmatprep.subr.mxu0 0.0
    %11771 = vmatpush1.msra.mxu0 0.0
    %11772 = vmatprep.subr.mxu0 0.0
    %11773 = vmatpush1.msra.mxu0 0.0
    %11774 = vmatprep.subr.mxu0 0.0
    %11775 = vmatpush1.msra.mxu0 0.0
    %11776 = vmatprep.subr.mxu0 0.0
    %11777 = vmatpush1.msra.mxu0 0.0
    %11778 = vmatprep.subr.mxu0 0.0
    %11779 = vmatpush1.msra.mxu0 0.0
    %11780 = vmatprep.subr.mxu0 0.0
    %11781 = vmatpush1.msra.mxu0 0.0
    %11782 = vmatprep.subr.mxu0 0.0
    %11783 = vmatpush1.msra.mxu0 0.0
    %11784 = vmatprep.subr.mxu0 0.0
    %11785 = vmatpush1.msra.mxu0 0.0
    %11786 = vmatprep.subr.mxu0 0.0
    %11787 = vmatpush1.msra.mxu0 0.0
    %11788 = vmatprep.subr.mxu0 0.0
    %11789 = vmatpush1.msra.mxu0 0.0
    %11790 = vmatprep.subr.mxu0 0.0
    %11791 = vmatpush1.msra.mxu0 0.0
    %11792 = vmatprep.subr.mxu0 0.0
    %11793 = vmatpush1.msra.mxu0 0.0
    %11794 = vmatprep.subr.mxu0 0.0
    %11795 = vmatpush1.msra.mxu0 0.0
    %11796 = vmatprep.subr.mxu0 0.0
    %11797 = vmatpush1.msra.mxu0 0.0
    %11798 = vmatprep.subr.mxu0 0.0
    %11799 = vmatpush1.msra.mxu0 0.0
    %11800 = vmatprep.subr.mxu0 0.0
    %11801 = vmatpush1.msra.mxu0 0.0
    %11802 = vmatprep.subr.mxu0 0.0
    %11803 = vmatpush1.msra.mxu0 0.0
    %11804 = vmatprep.subr.mxu0 0.0
    %11805 = vmatpush1.msra.mxu0 0.0
    %11806 = vmatprep.subr.mxu0 0.0
    %11807 = vmatpush1.msra.mxu0 0.0
    %11808 = vmatprep.mubr.f32.mxu0 0.0
    %v11809 = vand.u32 %v11719, 4294901760
    %v11810 = vsub.f32 %v11719, %v11809
    %v11811 = vand.u32 %v11810, 4294901760
    %v11812 = vsub.f32 %v11810, %v11811
    %v11813 = vand.u32 %v11812, 4294901760
    %11814 = vmatmul.mubr.f32.gmra.mrb[0].mxu0 %v11813
    %v11815 = vpop.f32.mrb[0].mxu0
    %v11816 = vadd.f32 0.0, %v11815
    %v11817 = vpop.f32.mrb[0].mxu0
    %11818 = vmatprep.mubr.f32.mxu0 0.0
    %v11819 = vand.u32 %v11722, 4294901760
    %v11820 = vsub.f32 %v11722, %v11819
    %v11821 = vand.u32 %v11820, 4294901760
    %v11822 = vsub.f32 %v11820, %v11821
    %v11823 = vand.u32 %v11822, 4294901760
    %11824 = vmatmul.mubr.f32.gmra.mrb[0].mxu0 %v11823
    %v11825 = vpop.f32.mrb[0].mxu0
    %v11826 = vadd.f32 0.0, %v11825
    %v11827 = vpop.f32.mrb[0].mxu0
    %11828 = vmatprep.mubr.f32.mxu0 0.0
    %v11829 = vand.u32 %v11725, 4294901760
    %v11830 = vsub.f32 %v11725, %v11829
    %v11831 = vand.u32 %v11830, 4294901760
    %v11832 = vsub.f32 %v11830, %v11831
    %v11833 = vand.u32 %v11832, 4294901760
    %11834 = vmatmul.mubr.f32.gmra.mrb[0].mxu0 %v11833
    %v11835 = vpop.f32.mrb[0].mxu0
    %v11836 = vadd.f32 0.0, %v11835
    %v11837 = vpop.f32.mrb[0].mxu0
    %11838 = vmatprep.mubr.f32.mxu0 0.0
    %v11839 = vand.u32 %v11728, 4294901760
    %v11840 = vsub.f32 %v11728, %v11839
    %v11841 = vand.u32 %v11840, 4294901760
    %v11842 = vsub.f32 %v11840, %v11841
    %v11843 = vand.u32 %v11842, 4294901760
    %11844 = vmatmul.mubr.f32.gmra.mrb[0].mxu0 %v11843
    %v11845 = vpop.f32.mrb[0].mxu0
    %v11846 = vadd.f32 0.0, %v11845
    %v11847 = vpop.f32.mrb[0].mxu0
    %11848 = vmatprep.mubr.f32.mxu0 0.0
    %v11849 = vand.u32 %v11731, 4294901760
    %v11850 = vsub.f32 %v11731, %v11849
    %v11851 = vand.u32 %v11850, 4294901760
    %v11852 = vsub.f32 %v11850, %v11851
    %v11853 = vand.u32 %v11852, 4294901760
    %11854 = vmatmul.mubr.f32.gmra.mrb[0].mxu0 %v11853
    %v11855 = vpop.f32.mrb[0].mxu0
    %v11856 = vadd.f32 0.0, %v11855
    %v11857 = vpop.f32.mrb[0].mxu0
    %11858 = vmatprep.mubr.f32.mxu0 0.0
    %v11859 = vand.u32 %v11734, 4294901760
    %v11860 = vsub.f32 %v11734, %v11859
    %v11861 = vand.u32 %v11860, 4294901760
    %v11862 = vsub.f32 %v11860, %v11861
    %v11863 = vand.u32 %v11862, 4294901760
    %11864 = vmatmul.mubr.f32.gmra.mrb[0].mxu0 %v11863
    %v11865 = vpop.f32.mrb[0].mxu0
    %v11866 = vadd.f32 0.0, %v11865
    %v11867 = vpop.f32.mrb[0].mxu0
    %11868 = vmatprep.mubr.f32.mxu0 0.0
    %v11869 = vand.u32 %v11737, 4294901760
    %v11870 = vsub.f32 %v11737, %v11869
    %v11871 = vand.u32 %v11870, 4294901760
    %v11872 = vsub.f32 %v11870, %v11871
    %v11873 = vand.u32 %v11872, 4294901760
    %11874 = vmatmul.mubr.f32.gmra.mrb[0].mxu0 %v11873
    %v11875 = vpop.f32.mrb[0].mxu0
    %v11876 = vadd.f32 0.0, %v11875
    %v11877 = vpop.f32.mrb[0].mxu0
    %11878 = vmatprep.mubr.f32.mxu0 0.0
    %v11879 = vand.u32 %v11740, 4294901760
    %v11880 = vsub.f32 %v11740, %v11879
    %v11881 = vand.u32 %v11880, 4294901760
    %v11882 = vsub.f32 %v11880, %v11881
    %v11883 = vand.u32 %v11882, 4294901760
    %11884 = vmatmul.mubr.f32.gmra.mrb[0].mxu0 %v11883
    %v11885 = vpop.f32.mrb[0].mxu0
    %v11886 = vadd.f32 0.0, %v11885
    %v11887 = vpop.f32.mrb[0].mxu0
    %11888 = vdwg.mxu0
    %11889 = vmatprep.subr.mxu0 0.0
    %v11890 = vand.u32 %v37, 4294901760
    %v11891 = vsub.f32 %v37, %v11890
    %v11892 = vand.u32 %v11891, 4294901760
    %v11893 = vsub.f32 %v11891, %v11892
    %v11894 = vand.u32 %v11893, 4294901760
    %11895 = vmatpush1.msra.mxu0 %v11894
    %11896 = vmatprep.subr.mxu0 0.0
    %v11897 = vand.u32 %v38, 4294901760
    %v11898 = vsub.f32 %v38, %v11897
    %v11899 = vand.u32 %v11898, 4294901760
    %v11900 = vsub.f32 %v11898, %v11899
    %v11901 = vand.u32 %v11900, 4294901760
    %11902 = vmatpush1.msra.mxu0 %v11901
    %11903 = vmatprep.subr.mxu0 0.0
    %11904 = vmatpush1.msra.mxu0 0.0
    %11905 = vmatprep.subr.mxu0 0.0
    %11906 = vmatpush1.msra.mxu0 0.0
    %11907 = vmatprep.subr.mxu0 0.0
    %11908 = vmatpush1.msra.mxu0 0.0
    %11909 = vmatprep.subr.mxu0 0.0
    %11910 = vmatpush1.msra.mxu0 0.0
    %11911 = vmatprep.subr.mxu0 0.0
    %11912 = vmatpush1.msra.mxu0 0.0
    %11913 = vmatprep.subr.mxu0 0.0
    %11914 = vmatpush1.msra.mxu0 0.0
    %11915 = vmatprep.subr.mxu0 0.0
    %11916 = vmatpush1.msra.mxu0 0.0
    %11917 = vmatprep.subr.mxu0 0.0
    %11918 = vmatpush1.msra.mxu0 0.0
    %11919 = vmatprep.subr.mxu0 0.0
    %11920 = vmatpush1.msra.mxu0 0.0
    %11921 = vmatprep.subr.mxu0 0.0
    %11922 = vmatpush1.msra.mxu0 0.0
    %11923 = vmatprep.subr.mxu0 0.0
    %11924 = vmatpush1.msra.mxu0 0.0
    %11925 = vmatprep.subr.mxu0 0.0
    %11926 = vmatpush1.msra.mxu0 0.0
    %11927 = vmatprep.subr.mxu0 0.0
    %11928 = vmatpush1.msra.mxu0 0.0
    %11929 = vmatprep.subr.mxu0 0.0
    %11930 = vmatpush1.msra.mxu0 0.0
    %11931 = vmatprep.subr.mxu0 0.0
    %11932 = vmatpush1.msra.mxu0 0.0
    %11933 = vmatprep.subr.mxu0 0.0
    %11934 = vmatpush1.msra.mxu0 0.0
    %11935 = vmatprep.subr.mxu0 0.0
    %11936 = vmatpush1.msra.mxu0 0.0
    %11937 = vmatprep.subr.mxu0 0.0
    %11938 = vmatpush1.msra.mxu0 0.0
    %11939 = vmatprep.subr.mxu0 0.0
    %11940 = vmatpush1.msra.mxu0 0.0
    %11941 = vmatprep.subr.mxu0 0.0
    %11942 = vmatpush1.msra.mxu0 0.0
    %11943 = vmatprep.subr.mxu0 0.0
    %11944 = vmatpush1.msra.mxu0 0.0
    %11945 = vmatprep.subr.mxu0 0.0
    %11946 = vmatpush1.msra.mxu0 0.0
    %11947 = vmatprep.subr.mxu0 0.0
    %11948 = vmatpush1.msra.mxu0 0.0
    %11949 = vmatprep.subr.mxu0 0.0
    %11950 = vmatpush1.msra.mxu0 0.0
    %11951 = vmatprep.subr.mxu0 0.0
    %11952 = vmatpush1.msra.mxu0 0.0
    %11953 = vmatprep.subr.mxu0 0.0
    %11954 = vmatpush1.msra.mxu0 0.0
    %11955 = vmatprep.subr.mxu0 0.0
    %11956 = vmatpush1.msra.mxu0 0.0
    %11957 = vmatprep.subr.mxu0 0.0
    %11958 = vmatpush1.msra.mxu0 0.0
    %11959 = vmatprep.subr.mxu0 0.0
    %11960 = vmatpush1.msra.mxu0 0.0
    %11961 = vmatprep.subr.mxu0 0.0
    %11962 = vmatpush1.msra.mxu0 0.0
    %11963 = vmatprep.mubr.f32.mxu0 0.0
    %v11964 = vand.u32 %v11719, 4294901760
    %11965 = vmatmul.mubr.f32.gmra.mrb[0].mxu0 %v11964
    %v11966 = vpop.f32.mrb[0].mxu0
    %v11967 = vadd.f32 %v11816, %v11966
    %v11968 = vpop.f32.mrb[0].mxu0
    %11969 = vmatprep.mubr.f32.mxu0 0.0
    %v11970 = vand.u32 %v11722, 4294901760
    %11971 = vmatmul.mubr.f32.gmra.mrb[0].mxu0 %v11970
    %v11972 = vpop.f32.mrb[0].mxu0
    %v11973 = vadd.f32 %v11826, %v11972
    %v11974 = vpop.f32.mrb[0].mxu0
    %11975 = vmatprep.mubr.f32.mxu0 0.0
    %v11976 = vand.u32 %v11725, 4294901760
    %11977 = vmatmul.mubr.f32.gmra.mrb[0].mxu0 %v11976
    %v11978 = vpop.f32.mrb[0].mxu0
    %v11979 = vadd.f32 %v11836, %v11978
    %v11980 = vpop.f32.mrb[0].mxu0
    %11981 = vmatprep.mubr.f32.mxu0 0.0
    %v11982 = vand.u32 %v11728, 4294901760
    %11983 = vmatmul.mubr.f32.gmra.mrb[0].mxu0 %v11982
    %v11984 = vpop.f32.mrb[0].mxu0
    %v11985 = vadd.f32 %v11846, %v11984
    %v11986 = vpop.f32.mrb[0].mxu0
    %11987 = vmatprep.mubr.f32.mxu0 0.0
    %v11988 = vand.u32 %v11731, 4294901760
    %11989 = vmatmul.mubr.f32.gmra.mrb[0].mxu0 %v11988
    %v11990 = vpop.f32.mrb[0].mxu0
    %v11991 = vadd.f32 %v11856, %v11990
    %v11992 = vpop.f32.mrb[0].mxu0
    %11993 = vmatprep.mubr.f32.mxu0 0.0
    %v11994 = vand.u32 %v11734, 4294901760
    %11995 = vmatmul.mubr.f32.gmra.mrb[0].mxu0 %v11994
    %v11996 = vpop.f32.mrb[0].mxu0
    %v11997 = vadd.f32 %v11866, %v11996
    %v11998 = vpop.f32.mrb[0].mxu0
    %11999 = vmatprep.mubr.f32.mxu0 0.0
    %v12000 = vand.u32 %v11737, 4294901760
    %12001 = vmatmul.mubr.f32.gmra.mrb[0].mxu0 %v12000
    %v12002 = vpop.f32.mrb[0].mxu0
    %v12003 = vadd.f32 %v11876, %v12002
    %v12004 = vpop.f32.mrb[0].mxu0
    %12005 = vmatprep.mubr.f32.mxu0 0.0
    %v12006 = vand.u32 %v11740, 4294901760
    %12007 = vmatmul.mubr.f32.gmra.mrb[0].mxu0 %v12006
    %v12008 = vpop.f32.mrb[0].mxu0
    %v12009 = vadd.f32 %v11886, %v12008
    %v12010 = vpop.f32.mrb[0].mxu0
    %12011 = vdwg.mxu0
    %12012 = vmatprep.subr.mxu0 0.0
    %v12013 = vand.u32 %v37, 4294901760
    %v12014 = vsub.f32 %v37, %v12013
    %12015 = vmatpush1.msra.mxu0 %v12014
    %12016 = vmatprep.subr.mxu0 0.0
    %v12017 = vand.u32 %v38, 4294901760
    %v12018 = vsub.f32 %v38, %v12017
    %12019 = vmatpush1.msra.mxu0 %v12018
    %12020 = vmatprep.subr.mxu0 0.0
    %12021 = vmatpush1.msra.mxu0 0.0
    %12022 = vmatprep.subr.mxu0 0.0
    %12023 = vmatpush1.msra.mxu0 0.0
    %12024 = vmatprep.subr.mxu0 0.0
    %12025 = vmatpush1.msra.mxu0 0.0
    %12026 = vmatprep.subr.mxu0 0.0
    %12027 = vmatpush1.msra.mxu0 0.0
    %12028 = vmatprep.subr.mxu0 0.0
    %12029 = vmatpush1.msra.mxu0 0.0
    %12030 = vmatprep.subr.mxu0 0.0
    %12031 = vmatpush1.msra.mxu0 0.0
    %12032 = vmatprep.subr.mxu0 0.0
    %12033 = vmatpush1.msra.mxu0 0.0
    %12034 = vmatprep.subr.mxu0 0.0
    %12035 = vmatpush1.msra.mxu0 0.0
    %12036 = vmatprep.subr.mxu0 0.0
    %12037 = vmatpush1.msra.mxu0 0.0
    %12038 = vmatprep.subr.mxu0 0.0
    %12039 = vmatpush1.msra.mxu0 0.0
    %12040 = vmatprep.subr.mxu0 0.0
    %12041 = vmatpush1.msra.mxu0 0.0
    %12042 = vmatprep.subr.mxu0 0.0
    %12043 = vmatpush1.msra.mxu0 0.0
    %12044 = vmatprep.subr.mxu0 0.0
    %12045 = vmatpush1.msra.mxu0 0.0
    %12046 = vmatprep.subr.mxu0 0.0
    %12047 = vmatpush1.msra.mxu0 0.0
    %12048 = vmatprep.subr.mxu0 0.0
    %12049 = vmatpush1.msra.mxu0 0.0
    %12050 = vmatprep.subr.mxu0 0.0
    %12051 = vmatpush1.msra.mxu0 0.0
    %12052 = vmatprep.subr.mxu0 0.0
    %12053 = vmatpush1.msra.mxu0 0.0
    %12054 = vmatprep.subr.mxu0 0.0
    %12055 = vmatpush1.msra.mxu0 0.0
    %12056 = vmatprep.subr.mxu0 0.0
    %12057 = vmatpush1.msra.mxu0 0.0
    %12058 = vmatprep.subr.mxu0 0.0
    %12059 = vmatpush1.msra.mxu0 0.0
    %12060 = vmatprep.subr.mxu0 0.0
    %12061 = vmatpush1.msra.mxu0 0.0
    %12062 = vmatprep.subr.mxu0 0.0
    %12063 = vmatpush1.msra.mxu0 0.0
    %12064 = vmatprep.subr.mxu0 0.0
    %12065 = vmatpush1.msra.mxu0 0.0
    %12066 = vmatprep.subr.mxu0 0.0
    %12067 = vmatpush1.msra.mxu0 0.0
    %12068 = vmatprep.subr.mxu0 0.0
    %12069 = vmatpush1.msra.mxu0 0.0
    %12070 = vmatprep.subr.mxu0 0.0
    %12071 = vmatpush1.msra.mxu0 0.0
    %12072 = vmatprep.subr.mxu0 0.0
    %12073 = vmatpush1.msra.mxu0 0.0
    %12074 = vmatprep.subr.mxu0 0.0
    %12075 = vmatpush1.msra.mxu0 0.0
    %12076 = vmatprep.subr.mxu0 0.0
    %12077 = vmatpush1.msra.mxu0 0.0
    %12078 = vmatprep.subr.mxu0 0.0
    %12079 = vmatpush1.msra.mxu0 0.0
    %12080 = vmatprep.mubr.f32.mxu0 0.0
    %v12081 = vand.u32 %v11719, 4294901760
    %v12082 = vsub.f32 %v11719, %v12081
    %12083 = vmatmul.mubr.f32.gmra.mrb[0].mxu0 %v12082
    %v12084 = vpop.f32.mrb[0].mxu0
    %v12085 = vadd.f32 %v11967, %v12084
    %v12086 = vpop.f32.mrb[0].mxu0
    %12087 = vmatprep.mubr.f32.mxu0 0.0
    %v12088 = vand.u32 %v11722, 4294901760
    %v12089 = vsub.f32 %v11722, %v12088
    %12090 = vmatmul.mubr.f32.gmra.mrb[0].mxu0 %v12089
    %v12091 = vpop.f32.mrb[0].mxu0
    %v12092 = vadd.f32 %v11973, %v12091
    %v12093 = vpop.f32.mrb[0].mxu0
    %12094 = vmatprep.mubr.f32.mxu0 0.0
    %v12095 = vand.u32 %v11725, 4294901760
    %v12096 = vsub.f32 %v11725, %v12095
    %12097 = vmatmul.mubr.f32.gmra.mrb[0].mxu0 %v12096
    %v12098 = vpop.f32.mrb[0].mxu0
    %v12099 = vadd.f32 %v11979, %v12098
    %v12100 = vpop.f32.mrb[0].mxu0
    %12101 = vmatprep.mubr.f32.mxu0 0.0
    %v12102 = vand.u32 %v11728, 4294901760
    %v12103 = vsub.f32 %v11728, %v12102
    %12104 = vmatmul.mubr.f32.gmra.mrb[0].mxu0 %v12103
    %v12105 = vpop.f32.mrb[0].mxu0
    %v12106 = vadd.f32 %v11985, %v12105
    %v12107 = vpop.f32.mrb[0].mxu0
    %12108 = vmatprep.mubr.f32.mxu0 0.0
    %v12109 = vand.u32 %v11731, 4294901760
    %v12110 = vsub.f32 %v11731, %v12109
    %12111 = vmatmul.mubr.f32.gmra.mrb[0].mxu0 %v12110
    %v12112 = vpop.f32.mrb[0].mxu0
    %v12113 = vadd.f32 %v11991, %v12112
    %v12114 = vpop.f32.mrb[0].mxu0
    %12115 = vmatprep.mubr.f32.mxu0 0.0
    %v12116 = vand.u32 %v11734, 4294901760
    %v12117 = vsub.f32 %v11734, %v12116
    %12118 = vmatmul.mubr.f32.gmra.mrb[0].mxu0 %v12117
    %v12119 = vpop.f32.mrb[0].mxu0
    %v12120 = vadd.f32 %v11997, %v12119
    %v12121 = vpop.f32.mrb[0].mxu0
    %12122 = vmatprep.mubr.f32.mxu0 0.0
    %v12123 = vand.u32 %v11737, 4294901760
    %v12124 = vsub.f32 %v11737, %v12123
    %12125 = vmatmul.mubr.f32.gmra.mrb[0].mxu0 %v12124
    %v12126 = vpop.f32.mrb[0].mxu0
    %v12127 = vadd.f32 %v12003, %v12126
    %v12128 = vpop.f32.mrb[0].mxu0
    %12129 = vmatprep.mubr.f32.mxu0 0.0
    %v12130 = vand.u32 %v11740, 4294901760
    %v12131 = vsub.f32 %v11740, %v12130
    %12132 = vmatmul.mubr.f32.gmra.mrb[0].mxu0 %v12131
    %v12133 = vpop.f32.mrb[0].mxu0
    %v12134 = vadd.f32 %v12009, %v12133
    %v12135 = vpop.f32.mrb[0].mxu0
    %12136 = vdwg.mxu0
    %12137 = vmatprep.subr.mxu0 0.0
    %v12138 = vand.u32 %v37, 4294901760
    %12139 = vmatpush1.msra.mxu0 %v12138
    %12140 = vmatprep.subr.mxu0 0.0
    %v12141 = vand.u32 %v38, 4294901760
    %12142 = vmatpush1.msra.mxu0 %v12141
    %12143 = vmatprep.subr.mxu0 0.0
    %12144 = vmatpush1.msra.mxu0 0.0
    %12145 = vmatprep.subr.mxu0 0.0
    %12146 = vmatpush1.msra.mxu0 0.0
    %12147 = vmatprep.subr.mxu0 0.0
    %12148 = vmatpush1.msra.mxu0 0.0
    %12149 = vmatprep.subr.mxu0 0.0
    %12150 = vmatpush1.msra.mxu0 0.0
    %12151 = vmatprep.subr.mxu0 0.0
    %12152 = vmatpush1.msra.mxu0 0.0
    %12153 = vmatprep.subr.mxu0 0.0
    %12154 = vmatpush1.msra.mxu0 0.0
    %12155 = vmatprep.subr.mxu0 0.0
    %12156 = vmatpush1.msra.mxu0 0.0
    %12157 = vmatprep.subr.mxu0 0.0
    %12158 = vmatpush1.msra.mxu0 0.0
    %12159 = vmatprep.subr.mxu0 0.0
    %12160 = vmatpush1.msra.mxu0 0.0
    %12161 = vmatprep.subr.mxu0 0.0
    %12162 = vmatpush1.msra.mxu0 0.0
    %12163 = vmatprep.subr.mxu0 0.0
    %12164 = vmatpush1.msra.mxu0 0.0
    %12165 = vmatprep.subr.mxu0 0.0
    %12166 = vmatpush1.msra.mxu0 0.0
    %12167 = vmatprep.subr.mxu0 0.0
    %12168 = vmatpush1.msra.mxu0 0.0
    %12169 = vmatprep.subr.mxu0 0.0
    %12170 = vmatpush1.msra.mxu0 0.0
    %12171 = vmatprep.subr.mxu0 0.0
    %12172 = vmatpush1.msra.mxu0 0.0
    %12173 = vmatprep.subr.mxu0 0.0
    %12174 = vmatpush1.msra.mxu0 0.0
    %12175 = vmatprep.subr.mxu0 0.0
    %12176 = vmatpush1.msra.mxu0 0.0
    %12177 = vmatprep.subr.mxu0 0.0
    %12178 = vmatpush1.msra.mxu0 0.0
    %12179 = vmatprep.subr.mxu0 0.0
    %12180 = vmatpush1.msra.mxu0 0.0
    %12181 = vmatprep.subr.mxu0 0.0
    %12182 = vmatpush1.msra.mxu0 0.0
    %12183 = vmatprep.subr.mxu0 0.0
    %12184 = vmatpush1.msra.mxu0 0.0
    %12185 = vmatprep.subr.mxu0 0.0
    %12186 = vmatpush1.msra.mxu0 0.0
    %12187 = vmatprep.subr.mxu0 0.0
    %12188 = vmatpush1.msra.mxu0 0.0
    %12189 = vmatprep.subr.mxu0 0.0
    %12190 = vmatpush1.msra.mxu0 0.0
    %12191 = vmatprep.subr.mxu0 0.0
    %12192 = vmatpush1.msra.mxu0 0.0
    %12193 = vmatprep.subr.mxu0 0.0
    %12194 = vmatpush1.msra.mxu0 0.0
    %12195 = vmatprep.subr.mxu0 0.0
    %12196 = vmatpush1.msra.mxu0 0.0
    %12197 = vmatprep.subr.mxu0 0.0
    %12198 = vmatpush1.msra.mxu0 0.0
    %12199 = vmatprep.subr.mxu0 0.0
    %12200 = vmatpush1.msra.mxu0 0.0
    %12201 = vmatprep.subr.mxu0 0.0
    %12202 = vmatpush1.msra.mxu0 0.0
    %12203 = vmatprep.mubr.f32.mxu0 0.0
    %v12204 = vand.u32 %v11719, 4294901760
    %v12205 = vsub.f32 %v11719, %v12204
    %v12206 = vand.u32 %v12205, 4294901760
    %12207 = vmatmul.mubr.f32.gmra.mrb[0].mxu0 %v12206
    %v12208 = vpop.f32.mrb[0].mxu0
    %v12209 = vadd.f32 %v12085, %v12208
    %v12210 = vpop.f32.mrb[0].mxu0
    %12211 = vmatprep.mubr.f32.mxu0 0.0
    %v12212 = vand.u32 %v11722, 4294901760
    %v12213 = vsub.f32 %v11722, %v12212
    %v12214 = vand.u32 %v12213, 4294901760
    %12215 = vmatmul.mubr.f32.gmra.mrb[0].mxu0 %v12214
    %v12216 = vpop.f32.mrb[0].mxu0
    %v12217 = vadd.f32 %v12092, %v12216
    %v12218 = vpop.f32.mrb[0].mxu0
    %12219 = vmatprep.mubr.f32.mxu0 0.0
    %v12220 = vand.u32 %v11725, 4294901760
    %v12221 = vsub.f32 %v11725, %v12220
    %v12222 = vand.u32 %v12221, 4294901760
    %12223 = vmatmul.mubr.f32.gmra.mrb[0].mxu0 %v12222
    %v12224 = vpop.f32.mrb[0].mxu0
    %v12225 = vadd.f32 %v12099, %v12224
    %v12226 = vpop.f32.mrb[0].mxu0
    %12227 = vmatprep.mubr.f32.mxu0 0.0
    %v12228 = vand.u32 %v11728, 4294901760
    %v12229 = vsub.f32 %v11728, %v12228
    %v12230 = vand.u32 %v12229, 4294901760
    %12231 = vmatmul.mubr.f32.gmra.mrb[0].mxu0 %v12230
    %v12232 = vpop.f32.mrb[0].mxu0
    %v12233 = vadd.f32 %v12106, %v12232
    %v12234 = vpop.f32.mrb[0].mxu0
    %12235 = vmatprep.mubr.f32.mxu0 0.0
    %v12236 = vand.u32 %v11731, 4294901760
    %v12237 = vsub.f32 %v11731, %v12236
    %v12238 = vand.u32 %v12237, 4294901760
    %12239 = vmatmul.mubr.f32.gmra.mrb[0].mxu0 %v12238
    %v12240 = vpop.f32.mrb[0].mxu0
    %v12241 = vadd.f32 %v12113, %v12240
    %v12242 = vpop.f32.mrb[0].mxu0
    %12243 = vmatprep.mubr.f32.mxu0 0.0
    %v12244 = vand.u32 %v11734, 4294901760
    %v12245 = vsub.f32 %v11734, %v12244
    %v12246 = vand.u32 %v12245, 4294901760
    %12247 = vmatmul.mubr.f32.gmra.mrb[0].mxu0 %v12246
    %v12248 = vpop.f32.mrb[0].mxu0
    %v12249 = vadd.f32 %v12120, %v12248
    %v12250 = vpop.f32.mrb[0].mxu0
    %12251 = vmatprep.mubr.f32.mxu0 0.0
    %v12252 = vand.u32 %v11737, 4294901760
    %v12253 = vsub.f32 %v11737, %v12252
    %v12254 = vand.u32 %v12253, 4294901760
    %12255 = vmatmul.mubr.f32.gmra.mrb[0].mxu0 %v12254
    %v12256 = vpop.f32.mrb[0].mxu0
    %v12257 = vadd.f32 %v12127, %v12256
    %v12258 = vpop.f32.mrb[0].mxu0
    %12259 = vmatprep.mubr.f32.mxu0 0.0
    %v12260 = vand.u32 %v11740, 4294901760
    %v12261 = vsub.f32 %v11740, %v12260
    %v12262 = vand.u32 %v12261, 4294901760
    %12263 = vmatmul.mubr.f32.gmra.mrb[0].mxu0 %v12262
    %v12264 = vpop.f32.mrb[0].mxu0
    %v12265 = vadd.f32 %v12134, %v12264
    %v12266 = vpop.f32.mrb[0].mxu0
    %12267 = vdwg.mxu0
    %12268 = vmatprep.subr.mxu0 0.0
    %v12269 = vand.u32 %v37, 4294901760
    %v12270 = vsub.f32 %v37, %v12269
    %v12271 = vand.u32 %v12270, 4294901760
    %12272 = vmatpush1.msra.mxu0 %v12271
    %12273 = vmatprep.subr.mxu0 0.0
    %v12274 = vand.u32 %v38, 4294901760
    %v12275 = vsub.f32 %v38, %v12274
    %v12276 = vand.u32 %v12275, 4294901760
    %12277 = vmatpush1.msra.mxu0 %v12276
    %12278 = vmatprep.subr.mxu0 0.0
    %12279 = vmatpush1.msra.mxu0 0.0
    %12280 = vmatprep.subr.mxu0 0.0
    %12281 = vmatpush1.msra.mxu0 0.0
    %12282 = vmatprep.subr.mxu0 0.0
    %12283 = vmatpush1.msra.mxu0 0.0
    %12284 = vmatprep.subr.mxu0 0.0
    %12285 = vmatpush1.msra.mxu0 0.0
    %12286 = vmatprep.subr.mxu0 0.0
    %12287 = vmatpush1.msra.mxu0 0.0
    %12288 = vmatprep.subr.mxu0 0.0
    %12289 = vmatpush1.msra.mxu0 0.0
    %12290 = vmatprep.subr.mxu0 0.0
    %12291 = vmatpush1.msra.mxu0 0.0
    %12292 = vmatprep.subr.mxu0 0.0
    %12293 = vmatpush1.msra.mxu0 0.0
    %12294 = vmatprep.subr.mxu0 0.0
    %12295 = vmatpush1.msra.mxu0 0.0
    %12296 = vmatprep.subr.mxu0 0.0
    %12297 = vmatpush1.msra.mxu0 0.0
    %12298 = vmatprep.subr.mxu0 0.0
    %12299 = vmatpush1.msra.mxu0 0.0
    %12300 = vmatprep.subr.mxu0 0.0
    %12301 = vmatpush1.msra.mxu0 0.0
    %12302 = vmatprep.subr.mxu0 0.0
    %12303 = vmatpush1.msra.mxu0 0.0
    %12304 = vmatprep.subr.mxu0 0.0
    %12305 = vmatpush1.msra.mxu0 0.0
    %12306 = vmatprep.subr.mxu0 0.0
    %12307 = vmatpush1.msra.mxu0 0.0
    %12308 = vmatprep.subr.mxu0 0.0
    %12309 = vmatpush1.msra.mxu0 0.0
    %12310 = vmatprep.subr.mxu0 0.0
    %12311 = vmatpush1.msra.mxu0 0.0
    %12312 = vmatprep.subr.mxu0 0.0
    %12313 = vmatpush1.msra.mxu0 0.0
    %12314 = vmatprep.subr.mxu0 0.0
    %12315 = vmatpush1.msra.mxu0 0.0
    %12316 = vmatprep.subr.mxu0 0.0
    %12317 = vmatpush1.msra.mxu0 0.0
    %12318 = vmatprep.subr.mxu0 0.0
    %12319 = vmatpush1.msra.mxu0 0.0
    %12320 = vmatprep.subr.mxu0 0.0
    %12321 = vmatpush1.msra.mxu0 0.0
    %12322 = vmatprep.subr.mxu0 0.0
    %12323 = vmatpush1.msra.mxu0 0.0
    %12324 = vmatprep.subr.mxu0 0.0
    %12325 = vmatpush1.msra.mxu0 0.0
    %12326 = vmatprep.subr.mxu0 0.0
    %12327 = vmatpush1.msra.mxu0 0.0
    %12328 = vmatprep.subr.mxu0 0.0
    %12329 = vmatpush1.msra.mxu0 0.0
    %12330 = vmatprep.subr.mxu0 0.0
    %12331 = vmatpush1.msra.mxu0 0.0
    %12332 = vmatprep.subr.mxu0 0.0
    %12333 = vmatpush1.msra.mxu0 0.0
    %12334 = vmatprep.subr.mxu0 0.0
    %12335 = vmatpush1.msra.mxu0 0.0
    %12336 = vmatprep.subr.mxu0 0.0
    %12337 = vmatpush1.msra.mxu0 0.0
    %12338 = vmatprep.mubr.f32.mxu0 0.0
    %v12339 = vand.u32 %v11719, 4294901760
    %12340 = vmatmul.mubr.f32.gmra.mrb[0].mxu0 %v12339
    %v12341 = vpop.f32.mrb[0].mxu0
    %v12342 = vadd.f32 %v12209, %v12341
    %v12343 = vpop.f32.mrb[0].mxu0
    %12344 = vmatprep.mubr.f32.mxu0 0.0
    %v12345 = vand.u32 %v11722, 4294901760
    %12346 = vmatmul.mubr.f32.gmra.mrb[0].mxu0 %v12345
    %v12347 = vpop.f32.mrb[0].mxu0
    %v12348 = vadd.f32 %v12217, %v12347
    %v12349 = vpop.f32.mrb[0].mxu0
    %12350 = vmatprep.mubr.f32.mxu0 0.0
    %v12351 = vand.u32 %v11725, 4294901760
    %12352 = vmatmul.mubr.f32.gmra.mrb[0].mxu0 %v12351
    %v12353 = vpop.f32.mrb[0].mxu0
    %v12354 = vadd.f32 %v12225, %v12353
    %v12355 = vpop.f32.mrb[0].mxu0
    %12356 = vmatprep.mubr.f32.mxu0 0.0
    %v12357 = vand.u32 %v11728, 4294901760
    %12358 = vmatmul.mubr.f32.gmra.mrb[0].mxu0 %v12357
    %v12359 = vpop.f32.mrb[0].mxu0
    %v12360 = vadd.f32 %v12233, %v12359
    %v12361 = vpop.f32.mrb[0].mxu0
    %12362 = vmatprep.mubr.f32.mxu0 0.0
    %v12363 = vand.u32 %v11731, 4294901760
    %12364 = vmatmul.mubr.f32.gmra.mrb[0].mxu0 %v12363
    %v12365 = vpop.f32.mrb[0].mxu0
    %v12366 = vadd.f32 %v12241, %v12365
    %v12367 = vpop.f32.mrb[0].mxu0
    %12368 = vmatprep.mubr.f32.mxu0 0.0
    %v12369 = vand.u32 %v11734, 4294901760
    %12370 = vmatmul.mubr.f32.gmra.mrb[0].mxu0 %v12369
    %v12371 = vpop.f32.mrb[0].mxu0
    %v12372 = vadd.f32 %v12249, %v12371
    %v12373 = vpop.f32.mrb[0].mxu0
    %12374 = vmatprep.mubr.f32.mxu0 0.0
    %v12375 = vand.u32 %v11737, 4294901760
    %12376 = vmatmul.mubr.f32.gmra.mrb[0].mxu0 %v12375
    %v12377 = vpop.f32.mrb[0].mxu0
    %v12378 = vadd.f32 %v12257, %v12377
    %v12379 = vpop.f32.mrb[0].mxu0
    %12380 = vmatprep.mubr.f32.mxu0 0.0
    %v12381 = vand.u32 %v11740, 4294901760
    %12382 = vmatmul.mubr.f32.gmra.mrb[0].mxu0 %v12381
    %v12383 = vpop.f32.mrb[0].mxu0
    %v12384 = vadd.f32 %v12265, %v12383
    %v12385 = vpop.f32.mrb[0].mxu0
    %12386 = vdwg.mxu0
    %12387 = vmatprep.subr.mxu0 0.0
    %v12388 = vand.u32 %v37, 4294901760
    %12389 = vmatpush1.msra.mxu0 %v12388
    %12390 = vmatprep.subr.mxu0 0.0
    %v12391 = vand.u32 %v38, 4294901760
    %12392 = vmatpush1.msra.mxu0 %v12391
    %12393 = vmatprep.subr.mxu0 0.0
    %12394 = vmatpush1.msra.mxu0 0.0
    %12395 = vmatprep.subr.mxu0 0.0
    %12396 = vmatpush1.msra.mxu0 0.0
    %12397 = vmatprep.subr.mxu0 0.0
    %12398 = vmatpush1.msra.mxu0 0.0
    %12399 = vmatprep.subr.mxu0 0.0
    %12400 = vmatpush1.msra.mxu0 0.0
    %12401 = vmatprep.subr.mxu0 0.0
    %12402 = vmatpush1.msra.mxu0 0.0
    %12403 = vmatprep.subr.mxu0 0.0
    %12404 = vmatpush1.msra.mxu0 0.0
    %12405 = vmatprep.subr.mxu0 0.0
    %12406 = vmatpush1.msra.mxu0 0.0
    %12407 = vmatprep.subr.mxu0 0.0
    %12408 = vmatpush1.msra.mxu0 0.0
    %12409 = vmatprep.subr.mxu0 0.0
    %12410 = vmatpush1.msra.mxu0 0.0
    %12411 = vmatprep.subr.mxu0 0.0
    %12412 = vmatpush1.msra.mxu0 0.0
    %12413 = vmatprep.subr.mxu0 0.0
    %12414 = vmatpush1.msra.mxu0 0.0
    %12415 = vmatprep.subr.mxu0 0.0
    %12416 = vmatpush1.msra.mxu0 0.0
    %12417 = vmatprep.subr.mxu0 0.0
    %12418 = vmatpush1.msra.mxu0 0.0
    %12419 = vmatprep.subr.mxu0 0.0
    %12420 = vmatpush1.msra.mxu0 0.0
    %12421 = vmatprep.subr.mxu0 0.0
    %12422 = vmatpush1.msra.mxu0 0.0
    %12423 = vmatprep.subr.mxu0 0.0
    %12424 = vmatpush1.msra.mxu0 0.0
    %12425 = vmatprep.subr.mxu0 0.0
    %12426 = vmatpush1.msra.mxu0 0.0
    %12427 = vmatprep.subr.mxu0 0.0
    %12428 = vmatpush1.msra.mxu0 0.0
    %12429 = vmatprep.subr.mxu0 0.0
    %12430 = vmatpush1.msra.mxu0 0.0
    %12431 = vmatprep.subr.mxu0 0.0
    %12432 = vmatpush1.msra.mxu0 0.0
    %12433 = vmatprep.subr.mxu0 0.0
    %12434 = vmatpush1.msra.mxu0 0.0
    %12435 = vmatprep.subr.mxu0 0.0
    %12436 = vmatpush1.msra.mxu0 0.0
    %12437 = vmatprep.subr.mxu0 0.0
    %12438 = vmatpush1.msra.mxu0 0.0
    %12439 = vmatprep.subr.mxu0 0.0
    %12440 = vmatpush1.msra.mxu0 0.0
    %12441 = vmatprep.subr.mxu0 0.0
    %12442 = vmatpush1.msra.mxu0 0.0
    %12443 = vmatprep.subr.mxu0 0.0
    %12444 = vmatpush1.msra.mxu0 0.0
    %12445 = vmatprep.subr.mxu0 0.0
    %12446 = vmatpush1.msra.mxu0 0.0
    %12447 = vmatprep.subr.mxu0 0.0
    %12448 = vmatpush1.msra.mxu0 0.0
    %12449 = vmatprep.subr.mxu0 0.0
    %12450 = vmatpush1.msra.mxu0 0.0
    %12451 = vmatprep.subr.mxu0 0.0
    %12452 = vmatpush1.msra.mxu0 0.0
    %12453 = vmatprep.mubr.f32.mxu0 0.0
    %v12454 = vand.u32 %v11719, 4294901760
    %12455 = vmatmul.mubr.f32.gmra.mrb[0].mxu0 %v12454
    %v12456 = vpop.f32.mrb[0].mxu0
    %v12457 = vadd.f32 %v12342, %v12456
    %v12458 = vpop.f32.mrb[0].mxu0
    %12459 = vmatprep.mubr.f32.mxu0 0.0
    %v12460 = vand.u32 %v11722, 4294901760
    %12461 = vmatmul.mubr.f32.gmra.mrb[0].mxu0 %v12460
    %v12462 = vpop.f32.mrb[0].mxu0
    %v12463 = vadd.f32 %v12348, %v12462
    %v12464 = vpop.f32.mrb[0].mxu0
    %12465 = vmatprep.mubr.f32.mxu0 0.0
    %v12466 = vand.u32 %v11725, 4294901760
    %12467 = vmatmul.mubr.f32.gmra.mrb[0].mxu0 %v12466
    %v12468 = vpop.f32.mrb[0].mxu0
    %v12469 = vadd.f32 %v12354, %v12468
    %v12470 = vpop.f32.mrb[0].mxu0
    %12471 = vmatprep.mubr.f32.mxu0 0.0
    %v12472 = vand.u32 %v11728, 4294901760
    %12473 = vmatmul.mubr.f32.gmra.mrb[0].mxu0 %v12472
    %v12474 = vpop.f32.mrb[0].mxu0
    %v12475 = vadd.f32 %v12360, %v12474
    %v12476 = vpop.f32.mrb[0].mxu0
    %12477 = vmatprep.mubr.f32.mxu0 0.0
    %v12478 = vand.u32 %v11731, 4294901760
    %12479 = vmatmul.mubr.f32.gmra.mrb[0].mxu0 %v12478
    %v12480 = vpop.f32.mrb[0].mxu0
    %v12481 = vadd.f32 %v12366, %v12480
    %v12482 = vpop.f32.mrb[0].mxu0
    %12483 = vmatprep.mubr.f32.mxu0 0.0
    %v12484 = vand.u32 %v11734, 4294901760
    %12485 = vmatmul.mubr.f32.gmra.mrb[0].mxu0 %v12484
    %v12486 = vpop.f32.mrb[0].mxu0
    %v12487 = vadd.f32 %v12372, %v12486
    %v12488 = vpop.f32.mrb[0].mxu0
    %12489 = vmatprep.mubr.f32.mxu0 0.0
    %v12490 = vand.u32 %v11737, 4294901760
    %12491 = vmatmul.mubr.f32.gmra.mrb[0].mxu0 %v12490
    %v12492 = vpop.f32.mrb[0].mxu0
    %v12493 = vadd.f32 %v12378, %v12492
    %v12494 = vpop.f32.mrb[0].mxu0
    %12495 = vmatprep.mubr.f32.mxu0 0.0
    %v12496 = vand.u32 %v11740, 4294901760
    %12497 = vmatmul.mubr.f32.gmra.mrb[0].mxu0 %v12496
    %v12498 = vpop.f32.mrb[0].mxu0
    %v12499 = vadd.f32 %v12384, %v12498
    %v12500 = vpop.f32.mrb[0].mxu0
    %12501 = vdwg.mxu0
    %s12502 = scalar_lea.vmem [#allocation5], 448
    %12503 = vst.msk [vmem:[%s12502] sm:$0xff] %vm1610, %v12457
    %12504 = vst.msk [vmem:[%s12502 + $0x8] sm:$0xff] %vm1610, %v12463
    %12505 = vst.msk [vmem:[%s12502 + $0x10] sm:$0xff] %vm1610, %v12469
    %12506 = vst.msk [vmem:[%s12502 + $0x18] sm:$0xff] %vm1610, %v12475
    %12507 = vst.msk [vmem:[%s12502 + $0x20] sm:$0xff] %vm1610, %v12481
    %12508 = vst.msk [vmem:[%s12502 + $0x28] sm:$0xff] %vm1610, %v12487
    %12509 = vst.msk [vmem:[%s12502 + $0x30] sm:$0xff] %vm1610, %v12493
    %12510 = vst.msk [vmem:[%s12502 + $0x38] sm:$0xff] %vm1610, %v12499
    // Predicated region
    $region18: #{tpu_custom_call.1} parent=1 // pred_check
      _
    $region19: #{tpu_custom_call.1} parent=1 // pred_check_branch
      %12512 = sbr.rel (0) target = $region21
    $region20: #{tpu_custom_call.1} parent=1 // pred_region
      %s12514 = ssub.s32 8192, 8192
      %12515 = vsyncadd [#allocation4], %s12514
      %s12516 = sshll.u32 [#allocation5], 4
      %s12517 = int_to_ptr.vmem [resolvable:$true] %s12516
      %12522 = dma.vmem_to_hbm [thread:$0]  %s12517, 8192, %s3, [#allocation4], 128, 128, 8
    $region21: #{tpu_custom_call.1} parent=1 // pred_fallthru
      _
    // Predicated region
    $region22: #{tpu_custom_call.1} parent=1 // pred_check
      _
    $region23: #{tpu_custom_call.1} parent=1 // pred_check_branch
      %12524 = sbr.rel (0) target = $region25
    $region24: #{tpu_custom_call.1} parent=1 // pred_region
      %12525 = dma.done [#allocation4], 8192
    $region25: #{tpu_custom_call.1} parent=1 // pred_fallthru
      _
    %12526 = vsyncpa [#allocation3], 1
    %12527 = vsyncpa [#allocation4], 1

</llo_original>
